<compile_context>
chip_gen: v7x
topology: tpu7x:2x2x1
jax: 0.10.0
libtpu: 0.0.40
codegen_flags: <defaults>
</compile_context>

<pallas_src>
import jax
import jax.numpy as jnp
from jax.experimental import pallas as pl
from jax.experimental.pallas import tpu as pltpu

_EPS = 1e-5


def _fill_scratch(s_ref, classes_flat):
    """Write the 4 parity classes + zero halo into the factored scratch.

    s_ref layout: (N, h+1, dr, half, w+1, C) bf16, where a padded full-res
    coordinate maps as   row p = 2*r + dr,   col q = 2*xq + half.
    classes_flat: 4 values of shape (N*h*w, C) in order (dy,dx) =
    (0,0),(0,1),(1,0),(1,1); class (dy,dx) holds the unpooled pixel
    (2*yl+dy, 2*xl+dx), which lives at padded (2*yl+dy+1, 2*xl+dx+1).
    Only the 1-wide halo border is zeroed; every interior element is written
    exactly once (no full-slab zero followed by a rewrite), and every write is
    a plain static slice.
    """
    N, hp1, _, _, wp1, C = s_ref.shape
    h, w = hp1 - 1, wp1 - 1
    dt = s_ref.dtype

    zrow = jnp.zeros((N, 1, 1, 2, wp1, C), dt)
    s_ref[:, 0:1, 0:1, :, :, :] = zrow                 # padded row 0
    s_ref[:, h:h + 1, 1:2, :, :, :] = zrow             # padded row H+1
    zcol = jnp.zeros((N, hp1, 2, 1, 1, C), dt)
    s_ref[:, :, :, 0:1, 0:1, :] = zcol                 # padded col 0
    s_ref[:, :, :, 1:2, w:w + 1, :] = zcol             # padded col W+1

    def shaped(v):
        return v.reshape(N, h, 1, 1, w, C).astype(dt)  # free major-dim reshape

    v00, v01, v10, v11 = classes_flat
    s_ref[:, 0:h, 1:2, 1:2, 0:w, :] = shaped(v00)          # (2yl+1, 2xl+1)
    s_ref[:, 0:h, 1:2, 0:1, 1:w + 1, :] = shaped(v01)      # (2yl+1, 2xl+2)
    s_ref[:, 1:h + 1, 0:1, 1:2, 0:w, :] = shaped(v10)      # (2yl+2, 2xl+1)
    s_ref[:, 1:h + 1, 0:1, 0:1, 1:w + 1, :] = shaped(v11)  # (2yl+2, 2xl+2)


def _conv3x3_classes(s_ref, w_ref):
    """3x3 'same' conv read out of the factored scratch, per output parity class.

    For output class (dy,dx) the tap (ky,kx) needs padded pixel
    (2*yl + dy + ky, 2*xl + dx + kx), which is always a plain static slice of
    the factored scratch.  The three kx taps are fused along the contraction
    axis (lane concat), so each class is 3 MXU dots with K = 3*Cin (bf16
    inputs, f32 accumulation) instead of 9 tiny-K dots.

    Returns 4 pre-BN activations of shape (N*h*w, Cout) f32, class order
    (0,0),(0,1),(1,0),(1,1).
    """
    N, hp1, _, _, wp1, C = s_ref.shape
    h, w = hp1 - 1, wp1 - 1
    M = N * h * w
    outs = []
    for dy in (0, 1):
        for dx in (0, 1):
            acc = None
            for ky in range(3):
                a = dy + ky                     # padded row = 2*yl + a
                taps = []
                for kx in range(3):
                    b = dx + kx                 # padded col = 2*xl + b
                    t = s_ref[:, a // 2:h + a // 2, a % 2:a % 2 + 1,
                              b % 2:b % 2 + 1, b // 2:w + b // 2, :]
                    taps.append(t.reshape(M, C))
                lhs = jnp.concatenate(taps, axis=-1)       # (M, 3*C) bf16
                part = jax.lax.dot_general(
                    lhs, w_ref[ky], (((1,), (0,)), ((), ())),
                    preferred_element_type=jnp.float32)
                acc = part if acc is None else acc + part
            outs.append(acc)
    return outs


def _bn_relu(classes, gamma, beta):
    """Training-mode BatchNorm2d over all 4 classes (= all N*H*W pixels) + ReLU.

    Centered two-pass statistics in f32 (avoids E[x^2]-E[x]^2 cancellation),
    then one fused per-channel scale/shift + ReLU pass.  Biased variance, as in
    torch training-mode normalization.
    """
    m_total = 4 * classes[0].shape[0]
    inv_m = 1.0 / m_total
    mean = sum(jnp.sum(c, axis=0, keepdims=True) for c in classes) * inv_m
    var = sum(jnp.sum((c - mean) * (c - mean), axis=0, keepdims=True)
              for c in classes) * inv_m
    scale = gamma * jax.lax.rsqrt(var + _EPS)
    shift = beta - mean * scale
    return [jnp.maximum(c * scale + shift, 0.0) for c in classes]


def _segnet_up2_kernel(x_ref, off_ref, w1_ref, g1_ref, be1_ref,
                       w2_ref, g2_ref, be2_ref, o_ref, s1_ref, s2_ref):
    N, h, w, Cin = x_ref.shape
    Cmid = w1_ref.shape[-1]
    Cout = w2_ref.shape[-1]
    M = N * h * w

    # ---- MaxUnpool2d(2,2): parity-class select directly on low-res data ------
    # Class (dy,dx) keeps the low-res value iff its 2-bit in-window offset
    # equals dy*2+dx; no full-resolution replication is ever materialized.
    # TODO(synk): general MaxUnpool2d allows indices outside the 2x2 window;
    # that arbitrary in-kernel scatter is not expressed here (it is never
    # produced by the matching MaxPool2d(2,2)).
    x = x_ref[...].reshape(M, Cin)                      # bf16
    off = off_ref[...].reshape(M, Cin).astype(jnp.int32)
    up = [jnp.where(off == code, x, jnp.zeros_like(x)) for code in range(4)]

    # ---- conv1 (3x3, pad 1) + BN1 (train stats) + ReLU ------------------------
    # Conv bias is dropped: a per-channel constant cancels exactly under
    # training-mode BatchNorm.
    _fill_scratch(s1_ref, up)
    a1 = _conv3x3_classes(s1_ref, w1_ref)
    o1 = _bn_relu(a1, g1_ref[...], be1_ref[...])

    # ---- conv2 (3x3, pad 1) + BN2 (train stats) + ReLU ------------------------
    _fill_scratch(s2_ref, o1)
    a2 = _conv3x3_classes(s2_ref, w2_ref)
    o2 = _bn_relu(a2, g2_ref[...], be2_ref[...])

    # ---- parity-major bf16 output store (wrapper reassembles NCHW) ------------
    for k, (dy, dx) in enumerate(((0, 0), (0, 1), (1, 0), (1, 1))):
        o_ref[dy:dy + 1, dx:dx + 1, :, :, :, :] = (
            o2[k].reshape(1, 1, N, h, w, Cout).astype(o_ref.dtype))


def segnet_up2(inputs, indices, output_hw,
               w1, b1, g1, be1, w2, b2, g2, be2):
    """Forward pass of segnetUp2.

    inputs/indices: (N, C_in, h, w) NCHW, as in the PyTorch module.
    output_hw:      (H, W) spatial size after MaxUnpool2d(2,2) (= 2h, 2w).
    w*: Conv2d weights (C_out, C_in, 3, 3) torch layout; b*: conv biases
    (accepted for API parity but unused: a per-channel constant added before
    training-mode BatchNorm cancels exactly); g*/be*: BatchNorm2d weight/bias.
    """
    N, Cin, h, w = inputs.shape
    H, W = output_hw
    assert (H, W) == (2 * h, 2 * w), "MaxUnpool2d(2,2) output size"
    Cmid, Cout = w1.shape[0], w2.shape[0]
    assert w1.shape == (Cmid, Cin, 3, 3) and w2.shape == (Cout, Cmid, 3, 3)

    # Low-res channels-last inputs only; the unpool is done in-kernel.
    x_nhwc = jnp.transpose(inputs, (0, 2, 3, 1)).astype(jnp.bfloat16)
    idx = indices.astype(jnp.int32)
    off = ((idx // W) % 2) * 2 + (idx % 2)              # 2-bit in-window offset
    off_nhwc = jnp.transpose(off, (0, 2, 3, 1)).astype(jnp.int8)

    # Weights pre-packed to (3, 3*Cin, Cout) bf16: kx fused into the K axis.
    w1_t = jnp.transpose(w1, (2, 3, 1, 0)).reshape(3, 3 * Cin, Cmid)
    w1_t = w1_t.astype(jnp.bfloat16)
    w2_t = jnp.transpose(w2, (2, 3, 1, 0)).reshape(3, 3 * Cmid, Cout)
    w2_t = w2_t.astype(jnp.bfloat16)

    def rowvec(v):  # per-channel params as (1, C) f32
        return v.reshape(1, -1).astype(jnp.float32)

    flops = 2 * N * H * W * 9 * (Cin * Cmid + Cmid * Cout)
    bytes_accessed = (x_nhwc.size * 2 + off_nhwc.size
                      + (w1_t.size + w2_t.size) * 2
                      + 4 * (Cmid + Cout) * 4
                      + N * H * W * Cout * 2)

    vmem = pl.BlockSpec(memory_space=pltpu.MemorySpace.VMEM)
    out6 = pl.pallas_call(
        _segnet_up2_kernel,
        out_shape=jax.ShapeDtypeStruct((2, 2, N, h, w, Cout), jnp.bfloat16),
        in_specs=[vmem] * 8,
        out_specs=vmem,
        scratch_shapes=[
            # parity-factored padded slabs, bf16 (half the VMEM of f32)
            pltpu.VMEM((N, h + 1, 2, 2, w + 1, Cin), jnp.bfloat16),
            pltpu.VMEM((N, h + 1, 2, 2, w + 1, Cmid), jnp.bfloat16),
        ],
        compiler_params=pltpu.CompilerParams(
            vmem_limit_bytes=32 * 1024 * 1024),
        cost_estimate=pl.CostEstimate(
            flops=flops, transcendentals=Cmid + Cout,
            bytes_accessed=bytes_accessed),
    )(x_nhwc, off_nhwc, w1_t, rowvec(g1), rowvec(be1),
      w2_t, rowvec(g2), rowvec(be2))

    # (dy, dx, N, h, w, C) -> (N, C, h, dy, w, dx) -> (N, C, H, W); single fused
    # XLA transpose over the (bf16) output, upcast to f32 to match the module.
    out = jnp.transpose(out6, (2, 5, 3, 0, 4, 1)).reshape(N, Cout, H, W)
    return out.astype(jnp.float32)


def _reference(x, indices, out_hw, w1, b1, g1, be1, w2, b2, g2, be2):
    """Pure-JAX NCHW reference mirroring the PyTorch module (train-mode BN).

    The unpool uses an explicit scatter (independent of the kernel's parity
    compare/select formulation) and the convs keep their bias, cross-checking
    both the unpool and the bias-cancellation claim.
    """
    N, C, h, w = x.shape
    H, W = out_hw
    flat = jnp.zeros((N, C, H * W), x.dtype)
    bidx = jnp.arange(N)[:, None, None]
    cidx = jnp.arange(C)[None, :, None]
    flat = flat.at[bidx, cidx, indices.reshape(N, C, h * w)].set(
        x.reshape(N, C, h * w))
    up = flat.reshape(N, C, H, W)

    def cbr(t, wt, bias, gamma, beta):
        y = jax.lax.conv_general_dilated(
            t, wt, window_strides=(1, 1), padding=((1, 1), (1, 1)),
            dimension_numbers=("NCHW", "OIHW", "NCHW"))
        y = y + bias.reshape(1, -1, 1, 1)
        m = jnp.mean(y, axis=(0, 2, 3), keepdims=True)
        v = jnp.mean((y - m) ** 2, axis=(0, 2, 3), keepdims=True)
        y = (y - m) * jax.lax.rsqrt(v + _EPS)
        y = y * gamma.reshape(1, -1, 1, 1) + beta.reshape(1, -1, 1, 1)
        return jnp.maximum(y, 0.0)

    y = cbr(up, w1, b1, g1, be1)
    y = cbr(y, w2, b2, g2, be2)
    return y


if __name__ == "__main__":
    key = jax.random.PRNGKey(0)
    N, C_in, C_out = 2, 4, 4          # in_size = out_size = 4
    h, w = 8, 8
    H, W = 2 * h, 2 * w               # unpooled spatial size = 16 x 16

    ks = jax.random.split(key, 7)
    x = jax.random.normal(ks[0], (N, C_in, h, w), jnp.float32)

    # Indices exactly as produced by MaxPool2d(2,2,return_indices=True): each
    # low-res cell points at one position inside its own 2x2 window of the
    # (H, W) plane, flattened as row*W + col.
    dy = jax.random.randint(ks[1], (N, C_in, h, w), 0, 2)
    dx = jax.random.randint(ks[2], (N, C_in, h, w), 0, 2)
    yy = 2 * jnp.arange(h)[:, None] + dy
    xx = 2 * jnp.arange(w)[None, :] + dx
    indices = (yy * W + xx).astype(jnp.int32)

    # Conv weights/biases (fresh module); BN gamma=1, beta=0 (fresh module).
    w1 = jax.random.normal(ks[3], (C_in, C_in, 3, 3), jnp.float32) * 0.1
    b1 = jax.random.normal(ks[4], (C_in,), jnp.float32) * 0.1
    w2 = jax.random.normal(ks[5], (C_out, C_in, 3, 3), jnp.float32) * 0.1
    b2 = jax.random.normal(ks[6], (C_out,), jnp.float32) * 0.1
    g1 = jnp.ones((C_in,), jnp.float32)
    be1 = jnp.zeros((C_in,), jnp.float32)
    g2 = jnp.ones((C_out,), jnp.float32)
    be2 = jnp.zeros((C_out,), jnp.float32)

    out = segnet_up2(x, indices, (H, W), w1, b1, g1, be1, w2, b2, g2, be2)
    out = jax.block_until_ready(out)

    ref = jax.block_until_ready(
        _reference(x, indices, (H, W), w1, b1, g1, be1, w2, b2, g2, be2))

    assert out.shape == (N, C_out, H, W)
    # Tolerance accounts for bf16 storage of activations / weights / output
    # across two conv+BN layers (MXU accumulation and BN statistics are f32).
    err = jnp.max(jnp.abs(out - ref))
    assert jnp.allclose(out, ref, atol=5e-2, rtol=5e-2), f"max abs err = {err}"

    print("KERNEL_OK")
</pallas_src>

<mosaic_0001>
module attributes {stable_mosaic.version = 11 : i64} {
  func.func @_segnet_up2_kernel(%arg0: memref<2x8x8x4xbf16, #tpu.memory_space<vmem>>, %arg1: memref<2x8x8x4xi8, #tpu.memory_space<vmem>>, %arg2: memref<3x12x4xbf16, #tpu.memory_space<vmem>>, %arg3: memref<1x4xf32, #tpu.memory_space<vmem>>, %arg4: memref<1x4xf32, #tpu.memory_space<vmem>>, %arg5: memref<3x12x4xbf16, #tpu.memory_space<vmem>>, %arg6: memref<1x4xf32, #tpu.memory_space<vmem>>, %arg7: memref<1x4xf32, #tpu.memory_space<vmem>>, %arg8: memref<2x2x2x8x8x4xbf16, #tpu.memory_space<vmem>>, %arg9: memref<2x9x2x2x9x4xbf16, #tpu.memory_space<vmem>>, %arg10: memref<2x9x2x2x9x4xbf16, #tpu.memory_space<vmem>>) attributes {dimension_semantics = [], scalar_prefetch = 0 : i64, scratch_operands = 2 : i64, tpu.core_type = #tpu.core_type<tc>} {
    %c0 = arith.constant 0 : index
    %c0_0 = arith.constant 0 : index
    %c0_1 = arith.constant 0 : index
    %c0_2 = arith.constant 0 : index
    %0 = vector.load %arg0[%c0, %c0_0, %c0_1, %c0_2] : memref<2x8x8x4xbf16, #tpu.memory_space<vmem>>, vector<2x8x8x4xbf16>
    %1 = vector.shape_cast %0 : vector<2x8x8x4xbf16> to vector<128x4xbf16>
    %c0_3 = arith.constant 0 : index
    %c0_4 = arith.constant 0 : index
    %c0_5 = arith.constant 0 : index
    %c0_6 = arith.constant 0 : index
    %2 = vector.load %arg1[%c0_3, %c0_4, %c0_5, %c0_6] : memref<2x8x8x4xi8, #tpu.memory_space<vmem>>, vector<2x8x8x4xi8>
    %3 = vector.shape_cast %2 : vector<2x8x8x4xi8> to vector<128x4xi8>
    %4 = arith.extsi %3 : vector<128x4xi8> to vector<128x4xi32>
    %c0_i32 = arith.constant 0 : i32
    %5 = vector.broadcast %c0_i32 : i32 to vector<128x4xi32>
    %6 = arith.cmpi eq, %4, %5 : vector<128x4xi32>
    %cst = arith.constant 0.000000e+00 : bf16
    %7 = vector.broadcast %cst : bf16 to vector<128x4xbf16>
    %8 = arith.select %6, %1, %7 : vector<128x4xi1>, vector<128x4xbf16>
    %c1_i32 = arith.constant 1 : i32
    %9 = vector.broadcast %c1_i32 : i32 to vector<128x4xi32>
    %10 = arith.cmpi eq, %4, %9 : vector<128x4xi32>
    %cst_7 = arith.constant 0.000000e+00 : bf16
    %11 = vector.broadcast %cst_7 : bf16 to vector<128x4xbf16>
    %12 = arith.select %10, %1, %11 : vector<128x4xi1>, vector<128x4xbf16>
    %c2_i32 = arith.constant 2 : i32
    %13 = vector.broadcast %c2_i32 : i32 to vector<128x4xi32>
    %14 = arith.cmpi eq, %4, %13 : vector<128x4xi32>
    %cst_8 = arith.constant 0.000000e+00 : bf16
    %15 = vector.broadcast %cst_8 : bf16 to vector<128x4xbf16>
    %16 = arith.select %14, %1, %15 : vector<128x4xi1>, vector<128x4xbf16>
    %c3_i32 = arith.constant 3 : i32
    %17 = vector.broadcast %c3_i32 : i32 to vector<128x4xi32>
    %18 = arith.cmpi eq, %4, %17 : vector<128x4xi32>
    %cst_9 = arith.constant 0.000000e+00 : bf16
    %19 = vector.broadcast %cst_9 : bf16 to vector<128x4xbf16>
    %20 = arith.select %18, %1, %19 : vector<128x4xi1>, vector<128x4xbf16>
    %cst_10 = arith.constant 0.000000e+00 : bf16
    %21 = vector.broadcast %cst_10 : bf16 to vector<2x1x1x2x9x4xbf16>
    %c0_11 = arith.constant 0 : index
    %c0_12 = arith.constant 0 : index
    %c0_13 = arith.constant 0 : index
    %c0_14 = arith.constant 0 : index
    %c0_15 = arith.constant 0 : index
    %c0_16 = arith.constant 0 : index
    %22 = vector.load %arg9[%c0_11, %c0_12, %c0_13, %c0_14, %c0_15, %c0_16] : memref<2x9x2x2x9x4xbf16, #tpu.memory_space<vmem>>, vector<2x1x1x2x9x4xbf16>
    tpu.vector_store %arg9[%c0_11, %c0_12, %c0_13, %c0_14, %c0_15, %c0_16], %21 {strides = array<i32>} : memref<2x9x2x2x9x4xbf16, #tpu.memory_space<vmem>>, vector<2x1x1x2x9x4xbf16>,
    %c0_17 = arith.constant 0 : index
    %c8 = arith.constant 8 : index
    %c1 = arith.constant 1 : index
    %c0_18 = arith.constant 0 : index
    %c0_19 = arith.constant 0 : index
    %c0_20 = arith.constant 0 : index
    %23 = vector.load %arg9[%c0_17, %c8, %c1, %c0_18, %c0_19, %c0_20] : memref<2x9x2x2x9x4xbf16, #tpu.memory_space<vmem>>, vector<2x1x1x2x9x4xbf16>
    tpu.vector_store %arg9[%c0_17, %c8, %c1, %c0_18, %c0_19, %c0_20], %21 {strides = array<i32>} : memref<2x9x2x2x9x4xbf16, #tpu.memory_space<vmem>>, vector<2x1x1x2x9x4xbf16>,
    %cst_21 = arith.constant 0.000000e+00 : bf16
    %24 = vector.broadcast %cst_21 : bf16 to vector<2x9x2x1x1x4xbf16>
    %c0_22 = arith.constant 0 : index
    %c0_23 = arith.constant 0 : index
    %c0_24 = arith.constant 0 : index
    %c0_25 = arith.constant 0 : index
    %c0_26 = arith.constant 0 : index
    %c0_27 = arith.constant 0 : index
    %25 = vector.load %arg9[%c0_22, %c0_23, %c0_24, %c0_25, %c0_26, %c0_27] : memref<2x9x2x2x9x4xbf16, #tpu.memory_space<vmem>>, vector<2x9x2x1x1x4xbf16>
    tpu.vector_store %arg9[%c0_22, %c0_23, %c0_24, %c0_25, %c0_26, %c0_27], %24 {strides = array<i32>} : memref<2x9x2x2x9x4xbf16, #tpu.memory_space<vmem>>, vector<2x9x2x1x1x4xbf16>,
    %c0_28 = arith.constant 0 : index
    %c0_29 = arith.constant 0 : index
    %c0_30 = arith.constant 0 : index
    %c1_31 = arith.constant 1 : index
    %c8_32 = arith.constant 8 : index
    %c0_33 = arith.constant 0 : index
    %26 = vector.load %arg9[%c0_28, %c0_29, %c0_30, %c1_31, %c8_32, %c0_33] : memref<2x9x2x2x9x4xbf16, #tpu.memory_space<vmem>>, vector<2x9x2x1x1x4xbf16>
    tpu.vector_store %arg9[%c0_28, %c0_29, %c0_30, %c1_31, %c8_32, %c0_33], %24 {strides = array<i32>} : memref<2x9x2x2x9x4xbf16, #tpu.memory_space<vmem>>, vector<2x9x2x1x1x4xbf16>,
    %27 = vector.shape_cast %8 : vector<128x4xbf16> to vector<2x8x1x1x8x4xbf16>
    %c0_34 = arith.constant 0 : index
    %c0_35 = arith.constant 0 : index
    %c1_36 = arith.constant 1 : index
    %c1_37 = arith.constant 1 : index
    %c0_38 = arith.constant 0 : index
    %c0_39 = arith.constant 0 : index
    %28 = vector.load %arg9[%c0_34, %c0_35, %c1_36, %c1_37, %c0_38, %c0_39] : memref<2x9x2x2x9x4xbf16, #tpu.memory_space<vmem>>, vector<2x8x1x1x8x4xbf16>
    tpu.vector_store %arg9[%c0_34, %c0_35, %c1_36, %c1_37, %c0_38, %c0_39], %27 {strides = array<i32>} : memref<2x9x2x2x9x4xbf16, #tpu.memory_space<vmem>>, vector<2x8x1x1x8x4xbf16>,
    %29 = vector.shape_cast %12 : vector<128x4xbf16> to vector<2x8x1x1x8x4xbf16>
    %c0_40 = arith.constant 0 : index
    %c0_41 = arith.constant 0 : index
    %c1_42 = arith.constant 1 : index
    %c0_43 = arith.constant 0 : index
    %c1_44 = arith.constant 1 : index
    %c0_45 = arith.constant 0 : index
    %30 = vector.load %arg9[%c0_40, %c0_41, %c1_42, %c0_43, %c1_44, %c0_45] : memref<2x9x2x2x9x4xbf16, #tpu.memory_space<vmem>>, vector<2x8x1x1x8x4xbf16>
    tpu.vector_store %arg9[%c0_40, %c0_41, %c1_42, %c0_43, %c1_44, %c0_45], %29 {strides = array<i32>} : memref<2x9x2x2x9x4xbf16, #tpu.memory_space<vmem>>, vector<2x8x1x1x8x4xbf16>,
    %31 = vector.shape_cast %16 : vector<128x4xbf16> to vector<2x8x1x1x8x4xbf16>
    %c0_46 = arith.constant 0 : index
    %c1_47 = arith.constant 1 : index
    %c0_48 = arith.constant 0 : index
    %c1_49 = arith.constant 1 : index
    %c0_50 = arith.constant 0 : index
    %c0_51 = arith.constant 0 : index
    %32 = vector.load %arg9[%c0_46, %c1_47, %c0_48, %c1_49, %c0_50, %c0_51] : memref<2x9x2x2x9x4xbf16, #tpu.memory_space<vmem>>, vector<2x8x1x1x8x4xbf16>
    tpu.vector_store %arg9[%c0_46, %c1_47, %c0_48, %c1_49, %c0_50, %c0_51], %31 {strides = array<i32>} : memref<2x9x2x2x9x4xbf16, #tpu.memory_space<vmem>>, vector<2x8x1x1x8x4xbf16>,
    %33 = vector.shape_cast %20 : vector<128x4xbf16> to vector<2x8x1x1x8x4xbf16>
    %c0_52 = arith.constant 0 : index
    %c1_53 = arith.constant 1 : index
    %c0_54 = arith.constant 0 : index
    %c0_55 = arith.constant 0 : index
    %c1_56 = arith.constant 1 : index
    %c0_57 = arith.constant 0 : index
    %34 = vector.load %arg9[%c0_52, %c1_53, %c0_54, %c0_55, %c1_56, %c0_57] : memref<2x9x2x2x9x4xbf16, #tpu.memory_space<vmem>>, vector<2x8x1x1x8x4xbf16>
    tpu.vector_store %arg9[%c0_52, %c1_53, %c0_54, %c0_55, %c1_56, %c0_57], %33 {strides = array<i32>} : memref<2x9x2x2x9x4xbf16, #tpu.memory_space<vmem>>, vector<2x8x1x1x8x4xbf16>,
    %c0_58 = arith.constant 0 : index
    %c0_59 = arith.constant 0 : index
    %c0_60 = arith.constant 0 : index
    %c0_61 = arith.constant 0 : index
    %c0_62 = arith.constant 0 : index
    %c0_63 = arith.constant 0 : index
    %35 = vector.load %arg9[%c0_58, %c0_59, %c0_60, %c0_61, %c0_62, %c0_63] : memref<2x9x2x2x9x4xbf16, #tpu.memory_space<vmem>>, vector<2x8x1x1x8x4xbf16>
    %36 = vector.shape_cast %35 : vector<2x8x1x1x8x4xbf16> to vector<128x4xbf16>
    %c0_64 = arith.constant 0 : index
    %c0_65 = arith.constant 0 : index
    %c0_66 = arith.constant 0 : index
    %c1_67 = arith.constant 1 : index
    %c0_68 = arith.constant 0 : index
    %c0_69 = arith.constant 0 : index
    %37 = vector.load %arg9[%c0_64, %c0_65, %c0_66, %c1_67, %c0_68, %c0_69] : memref<2x9x2x2x9x4xbf16, #tpu.memory_space<vmem>>, vector<2x8x1x1x8x4xbf16>
    %38 = vector.shape_cast %37 : vector<2x8x1x1x8x4xbf16> to vector<128x4xbf16>
    %c0_70 = arith.constant 0 : index
    %c0_71 = arith.constant 0 : index
    %c0_72 = arith.constant 0 : index
    %c0_73 = arith.constant 0 : index
    %c1_74 = arith.constant 1 : index
    %c0_75 = arith.constant 0 : index
    %39 = vector.load %arg9[%c0_70, %c0_71, %c0_72, %c0_73, %c1_74, %c0_75] : memref<2x9x2x2x9x4xbf16, #tpu.memory_space<vmem>>, vector<2x8x1x1x8x4xbf16>
    %40 = vector.shape_cast %39 : vector<2x8x1x1x8x4xbf16> to vector<128x4xbf16>
    %41 = tpu.concatenate %36, %38, %40 in 1 : vector<128x4xbf16>, vector<128x4xbf16>, vector<128x4xbf16> -> vector<128x12xbf16>
    %c0_76 = arith.constant 0 : index
    %c0_77 = arith.constant 0 : index
    %c0_78 = arith.constant 0 : index
    %42 = vector.load %arg2[%c0_76, %c0_77, %c0_78] : memref<3x12x4xbf16, #tpu.memory_space<vmem>>, vector<1x12x4xbf16>
    %43 = vector.shape_cast %42 : vector<1x12x4xbf16> to vector<12x4xbf16>
    %cst_79 = arith.constant dense<0.000000e+00> : vector<128x4xf32>
    %44 = tpu.matmul %41, %43, %cst_79 {dimension_numbers = #tpu.dot_dimension_numbers<[1], [0], [0], [1], [0, 0, 1, 1], [], []>} : vector<128x12xbf16>, vector<12x4xbf16>, vector<128x4xf32> -> vector<128x4xf32>
    %c0_80 = arith.constant 0 : index
    %c0_81 = arith.constant 0 : index
    %c1_82 = arith.constant 1 : index
    %c0_83 = arith.constant 0 : index
    %c0_84 = arith.constant 0 : index
    %c0_85 = arith.constant 0 : index
    %45 = vector.load %arg9[%c0_80, %c0_81, %c1_82, %c0_83, %c0_84, %c0_85] : memref<2x9x2x2x9x4xbf16, #tpu.memory_space<vmem>>, vector<2x8x1x1x8x4xbf16>
    %46 = vector.shape_cast %45 : vector<2x8x1x1x8x4xbf16> to vector<128x4xbf16>
    %c0_86 = arith.constant 0 : index
    %c0_87 = arith.constant 0 : index
    %c1_88 = arith.constant 1 : index
    %c1_89 = arith.constant 1 : index
    %c0_90 = arith.constant 0 : index
    %c0_91 = arith.constant 0 : index
    %47 = vector.load %arg9[%c0_86, %c0_87, %c1_88, %c1_89, %c0_90, %c0_91] : memref<2x9x2x2x9x4xbf16, #tpu.memory_space<vmem>>, vector<2x8x1x1x8x4xbf16>
    %48 = vector.shape_cast %47 : vector<2x8x1x1x8x4xbf16> to vector<128x4xbf16>
    %c0_92 = arith.constant 0 : index
    %c0_93 = arith.constant 0 : index
    %c1_94 = arith.constant 1 : index
    %c0_95 = arith.constant 0 : index
    %c1_96 = arith.constant 1 : index
    %c0_97 = arith.constant 0 : index
    %49 = vector.load %arg9[%c0_92, %c0_93, %c1_94, %c0_95, %c1_96, %c0_97] : memref<2x9x2x2x9x4xbf16, #tpu.memory_space<vmem>>, vector<2x8x1x1x8x4xbf16>
    %50 = vector.shape_cast %49 : vector<2x8x1x1x8x4xbf16> to vector<128x4xbf16>
    %51 = tpu.concatenate %46, %48, %50 in 1 : vector<128x4xbf16>, vector<128x4xbf16>, vector<128x4xbf16> -> vector<128x12xbf16>
    %c1_98 = arith.constant 1 : index
    %c0_99 = arith.constant 0 : index
    %c0_100 = arith.constant 0 : index
    %52 = vector.load %arg2[%c1_98, %c0_99, %c0_100] : memref<3x12x4xbf16, #tpu.memory_space<vmem>>, vector<1x12x4xbf16>
    %53 = vector.shape_cast %52 : vector<1x12x4xbf16> to vector<12x4xbf16>
    %cst_101 = arith.constant dense<0.000000e+00> : vector<128x4xf32>
    %54 = tpu.matmul %51, %53, %cst_101 {dimension_numbers = #tpu.dot_dimension_numbers<[1], [0], [0], [1], [0, 0, 1, 1], [], []>} : vector<128x12xbf16>, vector<12x4xbf16>, vector<128x4xf32> -> vector<128x4xf32>
    %55 = arith.addf %44, %54 : vector<128x4xf32>
    %c0_102 = arith.constant 0 : index
    %c1_103 = arith.constant 1 : index
    %c0_104 = arith.constant 0 : index
    %c0_105 = arith.constant 0 : index
    %c0_106 = arith.constant 0 : index
    %c0_107 = arith.constant 0 : index
    %56 = vector.load %arg9[%c0_102, %c1_103, %c0_104, %c0_105, %c0_106, %c0_107] : memref<2x9x2x2x9x4xbf16, #tpu.memory_space<vmem>>, vector<2x8x1x1x8x4xbf16>
    %57 = vector.shape_cast %56 : vector<2x8x1x1x8x4xbf16> to vector<128x4xbf16>
    %c0_108 = arith.constant 0 : index
    %c1_109 = arith.constant 1 : index
    %c0_110 = arith.constant 0 : index
    %c1_111 = arith.constant 1 : index
    %c0_112 = arith.constant 0 : index
    %c0_113 = arith.constant 0 : index
    %58 = vector.load %arg9[%c0_108, %c1_109, %c0_110, %c1_111, %c0_112, %c0_113] : memref<2x9x2x2x9x4xbf16, #tpu.memory_space<vmem>>, vector<2x8x1x1x8x4xbf16>
    %59 = vector.shape_cast %58 : vector<2x8x1x1x8x4xbf16> to vector<128x4xbf16>
    %c0_114 = arith.constant 0 : index
    %c1_115 = arith.constant 1 : index
    %c0_116 = arith.constant 0 : index
    %c0_117 = arith.constant 0 : index
    %c1_118 = arith.constant 1 : index
    %c0_119 = arith.constant 0 : index
    %60 = vector.load %arg9[%c0_114, %c1_115, %c0_116, %c0_117, %c1_118, %c0_119] : memref<2x9x2x2x9x4xbf16, #tpu.memory_space<vmem>>, vector<2x8x1x1x8x4xbf16>
    %61 = vector.shape_cast %60 : vector<2x8x1x1x8x4xbf16> to vector<128x4xbf16>
    %62 = tpu.concatenate %57, %59, %61 in 1 : vector<128x4xbf16>, vector<128x4xbf16>, vector<128x4xbf16> -> vector<128x12xbf16>
    %c2 = arith.constant 2 : index
    %c0_120 = arith.constant 0 : index
    %c0_121 = arith.constant 0 : index
    %63 = vector.load %arg2[%c2, %c0_120, %c0_121] : memref<3x12x4xbf16, #tpu.memory_space<vmem>>, vector<1x12x4xbf16>
    %64 = vector.shape_cast %63 : vector<1x12x4xbf16> to vector<12x4xbf16>
    %cst_122 = arith.constant dense<0.000000e+00> : vector<128x4xf32>
    %65 = tpu.matmul %62, %64, %cst_122 {dimension_numbers = #tpu.dot_dimension_numbers<[1], [0], [0], [1], [0, 0, 1, 1], [], []>} : vector<128x12xbf16>, vector<12x4xbf16>, vector<128x4xf32> -> vector<128x4xf32>
    %66 = arith.addf %55, %65 : vector<128x4xf32>
    %c0_123 = arith.constant 0 : index
    %c0_124 = arith.constant 0 : index
    %c0_125 = arith.constant 0 : index
    %c1_126 = arith.constant 1 : index
    %c0_127 = arith.constant 0 : index
    %c0_128 = arith.constant 0 : index
    %67 = vector.load %arg9[%c0_123, %c0_124, %c0_125, %c1_126, %c0_127, %c0_128] : memref<2x9x2x2x9x4xbf16, #tpu.memory_space<vmem>>, vector<2x8x1x1x8x4xbf16>
    %68 = vector.shape_cast %67 : vector<2x8x1x1x8x4xbf16> to vector<128x4xbf16>
    %c0_129 = arith.constant 0 : index
    %c0_130 = arith.constant 0 : index
    %c0_131 = arith.constant 0 : index
    %c0_132 = arith.constant 0 : index
    %c1_133 = arith.constant 1 : index
    %c0_134 = arith.constant 0 : index
    %69 = vector.load %arg9[%c0_129, %c0_130, %c0_131, %c0_132, %c1_133, %c0_134] : memref<2x9x2x2x9x4xbf16, #tpu.memory_space<vmem>>, vector<2x8x1x1x8x4xbf16>
    %70 = vector.shape_cast %69 : vector<2x8x1x1x8x4xbf16> to vector<128x4xbf16>
    %c0_135 = arith.constant 0 : index
    %c0_136 = arith.constant 0 : index
    %c0_137 = arith.constant 0 : index
    %c1_138 = arith.constant 1 : index
    %c1_139 = arith.constant 1 : index
    %c0_140 = arith.constant 0 : index
    %71 = vector.load %arg9[%c0_135, %c0_136, %c0_137, %c1_138, %c1_139, %c0_140] : memref<2x9x2x2x9x4xbf16, #tpu.memory_space<vmem>>, vector<2x8x1x1x8x4xbf16>
    %72 = vector.shape_cast %71 : vector<2x8x1x1x8x4xbf16> to vector<128x4xbf16>
    %73 = tpu.concatenate %68, %70, %72 in 1 : vector<128x4xbf16>, vector<128x4xbf16>, vector<128x4xbf16> -> vector<128x12xbf16>
    %c0_141 = arith.constant 0 : index
    %c0_142 = arith.constant 0 : index
    %c0_143 = arith.constant 0 : index
    %74 = vector.load %arg2[%c0_141, %c0_142, %c0_143] : memref<3x12x4xbf16, #tpu.memory_space<vmem>>, vector<1x12x4xbf16>
    %75 = vector.shape_cast %74 : vector<1x12x4xbf16> to vector<12x4xbf16>
    %cst_144 = arith.constant dense<0.000000e+00> : vector<128x4xf32>
    %76 = tpu.matmul %73, %75, %cst_144 {dimension_numbers = #tpu.dot_dimension_numbers<[1], [0], [0], [1], [0, 0, 1, 1], [], []>} : vector<128x12xbf16>, vector<12x4xbf16>, vector<128x4xf32> -> vector<128x4xf32>
    %c0_145 = arith.constant 0 : index
    %c0_146 = arith.constant 0 : index
    %c1_147 = arith.constant 1 : index
    %c1_148 = arith.constant 1 : index
    %c0_149 = arith.constant 0 : index
    %c0_150 = arith.constant 0 : index
    %77 = vector.load %arg9[%c0_145, %c0_146, %c1_147, %c1_148, %c0_149, %c0_150] : memref<2x9x2x2x9x4xbf16, #tpu.memory_space<vmem>>, vector<2x8x1x1x8x4xbf16>
    %78 = vector.shape_cast %77 : vector<2x8x1x1x8x4xbf16> to vector<128x4xbf16>
    %c0_151 = arith.constant 0 : index
    %c0_152 = arith.constant 0 : index
    %c1_153 = arith.constant 1 : index
    %c0_154 = arith.constant 0 : index
    %c1_155 = arith.constant 1 : index
    %c0_156 = arith.constant 0 : index
    %79 = vector.load %arg9[%c0_151, %c0_152, %c1_153, %c0_154, %c1_155, %c0_156] : memref<2x9x2x2x9x4xbf16, #tpu.memory_space<vmem>>, vector<2x8x1x1x8x4xbf16>
    %80 = vector.shape_cast %79 : vector<2x8x1x1x8x4xbf16> to vector<128x4xbf16>
    %c0_157 = arith.constant 0 : index
    %c0_158 = arith.constant 0 : index
    %c1_159 = arith.constant 1 : index
    %c1_160 = arith.constant 1 : index
    %c1_161 = arith.constant 1 : index
    %c0_162 = arith.constant 0 : index
    %81 = vector.load %arg9[%c0_157, %c0_158, %c1_159, %c1_160, %c1_161, %c0_162] : memref<2x9x2x2x9x4xbf16, #tpu.memory_space<vmem>>, vector<2x8x1x1x8x4xbf16>
    %82 = vector.shape_cast %81 : vector<2x8x1x1x8x4xbf16> to vector<128x4xbf16>
    %83 = tpu.concatenate %78, %80, %82 in 1 : vector<128x4xbf16>, vector<128x4xbf16>, vector<128x4xbf16> -> vector<128x12xbf16>
    %c1_163 = arith.constant 1 : index
    %c0_164 = arith.constant 0 : index
    %c0_165 = arith.constant 0 : index
    %84 = vector.load %arg2[%c1_163, %c0_164, %c0_165] : memref<3x12x4xbf16, #tpu.memory_space<vmem>>, vector<1x12x4xbf16>
    %85 = vector.shape_cast %84 : vector<1x12x4xbf16> to vector<12x4xbf16>
    %cst_166 = arith.constant dense<0.000000e+00> : vector<128x4xf32>
    %86 = tpu.matmul %83, %85, %cst_166 {dimension_numbers = #tpu.dot_dimension_numbers<[1], [0], [0], [1], [0, 0, 1, 1], [], []>} : vector<128x12xbf16>, vector<12x4xbf16>, vector<128x4xf32> -> vector<128x4xf32>
    %87 = arith.addf %76, %86 : vector<128x4xf32>
    %c0_167 = arith.constant 0 : index
    %c1_168 = arith.constant 1 : index
    %c0_169 = arith.constant 0 : index
    %c1_170 = arith.constant 1 : index
    %c0_171 = arith.constant 0 : index
    %c0_172 = arith.constant 0 : index
    %88 = vector.load %arg9[%c0_167, %c1_168, %c0_169, %c1_170, %c0_171, %c0_172] : memref<2x9x2x2x9x4xbf16, #tpu.memory_space<vmem>>, vector<2x8x1x1x8x4xbf16>
    %89 = vector.shape_cast %88 : vector<2x8x1x1x8x4xbf16> to vector<128x4xbf16>
    %c0_173 = arith.constant 0 : index
    %c1_174 = arith.constant 1 : index
    %c0_175 = arith.constant 0 : index
    %c0_176 = arith.constant 0 : index
    %c1_177 = arith.constant 1 : index
    %c0_178 = arith.constant 0 : index
    %90 = vector.load %arg9[%c0_173, %c1_174, %c0_175, %c0_176, %c1_177, %c0_178] : memref<2x9x2x2x9x4xbf16, #tpu.memory_space<vmem>>, vector<2x8x1x1x8x4xbf16>
    %91 = vector.shape_cast %90 : vector<2x8x1x1x8x4xbf16> to vector<128x4xbf16>
    %c0_179 = arith.constant 0 : index
    %c1_180 = arith.constant 1 : index
    %c0_181 = arith.constant 0 : index
    %c1_182 = arith.constant 1 : index
    %c1_183 = arith.constant 1 : index
    %c0_184 = arith.constant 0 : index
    %92 = vector.load %arg9[%c0_179, %c1_180, %c0_181, %c1_182, %c1_183, %c0_184] : memref<2x9x2x2x9x4xbf16, #tpu.memory_space<vmem>>, vector<2x8x1x1x8x4xbf16>
    %93 = vector.shape_cast %92 : vector<2x8x1x1x8x4xbf16> to vector<128x4xbf16>
    %94 = tpu.concatenate %89, %91, %93 in 1 : vector<128x4xbf16>, vector<128x4xbf16>, vector<128x4xbf16> -> vector<128x12xbf16>
    %c2_185 = arith.constant 2 : index
    %c0_186 = arith.constant 0 : index
    %c0_187 = arith.constant 0 : index
    %95 = vector.load %arg2[%c2_185, %c0_186, %c0_187] : memref<3x12x4xbf16, #tpu.memory_space<vmem>>, vector<1x12x4xbf16>
    %96 = vector.shape_cast %95 : vector<1x12x4xbf16> to vector<12x4xbf16>
    %cst_188 = arith.constant dense<0.000000e+00> : vector<128x4xf32>
    %97 = tpu.matmul %94, %96, %cst_188 {dimension_numbers = #tpu.dot_dimension_numbers<[1], [0], [0], [1], [0, 0, 1, 1], [], []>} : vector<128x12xbf16>, vector<12x4xbf16>, vector<128x4xf32> -> vector<128x4xf32>
    %98 = arith.addf %87, %97 : vector<128x4xf32>
    %c0_189 = arith.constant 0 : index
    %c0_190 = arith.constant 0 : index
    %c1_191 = arith.constant 1 : index
    %c0_192 = arith.constant 0 : index
    %c0_193 = arith.constant 0 : index
    %c0_194 = arith.constant 0 : index
    %99 = vector.load %arg9[%c0_189, %c0_190, %c1_191, %c0_192, %c0_193, %c0_194] : memref<2x9x2x2x9x4xbf16, #tpu.memory_space<vmem>>, vector<2x8x1x1x8x4xbf16>
    %100 = vector.shape_cast %99 : vector<2x8x1x1x8x4xbf16> to vector<128x4xbf16>
    %c0_195 = arith.constant 0 : index
    %c0_196 = arith.constant 0 : index
    %c1_197 = arith.constant 1 : index
    %c1_198 = arith.constant 1 : index
    %c0_199 = arith.constant 0 : index
    %c0_200 = arith.constant 0 : index
    %101 = vector.load %arg9[%c0_195, %c0_196, %c1_197, %c1_198, %c0_199, %c0_200] : memref<2x9x2x2x9x4xbf16, #tpu.memory_space<vmem>>, vector<2x8x1x1x8x4xbf16>
    %102 = vector.shape_cast %101 : vector<2x8x1x1x8x4xbf16> to vector<128x4xbf16>
    %c0_201 = arith.constant 0 : index
    %c0_202 = arith.constant 0 : index
    %c1_203 = arith.constant 1 : index
    %c0_204 = arith.constant 0 : index
    %c1_205 = arith.constant 1 : index
    %c0_206 = arith.constant 0 : index
    %103 = vector.load %arg9[%c0_201, %c0_202, %c1_203, %c0_204, %c1_205, %c0_206] : memref<2x9x2x2x9x4xbf16, #tpu.memory_space<vmem>>, vector<2x8x1x1x8x4xbf16>
    %104 = vector.shape_cast %103 : vector<2x8x1x1x8x4xbf16> to vector<128x4xbf16>
    %105 = tpu.concatenate %100, %102, %104 in 1 : vector<128x4xbf16>, vector<128x4xbf16>, vector<128x4xbf16> -> vector<128x12xbf16>
    %c0_207 = arith.constant 0 : index
    %c0_208 = arith.constant 0 : index
    %c0_209 = arith.constant 0 : index
    %106 = vector.load %arg2[%c0_207, %c0_208, %c0_209] : memref<3x12x4xbf16, #tpu.memory_space<vmem>>, vector<1x12x4xbf16>
    %107 = vector.shape_cast %106 : vector<1x12x4xbf16> to vector<12x4xbf16>
    %cst_210 = arith.constant dense<0.000000e+00> : vector<128x4xf32>
    %108 = tpu.matmul %105, %107, %cst_210 {dimension_numbers = #tpu.dot_dimension_numbers<[1], [0], [0], [1], [0, 0, 1, 1], [], []>} : vector<128x12xbf16>, vector<12x4xbf16>, vector<128x4xf32> -> vector<128x4xf32>
    %c0_211 = arith.constant 0 : index
    %c1_212 = arith.constant 1 : index
    %c0_213 = arith.constant 0 : index
    %c0_214 = arith.constant 0 : index
    %c0_215 = arith.constant 0 : index
    %c0_216 = arith.constant 0 : index
    %109 = vector.load %arg9[%c0_211, %c1_212, %c0_213, %c0_214, %c0_215, %c0_216] : memref<2x9x2x2x9x4xbf16, #tpu.memory_space<vmem>>, vector<2x8x1x1x8x4xbf16>
    %110 = vector.shape_cast %109 : vector<2x8x1x1x8x4xbf16> to vector<128x4xbf16>
    %c0_217 = arith.constant 0 : index
    %c1_218 = arith.constant 1 : index
    %c0_219 = arith.constant 0 : index
    %c1_220 = arith.constant 1 : index
    %c0_221 = arith.constant 0 : index
    %c0_222 = arith.constant 0 : index
    %111 = vector.load %arg9[%c0_217, %c1_218, %c0_219, %c1_220, %c0_221, %c0_222] : memref<2x9x2x2x9x4xbf16, #tpu.memory_space<vmem>>, vector<2x8x1x1x8x4xbf16>
    %112 = vector.shape_cast %111 : vector<2x8x1x1x8x4xbf16> to vector<128x4xbf16>
    %c0_223 = arith.constant 0 : index
    %c1_224 = arith.constant 1 : index
    %c0_225 = arith.constant 0 : index
    %c0_226 = arith.constant 0 : index
    %c1_227 = arith.constant 1 : index
    %c0_228 = arith.constant 0 : index
    %113 = vector.load %arg9[%c0_223, %c1_224, %c0_225, %c0_226, %c1_227, %c0_228] : memref<2x9x2x2x9x4xbf16, #tpu.memory_space<vmem>>, vector<2x8x1x1x8x4xbf16>
    %114 = vector.shape_cast %113 : vector<2x8x1x1x8x4xbf16> to vector<128x4xbf16>
    %115 = tpu.concatenate %110, %112, %114 in 1 : vector<128x4xbf16>, vector<128x4xbf16>, vector<128x4xbf16> -> vector<128x12xbf16>
    %c1_229 = arith.constant 1 : index
    %c0_230 = arith.constant 0 : index
    %c0_231 = arith.constant 0 : index
    %116 = vector.load %arg2[%c1_229, %c0_230, %c0_231] : memref<3x12x4xbf16, #tpu.memory_space<vmem>>, vector<1x12x4xbf16>
    %117 = vector.shape_cast %116 : vector<1x12x4xbf16> to vector<12x4xbf16>
    %cst_232 = arith.constant dense<0.000000e+00> : vector<128x4xf32>
    %118 = tpu.matmul %115, %117, %cst_232 {dimension_numbers = #tpu.dot_dimension_numbers<[1], [0], [0], [1], [0, 0, 1, 1], [], []>} : vector<128x12xbf16>, vector<12x4xbf16>, vector<128x4xf32> -> vector<128x4xf32>
    %119 = arith.addf %108, %118 : vector<128x4xf32>
    %c0_233 = arith.constant 0 : index
    %c1_234 = arith.constant 1 : index
    %c1_235 = arith.constant 1 : index
    %c0_236 = arith.constant 0 : index
    %c0_237 = arith.constant 0 : index
    %c0_238 = arith.constant 0 : index
    %120 = vector.load %arg9[%c0_233, %c1_234, %c1_235, %c0_236, %c0_237, %c0_238] : memref<2x9x2x2x9x4xbf16, #tpu.memory_space<vmem>>, vector<2x8x1x1x8x4xbf16>
    %121 = vector.shape_cast %120 : vector<2x8x1x1x8x4xbf16> to vector<128x4xbf16>
    %c0_239 = arith.constant 0 : index
    %c1_240 = arith.constant 1 : index
    %c1_241 = arith.constant 1 : index
    %c1_242 = arith.constant 1 : index
    %c0_243 = arith.constant 0 : index
    %c0_244 = arith.constant 0 : index
    %122 = vector.load %arg9[%c0_239, %c1_240, %c1_241, %c1_242, %c0_243, %c0_244] : memref<2x9x2x2x9x4xbf16, #tpu.memory_space<vmem>>, vector<2x8x1x1x8x4xbf16>
    %123 = vector.shape_cast %122 : vector<2x8x1x1x8x4xbf16> to vector<128x4xbf16>
    %c0_245 = arith.constant 0 : index
    %c1_246 = arith.constant 1 : index
    %c1_247 = arith.constant 1 : index
    %c0_248 = arith.constant 0 : index
    %c1_249 = arith.constant 1 : index
    %c0_250 = arith.constant 0 : index
    %124 = vector.load %arg9[%c0_245, %c1_246, %c1_247, %c0_248, %c1_249, %c0_250] : memref<2x9x2x2x9x4xbf16, #tpu.memory_space<vmem>>, vector<2x8x1x1x8x4xbf16>
    %125 = vector.shape_cast %124 : vector<2x8x1x1x8x4xbf16> to vector<128x4xbf16>
    %126 = tpu.concatenate %121, %123, %125 in 1 : vector<128x4xbf16>, vector<128x4xbf16>, vector<128x4xbf16> -> vector<128x12xbf16>
    %c2_251 = arith.constant 2 : index
    %c0_252 = arith.constant 0 : index
    %c0_253 = arith.constant 0 : index
    %127 = vector.load %arg2[%c2_251, %c0_252, %c0_253] : memref<3x12x4xbf16, #tpu.memory_space<vmem>>, vector<1x12x4xbf16>
    %128 = vector.shape_cast %127 : vector<1x12x4xbf16> to vector<12x4xbf16>
    %cst_254 = arith.constant dense<0.000000e+00> : vector<128x4xf32>
    %129 = tpu.matmul %126, %128, %cst_254 {dimension_numbers = #tpu.dot_dimension_numbers<[1], [0], [0], [1], [0, 0, 1, 1], [], []>} : vector<128x12xbf16>, vector<12x4xbf16>, vector<128x4xf32> -> vector<128x4xf32>
    %130 = arith.addf %119, %129 : vector<128x4xf32>
    %c0_255 = arith.constant 0 : index
    %c0_256 = arith.constant 0 : index
    %c1_257 = arith.constant 1 : index
    %c1_258 = arith.constant 1 : index
    %c0_259 = arith.constant 0 : index
    %c0_260 = arith.constant 0 : index
    %131 = vector.load %arg9[%c0_255, %c0_256, %c1_257, %c1_258, %c0_259, %c0_260] : memref<2x9x2x2x9x4xbf16, #tpu.memory_space<vmem>>, vector<2x8x1x1x8x4xbf16>
    %132 = vector.shape_cast %131 : vector<2x8x1x1x8x4xbf16> to vector<128x4xbf16>
    %c0_261 = arith.constant 0 : index
    %c0_262 = arith.constant 0 : index
    %c1_263 = arith.constant 1 : index
    %c0_264 = arith.constant 0 : index
    %c1_265 = arith.constant 1 : index
    %c0_266 = arith.constant 0 : index
    %133 = vector.load %arg9[%c0_261, %c0_262, %c1_263, %c0_264, %c1_265, %c0_266] : memref<2x9x2x2x9x4xbf16, #tpu.memory_space<vmem>>, vector<2x8x1x1x8x4xbf16>
    %134 = vector.shape_cast %133 : vector<2x8x1x1x8x4xbf16> to vector<128x4xbf16>
    %c0_267 = arith.constant 0 : index
    %c0_268 = arith.constant 0 : index
    %c1_269 = arith.constant 1 : index
    %c1_270 = arith.constant 1 : index
    %c1_271 = arith.constant 1 : index
    %c0_272 = arith.constant 0 : index
    %135 = vector.load %arg9[%c0_267, %c0_268, %c1_269, %c1_270, %c1_271, %c0_272] : memref<2x9x2x2x9x4xbf16, #tpu.memory_space<vmem>>, vector<2x8x1x1x8x4xbf16>
    %136 = vector.shape_cast %135 : vector<2x8x1x1x8x4xbf16> to vector<128x4xbf16>
    %137 = tpu.concatenate %132, %134, %136 in 1 : vector<128x4xbf16>, vector<128x4xbf16>, vector<128x4xbf16> -> vector<128x12xbf16>
    %c0_273 = arith.constant 0 : index
    %c0_274 = arith.constant 0 : index
    %c0_275 = arith.constant 0 : index
    %138 = vector.load %arg2[%c0_273, %c0_274, %c0_275] : memref<3x12x4xbf16, #tpu.memory_space<vmem>>, vector<1x12x4xbf16>
    %139 = vector.shape_cast %138 : vector<1x12x4xbf16> to vector<12x4xbf16>
    %cst_276 = arith.constant dense<0.000000e+00> : vector<128x4xf32>
    %140 = tpu.matmul %137, %139, %cst_276 {dimension_numbers = #tpu.dot_dimension_numbers<[1], [0], [0], [1], [0, 0, 1, 1], [], []>} : vector<128x12xbf16>, vector<12x4xbf16>, vector<128x4xf32> -> vector<128x4xf32>
    %c0_277 = arith.constant 0 : index
    %c1_278 = arith.constant 1 : index
    %c0_279 = arith.constant 0 : index
    %c1_280 = arith.constant 1 : index
    %c0_281 = arith.constant 0 : index
    %c0_282 = arith.constant 0 : index
    %141 = vector.load %arg9[%c0_277, %c1_278, %c0_279, %c1_280, %c0_281, %c0_282] : memref<2x9x2x2x9x4xbf16, #tpu.memory_space<vmem>>, vector<2x8x1x1x8x4xbf16>
    %142 = vector.shape_cast %141 : vector<2x8x1x1x8x4xbf16> to vector<128x4xbf16>
    %c0_283 = arith.constant 0 : index
    %c1_284 = arith.constant 1 : index
    %c0_285 = arith.constant 0 : index
    %c0_286 = arith.constant 0 : index
    %c1_287 = arith.constant 1 : index
    %c0_288 = arith.constant 0 : index
    %143 = vector.load %arg9[%c0_283, %c1_284, %c0_285, %c0_286, %c1_287, %c0_288] : memref<2x9x2x2x9x4xbf16, #tpu.memory_space<vmem>>, vector<2x8x1x1x8x4xbf16>
    %144 = vector.shape_cast %143 : vector<2x8x1x1x8x4xbf16> to vector<128x4xbf16>
    %c0_289 = arith.constant 0 : index
    %c1_290 = arith.constant 1 : index
    %c0_291 = arith.constant 0 : index
    %c1_292 = arith.constant 1 : index
    %c1_293 = arith.constant 1 : index
    %c0_294 = arith.constant 0 : index
    %145 = vector.load %arg9[%c0_289, %c1_290, %c0_291, %c1_292, %c1_293, %c0_294] : memref<2x9x2x2x9x4xbf16, #tpu.memory_space<vmem>>, vector<2x8x1x1x8x4xbf16>
    %146 = vector.shape_cast %145 : vector<2x8x1x1x8x4xbf16> to vector<128x4xbf16>
    %147 = tpu.concatenate %142, %144, %146 in 1 : vector<128x4xbf16>, vector<128x4xbf16>, vector<128x4xbf16> -> vector<128x12xbf16>
    %c1_295 = arith.constant 1 : index
    %c0_296 = arith.constant 0 : index
    %c0_297 = arith.constant 0 : index
    %148 = vector.load %arg2[%c1_295, %c0_296, %c0_297] : memref<3x12x4xbf16, #tpu.memory_space<vmem>>, vector<1x12x4xbf16>
    %149 = vector.shape_cast %148 : vector<1x12x4xbf16> to vector<12x4xbf16>
    %cst_298 = arith.constant dense<0.000000e+00> : vector<128x4xf32>
    %150 = tpu.matmul %147, %149, %cst_298 {dimension_numbers = #tpu.dot_dimension_numbers<[1], [0], [0], [1], [0, 0, 1, 1], [], []>} : vector<128x12xbf16>, vector<12x4xbf16>, vector<128x4xf32> -> vector<128x4xf32>
    %151 = arith.addf %140, %150 : vector<128x4xf32>
    %c0_299 = arith.constant 0 : index
    %c1_300 = arith.constant 1 : index
    %c1_301 = arith.constant 1 : index
    %c1_302 = arith.constant 1 : index
    %c0_303 = arith.constant 0 : index
    %c0_304 = arith.constant 0 : index
    %152 = vector.load %arg9[%c0_299, %c1_300, %c1_301, %c1_302, %c0_303, %c0_304] : memref<2x9x2x2x9x4xbf16, #tpu.memory_space<vmem>>, vector<2x8x1x1x8x4xbf16>
    %153 = vector.shape_cast %152 : vector<2x8x1x1x8x4xbf16> to vector<128x4xbf16>
    %c0_305 = arith.constant 0 : index
    %c1_306 = arith.constant 1 : index
    %c1_307 = arith.constant 1 : index
    %c0_308 = arith.constant 0 : index
    %c1_309 = arith.constant 1 : index
    %c0_310 = arith.constant 0 : index
    %154 = vector.load %arg9[%c0_305, %c1_306, %c1_307, %c0_308, %c1_309, %c0_310] : memref<2x9x2x2x9x4xbf16, #tpu.memory_space<vmem>>, vector<2x8x1x1x8x4xbf16>
    %155 = vector.shape_cast %154 : vector<2x8x1x1x8x4xbf16> to vector<128x4xbf16>
    %c0_311 = arith.constant 0 : index
    %c1_312 = arith.constant 1 : index
    %c1_313 = arith.constant 1 : index
    %c1_314 = arith.constant 1 : index
    %c1_315 = arith.constant 1 : index
    %c0_316 = arith.constant 0 : index
    %156 = vector.load %arg9[%c0_311, %c1_312, %c1_313, %c1_314, %c1_315, %c0_316] : memref<2x9x2x2x9x4xbf16, #tpu.memory_space<vmem>>, vector<2x8x1x1x8x4xbf16>
    %157 = vector.shape_cast %156 : vector<2x8x1x1x8x4xbf16> to vector<128x4xbf16>
    %158 = tpu.concatenate %153, %155, %157 in 1 : vector<128x4xbf16>, vector<128x4xbf16>, vector<128x4xbf16> -> vector<128x12xbf16>
    %c2_317 = arith.constant 2 : index
    %c0_318 = arith.constant 0 : index
    %c0_319 = arith.constant 0 : index
    %159 = vector.load %arg2[%c2_317, %c0_318, %c0_319] : memref<3x12x4xbf16, #tpu.memory_space<vmem>>, vector<1x12x4xbf16>
    %160 = vector.shape_cast %159 : vector<1x12x4xbf16> to vector<12x4xbf16>
    %cst_320 = arith.constant dense<0.000000e+00> : vector<128x4xf32>
    %161 = tpu.matmul %158, %160, %cst_320 {dimension_numbers = #tpu.dot_dimension_numbers<[1], [0], [0], [1], [0, 0, 1, 1], [], []>} : vector<128x12xbf16>, vector<12x4xbf16>, vector<128x4xf32> -> vector<128x4xf32>
    %162 = arith.addf %151, %161 : vector<128x4xf32>
    %c0_321 = arith.constant 0 : index
    %c0_322 = arith.constant 0 : index
    %163 = vector.load %arg3[%c0_321, %c0_322] : memref<1x4xf32, #tpu.memory_space<vmem>>, vector<1x4xf32>
    %c0_323 = arith.constant 0 : index
    %c0_324 = arith.constant 0 : index
    %164 = vector.load %arg4[%c0_323, %c0_324] : memref<1x4xf32, #tpu.memory_space<vmem>>, vector<1x4xf32>
    %cst_325 = arith.constant dense<0.000000e+00> : vector<4xf32>
    %165 = vector.multi_reduction <add>, %66, %cst_325 [0] : vector<128x4xf32> to vector<4xf32>
    %166 = vector.shape_cast %165 : vector<4xf32> to vector<1x4xf32>
    %cst_326 = arith.constant 0.000000e+00 : f32
    %167 = vector.broadcast %cst_326 : f32 to vector<1x4xf32>
    %168 = arith.addf %167, %166 : vector<1x4xf32>
    %cst_327 = arith.constant dense<0.000000e+00> : vector<4xf32>
    %169 = vector.multi_reduction <add>, %98, %cst_327 [0] : vector<128x4xf32> to vector<4xf32>
    %170 = vector.shape_cast %169 : vector<4xf32> to vector<1x4xf32>
    %171 = arith.addf %168, %170 : vector<1x4xf32>
    %cst_328 = arith.constant dense<0.000000e+00> : vector<4xf32>
    %172 = vector.multi_reduction <add>, %130, %cst_328 [0] : vector<128x4xf32> to vector<4xf32>
    %173 = vector.shape_cast %172 : vector<4xf32> to vector<1x4xf32>
    %174 = arith.addf %171, %173 : vector<1x4xf32>
    %cst_329 = arith.constant dense<0.000000e+00> : vector<4xf32>
    %175 = vector.multi_reduction <add>, %162, %cst_329 [0] : vector<128x4xf32> to vector<4xf32>
    %176 = vector.shape_cast %175 : vector<4xf32> to vector<1x4xf32>
    %177 = arith.addf %174, %176 : vector<1x4xf32>
    %cst_330 = arith.constant 0.001953125 : f32
    %178 = vector.broadcast %cst_330 : f32 to vector<1x4xf32>
    %179 = arith.mulf %177, %178 : vector<1x4xf32>
    %180 = vector.broadcast %179 : vector<1x4xf32> to vector<128x4xf32>
    %181 = arith.subf %66, %180 : vector<128x4xf32>
    %182 = vector.broadcast %179 : vector<1x4xf32> to vector<128x4xf32>
    %183 = arith.subf %66, %182 : vector<128x4xf32>
    %184 = arith.mulf %181, %183 : vector<128x4xf32>
    %cst_331 = arith.constant dense<0.000000e+00> : vector<4xf32>
    %185 = vector.multi_reduction <add>, %184, %cst_331 [0] : vector<128x4xf32> to vector<4xf32>
    %186 = vector.shape_cast %185 : vector<4xf32> to vector<1x4xf32>
    %cst_332 = arith.constant 0.000000e+00 : f32
    %187 = vector.broadcast %cst_332 : f32 to vector<1x4xf32>
    %188 = arith.addf %187, %186 : vector<1x4xf32>
    %189 = vector.broadcast %179 : vector<1x4xf32> to vector<128x4xf32>
    %190 = arith.subf %98, %189 : vector<128x4xf32>
    %191 = vector.broadcast %179 : vector<1x4xf32> to vector<128x4xf32>
    %192 = arith.subf %98, %191 : vector<128x4xf32>
    %193 = arith.mulf %190, %192 : vector<128x4xf32>
    %cst_333 = arith.constant dense<0.000000e+00> : vector<4xf32>
    %194 = vector.multi_reduction <add>, %193, %cst_333 [0] : vector<128x4xf32> to vector<4xf32>
    %195 = vector.shape_cast %194 : vector<4xf32> to vector<1x4xf32>
    %196 = arith.addf %188, %195 : vector<1x4xf32>
    %197 = vector.broadcast %179 : vector<1x4xf32> to vector<128x4xf32>
    %198 = arith.subf %130, %197 : vector<128x4xf32>
    %199 = vector.broadcast %179 : vector<1x4xf32> to vector<128x4xf32>
    %200 = arith.subf %130, %199 : vector<128x4xf32>
    %201 = arith.mulf %198, %200 : vector<128x4xf32>
    %cst_334 = arith.constant dense<0.000000e+00> : vector<4xf32>
    %202 = vector.multi_reduction <add>, %201, %cst_334 [0] : vector<128x4xf32> to vector<4xf32>
    %203 = vector.shape_cast %202 : vector<4xf32> to vector<1x4xf32>
    %204 = arith.addf %196, %203 : vector<1x4xf32>
    %205 = vector.broadcast %179 : vector<1x4xf32> to vector<128x4xf32>
    %206 = arith.subf %162, %205 : vector<128x4xf32>
    %207 = vector.broadcast %179 : vector<1x4xf32> to vector<128x4xf32>
    %208 = arith.subf %162, %207 : vector<128x4xf32>
    %209 = arith.mulf %206, %208 : vector<128x4xf32>
    %cst_335 = arith.constant dense<0.000000e+00> : vector<4xf32>
    %210 = vector.multi_reduction <add>, %209, %cst_335 [0] : vector<128x4xf32> to vector<4xf32>
    %211 = vector.shape_cast %210 : vector<4xf32> to vector<1x4xf32>
    %212 = arith.addf %204, %211 : vector<1x4xf32>
    %cst_336 = arith.constant 0.001953125 : f32
    %213 = vector.broadcast %cst_336 : f32 to vector<1x4xf32>
    %214 = arith.mulf %212, %213 : vector<1x4xf32>
    %cst_337 = arith.constant 9.99999974E-6 : f32
    %215 = vector.broadcast %cst_337 : f32 to vector<1x4xf32>
    %216 = arith.addf %214, %215 : vector<1x4xf32>
    %217 = math.rsqrt %216 : vector<1x4xf32>
    %218 = arith.mulf %163, %217 : vector<1x4xf32>
    %219 = arith.mulf %179, %218 : vector<1x4xf32>
    %220 = arith.subf %164, %219 : vector<1x4xf32>
    %221 = vector.broadcast %218 : vector<1x4xf32> to vector<128x4xf32>
    %222 = arith.mulf %66, %221 : vector<128x4xf32>
    %223 = vector.broadcast %220 : vector<1x4xf32> to vector<128x4xf32>
    %224 = arith.addf %222, %223 : vector<128x4xf32>
    %cst_338 = arith.constant 0.000000e+00 : f32
    %225 = vector.broadcast %cst_338 : f32 to vector<128x4xf32>
    %226 = arith.maximumf %224, %225 : vector<128x4xf32>
    %227 = vector.broadcast %218 : vector<1x4xf32> to vector<128x4xf32>
    %228 = arith.mulf %98, %227 : vector<128x4xf32>
    %229 = vector.broadcast %220 : vector<1x4xf32> to vector<128x4xf32>
    %230 = arith.addf %228, %229 : vector<128x4xf32>
    %cst_339 = arith.constant 0.000000e+00 : f32
    %231 = vector.broadcast %cst_339 : f32 to vector<128x4xf32>
    %232 = arith.maximumf %230, %231 : vector<128x4xf32>
    %233 = vector.broadcast %218 : vector<1x4xf32> to vector<128x4xf32>
    %234 = arith.mulf %130, %233 : vector<128x4xf32>
    %235 = vector.broadcast %220 : vector<1x4xf32> to vector<128x4xf32>
    %236 = arith.addf %234, %235 : vector<128x4xf32>
    %cst_340 = arith.constant 0.000000e+00 : f32
    %237 = vector.broadcast %cst_340 : f32 to vector<128x4xf32>
    %238 = arith.maximumf %236, %237 : vector<128x4xf32>
    %239 = vector.broadcast %218 : vector<1x4xf32> to vector<128x4xf32>
    %240 = arith.mulf %162, %239 : vector<128x4xf32>
    %241 = vector.broadcast %220 : vector<1x4xf32> to vector<128x4xf32>
    %242 = arith.addf %240, %241 : vector<128x4xf32>
    %cst_341 = arith.constant 0.000000e+00 : f32
    %243 = vector.broadcast %cst_341 : f32 to vector<128x4xf32>
    %244 = arith.maximumf %242, %243 : vector<128x4xf32>
    %cst_342 = arith.constant 0.000000e+00 : bf16
    %245 = vector.broadcast %cst_342 : bf16 to vector<2x1x1x2x9x4xbf16>
    %c0_343 = arith.constant 0 : index
    %c0_344 = arith.constant 0 : index
    %c0_345 = arith.constant 0 : index
    %c0_346 = arith.constant 0 : index
    %c0_347 = arith.constant 0 : index
    %c0_348 = arith.constant 0 : index
    %246 = vector.load %arg10[%c0_343, %c0_344, %c0_345, %c0_346, %c0_347, %c0_348] : memref<2x9x2x2x9x4xbf16, #tpu.memory_space<vmem>>, vector<2x1x1x2x9x4xbf16>
    tpu.vector_store %arg10[%c0_343, %c0_344, %c0_345, %c0_346, %c0_347, %c0_348], %245 {strides = array<i32>} : memref<2x9x2x2x9x4xbf16, #tpu.memory_space<vmem>>, vector<2x1x1x2x9x4xbf16>,
    %c0_349 = arith.constant 0 : index
    %c8_350 = arith.constant 8 : index
    %c1_351 = arith.constant 1 : index
    %c0_352 = arith.constant 0 : index
    %c0_353 = arith.constant 0 : index
    %c0_354 = arith.constant 0 : index
    %247 = vector.load %arg10[%c0_349, %c8_350, %c1_351, %c0_352, %c0_353, %c0_354] : memref<2x9x2x2x9x4xbf16, #tpu.memory_space<vmem>>, vector<2x1x1x2x9x4xbf16>
    tpu.vector_store %arg10[%c0_349, %c8_350, %c1_351, %c0_352, %c0_353, %c0_354], %245 {strides = array<i32>} : memref<2x9x2x2x9x4xbf16, #tpu.memory_space<vmem>>, vector<2x1x1x2x9x4xbf16>,
    %cst_355 = arith.constant 0.000000e+00 : bf16
    %248 = vector.broadcast %cst_355 : bf16 to vector<2x9x2x1x1x4xbf16>
    %c0_356 = arith.constant 0 : index
    %c0_357 = arith.constant 0 : index
    %c0_358 = arith.constant 0 : index
    %c0_359 = arith.constant 0 : index
    %c0_360 = arith.constant 0 : index
    %c0_361 = arith.constant 0 : index
    %249 = vector.load %arg10[%c0_356, %c0_357, %c0_358, %c0_359, %c0_360, %c0_361] : memref<2x9x2x2x9x4xbf16, #tpu.memory_space<vmem>>, vector<2x9x2x1x1x4xbf16>
    tpu.vector_store %arg10[%c0_356, %c0_357, %c0_358, %c0_359, %c0_360, %c0_361], %248 {strides = array<i32>} : memref<2x9x2x2x9x4xbf16, #tpu.memory_space<vmem>>, vector<2x9x2x1x1x4xbf16>,
    %c0_362 = arith.constant 0 : index
    %c0_363 = arith.constant 0 : index
    %c0_364 = arith.constant 0 : index
    %c1_365 = arith.constant 1 : index
    %c8_366 = arith.constant 8 : index
    %c0_367 = arith.constant 0 : index
    %250 = vector.load %arg10[%c0_362, %c0_363, %c0_364, %c1_365, %c8_366, %c0_367] : memref<2x9x2x2x9x4xbf16, #tpu.memory_space<vmem>>, vector<2x9x2x1x1x4xbf16>
    tpu.vector_store %arg10[%c0_362, %c0_363, %c0_364, %c1_365, %c8_366, %c0_367], %248 {strides = array<i32>} : memref<2x9x2x2x9x4xbf16, #tpu.memory_space<vmem>>, vector<2x9x2x1x1x4xbf16>,
    %251 = vector.shape_cast %226 : vector<128x4xf32> to vector<2x8x1x1x8x4xf32>
    %252 = arith.truncf %251 : vector<2x8x1x1x8x4xf32> to vector<2x8x1x1x8x4xbf16>
    %c0_368 = arith.constant 0 : index
    %c0_369 = arith.constant 0 : index
    %c1_370 = arith.constant 1 : index
    %c1_371 = arith.constant 1 : index
    %c0_372 = arith.constant 0 : index
    %c0_373 = arith.constant 0 : index
    %253 = vector.load %arg10[%c0_368, %c0_369, %c1_370, %c1_371, %c0_372, %c0_373] : memref<2x9x2x2x9x4xbf16, #tpu.memory_space<vmem>>, vector<2x8x1x1x8x4xbf16>
    tpu.vector_store %arg10[%c0_368, %c0_369, %c1_370, %c1_371, %c0_372, %c0_373], %252 {strides = array<i32>} : memref<2x9x2x2x9x4xbf16, #tpu.memory_space<vmem>>, vector<2x8x1x1x8x4xbf16>,
    %254 = vector.shape_cast %232 : vector<128x4xf32> to vector<2x8x1x1x8x4xf32>
    %255 = arith.truncf %254 : vector<2x8x1x1x8x4xf32> to vector<2x8x1x1x8x4xbf16>
    %c0_374 = arith.constant 0 : index
    %c0_375 = arith.constant 0 : index
    %c1_376 = arith.constant 1 : index
    %c0_377 = arith.constant 0 : index
    %c1_378 = arith.constant 1 : index
    %c0_379 = arith.constant 0 : index
    %256 = vector.load %arg10[%c0_374, %c0_375, %c1_376, %c0_377, %c1_378, %c0_379] : memref<2x9x2x2x9x4xbf16, #tpu.memory_space<vmem>>, vector<2x8x1x1x8x4xbf16>
    tpu.vector_store %arg10[%c0_374, %c0_375, %c1_376, %c0_377, %c1_378, %c0_379], %255 {strides = array<i32>} : memref<2x9x2x2x9x4xbf16, #tpu.memory_space<vmem>>, vector<2x8x1x1x8x4xbf16>,
    %257 = vector.shape_cast %238 : vector<128x4xf32> to vector<2x8x1x1x8x4xf32>
    %258 = arith.truncf %257 : vector<2x8x1x1x8x4xf32> to vector<2x8x1x1x8x4xbf16>
    %c0_380 = arith.constant 0 : index
    %c1_381 = arith.constant 1 : index
    %c0_382 = arith.constant 0 : index
    %c1_383 = arith.constant 1 : index
    %c0_384 = arith.constant 0 : index
    %c0_385 = arith.constant 0 : index
    %259 = vector.load %arg10[%c0_380, %c1_381, %c0_382, %c1_383, %c0_384, %c0_385] : memref<2x9x2x2x9x4xbf16, #tpu.memory_space<vmem>>, vector<2x8x1x1x8x4xbf16>
    tpu.vector_store %arg10[%c0_380, %c1_381, %c0_382, %c1_383, %c0_384, %c0_385], %258 {strides = array<i32>} : memref<2x9x2x2x9x4xbf16, #tpu.memory_space<vmem>>, vector<2x8x1x1x8x4xbf16>,
    %260 = vector.shape_cast %244 : vector<128x4xf32> to vector<2x8x1x1x8x4xf32>
    %261 = arith.truncf %260 : vector<2x8x1x1x8x4xf32> to vector<2x8x1x1x8x4xbf16>
    %c0_386 = arith.constant 0 : index
    %c1_387 = arith.constant 1 : index
    %c0_388 = arith.constant 0 : index
    %c0_389 = arith.constant 0 : index
    %c1_390 = arith.constant 1 : index
    %c0_391 = arith.constant 0 : index
    %262 = vector.load %arg10[%c0_386, %c1_387, %c0_388, %c0_389, %c1_390, %c0_391] : memref<2x9x2x2x9x4xbf16, #tpu.memory_space<vmem>>, vector<2x8x1x1x8x4xbf16>
    tpu.vector_store %arg10[%c0_386, %c1_387, %c0_388, %c0_389, %c1_390, %c0_391], %261 {strides = array<i32>} : memref<2x9x2x2x9x4xbf16, #tpu.memory_space<vmem>>, vector<2x8x1x1x8x4xbf16>,
    %c0_392 = arith.constant 0 : index
    %c0_393 = arith.constant 0 : index
    %c0_394 = arith.constant 0 : index
    %c0_395 = arith.constant 0 : index
    %c0_396 = arith.constant 0 : index
    %c0_397 = arith.constant 0 : index
    %263 = vector.load %arg10[%c0_392, %c0_393, %c0_394, %c0_395, %c0_396, %c0_397] : memref<2x9x2x2x9x4xbf16, #tpu.memory_space<vmem>>, vector<2x8x1x1x8x4xbf16>
    %264 = vector.shape_cast %263 : vector<2x8x1x1x8x4xbf16> to vector<128x4xbf16>
    %c0_398 = arith.constant 0 : index
    %c0_399 = arith.constant 0 : index
    %c0_400 = arith.constant 0 : index
    %c1_401 = arith.constant 1 : index
    %c0_402 = arith.constant 0 : index
    %c0_403 = arith.constant 0 : index
    %265 = vector.load %arg10[%c0_398, %c0_399, %c0_400, %c1_401, %c0_402, %c0_403] : memref<2x9x2x2x9x4xbf16, #tpu.memory_space<vmem>>, vector<2x8x1x1x8x4xbf16>
    %266 = vector.shape_cast %265 : vector<2x8x1x1x8x4xbf16> to vector<128x4xbf16>
    %c0_404 = arith.constant 0 : index
    %c0_405 = arith.constant 0 : index
    %c0_406 = arith.constant 0 : index
    %c0_407 = arith.constant 0 : index
    %c1_408 = arith.constant 1 : index
    %c0_409 = arith.constant 0 : index
    %267 = vector.load %arg10[%c0_404, %c0_405, %c0_406, %c0_407, %c1_408, %c0_409] : memref<2x9x2x2x9x4xbf16, #tpu.memory_space<vmem>>, vector<2x8x1x1x8x4xbf16>
    %268 = vector.shape_cast %267 : vector<2x8x1x1x8x4xbf16> to vector<128x4xbf16>
    %269 = tpu.concatenate %264, %266, %268 in 1 : vector<128x4xbf16>, vector<128x4xbf16>, vector<128x4xbf16> -> vector<128x12xbf16>
    %c0_410 = arith.constant 0 : index
    %c0_411 = arith.constant 0 : index
    %c0_412 = arith.constant 0 : index
    %270 = vector.load %arg5[%c0_410, %c0_411, %c0_412] : memref<3x12x4xbf16, #tpu.memory_space<vmem>>, vector<1x12x4xbf16>
    %271 = vector.shape_cast %270 : vector<1x12x4xbf16> to vector<12x4xbf16>
    %cst_413 = arith.constant dense<0.000000e+00> : vector<128x4xf32>
    %272 = tpu.matmul %269, %271, %cst_413 {dimension_numbers = #tpu.dot_dimension_numbers<[1], [0], [0], [1], [0, 0, 1, 1], [], []>} : vector<128x12xbf16>, vector<12x4xbf16>, vector<128x4xf32> -> vector<128x4xf32>
    %c0_414 = arith.constant 0 : index
    %c0_415 = arith.constant 0 : index
    %c1_416 = arith.constant 1 : index
    %c0_417 = arith.constant 0 : index
    %c0_418 = arith.constant 0 : index
    %c0_419 = arith.constant 0 : index
    %273 = vector.load %arg10[%c0_414, %c0_415, %c1_416, %c0_417, %c0_418, %c0_419] : memref<2x9x2x2x9x4xbf16, #tpu.memory_space<vmem>>, vector<2x8x1x1x8x4xbf16>
    %274 = vector.shape_cast %273 : vector<2x8x1x1x8x4xbf16> to vector<128x4xbf16>
    %c0_420 = arith.constant 0 : index
    %c0_421 = arith.constant 0 : index
    %c1_422 = arith.constant 1 : index
    %c1_423 = arith.constant 1 : index
    %c0_424 = arith.constant 0 : index
    %c0_425 = arith.constant 0 : index
    %275 = vector.load %arg10[%c0_420, %c0_421, %c1_422, %c1_423, %c0_424, %c0_425] : memref<2x9x2x2x9x4xbf16, #tpu.memory_space<vmem>>, vector<2x8x1x1x8x4xbf16>
    %276 = vector.shape_cast %275 : vector<2x8x1x1x8x4xbf16> to vector<128x4xbf16>
    %c0_426 = arith.constant 0 : index
    %c0_427 = arith.constant 0 : index
    %c1_428 = arith.constant 1 : index
    %c0_429 = arith.constant 0 : index
    %c1_430 = arith.constant 1 : index
    %c0_431 = arith.constant 0 : index
    %277 = vector.load %arg10[%c0_426, %c0_427, %c1_428, %c0_429, %c1_430, %c0_431] : memref<2x9x2x2x9x4xbf16, #tpu.memory_space<vmem>>, vector<2x8x1x1x8x4xbf16>
    %278 = vector.shape_cast %277 : vector<2x8x1x1x8x4xbf16> to vector<128x4xbf16>
    %279 = tpu.concatenate %274, %276, %278 in 1 : vector<128x4xbf16>, vector<128x4xbf16>, vector<128x4xbf16> -> vector<128x12xbf16>
    %c1_432 = arith.constant 1 : index
    %c0_433 = arith.constant 0 : index
    %c0_434 = arith.constant 0 : index
    %280 = vector.load %arg5[%c1_432, %c0_433, %c0_434] : memref<3x12x4xbf16, #tpu.memory_space<vmem>>, vector<1x12x4xbf16>
    %281 = vector.shape_cast %280 : vector<1x12x4xbf16> to vector<12x4xbf16>
    %cst_435 = arith.constant dense<0.000000e+00> : vector<128x4xf32>
    %282 = tpu.matmul %279, %281, %cst_435 {dimension_numbers = #tpu.dot_dimension_numbers<[1], [0], [0], [1], [0, 0, 1, 1], [], []>} : vector<128x12xbf16>, vector<12x4xbf16>, vector<128x4xf32> -> vector<128x4xf32>
    %283 = arith.addf %272, %282 : vector<128x4xf32>
    %c0_436 = arith.constant 0 : index
    %c1_437 = arith.constant 1 : index
    %c0_438 = arith.constant 0 : index
    %c0_439 = arith.constant 0 : index
    %c0_440 = arith.constant 0 : index
    %c0_441 = arith.constant 0 : index
    %284 = vector.load %arg10[%c0_436, %c1_437, %c0_438, %c0_439, %c0_440, %c0_441] : memref<2x9x2x2x9x4xbf16, #tpu.memory_space<vmem>>, vector<2x8x1x1x8x4xbf16>
    %285 = vector.shape_cast %284 : vector<2x8x1x1x8x4xbf16> to vector<128x4xbf16>
    %c0_442 = arith.constant 0 : index
    %c1_443 = arith.constant 1 : index
    %c0_444 = arith.constant 0 : index
    %c1_445 = arith.constant 1 : index
    %c0_446 = arith.constant 0 : index
    %c0_447 = arith.constant 0 : index
    %286 = vector.load %arg10[%c0_442, %c1_443, %c0_444, %c1_445, %c0_446, %c0_447] : memref<2x9x2x2x9x4xbf16, #tpu.memory_space<vmem>>, vector<2x8x1x1x8x4xbf16>
    %287 = vector.shape_cast %286 : vector<2x8x1x1x8x4xbf16> to vector<128x4xbf16>
    %c0_448 = arith.constant 0 : index
    %c1_449 = arith.constant 1 : index
    %c0_450 = arith.constant 0 : index
    %c0_451 = arith.constant 0 : index
    %c1_452 = arith.constant 1 : index
    %c0_453 = arith.constant 0 : index
    %288 = vector.load %arg10[%c0_448, %c1_449, %c0_450, %c0_451, %c1_452, %c0_453] : memref<2x9x2x2x9x4xbf16, #tpu.memory_space<vmem>>, vector<2x8x1x1x8x4xbf16>
    %289 = vector.shape_cast %288 : vector<2x8x1x1x8x4xbf16> to vector<128x4xbf16>
    %290 = tpu.concatenate %285, %287, %289 in 1 : vector<128x4xbf16>, vector<128x4xbf16>, vector<128x4xbf16> -> vector<128x12xbf16>
    %c2_454 = arith.constant 2 : index
    %c0_455 = arith.constant 0 : index
    %c0_456 = arith.constant 0 : index
    %291 = vector.load %arg5[%c2_454, %c0_455, %c0_456] : memref<3x12x4xbf16, #tpu.memory_space<vmem>>, vector<1x12x4xbf16>
    %292 = vector.shape_cast %291 : vector<1x12x4xbf16> to vector<12x4xbf16>
    %cst_457 = arith.constant dense<0.000000e+00> : vector<128x4xf32>
    %293 = tpu.matmul %290, %292, %cst_457 {dimension_numbers = #tpu.dot_dimension_numbers<[1], [0], [0], [1], [0, 0, 1, 1], [], []>} : vector<128x12xbf16>, vector<12x4xbf16>, vector<128x4xf32> -> vector<128x4xf32>
    %294 = arith.addf %283, %293 : vector<128x4xf32>
    %c0_458 = arith.constant 0 : index
    %c0_459 = arith.constant 0 : index
    %c0_460 = arith.constant 0 : index
    %c1_461 = arith.constant 1 : index
    %c0_462 = arith.constant 0 : index
    %c0_463 = arith.constant 0 : index
    %295 = vector.load %arg10[%c0_458, %c0_459, %c0_460, %c1_461, %c0_462, %c0_463] : memref<2x9x2x2x9x4xbf16, #tpu.memory_space<vmem>>, vector<2x8x1x1x8x4xbf16>
    %296 = vector.shape_cast %295 : vector<2x8x1x1x8x4xbf16> to vector<128x4xbf16>
    %c0_464 = arith.constant 0 : index
    %c0_465 = arith.constant 0 : index
    %c0_466 = arith.constant 0 : index
    %c0_467 = arith.constant 0 : index
    %c1_468 = arith.constant 1 : index
    %c0_469 = arith.constant 0 : index
    %297 = vector.load %arg10[%c0_464, %c0_465, %c0_466, %c0_467, %c1_468, %c0_469] : memref<2x9x2x2x9x4xbf16, #tpu.memory_space<vmem>>, vector<2x8x1x1x8x4xbf16>
    %298 = vector.shape_cast %297 : vector<2x8x1x1x8x4xbf16> to vector<128x4xbf16>
    %c0_470 = arith.constant 0 : index
    %c0_471 = arith.constant 0 : index
    %c0_472 = arith.constant 0 : index
    %c1_473 = arith.constant 1 : index
    %c1_474 = arith.constant 1 : index
    %c0_475 = arith.constant 0 : index
    %299 = vector.load %arg10[%c0_470, %c0_471, %c0_472, %c1_473, %c1_474, %c0_475] : memref<2x9x2x2x9x4xbf16, #tpu.memory_space<vmem>>, vector<2x8x1x1x8x4xbf16>
    %300 = vector.shape_cast %299 : vector<2x8x1x1x8x4xbf16> to vector<128x4xbf16>
    %301 = tpu.concatenate %296, %298, %300 in 1 : vector<128x4xbf16>, vector<128x4xbf16>, vector<128x4xbf16> -> vector<128x12xbf16>
    %c0_476 = arith.constant 0 : index
    %c0_477 = arith.constant 0 : index
    %c0_478 = arith.constant 0 : index
    %302 = vector.load %arg5[%c0_476, %c0_477, %c0_478] : memref<3x12x4xbf16, #tpu.memory_space<vmem>>, vector<1x12x4xbf16>
    %303 = vector.shape_cast %302 : vector<1x12x4xbf16> to vector<12x4xbf16>
    %cst_479 = arith.constant dense<0.000000e+00> : vector<128x4xf32>
    %304 = tpu.matmul %301, %303, %cst_479 {dimension_numbers = #tpu.dot_dimension_numbers<[1], [0], [0], [1], [0, 0, 1, 1], [], []>} : vector<128x12xbf16>, vector<12x4xbf16>, vector<128x4xf32> -> vector<128x4xf32>
    %c0_480 = arith.constant 0 : index
    %c0_481 = arith.constant 0 : index
    %c1_482 = arith.constant 1 : index
    %c1_483 = arith.constant 1 : index
    %c0_484 = arith.constant 0 : index
    %c0_485 = arith.constant 0 : index
    %305 = vector.load %arg10[%c0_480, %c0_481, %c1_482, %c1_483, %c0_484, %c0_485] : memref<2x9x2x2x9x4xbf16, #tpu.memory_space<vmem>>, vector<2x8x1x1x8x4xbf16>
    %306 = vector.shape_cast %305 : vector<2x8x1x1x8x4xbf16> to vector<128x4xbf16>
    %c0_486 = arith.constant 0 : index
    %c0_487 = arith.constant 0 : index
    %c1_488 = arith.constant 1 : index
    %c0_489 = arith.constant 0 : index
    %c1_490 = arith.constant 1 : index
    %c0_491 = arith.constant 0 : index
    %307 = vector.load %arg10[%c0_486, %c0_487, %c1_488, %c0_489, %c1_490, %c0_491] : memref<2x9x2x2x9x4xbf16, #tpu.memory_space<vmem>>, vector<2x8x1x1x8x4xbf16>
    %308 = vector.shape_cast %307 : vector<2x8x1x1x8x4xbf16> to vector<128x4xbf16>
    %c0_492 = arith.constant 0 : index
    %c0_493 = arith.constant 0 : index
    %c1_494 = arith.constant 1 : index
    %c1_495 = arith.constant 1 : index
    %c1_496 = arith.constant 1 : index
    %c0_497 = arith.constant 0 : index
    %309 = vector.load %arg10[%c0_492, %c0_493, %c1_494, %c1_495, %c1_496, %c0_497] : memref<2x9x2x2x9x4xbf16, #tpu.memory_space<vmem>>, vector<2x8x1x1x8x4xbf16>
    %310 = vector.shape_cast %309 : vector<2x8x1x1x8x4xbf16> to vector<128x4xbf16>
    %311 = tpu.concatenate %306, %308, %310 in 1 : vector<128x4xbf16>, vector<128x4xbf16>, vector<128x4xbf16> -> vector<128x12xbf16>
    %c1_498 = arith.constant 1 : index
    %c0_499 = arith.constant 0 : index
    %c0_500 = arith.constant 0 : index
    %312 = vector.load %arg5[%c1_498, %c0_499, %c0_500] : memref<3x12x4xbf16, #tpu.memory_space<vmem>>, vector<1x12x4xbf16>
    %313 = vector.shape_cast %312 : vector<1x12x4xbf16> to vector<12x4xbf16>
    %cst_501 = arith.constant dense<0.000000e+00> : vector<128x4xf32>
    %314 = tpu.matmul %311, %313, %cst_501 {dimension_numbers = #tpu.dot_dimension_numbers<[1], [0], [0], [1], [0, 0, 1, 1], [], []>} : vector<128x12xbf16>, vector<12x4xbf16>, vector<128x4xf32> -> vector<128x4xf32>
    %315 = arith.addf %304, %314 : vector<128x4xf32>
    %c0_502 = arith.constant 0 : index
    %c1_503 = arith.constant 1 : index
    %c0_504 = arith.constant 0 : index
    %c1_505 = arith.constant 1 : index
    %c0_506 = arith.constant 0 : index
    %c0_507 = arith.constant 0 : index
    %316 = vector.load %arg10[%c0_502, %c1_503, %c0_504, %c1_505, %c0_506, %c0_507] : memref<2x9x2x2x9x4xbf16, #tpu.memory_space<vmem>>, vector<2x8x1x1x8x4xbf16>
    %317 = vector.shape_cast %316 : vector<2x8x1x1x8x4xbf16> to vector<128x4xbf16>
    %c0_508 = arith.constant 0 : index
    %c1_509 = arith.constant 1 : index
    %c0_510 = arith.constant 0 : index
    %c0_511 = arith.constant 0 : index
    %c1_512 = arith.constant 1 : index
    %c0_513 = arith.constant 0 : index
    %318 = vector.load %arg10[%c0_508, %c1_509, %c0_510, %c0_511, %c1_512, %c0_513] : memref<2x9x2x2x9x4xbf16, #tpu.memory_space<vmem>>, vector<2x8x1x1x8x4xbf16>
    %319 = vector.shape_cast %318 : vector<2x8x1x1x8x4xbf16> to vector<128x4xbf16>
    %c0_514 = arith.constant 0 : index
    %c1_515 = arith.constant 1 : index
    %c0_516 = arith.constant 0 : index
    %c1_517 = arith.constant 1 : index
    %c1_518 = arith.constant 1 : index
    %c0_519 = arith.constant 0 : index
    %320 = vector.load %arg10[%c0_514, %c1_515, %c0_516, %c1_517, %c1_518, %c0_519] : memref<2x9x2x2x9x4xbf16, #tpu.memory_space<vmem>>, vector<2x8x1x1x8x4xbf16>
    %321 = vector.shape_cast %320 : vector<2x8x1x1x8x4xbf16> to vector<128x4xbf16>
    %322 = tpu.concatenate %317, %319, %321 in 1 : vector<128x4xbf16>, vector<128x4xbf16>, vector<128x4xbf16> -> vector<128x12xbf16>
    %c2_520 = arith.constant 2 : index
    %c0_521 = arith.constant 0 : index
    %c0_522 = arith.constant 0 : index
    %323 = vector.load %arg5[%c2_520, %c0_521, %c0_522] : memref<3x12x4xbf16, #tpu.memory_space<vmem>>, vector<1x12x4xbf16>
    %324 = vector.shape_cast %323 : vector<1x12x4xbf16> to vector<12x4xbf16>
    %cst_523 = arith.constant dense<0.000000e+00> : vector<128x4xf32>
    %325 = tpu.matmul %322, %324, %cst_523 {dimension_numbers = #tpu.dot_dimension_numbers<[1], [0], [0], [1], [0, 0, 1, 1], [], []>} : vector<128x12xbf16>, vector<12x4xbf16>, vector<128x4xf32> -> vector<128x4xf32>
    %326 = arith.addf %315, %325 : vector<128x4xf32>
    %c0_524 = arith.constant 0 : index
    %c0_525 = arith.constant 0 : index
    %c1_526 = arith.constant 1 : index
    %c0_527 = arith.constant 0 : index
    %c0_528 = arith.constant 0 : index
    %c0_529 = arith.constant 0 : index
    %327 = vector.load %arg10[%c0_524, %c0_525, %c1_526, %c0_527, %c0_528, %c0_529] : memref<2x9x2x2x9x4xbf16, #tpu.memory_space<vmem>>, vector<2x8x1x1x8x4xbf16>
    %328 = vector.shape_cast %327 : vector<2x8x1x1x8x4xbf16> to vector<128x4xbf16>
    %c0_530 = arith.constant 0 : index
    %c0_531 = arith.constant 0 : index
    %c1_532 = arith.constant 1 : index
    %c1_533 = arith.constant 1 : index
    %c0_534 = arith.constant 0 : index
    %c0_535 = arith.constant 0 : index
    %329 = vector.load %arg10[%c0_530, %c0_531, %c1_532, %c1_533, %c0_534, %c0_535] : memref<2x9x2x2x9x4xbf16, #tpu.memory_space<vmem>>, vector<2x8x1x1x8x4xbf16>
    %330 = vector.shape_cast %329 : vector<2x8x1x1x8x4xbf16> to vector<128x4xbf16>
    %c0_536 = arith.constant 0 : index
    %c0_537 = arith.constant 0 : index
    %c1_538 = arith.constant 1 : index
    %c0_539 = arith.constant 0 : index
    %c1_540 = arith.constant 1 : index
    %c0_541 = arith.constant 0 : index
    %331 = vector.load %arg10[%c0_536, %c0_537, %c1_538, %c0_539, %c1_540, %c0_541] : memref<2x9x2x2x9x4xbf16, #tpu.memory_space<vmem>>, vector<2x8x1x1x8x4xbf16>
    %332 = vector.shape_cast %331 : vector<2x8x1x1x8x4xbf16> to vector<128x4xbf16>
    %333 = tpu.concatenate %328, %330, %332 in 1 : vector<128x4xbf16>, vector<128x4xbf16>, vector<128x4xbf16> -> vector<128x12xbf16>
    %c0_542 = arith.constant 0 : index
    %c0_543 = arith.constant 0 : index
    %c0_544 = arith.constant 0 : index
    %334 = vector.load %arg5[%c0_542, %c0_543, %c0_544] : memref<3x12x4xbf16, #tpu.memory_space<vmem>>, vector<1x12x4xbf16>
    %335 = vector.shape_cast %334 : vector<1x12x4xbf16> to vector<12x4xbf16>
    %cst_545 = arith.constant dense<0.000000e+00> : vector<128x4xf32>
    %336 = tpu.matmul %333, %335, %cst_545 {dimension_numbers = #tpu.dot_dimension_numbers<[1], [0], [0], [1], [0, 0, 1, 1], [], []>} : vector<128x12xbf16>, vector<12x4xbf16>, vector<128x4xf32> -> vector<128x4xf32>
    %c0_546 = arith.constant 0 : index
    %c1_547 = arith.constant 1 : index
    %c0_548 = arith.constant 0 : index
    %c0_549 = arith.constant 0 : index
    %c0_550 = arith.constant 0 : index
    %c0_551 = arith.constant 0 : index
    %337 = vector.load %arg10[%c0_546, %c1_547, %c0_548, %c0_549, %c0_550, %c0_551] : memref<2x9x2x2x9x4xbf16, #tpu.memory_space<vmem>>, vector<2x8x1x1x8x4xbf16>
    %338 = vector.shape_cast %337 : vector<2x8x1x1x8x4xbf16> to vector<128x4xbf16>
    %c0_552 = arith.constant 0 : index
    %c1_553 = arith.constant 1 : index
    %c0_554 = arith.constant 0 : index
    %c1_555 = arith.constant 1 : index
    %c0_556 = arith.constant 0 : index
    %c0_557 = arith.constant 0 : index
    %339 = vector.load %arg10[%c0_552, %c1_553, %c0_554, %c1_555, %c0_556, %c0_557] : memref<2x9x2x2x9x4xbf16, #tpu.memory_space<vmem>>, vector<2x8x1x1x8x4xbf16>
    %340 = vector.shape_cast %339 : vector<2x8x1x1x8x4xbf16> to vector<128x4xbf16>
    %c0_558 = arith.constant 0 : index
    %c1_559 = arith.constant 1 : index
    %c0_560 = arith.constant 0 : index
    %c0_561 = arith.constant 0 : index
    %c1_562 = arith.constant 1 : index
    %c0_563 = arith.constant 0 : index
    %341 = vector.load %arg10[%c0_558, %c1_559, %c0_560, %c0_561, %c1_562, %c0_563] : memref<2x9x2x2x9x4xbf16, #tpu.memory_space<vmem>>, vector<2x8x1x1x8x4xbf16>
    %342 = vector.shape_cast %341 : vector<2x8x1x1x8x4xbf16> to vector<128x4xbf16>
    %343 = tpu.concatenate %338, %340, %342 in 1 : vector<128x4xbf16>, vector<128x4xbf16>, vector<128x4xbf16> -> vector<128x12xbf16>
    %c1_564 = arith.constant 1 : index
    %c0_565 = arith.constant 0 : index
    %c0_566 = arith.constant 0 : index
    %344 = vector.load %arg5[%c1_564, %c0_565, %c0_566] : memref<3x12x4xbf16, #tpu.memory_space<vmem>>, vector<1x12x4xbf16>
    %345 = vector.shape_cast %344 : vector<1x12x4xbf16> to vector<12x4xbf16>
    %cst_567 = arith.constant dense<0.000000e+00> : vector<128x4xf32>
    %346 = tpu.matmul %343, %345, %cst_567 {dimension_numbers = #tpu.dot_dimension_numbers<[1], [0], [0], [1], [0, 0, 1, 1], [], []>} : vector<128x12xbf16>, vector<12x4xbf16>, vector<128x4xf32> -> vector<128x4xf32>
    %347 = arith.addf %336, %346 : vector<128x4xf32>
    %c0_568 = arith.constant 0 : index
    %c1_569 = arith.constant 1 : index
    %c1_570 = arith.constant 1 : index
    %c0_571 = arith.constant 0 : index
    %c0_572 = arith.constant 0 : index
    %c0_573 = arith.constant 0 : index
    %348 = vector.load %arg10[%c0_568, %c1_569, %c1_570, %c0_571, %c0_572, %c0_573] : memref<2x9x2x2x9x4xbf16, #tpu.memory_space<vmem>>, vector<2x8x1x1x8x4xbf16>
    %349 = vector.shape_cast %348 : vector<2x8x1x1x8x4xbf16> to vector<128x4xbf16>
    %c0_574 = arith.constant 0 : index
    %c1_575 = arith.constant 1 : index
    %c1_576 = arith.constant 1 : index
    %c1_577 = arith.constant 1 : index
    %c0_578 = arith.constant 0 : index
    %c0_579 = arith.constant 0 : index
    %350 = vector.load %arg10[%c0_574, %c1_575, %c1_576, %c1_577, %c0_578, %c0_579] : memref<2x9x2x2x9x4xbf16, #tpu.memory_space<vmem>>, vector<2x8x1x1x8x4xbf16>
    %351 = vector.shape_cast %350 : vector<2x8x1x1x8x4xbf16> to vector<128x4xbf16>
    %c0_580 = arith.constant 0 : index
    %c1_581 = arith.constant 1 : index
    %c1_582 = arith.constant 1 : index
    %c0_583 = arith.constant 0 : index
    %c1_584 = arith.constant 1 : index
    %c0_585 = arith.constant 0 : index
    %352 = vector.load %arg10[%c0_580, %c1_581, %c1_582, %c0_583, %c1_584, %c0_585] : memref<2x9x2x2x9x4xbf16, #tpu.memory_space<vmem>>, vector<2x8x1x1x8x4xbf16>
    %353 = vector.shape_cast %352 : vector<2x8x1x1x8x4xbf16> to vector<128x4xbf16>
    %354 = tpu.concatenate %349, %351, %353 in 1 : vector<128x4xbf16>, vector<128x4xbf16>, vector<128x4xbf16> -> vector<128x12xbf16>
    %c2_586 = arith.constant 2 : index
    %c0_587 = arith.constant 0 : index
    %c0_588 = arith.constant 0 : index
    %355 = vector.load %arg5[%c2_586, %c0_587, %c0_588] : memref<3x12x4xbf16, #tpu.memory_space<vmem>>, vector<1x12x4xbf16>
    %356 = vector.shape_cast %355 : vector<1x12x4xbf16> to vector<12x4xbf16>
    %cst_589 = arith.constant dense<0.000000e+00> : vector<128x4xf32>
    %357 = tpu.matmul %354, %356, %cst_589 {dimension_numbers = #tpu.dot_dimension_numbers<[1], [0], [0], [1], [0, 0, 1, 1], [], []>} : vector<128x12xbf16>, vector<12x4xbf16>, vector<128x4xf32> -> vector<128x4xf32>
    %358 = arith.addf %347, %357 : vector<128x4xf32>
    %c0_590 = arith.constant 0 : index
    %c0_591 = arith.constant 0 : index
    %c1_592 = arith.constant 1 : index
    %c1_593 = arith.constant 1 : index
    %c0_594 = arith.constant 0 : index
    %c0_595 = arith.constant 0 : index
    %359 = vector.load %arg10[%c0_590, %c0_591, %c1_592, %c1_593, %c0_594, %c0_595] : memref<2x9x2x2x9x4xbf16, #tpu.memory_space<vmem>>, vector<2x8x1x1x8x4xbf16>
    %360 = vector.shape_cast %359 : vector<2x8x1x1x8x4xbf16> to vector<128x4xbf16>
    %c0_596 = arith.constant 0 : index
    %c0_597 = arith.constant 0 : index
    %c1_598 = arith.constant 1 : index
    %c0_599 = arith.constant 0 : index
    %c1_600 = arith.constant 1 : index
    %c0_601 = arith.constant 0 : index
    %361 = vector.load %arg10[%c0_596, %c0_597, %c1_598, %c0_599, %c1_600, %c0_601] : memref<2x9x2x2x9x4xbf16, #tpu.memory_space<vmem>>, vector<2x8x1x1x8x4xbf16>
    %362 = vector.shape_cast %361 : vector<2x8x1x1x8x4xbf16> to vector<128x4xbf16>
    %c0_602 = arith.constant 0 : index
    %c0_603 = arith.constant 0 : index
    %c1_604 = arith.constant 1 : index
    %c1_605 = arith.constant 1 : index
    %c1_606 = arith.constant 1 : index
    %c0_607 = arith.constant 0 : index
    %363 = vector.load %arg10[%c0_602, %c0_603, %c1_604, %c1_605, %c1_606, %c0_607] : memref<2x9x2x2x9x4xbf16, #tpu.memory_space<vmem>>, vector<2x8x1x1x8x4xbf16>
    %364 = vector.shape_cast %363 : vector<2x8x1x1x8x4xbf16> to vector<128x4xbf16>
    %365 = tpu.concatenate %360, %362, %364 in 1 : vector<128x4xbf16>, vector<128x4xbf16>, vector<128x4xbf16> -> vector<128x12xbf16>
    %c0_608 = arith.constant 0 : index
    %c0_609 = arith.constant 0 : index
    %c0_610 = arith.constant 0 : index
    %366 = vector.load %arg5[%c0_608, %c0_609, %c0_610] : memref<3x12x4xbf16, #tpu.memory_space<vmem>>, vector<1x12x4xbf16>
    %367 = vector.shape_cast %366 : vector<1x12x4xbf16> to vector<12x4xbf16>
    %cst_611 = arith.constant dense<0.000000e+00> : vector<128x4xf32>
    %368 = tpu.matmul %365, %367, %cst_611 {dimension_numbers = #tpu.dot_dimension_numbers<[1], [0], [0], [1], [0, 0, 1, 1], [], []>} : vector<128x12xbf16>, vector<12x4xbf16>, vector<128x4xf32> -> vector<128x4xf32>
    %c0_612 = arith.constant 0 : index
    %c1_613 = arith.constant 1 : index
    %c0_614 = arith.constant 0 : index
    %c1_615 = arith.constant 1 : index
    %c0_616 = arith.constant 0 : index
    %c0_617 = arith.constant 0 : index
    %369 = vector.load %arg10[%c0_612, %c1_613, %c0_614, %c1_615, %c0_616, %c0_617] : memref<2x9x2x2x9x4xbf16, #tpu.memory_space<vmem>>, vector<2x8x1x1x8x4xbf16>
    %370 = vector.shape_cast %369 : vector<2x8x1x1x8x4xbf16> to vector<128x4xbf16>
    %c0_618 = arith.constant 0 : index
    %c1_619 = arith.constant 1 : index
    %c0_620 = arith.constant 0 : index
    %c0_621 = arith.constant 0 : index
    %c1_622 = arith.constant 1 : index
    %c0_623 = arith.constant 0 : index
    %371 = vector.load %arg10[%c0_618, %c1_619, %c0_620, %c0_621, %c1_622, %c0_623] : memref<2x9x2x2x9x4xbf16, #tpu.memory_space<vmem>>, vector<2x8x1x1x8x4xbf16>
    %372 = vector.shape_cast %371 : vector<2x8x1x1x8x4xbf16> to vector<128x4xbf16>
    %c0_624 = arith.constant 0 : index
    %c1_625 = arith.constant 1 : index
    %c0_626 = arith.constant 0 : index
    %c1_627 = arith.constant 1 : index
    %c1_628 = arith.constant 1 : index
    %c0_629 = arith.constant 0 : index
    %373 = vector.load %arg10[%c0_624, %c1_625, %c0_626, %c1_627, %c1_628, %c0_629] : memref<2x9x2x2x9x4xbf16, #tpu.memory_space<vmem>>, vector<2x8x1x1x8x4xbf16>
    %374 = vector.shape_cast %373 : vector<2x8x1x1x8x4xbf16> to vector<128x4xbf16>
    %375 = tpu.concatenate %370, %372, %374 in 1 : vector<128x4xbf16>, vector<128x4xbf16>, vector<128x4xbf16> -> vector<128x12xbf16>
    %c1_630 = arith.constant 1 : index
    %c0_631 = arith.constant 0 : index
    %c0_632 = arith.constant 0 : index
    %376 = vector.load %arg5[%c1_630, %c0_631, %c0_632] : memref<3x12x4xbf16, #tpu.memory_space<vmem>>, vector<1x12x4xbf16>
    %377 = vector.shape_cast %376 : vector<1x12x4xbf16> to vector<12x4xbf16>
    %cst_633 = arith.constant dense<0.000000e+00> : vector<128x4xf32>
    %378 = tpu.matmul %375, %377, %cst_633 {dimension_numbers = #tpu.dot_dimension_numbers<[1], [0], [0], [1], [0, 0, 1, 1], [], []>} : vector<128x12xbf16>, vector<12x4xbf16>, vector<128x4xf32> -> vector<128x4xf32>
    %379 = arith.addf %368, %378 : vector<128x4xf32>
    %c0_634 = arith.constant 0 : index
    %c1_635 = arith.constant 1 : index
    %c1_636 = arith.constant 1 : index
    %c1_637 = arith.constant 1 : index
    %c0_638 = arith.constant 0 : index
    %c0_639 = arith.constant 0 : index
    %380 = vector.load %arg10[%c0_634, %c1_635, %c1_636, %c1_637, %c0_638, %c0_639] : memref<2x9x2x2x9x4xbf16, #tpu.memory_space<vmem>>, vector<2x8x1x1x8x4xbf16>
    %381 = vector.shape_cast %380 : vector<2x8x1x1x8x4xbf16> to vector<128x4xbf16>
    %c0_640 = arith.constant 0 : index
    %c1_641 = arith.constant 1 : index
    %c1_642 = arith.constant 1 : index
    %c0_643 = arith.constant 0 : index
    %c1_644 = arith.constant 1 : index
    %c0_645 = arith.constant 0 : index
    %382 = vector.load %arg10[%c0_640, %c1_641, %c1_642, %c0_643, %c1_644, %c0_645] : memref<2x9x2x2x9x4xbf16, #tpu.memory_space<vmem>>, vector<2x8x1x1x8x4xbf16>
    %383 = vector.shape_cast %382 : vector<2x8x1x1x8x4xbf16> to vector<128x4xbf16>
    %c0_646 = arith.constant 0 : index
    %c1_647 = arith.constant 1 : index
    %c1_648 = arith.constant 1 : index
    %c1_649 = arith.constant 1 : index
    %c1_650 = arith.constant 1 : index
    %c0_651 = arith.constant 0 : index
    %384 = vector.load %arg10[%c0_646, %c1_647, %c1_648, %c1_649, %c1_650, %c0_651] : memref<2x9x2x2x9x4xbf16, #tpu.memory_space<vmem>>, vector<2x8x1x1x8x4xbf16>
    %385 = vector.shape_cast %384 : vector<2x8x1x1x8x4xbf16> to vector<128x4xbf16>
    %386 = tpu.concatenate %381, %383, %385 in 1 : vector<128x4xbf16>, vector<128x4xbf16>, vector<128x4xbf16> -> vector<128x12xbf16>
    %c2_652 = arith.constant 2 : index
    %c0_653 = arith.constant 0 : index
    %c0_654 = arith.constant 0 : index
    %387 = vector.load %arg5[%c2_652, %c0_653, %c0_654] : memref<3x12x4xbf16, #tpu.memory_space<vmem>>, vector<1x12x4xbf16>
    %388 = vector.shape_cast %387 : vector<1x12x4xbf16> to vector<12x4xbf16>
    %cst_655 = arith.constant dense<0.000000e+00> : vector<128x4xf32>
    %389 = tpu.matmul %386, %388, %cst_655 {dimension_numbers = #tpu.dot_dimension_numbers<[1], [0], [0], [1], [0, 0, 1, 1], [], []>} : vector<128x12xbf16>, vector<12x4xbf16>, vector<128x4xf32> -> vector<128x4xf32>
    %390 = arith.addf %379, %389 : vector<128x4xf32>
    %c0_656 = arith.constant 0 : index
    %c0_657 = arith.constant 0 : index
    %391 = vector.load %arg6[%c0_656, %c0_657] : memref<1x4xf32, #tpu.memory_space<vmem>>, vector<1x4xf32>
    %c0_658 = arith.constant 0 : index
    %c0_659 = arith.constant 0 : index
    %392 = vector.load %arg7[%c0_658, %c0_659] : memref<1x4xf32, #tpu.memory_space<vmem>>, vector<1x4xf32>
    %cst_660 = arith.constant dense<0.000000e+00> : vector<4xf32>
    %393 = vector.multi_reduction <add>, %294, %cst_660 [0] : vector<128x4xf32> to vector<4xf32>
    %394 = vector.shape_cast %393 : vector<4xf32> to vector<1x4xf32>
    %cst_661 = arith.constant 0.000000e+00 : f32
    %395 = vector.broadcast %cst_661 : f32 to vector<1x4xf32>
    %396 = arith.addf %395, %394 : vector<1x4xf32>
    %cst_662 = arith.constant dense<0.000000e+00> : vector<4xf32>
    %397 = vector.multi_reduction <add>, %326, %cst_662 [0] : vector<128x4xf32> to vector<4xf32>
    %398 = vector.shape_cast %397 : vector<4xf32> to vector<1x4xf32>
    %399 = arith.addf %396, %398 : vector<1x4xf32>
    %cst_663 = arith.constant dense<0.000000e+00> : vector<4xf32>
    %400 = vector.multi_reduction <add>, %358, %cst_663 [0] : vector<128x4xf32> to vector<4xf32>
    %401 = vector.shape_cast %400 : vector<4xf32> to vector<1x4xf32>
    %402 = arith.addf %399, %401 : vector<1x4xf32>
    %cst_664 = arith.constant dense<0.000000e+00> : vector<4xf32>
    %403 = vector.multi_reduction <add>, %390, %cst_664 [0] : vector<128x4xf32> to vector<4xf32>
    %404 = vector.shape_cast %403 : vector<4xf32> to vector<1x4xf32>
    %405 = arith.addf %402, %404 : vector<1x4xf32>
    %cst_665 = arith.constant 0.001953125 : f32
    %406 = vector.broadcast %cst_665 : f32 to vector<1x4xf32>
    %407 = arith.mulf %405, %406 : vector<1x4xf32>
    %408 = vector.broadcast %407 : vector<1x4xf32> to vector<128x4xf32>
    %409 = arith.subf %294, %408 : vector<128x4xf32>
    %410 = vector.broadcast %407 : vector<1x4xf32> to vector<128x4xf32>
    %411 = arith.subf %294, %410 : vector<128x4xf32>
    %412 = arith.mulf %409, %411 : vector<128x4xf32>
    %cst_666 = arith.constant dense<0.000000e+00> : vector<4xf32>
    %413 = vector.multi_reduction <add>, %412, %cst_666 [0] : vector<128x4xf32> to vector<4xf32>
    %414 = vector.shape_cast %413 : vector<4xf32> to vector<1x4xf32>
    %cst_667 = arith.constant 0.000000e+00 : f32
    %415 = vector.broadcast %cst_667 : f32 to vector<1x4xf32>
    %416 = arith.addf %415, %414 : vector<1x4xf32>
    %417 = vector.broadcast %407 : vector<1x4xf32> to vector<128x4xf32>
    %418 = arith.subf %326, %417 : vector<128x4xf32>
    %419 = vector.broadcast %407 : vector<1x4xf32> to vector<128x4xf32>
    %420 = arith.subf %326, %419 : vector<128x4xf32>
    %421 = arith.mulf %418, %420 : vector<128x4xf32>
    %cst_668 = arith.constant dense<0.000000e+00> : vector<4xf32>
    %422 = vector.multi_reduction <add>, %421, %cst_668 [0] : vector<128x4xf32> to vector<4xf32>
    %423 = vector.shape_cast %422 : vector<4xf32> to vector<1x4xf32>
    %424 = arith.addf %416, %423 : vector<1x4xf32>
    %425 = vector.broadcast %407 : vector<1x4xf32> to vector<128x4xf32>
    %426 = arith.subf %358, %425 : vector<128x4xf32>
    %427 = vector.broadcast %407 : vector<1x4xf32> to vector<128x4xf32>
    %428 = arith.subf %358, %427 : vector<128x4xf32>
    %429 = arith.mulf %426, %428 : vector<128x4xf32>
    %cst_669 = arith.constant dense<0.000000e+00> : vector<4xf32>
    %430 = vector.multi_reduction <add>, %429, %cst_669 [0] : vector<128x4xf32> to vector<4xf32>
    %431 = vector.shape_cast %430 : vector<4xf32> to vector<1x4xf32>
    %432 = arith.addf %424, %431 : vector<1x4xf32>
    %433 = vector.broadcast %407 : vector<1x4xf32> to vector<128x4xf32>
    %434 = arith.subf %390, %433 : vector<128x4xf32>
    %435 = vector.broadcast %407 : vector<1x4xf32> to vector<128x4xf32>
    %436 = arith.subf %390, %435 : vector<128x4xf32>
    %437 = arith.mulf %434, %436 : vector<128x4xf32>
    %cst_670 = arith.constant dense<0.000000e+00> : vector<4xf32>
    %438 = vector.multi_reduction <add>, %437, %cst_670 [0] : vector<128x4xf32> to vector<4xf32>
    %439 = vector.shape_cast %438 : vector<4xf32> to vector<1x4xf32>
    %440 = arith.addf %432, %439 : vector<1x4xf32>
    %cst_671 = arith.constant 0.001953125 : f32
    %441 = vector.broadcast %cst_671 : f32 to vector<1x4xf32>
    %442 = arith.mulf %440, %441 : vector<1x4xf32>
    %cst_672 = arith.constant 9.99999974E-6 : f32
    %443 = vector.broadcast %cst_672 : f32 to vector<1x4xf32>
    %444 = arith.addf %442, %443 : vector<1x4xf32>
    %445 = math.rsqrt %444 : vector<1x4xf32>
    %446 = arith.mulf %391, %445 : vector<1x4xf32>
    %447 = arith.mulf %407, %446 : vector<1x4xf32>
    %448 = arith.subf %392, %447 : vector<1x4xf32>
    %449 = vector.broadcast %446 : vector<1x4xf32> to vector<128x4xf32>
    %450 = arith.mulf %294, %449 : vector<128x4xf32>
    %451 = vector.broadcast %448 : vector<1x4xf32> to vector<128x4xf32>
    %452 = arith.addf %450, %451 : vector<128x4xf32>
    %cst_673 = arith.constant 0.000000e+00 : f32
    %453 = vector.broadcast %cst_673 : f32 to vector<128x4xf32>
    %454 = arith.maximumf %452, %453 : vector<128x4xf32>
    %455 = vector.broadcast %446 : vector<1x4xf32> to vector<128x4xf32>
    %456 = arith.mulf %326, %455 : vector<128x4xf32>
    %457 = vector.broadcast %448 : vector<1x4xf32> to vector<128x4xf32>
    %458 = arith.addf %456, %457 : vector<128x4xf32>
    %cst_674 = arith.constant 0.000000e+00 : f32
    %459 = vector.broadcast %cst_674 : f32 to vector<128x4xf32>
    %460 = arith.maximumf %458, %459 : vector<128x4xf32>
    %461 = vector.broadcast %446 : vector<1x4xf32> to vector<128x4xf32>
    %462 = arith.mulf %358, %461 : vector<128x4xf32>
    %463 = vector.broadcast %448 : vector<1x4xf32> to vector<128x4xf32>
    %464 = arith.addf %462, %463 : vector<128x4xf32>
    %cst_675 = arith.constant 0.000000e+00 : f32
    %465 = vector.broadcast %cst_675 : f32 to vector<128x4xf32>
    %466 = arith.maximumf %464, %465 : vector<128x4xf32>
    %467 = vector.broadcast %446 : vector<1x4xf32> to vector<128x4xf32>
    %468 = arith.mulf %390, %467 : vector<128x4xf32>
    %469 = vector.broadcast %448 : vector<1x4xf32> to vector<128x4xf32>
    %470 = arith.addf %468, %469 : vector<128x4xf32>
    %cst_676 = arith.constant 0.000000e+00 : f32
    %471 = vector.broadcast %cst_676 : f32 to vector<128x4xf32>
    %472 = arith.maximumf %470, %471 : vector<128x4xf32>
    %473 = vector.shape_cast %454 : vector<128x4xf32> to vector<1x1x2x8x8x4xf32>
    %474 = arith.truncf %473 : vector<1x1x2x8x8x4xf32> to vector<1x1x2x8x8x4xbf16>
    %c0_677 = arith.constant 0 : index
    %c0_678 = arith.constant 0 : index
    %c0_679 = arith.constant 0 : index
    %c0_680 = arith.constant 0 : index
    %c0_681 = arith.constant 0 : index
    %c0_682 = arith.constant 0 : index
    %475 = vector.load %arg8[%c0_677, %c0_678, %c0_679, %c0_680, %c0_681, %c0_682] : memref<2x2x2x8x8x4xbf16, #tpu.memory_space<vmem>>, vector<1x1x2x8x8x4xbf16>
    tpu.vector_store %arg8[%c0_677, %c0_678, %c0_679, %c0_680, %c0_681, %c0_682], %474 {strides = array<i32>} : memref<2x2x2x8x8x4xbf16, #tpu.memory_space<vmem>>, vector<1x1x2x8x8x4xbf16>,
    %476 = vector.shape_cast %460 : vector<128x4xf32> to vector<1x1x2x8x8x4xf32>
    %477 = arith.truncf %476 : vector<1x1x2x8x8x4xf32> to vector<1x1x2x8x8x4xbf16>
    %c0_683 = arith.constant 0 : index
    %c1_684 = arith.constant 1 : index
    %c0_685 = arith.constant 0 : index
    %c0_686 = arith.constant 0 : index
    %c0_687 = arith.constant 0 : index
    %c0_688 = arith.constant 0 : index
    %478 = vector.load %arg8[%c0_683, %c1_684, %c0_685, %c0_686, %c0_687, %c0_688] : memref<2x2x2x8x8x4xbf16, #tpu.memory_space<vmem>>, vector<1x1x2x8x8x4xbf16>
    tpu.vector_store %arg8[%c0_683, %c1_684, %c0_685, %c0_686, %c0_687, %c0_688], %477 {strides = array<i32>} : memref<2x2x2x8x8x4xbf16, #tpu.memory_space<vmem>>, vector<1x1x2x8x8x4xbf16>,
    %479 = vector.shape_cast %466 : vector<128x4xf32> to vector<1x1x2x8x8x4xf32>
    %480 = arith.truncf %479 : vector<1x1x2x8x8x4xf32> to vector<1x1x2x8x8x4xbf16>
    %c1_689 = arith.constant 1 : index
    %c0_690 = arith.constant 0 : index
    %c0_691 = arith.constant 0 : index
    %c0_692 = arith.constant 0 : index
    %c0_693 = arith.constant 0 : index
    %c0_694 = arith.constant 0 : index
    %481 = vector.load %arg8[%c1_689, %c0_690, %c0_691, %c0_692, %c0_693, %c0_694] : memref<2x2x2x8x8x4xbf16, #tpu.memory_space<vmem>>, vector<1x1x2x8x8x4xbf16>
    tpu.vector_store %arg8[%c1_689, %c0_690, %c0_691, %c0_692, %c0_693, %c0_694], %480 {strides = array<i32>} : memref<2x2x2x8x8x4xbf16, #tpu.memory_space<vmem>>, vector<1x1x2x8x8x4xbf16>,
    %482 = vector.shape_cast %472 : vector<128x4xf32> to vector<1x1x2x8x8x4xf32>
    %483 = arith.truncf %482 : vector<1x1x2x8x8x4xf32> to vector<1x1x2x8x8x4xbf16>
    %c1_695 = arith.constant 1 : index
    %c1_696 = arith.constant 1 : index
    %c0_697 = arith.constant 0 : index
    %c0_698 = arith.constant 0 : index
    %c0_699 = arith.constant 0 : index
    %c0_700 = arith.constant 0 : index
    %484 = vector.load %arg8[%c1_695, %c1_696, %c0_697, %c0_698, %c0_699, %c0_700] : memref<2x2x2x8x8x4xbf16, #tpu.memory_space<vmem>>, vector<1x1x2x8x8x4xbf16>
    tpu.vector_store %arg8[%c1_695, %c1_696, %c0_697, %c0_698, %c0_699, %c0_700], %483 {strides = array<i32>} : memref<2x2x2x8x8x4xbf16, #tpu.memory_space<vmem>>, vector<1x1x2x8x8x4xbf16>,
    return
  }
}

</mosaic_0001>

<llo_original>
// kernel: tpu_custom_call.1
$region0: #{tpu_custom_call.1}
  #allocation0 [shape = 'u32[]', space=smem, size = 0x4, offset = 0x4, fixed_abs, tag = 'smem constant byte address 0x4 - core index']
  #allocation1 [shape = 'u32[144,128]{1,0:T(1,128)}', space=vmem, size = 0x12000, scoped, tag = 'internal scratch']
  #allocation2 [shape = 'bf16[2,9,2,2,9,4]{5,4,3,2,1,0:T(8,128)(2,1)}', space=vmem, size = 0x48000, scoped, tag = 'scratch operand']
  #allocation3 [shape = 'bf16[2,9,2,2,9,4]{5,4,3,2,1,0:T(8,128)(2,1)}', space=vmem, size = 0x48000, scoped, tag = 'scratch operand']
  %s0 = inlined_call_operand.vmem [shape: bf16[2,8,8,4], index: 0, kind: input, shape index: {}]
  %s1 = inlined_call_operand.vmem [shape: s8[2,8,8,4], index: 1, kind: input, shape index: {}]
  %s2 = inlined_call_operand.vmem [shape: bf16[3,12,4], index: 2, kind: input, shape index: {}]
  %s3 = inlined_call_operand.vmem [shape: f32[1,4], index: 3, kind: input, shape index: {}]
  %s4 = inlined_call_operand.vmem [shape: f32[1,4], index: 4, kind: input, shape index: {}]
  %s5 = inlined_call_operand.vmem [shape: bf16[3,12,4], index: 5, kind: input, shape index: {}]
  %s6 = inlined_call_operand.vmem [shape: f32[1,4], index: 6, kind: input, shape index: {}]
  %s7 = inlined_call_operand.vmem [shape: f32[1,4], index: 7, kind: input, shape index: {}]
  %s8 = inlined_call_operand.vmem [shape: bf16[2,2,2,8,8,4], index: 8, kind: output, shape index: {}]
  %s9 = sld [smem:[#allocation0]]
  $region42: #{tpu_custom_call.1} parent=0
    _
  %s11 = ssub.s32 1, %s9
  %s12 = scalar_select 0, %s11, %s9
  // Predicated region
  $region2: #{tpu_custom_call.1} parent=0 // pred_check
    _
  $region3: #{tpu_custom_call.1} parent=0 // pred_check_branch
    %14 = sbr.rel (0) target = $region5
  $region4: #{tpu_custom_call.1} parent=0 // pred_region
    _
  $region5: #{tpu_custom_call.1} parent=0 // pred_fallthru
    _
  // Predicated region
  $region6: #{tpu_custom_call.1} parent=0 // pred_check
    _
  $region7: #{tpu_custom_call.1} parent=0 // pred_check_branch
    %16 = sbr.rel (0) target = $region9
  $region8: #{tpu_custom_call.1} parent=0 // pred_region
    _
  $region9: #{tpu_custom_call.1} parent=0 // pred_fallthru
    _
  // Predicated region
  $region10: #{tpu_custom_call.1} parent=0 // pred_check
    _
  $region11: #{tpu_custom_call.1} parent=0 // pred_check_branch
    %18 = sbr.rel (0) target = $region13
  $region12: #{tpu_custom_call.1} parent=0 // pred_region
    _
  $region13: #{tpu_custom_call.1} parent=0 // pred_fallthru
    _
  // Predicated region
  $region14: #{tpu_custom_call.1} parent=0 // pred_check
    _
  $region15: #{tpu_custom_call.1} parent=0 // pred_check_branch
    %20 = sbr.rel (0) target = $region17
  $region16: #{tpu_custom_call.1} parent=0 // pred_region
    _
  $region17: #{tpu_custom_call.1} parent=0 // pred_fallthru
    _
  // Predicated region
  $region18: #{tpu_custom_call.1} parent=0 // pred_check
    _
  $region19: #{tpu_custom_call.1} parent=0 // pred_check_branch
    %22 = sbr.rel (0) target = $region21
  $region20: #{tpu_custom_call.1} parent=0 // pred_region
    _
  $region21: #{tpu_custom_call.1} parent=0 // pred_fallthru
    _
  // Predicated region
  $region22: #{tpu_custom_call.1} parent=0 // pred_check
    _
  $region23: #{tpu_custom_call.1} parent=0 // pred_check_branch
    %24 = sbr.rel (0) target = $region25
  $region24: #{tpu_custom_call.1} parent=0 // pred_region
    _
  $region25: #{tpu_custom_call.1} parent=0 // pred_fallthru
    _
  // Predicated region
  $region26: #{tpu_custom_call.1} parent=0 // pred_check
    _
  $region27: #{tpu_custom_call.1} parent=0 // pred_check_branch
    %26 = sbr.rel (0) target = $region29
  $region28: #{tpu_custom_call.1} parent=0 // pred_region
    _
  $region29: #{tpu_custom_call.1} parent=0 // pred_fallthru
    _
  // Predicated region
  $region30: #{tpu_custom_call.1} parent=0 // pred_check
    _
  $region31: #{tpu_custom_call.1} parent=0 // pred_check_branch
    %28 = sbr.rel (0) target = $region33
  $region32: #{tpu_custom_call.1} parent=0 // pred_region
    _
  $region33: #{tpu_custom_call.1} parent=0 // pred_fallthru
    _
  %v30 = vld [vmem:[%s0] sm:$0xf]
  %v31 = vld [vmem:[%s0 + $0x4] sm:$0xf]
  %v32 = vld [vmem:[%s0 + $0x8] sm:$0xf]
  %v33 = vld [vmem:[%s0 + $0xc] sm:$0xf]
  %v34 = vld [vmem:[%s0 + $0x10] sm:$0xf]
  %v35 = vld [vmem:[%s0 + $0x14] sm:$0xf]
  %v36 = vld [vmem:[%s0 + $0x18] sm:$0xf]
  %v37 = vld [vmem:[%s0 + $0x1c] sm:$0xf]
  %v38 = vld [vmem:[%s0 + $0x20] sm:$0xf]
  %v39 = vld [vmem:[%s0 + $0x24] sm:$0xf]
  %v40 = vld [vmem:[%s0 + $0x28] sm:$0xf]
  %v41 = vld [vmem:[%s0 + $0x2c] sm:$0xf]
  %v42 = vld [vmem:[%s0 + $0x30] sm:$0xf]
  %v43 = vld [vmem:[%s0 + $0x34] sm:$0xf]
  %v44 = vld [vmem:[%s0 + $0x38] sm:$0xf]
  %v45 = vld [vmem:[%s0 + $0x3c] sm:$0xf]
  %v46 = vld [vmem:[%s1] sm:$0x3]
  %v47 = vld [vmem:[%s1 + $0x2] sm:$0x3]
  %v48 = vld [vmem:[%s1 + $0x4] sm:$0x3]
  %v49 = vld [vmem:[%s1 + $0x6] sm:$0x3]
  %v50 = vld [vmem:[%s1 + $0x8] sm:$0x3]
  %v51 = vld [vmem:[%s1 + $0xa] sm:$0x3]
  %v52 = vld [vmem:[%s1 + $0xc] sm:$0x3]
  %v53 = vld [vmem:[%s1 + $0xe] sm:$0x3]
  %v54 = vld [vmem:[%s1 + $0x10] sm:$0x3]
  %v55 = vld [vmem:[%s1 + $0x12] sm:$0x3]
  %v56 = vld [vmem:[%s1 + $0x14] sm:$0x3]
  %v57 = vld [vmem:[%s1 + $0x16] sm:$0x3]
  %v58 = vld [vmem:[%s1 + $0x18] sm:$0x3]
  %v59 = vld [vmem:[%s1 + $0x1a] sm:$0x3]
  %v60 = vld [vmem:[%s1 + $0x1c] sm:$0x3]
  %v61 = vld [vmem:[%s1 + $0x1e] sm:$0x3]
  %v62 = vunpack.c.0.s8 %v46
  %v63 = vunpack.c.0.s8 %v47
  %v64 = vunpack.c.0.s8 %v48
  %v65 = vunpack.c.0.s8 %v49
  %v66 = vunpack.c.0.s8 %v50
  %v67 = vunpack.c.0.s8 %v51
  %v68 = vunpack.c.0.s8 %v52
  %v69 = vunpack.c.0.s8 %v53
  %v70 = vunpack.c.0.s8 %v54
  %v71 = vunpack.c.0.s8 %v55
  %v72 = vunpack.c.0.s8 %v56
  %v73 = vunpack.c.0.s8 %v57
  %v74 = vunpack.c.0.s8 %v58
  %v75 = vunpack.c.0.s8 %v59
  %v76 = vunpack.c.0.s8 %v60
  %v77 = vunpack.c.0.s8 %v61
  %vm78 = vcmp.eq.s32.totalorder %v62, 0
  %vm79 = vcmp.eq.s32.totalorder %v63, 0
  %vm80 = vcmp.eq.s32.totalorder %v64, 0
  %vm81 = vcmp.eq.s32.totalorder %v65, 0
  %vm82 = vcmp.eq.s32.totalorder %v66, 0
  %vm83 = vcmp.eq.s32.totalorder %v67, 0
  %vm84 = vcmp.eq.s32.totalorder %v68, 0
  %vm85 = vcmp.eq.s32.totalorder %v69, 0
  %vm86 = vcmp.eq.s32.totalorder %v70, 0
  %vm87 = vcmp.eq.s32.totalorder %v71, 0
  %vm88 = vcmp.eq.s32.totalorder %v72, 0
  %vm89 = vcmp.eq.s32.totalorder %v73, 0
  %vm90 = vcmp.eq.s32.totalorder %v74, 0
  %vm91 = vcmp.eq.s32.totalorder %v75, 0
  %vm92 = vcmp.eq.s32.totalorder %v76, 0
  %vm93 = vcmp.eq.s32.totalorder %v77, 0
  %vm94 = vmpackc.low %vm78, %vm78
  %vm95 = vmpackc.low %vm79, %vm79
  %vm96 = vmpackc.low %vm80, %vm80
  %vm97 = vmpackc.low %vm81, %vm81
  %vm98 = vmpackc.low %vm82, %vm82
  %vm99 = vmpackc.low %vm83, %vm83
  %vm100 = vmpackc.low %vm84, %vm84
  %vm101 = vmpackc.low %vm85, %vm85
  %vm102 = vmpackc.low %vm86, %vm86
  %vm103 = vmpackc.low %vm87, %vm87
  %vm104 = vmpackc.low %vm88, %vm88
  %vm105 = vmpackc.low %vm89, %vm89
  %vm106 = vmpackc.low %vm90, %vm90
  %vm107 = vmpackc.low %vm91, %vm91
  %vm108 = vmpackc.low %vm92, %vm92
  %vm109 = vmpackc.low %vm93, %vm93
  %v110 = vsel %vm94, %v30, 0
  %v111 = vsel %vm95, %v31, 0
  %v112 = vsel %vm96, %v32, 0
  %v113 = vsel %vm97, %v33, 0
  %v114 = vsel %vm98, %v34, 0
  %v115 = vsel %vm99, %v35, 0
  %v116 = vsel %vm100, %v36, 0
  %v117 = vsel %vm101, %v37, 0
  %v118 = vsel %vm102, %v38, 0
  %v119 = vsel %vm103, %v39, 0
  %v120 = vsel %vm104, %v40, 0
  %v121 = vsel %vm105, %v41, 0
  %v122 = vsel %vm106, %v42, 0
  %v123 = vsel %vm107, %v43, 0
  %v124 = vsel %vm108, %v44, 0
  %v125 = vsel %vm109, %v45, 0
  %vm126 = vcmp.eq.s32.totalorder %v62, 1
  %vm127 = vcmp.eq.s32.totalorder %v63, 1
  %vm128 = vcmp.eq.s32.totalorder %v64, 1
  %vm129 = vcmp.eq.s32.totalorder %v65, 1
  %vm130 = vcmp.eq.s32.totalorder %v66, 1
  %vm131 = vcmp.eq.s32.totalorder %v67, 1
  %vm132 = vcmp.eq.s32.totalorder %v68, 1
  %vm133 = vcmp.eq.s32.totalorder %v69, 1
  %vm134 = vcmp.eq.s32.totalorder %v70, 1
  %vm135 = vcmp.eq.s32.totalorder %v71, 1
  %vm136 = vcmp.eq.s32.totalorder %v72, 1
  %vm137 = vcmp.eq.s32.totalorder %v73, 1
  %vm138 = vcmp.eq.s32.totalorder %v74, 1
  %vm139 = vcmp.eq.s32.totalorder %v75, 1
  %vm140 = vcmp.eq.s32.totalorder %v76, 1
  %vm141 = vcmp.eq.s32.totalorder %v77, 1
  %vm142 = vmpackc.low %vm126, %vm126
  %vm143 = vmpackc.low %vm127, %vm127
  %vm144 = vmpackc.low %vm128, %vm128
  %vm145 = vmpackc.low %vm129, %vm129
  %vm146 = vmpackc.low %vm130, %vm130
  %vm147 = vmpackc.low %vm131, %vm131
  %vm148 = vmpackc.low %vm132, %vm132
  %vm149 = vmpackc.low %vm133, %vm133
  %vm150 = vmpackc.low %vm134, %vm134
  %vm151 = vmpackc.low %vm135, %vm135
  %vm152 = vmpackc.low %vm136, %vm136
  %vm153 = vmpackc.low %vm137, %vm137
  %vm154 = vmpackc.low %vm138, %vm138
  %vm155 = vmpackc.low %vm139, %vm139
  %vm156 = vmpackc.low %vm140, %vm140
  %vm157 = vmpackc.low %vm141, %vm141
  %v158 = vsel %vm142, %v30, 0
  %v159 = vsel %vm143, %v31, 0
  %v160 = vsel %vm144, %v32, 0
  %v161 = vsel %vm145, %v33, 0
  %v162 = vsel %vm146, %v34, 0
  %v163 = vsel %vm147, %v35, 0
  %v164 = vsel %vm148, %v36, 0
  %v165 = vsel %vm149, %v37, 0
  %v166 = vsel %vm150, %v38, 0
  %v167 = vsel %vm151, %v39, 0
  %v168 = vsel %vm152, %v40, 0
  %v169 = vsel %vm153, %v41, 0
  %v170 = vsel %vm154, %v42, 0
  %v171 = vsel %vm155, %v43, 0
  %v172 = vsel %vm156, %v44, 0
  %v173 = vsel %vm157, %v45, 0
  %vm174 = vcmp.eq.s32.totalorder %v62, 2
  %vm175 = vcmp.eq.s32.totalorder %v63, 2
  %vm176 = vcmp.eq.s32.totalorder %v64, 2
  %vm177 = vcmp.eq.s32.totalorder %v65, 2
  %vm178 = vcmp.eq.s32.totalorder %v66, 2
  %vm179 = vcmp.eq.s32.totalorder %v67, 2
  %vm180 = vcmp.eq.s32.totalorder %v68, 2
  %vm181 = vcmp.eq.s32.totalorder %v69, 2
  %vm182 = vcmp.eq.s32.totalorder %v70, 2
  %vm183 = vcmp.eq.s32.totalorder %v71, 2
  %vm184 = vcmp.eq.s32.totalorder %v72, 2
  %vm185 = vcmp.eq.s32.totalorder %v73, 2
  %vm186 = vcmp.eq.s32.totalorder %v74, 2
  %vm187 = vcmp.eq.s32.totalorder %v75, 2
  %vm188 = vcmp.eq.s32.totalorder %v76, 2
  %vm189 = vcmp.eq.s32.totalorder %v77, 2
  %vm190 = vmpackc.low %vm174, %vm174
  %vm191 = vmpackc.low %vm175, %vm175
  %vm192 = vmpackc.low %vm176, %vm176
  %vm193 = vmpackc.low %vm177, %vm177
  %vm194 = vmpackc.low %vm178, %vm178
  %vm195 = vmpackc.low %vm179, %vm179
  %vm196 = vmpackc.low %vm180, %vm180
  %vm197 = vmpackc.low %vm181, %vm181
  %vm198 = vmpackc.low %vm182, %vm182
  %vm199 = vmpackc.low %vm183, %vm183
  %vm200 = vmpackc.low %vm184, %vm184
  %vm201 = vmpackc.low %vm185, %vm185
  %vm202 = vmpackc.low %vm186, %vm186
  %vm203 = vmpackc.low %vm187, %vm187
  %vm204 = vmpackc.low %vm188, %vm188
  %vm205 = vmpackc.low %vm189, %vm189
  %v206 = vsel %vm190, %v30, 0
  %v207 = vsel %vm191, %v31, 0
  %v208 = vsel %vm192, %v32, 0
  %v209 = vsel %vm193, %v33, 0
  %v210 = vsel %vm194, %v34, 0
  %v211 = vsel %vm195, %v35, 0
  %v212 = vsel %vm196, %v36, 0
  %v213 = vsel %vm197, %v37, 0
  %v214 = vsel %vm198, %v38, 0
  %v215 = vsel %vm199, %v39, 0
  %v216 = vsel %vm200, %v40, 0
  %v217 = vsel %vm201, %v41, 0
  %v218 = vsel %vm202, %v42, 0
  %v219 = vsel %vm203, %v43, 0
  %v220 = vsel %vm204, %v44, 0
  %v221 = vsel %vm205, %v45, 0
  %vm222 = vcmp.eq.s32.totalorder %v62, 3
  %vm223 = vcmp.eq.s32.totalorder %v63, 3
  %vm224 = vcmp.eq.s32.totalorder %v64, 3
  %vm225 = vcmp.eq.s32.totalorder %v65, 3
  %vm226 = vcmp.eq.s32.totalorder %v66, 3
  %vm227 = vcmp.eq.s32.totalorder %v67, 3
  %vm228 = vcmp.eq.s32.totalorder %v68, 3
  %vm229 = vcmp.eq.s32.totalorder %v69, 3
  %vm230 = vcmp.eq.s32.totalorder %v70, 3
  %vm231 = vcmp.eq.s32.totalorder %v71, 3
  %vm232 = vcmp.eq.s32.totalorder %v72, 3
  %vm233 = vcmp.eq.s32.totalorder %v73, 3
  %vm234 = vcmp.eq.s32.totalorder %v74, 3
  %vm235 = vcmp.eq.s32.totalorder %v75, 3
  %vm236 = vcmp.eq.s32.totalorder %v76, 3
  %vm237 = vcmp.eq.s32.totalorder %v77, 3
  %vm238 = vmpackc.low %vm222, %vm222
  %vm239 = vmpackc.low %vm223, %vm223
  %vm240 = vmpackc.low %vm224, %vm224
  %vm241 = vmpackc.low %vm225, %vm225
  %vm242 = vmpackc.low %vm226, %vm226
  %vm243 = vmpackc.low %vm227, %vm227
  %vm244 = vmpackc.low %vm228, %vm228
  %vm245 = vmpackc.low %vm229, %vm229
  %vm246 = vmpackc.low %vm230, %vm230
  %vm247 = vmpackc.low %vm231, %vm231
  %vm248 = vmpackc.low %vm232, %vm232
  %vm249 = vmpackc.low %vm233, %vm233
  %vm250 = vmpackc.low %vm234, %vm234
  %vm251 = vmpackc.low %vm235, %vm235
  %vm252 = vmpackc.low %vm236, %vm236
  %vm253 = vmpackc.low %vm237, %vm237
  %v254 = vsel %vm238, %v30, 0
  %v255 = vsel %vm239, %v31, 0
  %v256 = vsel %vm240, %v32, 0
  %v257 = vsel %vm241, %v33, 0
  %v258 = vsel %vm242, %v34, 0
  %v259 = vsel %vm243, %v35, 0
  %v260 = vsel %vm244, %v36, 0
  %v261 = vsel %vm245, %v37, 0
  %v262 = vsel %vm246, %v38, 0
  %v263 = vsel %vm247, %v39, 0
  %v264 = vsel %vm248, %v40, 0
  %v265 = vsel %vm249, %v41, 0
  %v266 = vsel %vm250, %v42, 0
  %v267 = vsel %vm251, %v43, 0
  %v268 = vsel %vm252, %v44, 0
  %v269 = vsel %vm253, %v45, 0
  %vm270 = vcmask 27648
  %271 = vst.msk [vmem:[#allocation2] sm:$0xf] %vm270, 0
  %vm272 = vcmask 24576
  %vm273 = vsmask.f32 256
  %vm274 = vmand %vm272, %vm273
  %v275 = vld [vmem:[#allocation2 + $0x4] sm:$0x1]
  %v276 = vsel %vm274, 0, %v275
  %277 = vst [vmem:[#allocation2 + $0x4] sm:$0x1] %v276
  %278 = vst.msk [vmem:[#allocation2 + $0x8] sm:$0xf] %vm270, 0
  %v279 = vld [vmem:[#allocation2 + $0xc] sm:$0x1]
  %v280 = vsel %vm274, 0, %v279
  %281 = vst [vmem:[#allocation2 + $0xc] sm:$0x1] %v280
  %282 = vst.msk [vmem:[#allocation2 + $0x120] sm:$0xf] %vm270, 0
  %v283 = vld [vmem:[#allocation2 + $0x124] sm:$0x1]
  %v284 = vsel %vm274, 0, %v283
  %285 = vst [vmem:[#allocation2 + $0x124] sm:$0x1] %v284
  %286 = vst.msk [vmem:[#allocation2 + $0x128] sm:$0xf] %vm270, 0
  %v287 = vld [vmem:[#allocation2 + $0x12c] sm:$0x1]
  %v288 = vsel %vm274, 0, %v287
  %289 = vst [vmem:[#allocation2 + $0x12c] sm:$0x1] %v288
  %s290 = scalar_lea.vmem [#allocation2], 272
  %291 = vst.msk [vmem:[%s290] sm:$0xf] %vm270, 0
  %v292 = vld [vmem:[%s290 + $0x4] sm:$0x1]
  %v293 = vsel %vm274, 0, %v292
  %294 = vst [vmem:[%s290 + $0x4] sm:$0x1] %v293
  %295 = vst.msk [vmem:[%s290 + $0x8] sm:$0xf] %vm270, 0
  %v296 = vld [vmem:[%s290 + $0xc] sm:$0x1]
  %v297 = vsel %vm274, 0, %v296
  %298 = vst [vmem:[%s290 + $0xc] sm:$0x1] %v297
  %299 = vst.msk [vmem:[%s290 + $0x120] sm:$0xf] %vm270, 0
  %v300 = vld [vmem:[%s290 + $0x124] sm:$0x1]
  %v301 = vsel %vm274, 0, %v300
  %302 = vst [vmem:[%s290 + $0x124] sm:$0x1] %v301
  %303 = vst.msk [vmem:[%s290 + $0x128] sm:$0xf] %vm270, 0
  %v304 = vld [vmem:[%s290 + $0x12c] sm:$0x1]
  %v305 = vsel %vm274, 0, %v304
  %306 = vst [vmem:[%s290 + $0x12c] sm:$0x1] %v305
  %v307 = vld [vmem:[#allocation2] sm:$0x1]
  %v308 = vsel %vm274, 0, %v307
  %309 = vst [vmem:[#allocation2] sm:$0x1] %v308
  %v310 = vld [vmem:[#allocation2 + $0x10] sm:$0x1]
  %v311 = vsel %vm274, 0, %v310
  %312 = vst [vmem:[#allocation2 + $0x10] sm:$0x1] %v311
  %v313 = vld [vmem:[#allocation2 + $0x20] sm:$0x1]
  %v314 = vsel %vm274, 0, %v313
  %315 = vst [vmem:[#allocation2 + $0x20] sm:$0x1] %v314
  %v316 = vld [vmem:[#allocation2 + $0x30] sm:$0x1]
  %v317 = vsel %vm274, 0, %v316
  %318 = vst [vmem:[#allocation2 + $0x30] sm:$0x1] %v317
  %v319 = vld [vmem:[#allocation2 + $0x40] sm:$0x1]
  %v320 = vsel %vm274, 0, %v319
  %321 = vst [vmem:[#allocation2 + $0x40] sm:$0x1] %v320
  %v322 = vld [vmem:[#allocation2 + $0x50] sm:$0x1]
  %v323 = vsel %vm274, 0, %v322
  %324 = vst [vmem:[#allocation2 + $0x50] sm:$0x1] %v323
  %v325 = vld [vmem:[#allocation2 + $0x60] sm:$0x1]
  %v326 = vsel %vm274, 0, %v325
  %327 = vst [vmem:[#allocation2 + $0x60] sm:$0x1] %v326
  %v328 = vld [vmem:[#allocation2 + $0x70] sm:$0x1]
  %v329 = vsel %vm274, 0, %v328
  %330 = vst [vmem:[#allocation2 + $0x70] sm:$0x1] %v329
  %v331 = vld [vmem:[#allocation2 + $0x80] sm:$0x1]
  %v332 = vsel %vm274, 0, %v331
  %333 = vst [vmem:[#allocation2 + $0x80] sm:$0x1] %v332
  %v334 = vld [vmem:[#allocation2 + $0x90] sm:$0x1]
  %v335 = vsel %vm274, 0, %v334
  %336 = vst [vmem:[#allocation2 + $0x90] sm:$0x1] %v335
  %v337 = vld [vmem:[#allocation2 + $0xa0] sm:$0x1]
  %v338 = vsel %vm274, 0, %v337
  %339 = vst [vmem:[#allocation2 + $0xa0] sm:$0x1] %v338
  %v340 = vld [vmem:[#allocation2 + $0xb0] sm:$0x1]
  %v341 = vsel %vm274, 0, %v340
  %342 = vst [vmem:[#allocation2 + $0xb0] sm:$0x1] %v341
  %v343 = vld [vmem:[#allocation2 + $0xc0] sm:$0x1]
  %v344 = vsel %vm274, 0, %v343
  %345 = vst [vmem:[#allocation2 + $0xc0] sm:$0x1] %v344
  %v346 = vld [vmem:[#allocation2 + $0xd0] sm:$0x1]
  %v347 = vsel %vm274, 0, %v346
  %348 = vst [vmem:[#allocation2 + $0xd0] sm:$0x1] %v347
  %v349 = vld [vmem:[#allocation2 + $0xe0] sm:$0x1]
  %v350 = vsel %vm274, 0, %v349
  %351 = vst [vmem:[#allocation2 + $0xe0] sm:$0x1] %v350
  %v352 = vld [vmem:[#allocation2 + $0xf0] sm:$0x1]
  %v353 = vsel %vm274, 0, %v352
  %354 = vst [vmem:[#allocation2 + $0xf0] sm:$0x1] %v353
  %v355 = vld [vmem:[#allocation2 + $0x100] sm:$0x1]
  %v356 = vsel %vm274, 0, %v355
  %357 = vst [vmem:[#allocation2 + $0x100] sm:$0x1] %v356
  %v358 = vld [vmem:[#allocation2 + $0x110] sm:$0x1]
  %v359 = vsel %vm274, 0, %v358
  %360 = vst [vmem:[#allocation2 + $0x110] sm:$0x1] %v359
  %v361 = vld [vmem:[#allocation2 + $0x120] sm:$0x1]
  %v362 = vsel %vm274, 0, %v361
  %363 = vst [vmem:[#allocation2 + $0x120] sm:$0x1] %v362
  %v364 = vld [vmem:[#allocation2 + $0x130] sm:$0x1]
  %v365 = vsel %vm274, 0, %v364
  %366 = vst [vmem:[#allocation2 + $0x130] sm:$0x1] %v365
  %v367 = vld [vmem:[#allocation2 + $0x140] sm:$0x1]
  %v368 = vsel %vm274, 0, %v367
  %369 = vst [vmem:[#allocation2 + $0x140] sm:$0x1] %v368
  %v370 = vld [vmem:[#allocation2 + $0x150] sm:$0x1]
  %v371 = vsel %vm274, 0, %v370
  %372 = vst [vmem:[#allocation2 + $0x150] sm:$0x1] %v371
  %v373 = vld [vmem:[#allocation2 + $0x160] sm:$0x1]
  %v374 = vsel %vm274, 0, %v373
  %375 = vst [vmem:[#allocation2 + $0x160] sm:$0x1] %v374
  %v376 = vld [vmem:[#allocation2 + $0x170] sm:$0x1]
  %v377 = vsel %vm274, 0, %v376
  %378 = vst [vmem:[#allocation2 + $0x170] sm:$0x1] %v377
  %v379 = vld [vmem:[#allocation2 + $0x180] sm:$0x1]
  %v380 = vsel %vm274, 0, %v379
  %381 = vst [vmem:[#allocation2 + $0x180] sm:$0x1] %v380
  %v382 = vld [vmem:[#allocation2 + $0x190] sm:$0x1]
  %v383 = vsel %vm274, 0, %v382
  %384 = vst [vmem:[#allocation2 + $0x190] sm:$0x1] %v383
  %v385 = vld [vmem:[#allocation2 + $0x1a0] sm:$0x1]
  %v386 = vsel %vm274, 0, %v385
  %387 = vst [vmem:[#allocation2 + $0x1a0] sm:$0x1] %v386
  %v388 = vld [vmem:[#allocation2 + $0x1b0] sm:$0x1]
  %v389 = vsel %vm274, 0, %v388
  %390 = vst [vmem:[#allocation2 + $0x1b0] sm:$0x1] %v389
  %v391 = vld [vmem:[#allocation2 + $0x1c0] sm:$0x1]
  %v392 = vsel %vm274, 0, %v391
  %393 = vst [vmem:[#allocation2 + $0x1c0] sm:$0x1] %v392
  %v394 = vld [vmem:[#allocation2 + $0x1d0] sm:$0x1]
  %v395 = vsel %vm274, 0, %v394
  %396 = vst [vmem:[#allocation2 + $0x1d0] sm:$0x1] %v395
  %v397 = vld [vmem:[#allocation2 + $0x1e0] sm:$0x1]
  %v398 = vsel %vm274, 0, %v397
  %399 = vst [vmem:[#allocation2 + $0x1e0] sm:$0x1] %v398
  %v400 = vld [vmem:[#allocation2 + $0x1f0] sm:$0x1]
  %v401 = vsel %vm274, 0, %v400
  %402 = vst [vmem:[#allocation2 + $0x1f0] sm:$0x1] %v401
  %v403 = vld [vmem:[#allocation2 + $0x200] sm:$0x1]
  %v404 = vsel %vm274, 0, %v403
  %405 = vst [vmem:[#allocation2 + $0x200] sm:$0x1] %v404
  %v406 = vld [vmem:[#allocation2 + $0x210] sm:$0x1]
  %v407 = vsel %vm274, 0, %v406
  %408 = vst [vmem:[#allocation2 + $0x210] sm:$0x1] %v407
  %v409 = vld [vmem:[#allocation2 + $0x220] sm:$0x1]
  %v410 = vsel %vm274, 0, %v409
  %411 = vst [vmem:[#allocation2 + $0x220] sm:$0x1] %v410
  %v412 = vld [vmem:[#allocation2 + $0x230] sm:$0x1]
  %v413 = vsel %vm274, 0, %v412
  %414 = vst [vmem:[#allocation2 + $0x230] sm:$0x1] %v413
  %s415 = scalar_lea.vmem [#allocation2], 8
  %v416 = vld [vmem:[%s415 + $0x4] sm:$0x1]
  %v417 = vsel %vm274, 0, %v416
  %418 = vst [vmem:[%s415 + $0x4] sm:$0x1] %v417
  %v419 = vld [vmem:[%s415 + $0x14] sm:$0x1]
  %v420 = vsel %vm274, 0, %v419
  %421 = vst [vmem:[%s415 + $0x14] sm:$0x1] %v420
  %v422 = vld [vmem:[%s415 + $0x24] sm:$0x1]
  %v423 = vsel %vm274, 0, %v422
  %424 = vst [vmem:[%s415 + $0x24] sm:$0x1] %v423
  %v425 = vld [vmem:[%s415 + $0x34] sm:$0x1]
  %v426 = vsel %vm274, 0, %v425
  %427 = vst [vmem:[%s415 + $0x34] sm:$0x1] %v426
  %v428 = vld [vmem:[%s415 + $0x44] sm:$0x1]
  %v429 = vsel %vm274, 0, %v428
  %430 = vst [vmem:[%s415 + $0x44] sm:$0x1] %v429
  %v431 = vld [vmem:[%s415 + $0x54] sm:$0x1]
  %v432 = vsel %vm274, 0, %v431
  %433 = vst [vmem:[%s415 + $0x54] sm:$0x1] %v432
  %v434 = vld [vmem:[%s415 + $0x64] sm:$0x1]
  %v435 = vsel %vm274, 0, %v434
  %436 = vst [vmem:[%s415 + $0x64] sm:$0x1] %v435
  %v437 = vld [vmem:[%s415 + $0x74] sm:$0x1]
  %v438 = vsel %vm274, 0, %v437
  %439 = vst [vmem:[%s415 + $0x74] sm:$0x1] %v438
  %v440 = vld [vmem:[%s415 + $0x84] sm:$0x1]
  %v441 = vsel %vm274, 0, %v440
  %442 = vst [vmem:[%s415 + $0x84] sm:$0x1] %v441
  %v443 = vld [vmem:[%s415 + $0x94] sm:$0x1]
  %v444 = vsel %vm274, 0, %v443
  %445 = vst [vmem:[%s415 + $0x94] sm:$0x1] %v444
  %v446 = vld [vmem:[%s415 + $0xa4] sm:$0x1]
  %v447 = vsel %vm274, 0, %v446
  %448 = vst [vmem:[%s415 + $0xa4] sm:$0x1] %v447
  %v449 = vld [vmem:[%s415 + $0xb4] sm:$0x1]
  %v450 = vsel %vm274, 0, %v449
  %451 = vst [vmem:[%s415 + $0xb4] sm:$0x1] %v450
  %v452 = vld [vmem:[%s415 + $0xc4] sm:$0x1]
  %v453 = vsel %vm274, 0, %v452
  %454 = vst [vmem:[%s415 + $0xc4] sm:$0x1] %v453
  %v455 = vld [vmem:[%s415 + $0xd4] sm:$0x1]
  %v456 = vsel %vm274, 0, %v455
  %457 = vst [vmem:[%s415 + $0xd4] sm:$0x1] %v456
  %v458 = vld [vmem:[%s415 + $0xe4] sm:$0x1]
  %v459 = vsel %vm274, 0, %v458
  %460 = vst [vmem:[%s415 + $0xe4] sm:$0x1] %v459
  %v461 = vld [vmem:[%s415 + $0xf4] sm:$0x1]
  %v462 = vsel %vm274, 0, %v461
  %463 = vst [vmem:[%s415 + $0xf4] sm:$0x1] %v462
  %v464 = vld [vmem:[%s415 + $0x104] sm:$0x1]
  %v465 = vsel %vm274, 0, %v464
  %466 = vst [vmem:[%s415 + $0x104] sm:$0x1] %v465
  %v467 = vld [vmem:[%s415 + $0x114] sm:$0x1]
  %v468 = vsel %vm274, 0, %v467
  %469 = vst [vmem:[%s415 + $0x114] sm:$0x1] %v468
  %v470 = vld [vmem:[%s415 + $0x124] sm:$0x1]
  %v471 = vsel %vm274, 0, %v470
  %472 = vst [vmem:[%s415 + $0x124] sm:$0x1] %v471
  %v473 = vld [vmem:[%s415 + $0x134] sm:$0x1]
  %v474 = vsel %vm274, 0, %v473
  %475 = vst [vmem:[%s415 + $0x134] sm:$0x1] %v474
  %v476 = vld [vmem:[%s415 + $0x144] sm:$0x1]
  %v477 = vsel %vm274, 0, %v476
  %478 = vst [vmem:[%s415 + $0x144] sm:$0x1] %v477
  %v479 = vld [vmem:[%s415 + $0x154] sm:$0x1]
  %v480 = vsel %vm274, 0, %v479
  %481 = vst [vmem:[%s415 + $0x154] sm:$0x1] %v480
  %v482 = vld [vmem:[%s415 + $0x164] sm:$0x1]
  %v483 = vsel %vm274, 0, %v482
  %484 = vst [vmem:[%s415 + $0x164] sm:$0x1] %v483
  %v485 = vld [vmem:[%s415 + $0x174] sm:$0x1]
  %v486 = vsel %vm274, 0, %v485
  %487 = vst [vmem:[%s415 + $0x174] sm:$0x1] %v486
  %v488 = vld [vmem:[%s415 + $0x184] sm:$0x1]
  %v489 = vsel %vm274, 0, %v488
  %490 = vst [vmem:[%s415 + $0x184] sm:$0x1] %v489
  %v491 = vld [vmem:[%s415 + $0x194] sm:$0x1]
  %v492 = vsel %vm274, 0, %v491
  %493 = vst [vmem:[%s415 + $0x194] sm:$0x1] %v492
  %v494 = vld [vmem:[%s415 + $0x1a4] sm:$0x1]
  %v495 = vsel %vm274, 0, %v494
  %496 = vst [vmem:[%s415 + $0x1a4] sm:$0x1] %v495
  %v497 = vld [vmem:[%s415 + $0x1b4] sm:$0x1]
  %v498 = vsel %vm274, 0, %v497
  %499 = vst [vmem:[%s415 + $0x1b4] sm:$0x1] %v498
  %v500 = vld [vmem:[%s415 + $0x1c4] sm:$0x1]
  %v501 = vsel %vm274, 0, %v500
  %502 = vst [vmem:[%s415 + $0x1c4] sm:$0x1] %v501
  %v503 = vld [vmem:[%s415 + $0x1d4] sm:$0x1]
  %v504 = vsel %vm274, 0, %v503
  %505 = vst [vmem:[%s415 + $0x1d4] sm:$0x1] %v504
  %v506 = vld [vmem:[%s415 + $0x1e4] sm:$0x1]
  %v507 = vsel %vm274, 0, %v506
  %508 = vst [vmem:[%s415 + $0x1e4] sm:$0x1] %v507
  %v509 = vld [vmem:[%s415 + $0x1f4] sm:$0x1]
  %v510 = vsel %vm274, 0, %v509
  %511 = vst [vmem:[%s415 + $0x1f4] sm:$0x1] %v510
  %v512 = vld [vmem:[%s415 + $0x204] sm:$0x1]
  %v513 = vsel %vm274, 0, %v512
  %514 = vst [vmem:[%s415 + $0x204] sm:$0x1] %v513
  %v515 = vld [vmem:[%s415 + $0x214] sm:$0x1]
  %v516 = vsel %vm274, 0, %v515
  %517 = vst [vmem:[%s415 + $0x214] sm:$0x1] %v516
  %v518 = vld [vmem:[%s415 + $0x224] sm:$0x1]
  %v519 = vsel %vm274, 0, %v518
  %520 = vst [vmem:[%s415 + $0x224] sm:$0x1] %v519
  %v521 = vld [vmem:[%s415 + $0x234] sm:$0x1]
  %v522 = vsel %vm274, 0, %v521
  %523 = vst [vmem:[%s415 + $0x234] sm:$0x1] %v522
  %s524 = scalar_lea.vmem [#allocation2], 24
  %525 = vst.msk [vmem:[%s524] sm:$0xf] %vm270, %v110
  %526 = vst.msk [vmem:[%s524 + $0x20] sm:$0xf] %vm270, %v111
  %527 = vst.msk [vmem:[%s524 + $0x40] sm:$0xf] %vm270, %v112
  %528 = vst.msk [vmem:[%s524 + $0x60] sm:$0xf] %vm270, %v113
  %529 = vst.msk [vmem:[%s524 + $0x80] sm:$0xf] %vm270, %v114
  %530 = vst.msk [vmem:[%s524 + $0xa0] sm:$0xf] %vm270, %v115
  %531 = vst.msk [vmem:[%s524 + $0xc0] sm:$0xf] %vm270, %v116
  %532 = vst.msk [vmem:[%s524 + $0xe0] sm:$0xf] %vm270, %v117
  %533 = vst.msk [vmem:[%s524 + $0x120] sm:$0xf] %vm270, %v118
  %534 = vst.msk [vmem:[%s524 + $0x140] sm:$0xf] %vm270, %v119
  %535 = vst.msk [vmem:[%s524 + $0x160] sm:$0xf] %vm270, %v120
  %536 = vst.msk [vmem:[%s524 + $0x180] sm:$0xf] %vm270, %v121
  %537 = vst.msk [vmem:[%s524 + $0x1a0] sm:$0xf] %vm270, %v122
  %538 = vst.msk [vmem:[%s524 + $0x1c0] sm:$0xf] %vm270, %v123
  %539 = vst.msk [vmem:[%s524 + $0x1e0] sm:$0xf] %vm270, %v124
  %540 = vst.msk [vmem:[%s524 + $0x200] sm:$0xf] %vm270, %v125
  %v542 = vshrl.u32 %v158, 16
  %v544 = vrot.slane %v542, 7
  %v545 = vshll.u32 %v158, 16
  %v547 = vor.u32 %v544, %v545
  %v548 = vrot.slane %v544, 4
  %v550 = vshrl.u32 %v159, 16
  %v552 = vrot.slane %v550, 7
  %v553 = vshll.u32 %v159, 16
  %v555 = vor.u32 %v552, %v553
  %v556 = vrot.slane %v552, 4
  %v558 = vshrl.u32 %v160, 16
  %v560 = vrot.slane %v558, 7
  %v561 = vshll.u32 %v160, 16
  %v563 = vor.u32 %v560, %v561
  %v564 = vrot.slane %v560, 4
  %v566 = vshrl.u32 %v161, 16
  %v568 = vrot.slane %v566, 7
  %v569 = vshll.u32 %v161, 16
  %v571 = vor.u32 %v568, %v569
  %v572 = vrot.slane %v568, 4
  %v574 = vshrl.u32 %v162, 16
  %v576 = vrot.slane %v574, 7
  %v577 = vshll.u32 %v162, 16
  %v579 = vor.u32 %v576, %v577
  %v580 = vrot.slane %v576, 4
  %v582 = vshrl.u32 %v163, 16
  %v584 = vrot.slane %v582, 7
  %v585 = vshll.u32 %v163, 16
  %v587 = vor.u32 %v584, %v585
  %v588 = vrot.slane %v584, 4
  %v590 = vshrl.u32 %v164, 16
  %v592 = vrot.slane %v590, 7
  %v593 = vshll.u32 %v164, 16
  %v595 = vor.u32 %v592, %v593
  %v596 = vrot.slane %v592, 4
  %v598 = vshrl.u32 %v165, 16
  %v600 = vrot.slane %v598, 7
  %v601 = vshll.u32 %v165, 16
  %v603 = vor.u32 %v600, %v601
  %v604 = vrot.slane %v600, 4
  %v606 = vshrl.u32 %v166, 16
  %v608 = vrot.slane %v606, 7
  %v609 = vshll.u32 %v166, 16
  %v611 = vor.u32 %v608, %v609
  %v612 = vrot.slane %v608, 4
  %v614 = vshrl.u32 %v167, 16
  %v616 = vrot.slane %v614, 7
  %v617 = vshll.u32 %v167, 16
  %v619 = vor.u32 %v616, %v617
  %v620 = vrot.slane %v616, 4
  %v622 = vshrl.u32 %v168, 16
  %v624 = vrot.slane %v622, 7
  %v625 = vshll.u32 %v168, 16
  %v627 = vor.u32 %v624, %v625
  %v628 = vrot.slane %v624, 4
  %v630 = vshrl.u32 %v169, 16
  %v632 = vrot.slane %v630, 7
  %v633 = vshll.u32 %v169, 16
  %v635 = vor.u32 %v632, %v633
  %v636 = vrot.slane %v632, 4
  %v638 = vshrl.u32 %v170, 16
  %v640 = vrot.slane %v638, 7
  %v641 = vshll.u32 %v170, 16
  %v643 = vor.u32 %v640, %v641
  %v644 = vrot.slane %v640, 4
  %v646 = vshrl.u32 %v171, 16
  %v648 = vrot.slane %v646, 7
  %v649 = vshll.u32 %v171, 16
  %v651 = vor.u32 %v648, %v649
  %v652 = vrot.slane %v648, 4
  %v654 = vshrl.u32 %v172, 16
  %v656 = vrot.slane %v654, 7
  %v657 = vshll.u32 %v172, 16
  %v659 = vor.u32 %v656, %v657
  %v660 = vrot.slane %v656, 4
  %v662 = vshrl.u32 %v173, 16
  %v664 = vrot.slane %v662, 7
  %v665 = vshll.u32 %v173, 16
  %v667 = vor.u32 %v664, %v665
  %v668 = vrot.slane %v664, 4
  %s701 = scalar_lea.vmem [#allocation2], 16
  %vm702 = vcmask 27648
  %vm703 = vsmask.f32 7938
  %vm704 = vmand %vm702, %vm703
  %v705 = vld [vmem:[%s701] sm:$0xf]
  %v706 = vsel %vm704, %v547, %v705
  %707 = vst [vmem:[%s701] sm:$0xf] %v706
  %v708 = vld [vmem:[%s701 + $0x4] sm:$0x1]
  %v709 = vsel %vm274, %v548, %v708
  %710 = vst [vmem:[%s701 + $0x4] sm:$0x1] %v709
  %v711 = vld [vmem:[%s701 + $0x20] sm:$0xf]
  %v712 = vsel %vm704, %v555, %v711
  %713 = vst [vmem:[%s701 + $0x20] sm:$0xf] %v712
  %v714 = vld [vmem:[%s701 + $0x24] sm:$0x1]
  %v715 = vsel %vm274, %v556, %v714
  %716 = vst [vmem:[%s701 + $0x24] sm:$0x1] %v715
  %v717 = vld [vmem:[%s701 + $0x40] sm:$0xf]
  %v718 = vsel %vm704, %v563, %v717
  %719 = vst [vmem:[%s701 + $0x40] sm:$0xf] %v718
  %v720 = vld [vmem:[%s701 + $0x44] sm:$0x1]
  %v721 = vsel %vm274, %v564, %v720
  %722 = vst [vmem:[%s701 + $0x44] sm:$0x1] %v721
  %v723 = vld [vmem:[%s701 + $0x60] sm:$0xf]
  %v724 = vsel %vm704, %v571, %v723
  %725 = vst [vmem:[%s701 + $0x60] sm:$0xf] %v724
  %v726 = vld [vmem:[%s701 + $0x64] sm:$0x1]
  %v727 = vsel %vm274, %v572, %v726
  %728 = vst [vmem:[%s701 + $0x64] sm:$0x1] %v727
  %v729 = vld [vmem:[%s701 + $0x80] sm:$0xf]
  %v730 = vsel %vm704, %v579, %v729
  %731 = vst [vmem:[%s701 + $0x80] sm:$0xf] %v730
  %v732 = vld [vmem:[%s701 + $0x84] sm:$0x1]
  %v733 = vsel %vm274, %v580, %v732
  %734 = vst [vmem:[%s701 + $0x84] sm:$0x1] %v733
  %v735 = vld [vmem:[%s701 + $0xa0] sm:$0xf]
  %v736 = vsel %vm704, %v587, %v735
  %737 = vst [vmem:[%s701 + $0xa0] sm:$0xf] %v736
  %v738 = vld [vmem:[%s701 + $0xa4] sm:$0x1]
  %v739 = vsel %vm274, %v588, %v738
  %740 = vst [vmem:[%s701 + $0xa4] sm:$0x1] %v739
  %v741 = vld [vmem:[%s701 + $0xc0] sm:$0xf]
  %v742 = vsel %vm704, %v595, %v741
  %743 = vst [vmem:[%s701 + $0xc0] sm:$0xf] %v742
  %v744 = vld [vmem:[%s701 + $0xc4] sm:$0x1]
  %v745 = vsel %vm274, %v596, %v744
  %746 = vst [vmem:[%s701 + $0xc4] sm:$0x1] %v745
  %v747 = vld [vmem:[%s701 + $0xe0] sm:$0xf]
  %v748 = vsel %vm704, %v603, %v747
  %749 = vst [vmem:[%s701 + $0xe0] sm:$0xf] %v748
  %v750 = vld [vmem:[%s701 + $0xe4] sm:$0x1]
  %v751 = vsel %vm274, %v604, %v750
  %752 = vst [vmem:[%s701 + $0xe4] sm:$0x1] %v751
  %v753 = vld [vmem:[%s701 + $0x120] sm:$0xf]
  %v754 = vsel %vm704, %v611, %v753
  %755 = vst [vmem:[%s701 + $0x120] sm:$0xf] %v754
  %v756 = vld [vmem:[%s701 + $0x124] sm:$0x1]
  %v757 = vsel %vm274, %v612, %v756
  %758 = vst [vmem:[%s701 + $0x124] sm:$0x1] %v757
  %v759 = vld [vmem:[%s701 + $0x140] sm:$0xf]
  %v760 = vsel %vm704, %v619, %v759
  %761 = vst [vmem:[%s701 + $0x140] sm:$0xf] %v760
  %v762 = vld [vmem:[%s701 + $0x144] sm:$0x1]
  %v763 = vsel %vm274, %v620, %v762
  %764 = vst [vmem:[%s701 + $0x144] sm:$0x1] %v763
  %v765 = vld [vmem:[%s701 + $0x160] sm:$0xf]
  %v766 = vsel %vm704, %v627, %v765
  %767 = vst [vmem:[%s701 + $0x160] sm:$0xf] %v766
  %v768 = vld [vmem:[%s701 + $0x164] sm:$0x1]
  %v769 = vsel %vm274, %v628, %v768
  %770 = vst [vmem:[%s701 + $0x164] sm:$0x1] %v769
  %v771 = vld [vmem:[%s701 + $0x180] sm:$0xf]
  %v772 = vsel %vm704, %v635, %v771
  %773 = vst [vmem:[%s701 + $0x180] sm:$0xf] %v772
  %v774 = vld [vmem:[%s701 + $0x184] sm:$0x1]
  %v775 = vsel %vm274, %v636, %v774
  %776 = vst [vmem:[%s701 + $0x184] sm:$0x1] %v775
  %v777 = vld [vmem:[%s701 + $0x1a0] sm:$0xf]
  %v778 = vsel %vm704, %v643, %v777
  %779 = vst [vmem:[%s701 + $0x1a0] sm:$0xf] %v778
  %v780 = vld [vmem:[%s701 + $0x1a4] sm:$0x1]
  %v781 = vsel %vm274, %v644, %v780
  %782 = vst [vmem:[%s701 + $0x1a4] sm:$0x1] %v781
  %v783 = vld [vmem:[%s701 + $0x1c0] sm:$0xf]
  %v784 = vsel %vm704, %v651, %v783
  %785 = vst [vmem:[%s701 + $0x1c0] sm:$0xf] %v784
  %v786 = vld [vmem:[%s701 + $0x1c4] sm:$0x1]
  %v787 = vsel %vm274, %v652, %v786
  %788 = vst [vmem:[%s701 + $0x1c4] sm:$0x1] %v787
  %v789 = vld [vmem:[%s701 + $0x1e0] sm:$0xf]
  %v790 = vsel %vm704, %v659, %v789
  %791 = vst [vmem:[%s701 + $0x1e0] sm:$0xf] %v790
  %v792 = vld [vmem:[%s701 + $0x1e4] sm:$0x1]
  %v793 = vsel %vm274, %v660, %v792
  %794 = vst [vmem:[%s701 + $0x1e4] sm:$0x1] %v793
  %v795 = vld [vmem:[%s701 + $0x200] sm:$0xf]
  %v796 = vsel %vm704, %v667, %v795
  %797 = vst [vmem:[%s701 + $0x200] sm:$0xf] %v796
  %v798 = vld [vmem:[%s701 + $0x204] sm:$0x1]
  %v799 = vsel %vm274, %v668, %v798
  %800 = vst [vmem:[%s701 + $0x204] sm:$0x1] %v799
  %s801 = scalar_lea.vmem [#allocation2], 40
  %802 = vst.msk [vmem:[%s801] sm:$0xf] %vm270, %v206
  %803 = vst.msk [vmem:[%s801 + $0x20] sm:$0xf] %vm270, %v207
  %804 = vst.msk [vmem:[%s801 + $0x40] sm:$0xf] %vm270, %v208
  %805 = vst.msk [vmem:[%s801 + $0x60] sm:$0xf] %vm270, %v209
  %806 = vst.msk [vmem:[%s801 + $0x80] sm:$0xf] %vm270, %v210
  %807 = vst.msk [vmem:[%s801 + $0xa0] sm:$0xf] %vm270, %v211
  %808 = vst.msk [vmem:[%s801 + $0xc0] sm:$0xf] %vm270, %v212
  %809 = vst.msk [vmem:[%s801 + $0xe0] sm:$0xf] %vm270, %v213
  %810 = vst.msk [vmem:[%s801 + $0x120] sm:$0xf] %vm270, %v214
  %811 = vst.msk [vmem:[%s801 + $0x140] sm:$0xf] %vm270, %v215
  %812 = vst.msk [vmem:[%s801 + $0x160] sm:$0xf] %vm270, %v216
  %813 = vst.msk [vmem:[%s801 + $0x180] sm:$0xf] %vm270, %v217
  %814 = vst.msk [vmem:[%s801 + $0x1a0] sm:$0xf] %vm270, %v218
  %815 = vst.msk [vmem:[%s801 + $0x1c0] sm:$0xf] %vm270, %v219
  %816 = vst.msk [vmem:[%s801 + $0x1e0] sm:$0xf] %vm270, %v220
  %817 = vst.msk [vmem:[%s801 + $0x200] sm:$0xf] %vm270, %v221
  %v819 = vshrl.u32 %v254, 16
  %v821 = vrot.slane %v819, 7
  %v822 = vshll.u32 %v254, 16
  %v824 = vor.u32 %v821, %v822
  %v825 = vrot.slane %v821, 4
  %v827 = vshrl.u32 %v255, 16
  %v829 = vrot.slane %v827, 7
  %v830 = vshll.u32 %v255, 16
  %v832 = vor.u32 %v829, %v830
  %v833 = vrot.slane %v829, 4
  %v835 = vshrl.u32 %v256, 16
  %v837 = vrot.slane %v835, 7
  %v838 = vshll.u32 %v256, 16
  %v840 = vor.u32 %v837, %v838
  %v841 = vrot.slane %v837, 4
  %v843 = vshrl.u32 %v257, 16
  %v845 = vrot.slane %v843, 7
  %v846 = vshll.u32 %v257, 16
  %v848 = vor.u32 %v845, %v846
  %v849 = vrot.slane %v845, 4
  %v851 = vshrl.u32 %v258, 16
  %v853 = vrot.slane %v851, 7
  %v854 = vshll.u32 %v258, 16
  %v856 = vor.u32 %v853, %v854
  %v857 = vrot.slane %v853, 4
  %v859 = vshrl.u32 %v259, 16
  %v861 = vrot.slane %v859, 7
  %v862 = vshll.u32 %v259, 16
  %v864 = vor.u32 %v861, %v862
  %v865 = vrot.slane %v861, 4
  %v867 = vshrl.u32 %v260, 16
  %v869 = vrot.slane %v867, 7
  %v870 = vshll.u32 %v260, 16
  %v872 = vor.u32 %v869, %v870
  %v873 = vrot.slane %v869, 4
  %v875 = vshrl.u32 %v261, 16
  %v877 = vrot.slane %v875, 7
  %v878 = vshll.u32 %v261, 16
  %v880 = vor.u32 %v877, %v878
  %v881 = vrot.slane %v877, 4
  %v883 = vshrl.u32 %v262, 16
  %v885 = vrot.slane %v883, 7
  %v886 = vshll.u32 %v262, 16
  %v888 = vor.u32 %v885, %v886
  %v889 = vrot.slane %v885, 4
  %v891 = vshrl.u32 %v263, 16
  %v893 = vrot.slane %v891, 7
  %v894 = vshll.u32 %v263, 16
  %v896 = vor.u32 %v893, %v894
  %v897 = vrot.slane %v893, 4
  %v899 = vshrl.u32 %v264, 16
  %v901 = vrot.slane %v899, 7
  %v902 = vshll.u32 %v264, 16
  %v904 = vor.u32 %v901, %v902
  %v905 = vrot.slane %v901, 4
  %v907 = vshrl.u32 %v265, 16
  %v909 = vrot.slane %v907, 7
  %v910 = vshll.u32 %v265, 16
  %v912 = vor.u32 %v909, %v910
  %v913 = vrot.slane %v909, 4
  %v915 = vshrl.u32 %v266, 16
  %v917 = vrot.slane %v915, 7
  %v918 = vshll.u32 %v266, 16
  %v920 = vor.u32 %v917, %v918
  %v921 = vrot.slane %v917, 4
  %v923 = vshrl.u32 %v267, 16
  %v925 = vrot.slane %v923, 7
  %v926 = vshll.u32 %v267, 16
  %v928 = vor.u32 %v925, %v926
  %v929 = vrot.slane %v925, 4
  %v931 = vshrl.u32 %v268, 16
  %v933 = vrot.slane %v931, 7
  %v934 = vshll.u32 %v268, 16
  %v936 = vor.u32 %v933, %v934
  %v937 = vrot.slane %v933, 4
  %v939 = vshrl.u32 %v269, 16
  %v941 = vrot.slane %v939, 7
  %v942 = vshll.u32 %v269, 16
  %v944 = vor.u32 %v941, %v942
  %v945 = vrot.slane %v941, 4
  %s978 = scalar_lea.vmem [#allocation2], 32
  %v979 = vld [vmem:[%s978] sm:$0xf]
  %v980 = vsel %vm704, %v824, %v979
  %981 = vst [vmem:[%s978] sm:$0xf] %v980
  %v982 = vld [vmem:[%s978 + $0x4] sm:$0x1]
  %v983 = vsel %vm274, %v825, %v982
  %984 = vst [vmem:[%s978 + $0x4] sm:$0x1] %v983
  %v985 = vld [vmem:[%s978 + $0x20] sm:$0xf]
  %v986 = vsel %vm704, %v832, %v985
  %987 = vst [vmem:[%s978 + $0x20] sm:$0xf] %v986
  %v988 = vld [vmem:[%s978 + $0x24] sm:$0x1]
  %v989 = vsel %vm274, %v833, %v988
  %990 = vst [vmem:[%s978 + $0x24] sm:$0x1] %v989
  %v991 = vld [vmem:[%s978 + $0x40] sm:$0xf]
  %v992 = vsel %vm704, %v840, %v991
  %993 = vst [vmem:[%s978 + $0x40] sm:$0xf] %v992
  %v994 = vld [vmem:[%s978 + $0x44] sm:$0x1]
  %v995 = vsel %vm274, %v841, %v994
  %996 = vst [vmem:[%s978 + $0x44] sm:$0x1] %v995
  %v997 = vld [vmem:[%s978 + $0x60] sm:$0xf]
  %v998 = vsel %vm704, %v848, %v997
  %999 = vst [vmem:[%s978 + $0x60] sm:$0xf] %v998
  %v1000 = vld [vmem:[%s978 + $0x64] sm:$0x1]
  %v1001 = vsel %vm274, %v849, %v1000
  %1002 = vst [vmem:[%s978 + $0x64] sm:$0x1] %v1001
  %v1003 = vld [vmem:[%s978 + $0x80] sm:$0xf]
  %v1004 = vsel %vm704, %v856, %v1003
  %1005 = vst [vmem:[%s978 + $0x80] sm:$0xf] %v1004
  %v1006 = vld [vmem:[%s978 + $0x84] sm:$0x1]
  %v1007 = vsel %vm274, %v857, %v1006
  %1008 = vst [vmem:[%s978 + $0x84] sm:$0x1] %v1007
  %v1009 = vld [vmem:[%s978 + $0xa0] sm:$0xf]
  %v1010 = vsel %vm704, %v864, %v1009
  %1011 = vst [vmem:[%s978 + $0xa0] sm:$0xf] %v1010
  %v1012 = vld [vmem:[%s978 + $0xa4] sm:$0x1]
  %v1013 = vsel %vm274, %v865, %v1012
  %1014 = vst [vmem:[%s978 + $0xa4] sm:$0x1] %v1013
  %v1015 = vld [vmem:[%s978 + $0xc0] sm:$0xf]
  %v1016 = vsel %vm704, %v872, %v1015
  %1017 = vst [vmem:[%s978 + $0xc0] sm:$0xf] %v1016
  %v1018 = vld [vmem:[%s978 + $0xc4] sm:$0x1]
  %v1019 = vsel %vm274, %v873, %v1018
  %1020 = vst [vmem:[%s978 + $0xc4] sm:$0x1] %v1019
  %v1021 = vld [vmem:[%s978 + $0xe0] sm:$0xf]
  %v1022 = vsel %vm704, %v880, %v1021
  %1023 = vst [vmem:[%s978 + $0xe0] sm:$0xf] %v1022
  %v1024 = vld [vmem:[%s978 + $0xe4] sm:$0x1]
  %v1025 = vsel %vm274, %v881, %v1024
  %1026 = vst [vmem:[%s978 + $0xe4] sm:$0x1] %v1025
  %v1027 = vld [vmem:[%s978 + $0x120] sm:$0xf]
  %v1028 = vsel %vm704, %v888, %v1027
  %1029 = vst [vmem:[%s978 + $0x120] sm:$0xf] %v1028
  %v1030 = vld [vmem:[%s978 + $0x124] sm:$0x1]
  %v1031 = vsel %vm274, %v889, %v1030
  %1032 = vst [vmem:[%s978 + $0x124] sm:$0x1] %v1031
  %v1033 = vld [vmem:[%s978 + $0x140] sm:$0xf]
  %v1034 = vsel %vm704, %v896, %v1033
  %1035 = vst [vmem:[%s978 + $0x140] sm:$0xf] %v1034
  %v1036 = vld [vmem:[%s978 + $0x144] sm:$0x1]
  %v1037 = vsel %vm274, %v897, %v1036
  %1038 = vst [vmem:[%s978 + $0x144] sm:$0x1] %v1037
  %v1039 = vld [vmem:[%s978 + $0x160] sm:$0xf]
  %v1040 = vsel %vm704, %v904, %v1039
  %1041 = vst [vmem:[%s978 + $0x160] sm:$0xf] %v1040
  %v1042 = vld [vmem:[%s978 + $0x164] sm:$0x1]
  %v1043 = vsel %vm274, %v905, %v1042
  %1044 = vst [vmem:[%s978 + $0x164] sm:$0x1] %v1043
  %v1045 = vld [vmem:[%s978 + $0x180] sm:$0xf]
  %v1046 = vsel %vm704, %v912, %v1045
  %1047 = vst [vmem:[%s978 + $0x180] sm:$0xf] %v1046
  %v1048 = vld [vmem:[%s978 + $0x184] sm:$0x1]
  %v1049 = vsel %vm274, %v913, %v1048
  %1050 = vst [vmem:[%s978 + $0x184] sm:$0x1] %v1049
  %v1051 = vld [vmem:[%s978 + $0x1a0] sm:$0xf]
  %v1052 = vsel %vm704, %v920, %v1051
  %1053 = vst [vmem:[%s978 + $0x1a0] sm:$0xf] %v1052
  %v1054 = vld [vmem:[%s978 + $0x1a4] sm:$0x1]
  %v1055 = vsel %vm274, %v921, %v1054
  %1056 = vst [vmem:[%s978 + $0x1a4] sm:$0x1] %v1055
  %v1057 = vld [vmem:[%s978 + $0x1c0] sm:$0xf]
  %v1058 = vsel %vm704, %v928, %v1057
  %1059 = vst [vmem:[%s978 + $0x1c0] sm:$0xf] %v1058
  %v1060 = vld [vmem:[%s978 + $0x1c4] sm:$0x1]
  %v1061 = vsel %vm274, %v929, %v1060
  %1062 = vst [vmem:[%s978 + $0x1c4] sm:$0x1] %v1061
  %v1063 = vld [vmem:[%s978 + $0x1e0] sm:$0xf]
  %v1064 = vsel %vm704, %v936, %v1063
  %1065 = vst [vmem:[%s978 + $0x1e0] sm:$0xf] %v1064
  %v1066 = vld [vmem:[%s978 + $0x1e4] sm:$0x1]
  %v1067 = vsel %vm274, %v937, %v1066
  %1068 = vst [vmem:[%s978 + $0x1e4] sm:$0x1] %v1067
  %v1069 = vld [vmem:[%s978 + $0x200] sm:$0xf]
  %v1070 = vsel %vm704, %v944, %v1069
  %1071 = vst [vmem:[%s978 + $0x200] sm:$0xf] %v1070
  %v1072 = vld [vmem:[%s978 + $0x204] sm:$0x1]
  %v1073 = vsel %vm274, %v945, %v1072
  %1074 = vst [vmem:[%s978 + $0x204] sm:$0x1] %v1073
  %v1075 = vld [vmem:[#allocation2] sm:$0xf]
  %v1076 = vld [vmem:[#allocation2 + $0x20] sm:$0xf]
  %v1077 = vld [vmem:[#allocation2 + $0x40] sm:$0xf]
  %v1078 = vld [vmem:[#allocation2 + $0x60] sm:$0xf]
  %v1079 = vld [vmem:[#allocation2 + $0x80] sm:$0xf]
  %v1080 = vld [vmem:[#allocation2 + $0xa0] sm:$0xf]
  %v1081 = vld [vmem:[#allocation2 + $0xc0] sm:$0xf]
  %v1082 = vld [vmem:[#allocation2 + $0xe0] sm:$0xf]
  %v1083 = vld [vmem:[#allocation2 + $0x120] sm:$0xf]
  %v1084 = vld [vmem:[#allocation2 + $0x140] sm:$0xf]
  %v1085 = vld [vmem:[#allocation2 + $0x160] sm:$0xf]
  %v1086 = vld [vmem:[#allocation2 + $0x180] sm:$0xf]
  %v1087 = vld [vmem:[#allocation2 + $0x1a0] sm:$0xf]
  %v1088 = vld [vmem:[#allocation2 + $0x1c0] sm:$0xf]
  %v1089 = vld [vmem:[#allocation2 + $0x1e0] sm:$0xf]
  %v1090 = vld [vmem:[#allocation2 + $0x200] sm:$0xf]
  %v1091 = vld [vmem:[%s415] sm:$0xf]
  %v1092 = vld [vmem:[%s415 + $0x20] sm:$0xf]
  %v1093 = vld [vmem:[%s415 + $0x40] sm:$0xf]
  %v1094 = vld [vmem:[%s415 + $0x60] sm:$0xf]
  %v1095 = vld [vmem:[%s415 + $0x80] sm:$0xf]
  %v1096 = vld [vmem:[%s415 + $0xa0] sm:$0xf]
  %v1097 = vld [vmem:[%s415 + $0xc0] sm:$0xf]
  %v1098 = vld [vmem:[%s415 + $0xe0] sm:$0xf]
  %v1099 = vld [vmem:[%s415 + $0x120] sm:$0xf]
  %v1100 = vld [vmem:[%s415 + $0x140] sm:$0xf]
  %v1101 = vld [vmem:[%s415 + $0x160] sm:$0xf]
  %v1102 = vld [vmem:[%s415 + $0x180] sm:$0xf]
  %v1103 = vld [vmem:[%s415 + $0x1a0] sm:$0xf]
  %v1104 = vld [vmem:[%s415 + $0x1c0] sm:$0xf]
  %v1105 = vld [vmem:[%s415 + $0x1e0] sm:$0xf]
  %v1106 = vld [vmem:[%s415 + $0x200] sm:$0xf]
  %v1107 = vld [vmem:[#allocation2 + $0x4] sm:$0x1]
  %v1108 = vld [vmem:[#allocation2 + $0x24] sm:$0x1]
  %v1109 = vld [vmem:[#allocation2 + $0x44] sm:$0x1]
  %v1110 = vld [vmem:[#allocation2 + $0x64] sm:$0x1]
  %v1111 = vld [vmem:[#allocation2 + $0x84] sm:$0x1]
  %v1112 = vld [vmem:[#allocation2 + $0xa4] sm:$0x1]
  %v1113 = vld [vmem:[#allocation2 + $0xc4] sm:$0x1]
  %v1114 = vld [vmem:[#allocation2 + $0xe4] sm:$0x1]
  %v1115 = vld [vmem:[#allocation2 + $0x124] sm:$0x1]
  %v1116 = vld [vmem:[#allocation2 + $0x144] sm:$0x1]
  %v1117 = vld [vmem:[#allocation2 + $0x164] sm:$0x1]
  %v1118 = vld [vmem:[#allocation2 + $0x184] sm:$0x1]
  %v1119 = vld [vmem:[#allocation2 + $0x1a4] sm:$0x1]
  %v1120 = vld [vmem:[#allocation2 + $0x1c4] sm:$0x1]
  %v1121 = vld [vmem:[#allocation2 + $0x1e4] sm:$0x1]
  %v1122 = vld [vmem:[#allocation2 + $0x204] sm:$0x1]
  %vm1123 = vsmask.f32 3328
  %vm1124 = vsmask.f32 7440
  %vm1125 = vmor %vm1123, %vm1124
  %v1127 = vshrl.u32 %v1075, 16
  %v1129 = vrot.slane %v1127, 4
  %v1130 = vshll.u32 %v1075, 16
  %v1132 = vrot.slane %v1130, 5
  %v1133 = vor.u32 %v1129, %v1132
  %v1134 = vrot.slane %v1133, 4
  %v1136 = vshll.u32 %v1107, 16
  %v1138 = vrot.slane %v1136, 5
  %v1139 = vsel %vm1125, %v1134, %v1138
  %v1141 = vshrl.u32 %v1076, 16
  %v1143 = vrot.slane %v1141, 4
  %v1144 = vshll.u32 %v1076, 16
  %v1146 = vrot.slane %v1144, 5
  %v1147 = vor.u32 %v1143, %v1146
  %v1148 = vrot.slane %v1147, 4
  %v1150 = vshll.u32 %v1108, 16
  %v1152 = vrot.slane %v1150, 5
  %v1153 = vsel %vm1125, %v1148, %v1152
  %v1155 = vshrl.u32 %v1077, 16
  %v1157 = vrot.slane %v1155, 4
  %v1158 = vshll.u32 %v1077, 16
  %v1160 = vrot.slane %v1158, 5
  %v1161 = vor.u32 %v1157, %v1160
  %v1162 = vrot.slane %v1161, 4
  %v1164 = vshll.u32 %v1109, 16
  %v1166 = vrot.slane %v1164, 5
  %v1167 = vsel %vm1125, %v1162, %v1166
  %v1169 = vshrl.u32 %v1078, 16
  %v1171 = vrot.slane %v1169, 4
  %v1172 = vshll.u32 %v1078, 16
  %v1174 = vrot.slane %v1172, 5
  %v1175 = vor.u32 %v1171, %v1174
  %v1176 = vrot.slane %v1175, 4
  %v1178 = vshll.u32 %v1110, 16
  %v1180 = vrot.slane %v1178, 5
  %v1181 = vsel %vm1125, %v1176, %v1180
  %v1183 = vshrl.u32 %v1079, 16
  %v1185 = vrot.slane %v1183, 4
  %v1186 = vshll.u32 %v1079, 16
  %v1188 = vrot.slane %v1186, 5
  %v1189 = vor.u32 %v1185, %v1188
  %v1190 = vrot.slane %v1189, 4
  %v1192 = vshll.u32 %v1111, 16
  %v1194 = vrot.slane %v1192, 5
  %v1195 = vsel %vm1125, %v1190, %v1194
  %v1197 = vshrl.u32 %v1080, 16
  %v1199 = vrot.slane %v1197, 4
  %v1200 = vshll.u32 %v1080, 16
  %v1202 = vrot.slane %v1200, 5
  %v1203 = vor.u32 %v1199, %v1202
  %v1204 = vrot.slane %v1203, 4
  %v1206 = vshll.u32 %v1112, 16
  %v1208 = vrot.slane %v1206, 5
  %v1209 = vsel %vm1125, %v1204, %v1208
  %v1211 = vshrl.u32 %v1081, 16
  %v1213 = vrot.slane %v1211, 4
  %v1214 = vshll.u32 %v1081, 16
  %v1216 = vrot.slane %v1214, 5
  %v1217 = vor.u32 %v1213, %v1216
  %v1218 = vrot.slane %v1217, 4
  %v1220 = vshll.u32 %v1113, 16
  %v1222 = vrot.slane %v1220, 5
  %v1223 = vsel %vm1125, %v1218, %v1222
  %v1225 = vshrl.u32 %v1082, 16
  %v1227 = vrot.slane %v1225, 4
  %v1228 = vshll.u32 %v1082, 16
  %v1230 = vrot.slane %v1228, 5
  %v1231 = vor.u32 %v1227, %v1230
  %v1232 = vrot.slane %v1231, 4
  %v1234 = vshll.u32 %v1114, 16
  %v1236 = vrot.slane %v1234, 5
  %v1237 = vsel %vm1125, %v1232, %v1236
  %v1239 = vshrl.u32 %v1083, 16
  %v1241 = vrot.slane %v1239, 4
  %v1242 = vshll.u32 %v1083, 16
  %v1244 = vrot.slane %v1242, 5
  %v1245 = vor.u32 %v1241, %v1244
  %v1246 = vrot.slane %v1245, 4
  %v1248 = vshll.u32 %v1115, 16
  %v1250 = vrot.slane %v1248, 5
  %v1251 = vsel %vm1125, %v1246, %v1250
  %v1253 = vshrl.u32 %v1084, 16
  %v1255 = vrot.slane %v1253, 4
  %v1256 = vshll.u32 %v1084, 16
  %v1258 = vrot.slane %v1256, 5
  %v1259 = vor.u32 %v1255, %v1258
  %v1260 = vrot.slane %v1259, 4
  %v1262 = vshll.u32 %v1116, 16
  %v1264 = vrot.slane %v1262, 5
  %v1265 = vsel %vm1125, %v1260, %v1264
  %v1267 = vshrl.u32 %v1085, 16
  %v1269 = vrot.slane %v1267, 4
  %v1270 = vshll.u32 %v1085, 16
  %v1272 = vrot.slane %v1270, 5
  %v1273 = vor.u32 %v1269, %v1272
  %v1274 = vrot.slane %v1273, 4
  %v1276 = vshll.u32 %v1117, 16
  %v1278 = vrot.slane %v1276, 5
  %v1279 = vsel %vm1125, %v1274, %v1278
  %v1281 = vshrl.u32 %v1086, 16
  %v1283 = vrot.slane %v1281, 4
  %v1284 = vshll.u32 %v1086, 16
  %v1286 = vrot.slane %v1284, 5
  %v1287 = vor.u32 %v1283, %v1286
  %v1288 = vrot.slane %v1287, 4
  %v1290 = vshll.u32 %v1118, 16
  %v1292 = vrot.slane %v1290, 5
  %v1293 = vsel %vm1125, %v1288, %v1292
  %v1295 = vshrl.u32 %v1087, 16
  %v1297 = vrot.slane %v1295, 4
  %v1298 = vshll.u32 %v1087, 16
  %v1300 = vrot.slane %v1298, 5
  %v1301 = vor.u32 %v1297, %v1300
  %v1302 = vrot.slane %v1301, 4
  %v1304 = vshll.u32 %v1119, 16
  %v1306 = vrot.slane %v1304, 5
  %v1307 = vsel %vm1125, %v1302, %v1306
  %v1309 = vshrl.u32 %v1088, 16
  %v1311 = vrot.slane %v1309, 4
  %v1312 = vshll.u32 %v1088, 16
  %v1314 = vrot.slane %v1312, 5
  %v1315 = vor.u32 %v1311, %v1314
  %v1316 = vrot.slane %v1315, 4
  %v1318 = vshll.u32 %v1120, 16
  %v1320 = vrot.slane %v1318, 5
  %v1321 = vsel %vm1125, %v1316, %v1320
  %v1323 = vshrl.u32 %v1089, 16
  %v1325 = vrot.slane %v1323, 4
  %v1326 = vshll.u32 %v1089, 16
  %v1328 = vrot.slane %v1326, 5
  %v1329 = vor.u32 %v1325, %v1328
  %v1330 = vrot.slane %v1329, 4
  %v1332 = vshll.u32 %v1121, 16
  %v1334 = vrot.slane %v1332, 5
  %v1335 = vsel %vm1125, %v1330, %v1334
  %v1337 = vshrl.u32 %v1090, 16
  %v1339 = vrot.slane %v1337, 4
  %v1340 = vshll.u32 %v1090, 16
  %v1342 = vrot.slane %v1340, 5
  %v1343 = vor.u32 %v1339, %v1342
  %v1344 = vrot.slane %v1343, 4
  %v1346 = vshll.u32 %v1122, 16
  %v1348 = vrot.slane %v1346, 5
  %v1349 = vsel %vm1125, %v1344, %v1348
  %v1366 = vunpack.c.l.b16 %v1075
  %v1367 = vunpack.c.l.b16 %v1076
  %v1368 = vunpack.c.l.b16 %v1077
  %v1369 = vunpack.c.l.b16 %v1078
  %v1370 = vunpack.c.l.b16 %v1079
  %v1371 = vunpack.c.l.b16 %v1080
  %v1372 = vunpack.c.l.b16 %v1081
  %v1373 = vunpack.c.l.b16 %v1082
  %v1374 = vunpack.c.l.b16 %v1083
  %v1375 = vunpack.c.l.b16 %v1084
  %v1376 = vunpack.c.l.b16 %v1085
  %v1377 = vunpack.c.l.b16 %v1086
  %v1378 = vunpack.c.l.b16 %v1087
  %v1379 = vunpack.c.l.b16 %v1088
  %v1380 = vunpack.c.l.b16 %v1089
  %v1381 = vunpack.c.l.b16 %v1090
  %v1382 = vpack.c.b16 %v1367, %v1366
  %v1383 = vpack.c.b16 %v1369, %v1368
  %v1384 = vpack.c.b16 %v1371, %v1370
  %v1385 = vpack.c.b16 %v1373, %v1372
  %v1386 = vpack.c.b16 %v1375, %v1374
  %v1387 = vpack.c.b16 %v1377, %v1376
  %v1388 = vpack.c.b16 %v1379, %v1378
  %v1389 = vpack.c.b16 %v1381, %v1380
  %v1406 = vunpack.c.l.b16 %v1091
  %v1407 = vunpack.c.l.b16 %v1092
  %v1408 = vunpack.c.l.b16 %v1093
  %v1409 = vunpack.c.l.b16 %v1094
  %v1410 = vunpack.c.l.b16 %v1095
  %v1411 = vunpack.c.l.b16 %v1096
  %v1412 = vunpack.c.l.b16 %v1097
  %v1413 = vunpack.c.l.b16 %v1098
  %v1414 = vunpack.c.l.b16 %v1099
  %v1415 = vunpack.c.l.b16 %v1100
  %v1416 = vunpack.c.l.b16 %v1101
  %v1417 = vunpack.c.l.b16 %v1102
  %v1418 = vunpack.c.l.b16 %v1103
  %v1419 = vunpack.c.l.b16 %v1104
  %v1420 = vunpack.c.l.b16 %v1105
  %v1421 = vunpack.c.l.b16 %v1106
  %v1422 = vpack.c.b16 %v1407, %v1406
  %v1423 = vpack.c.b16 %v1409, %v1408
  %v1424 = vpack.c.b16 %v1411, %v1410
  %v1425 = vpack.c.b16 %v1413, %v1412
  %v1426 = vpack.c.b16 %v1415, %v1414
  %v1427 = vpack.c.b16 %v1417, %v1416
  %v1428 = vpack.c.b16 %v1419, %v1418
  %v1429 = vpack.c.b16 %v1421, %v1420
  %1430 = vrot.lane.b32.xlu0 %v1422, 4
  %v1431 = vpop.permute.xlu0 %1430
  %1432 = vrot.lane.b32.xlu0 %v1423, 4
  %v1433 = vpop.permute.xlu0 %1432
  %1434 = vrot.lane.b32.xlu0 %v1424, 4
  %v1435 = vpop.permute.xlu0 %1434
  %1436 = vrot.lane.b32.xlu0 %v1425, 4
  %v1437 = vpop.permute.xlu0 %1436
  %1438 = vrot.lane.b32.xlu0 %v1426, 4
  %v1439 = vpop.permute.xlu0 %1438
  %1440 = vrot.lane.b32.xlu0 %v1427, 4
  %v1441 = vpop.permute.xlu0 %1440
  %1442 = vrot.lane.b32.xlu0 %v1428, 4
  %v1443 = vpop.permute.xlu0 %1442
  %1444 = vrot.lane.b32.xlu0 %v1429, 4
  %v1445 = vpop.permute.xlu0 %1444
  %v1446 = vunpack.c.l.b16 %v1139
  %v1447 = vunpack.c.l.b16 %v1153
  %v1448 = vunpack.c.l.b16 %v1167
  %v1449 = vunpack.c.l.b16 %v1181
  %v1450 = vunpack.c.l.b16 %v1195
  %v1451 = vunpack.c.l.b16 %v1209
  %v1452 = vunpack.c.l.b16 %v1223
  %v1453 = vunpack.c.l.b16 %v1237
  %v1454 = vunpack.c.l.b16 %v1251
  %v1455 = vunpack.c.l.b16 %v1265
  %v1456 = vunpack.c.l.b16 %v1279
  %v1457 = vunpack.c.l.b16 %v1293
  %v1458 = vunpack.c.l.b16 %v1307
  %v1459 = vunpack.c.l.b16 %v1321
  %v1460 = vunpack.c.l.b16 %v1335
  %v1461 = vunpack.c.l.b16 %v1349
  %v1462 = vpack.c.b16 %v1447, %v1446
  %v1463 = vpack.c.b16 %v1449, %v1448
  %v1464 = vpack.c.b16 %v1451, %v1450
  %v1465 = vpack.c.b16 %v1453, %v1452
  %v1466 = vpack.c.b16 %v1455, %v1454
  %v1467 = vpack.c.b16 %v1457, %v1456
  %v1468 = vpack.c.b16 %v1459, %v1458
  %v1469 = vpack.c.b16 %v1461, %v1460
  %1470 = vrot.lane.b32.xlu0 %v1462, 8
  %v1471 = vpop.permute.xlu0 %1470
  %1472 = vrot.lane.b32.xlu0 %v1463, 8
  %v1473 = vpop.permute.xlu0 %1472
  %1474 = vrot.lane.b32.xlu0 %v1464, 8
  %v1475 = vpop.permute.xlu0 %1474
  %1476 = vrot.lane.b32.xlu0 %v1465, 8
  %v1477 = vpop.permute.xlu0 %1476
  %1478 = vrot.lane.b32.xlu0 %v1466, 8
  %v1479 = vpop.permute.xlu0 %1478
  %1480 = vrot.lane.b32.xlu0 %v1467, 8
  %v1481 = vpop.permute.xlu0 %1480
  %1482 = vrot.lane.b32.xlu0 %v1468, 8
  %v1483 = vpop.permute.xlu0 %1482
  %1484 = vrot.lane.b32.xlu0 %v1469, 8
  %v1485 = vpop.permute.xlu0 %1484
  %vm1486 = vcmask 31744
  %v1489 = vsel %vm1486, %v1382, %v1431
  %v1492 = vsel %vm1486, %v1383, %v1433
  %v1495 = vsel %vm1486, %v1384, %v1435
  %v1498 = vsel %vm1486, %v1385, %v1437
  %v1501 = vsel %vm1486, %v1386, %v1439
  %v1504 = vsel %vm1486, %v1387, %v1441
  %v1507 = vsel %vm1486, %v1388, %v1443
  %v1510 = vsel %vm1486, %v1389, %v1445
  %vm1511 = vcmask 64512
  %v1513 = vsel %vm1511, %v1489, %v1471
  %v1515 = vsel %vm1511, %v1492, %v1473
  %v1517 = vsel %vm1511, %v1495, %v1475
  %v1519 = vsel %vm1511, %v1498, %v1477
  %v1521 = vsel %vm1511, %v1501, %v1479
  %v1523 = vsel %vm1511, %v1504, %v1481
  %v1525 = vsel %vm1511, %v1507, %v1483
  %v1527 = vsel %vm1511, %v1510, %v1485
  %v1528 = vld [vmem:[%s2] sm:$0xf]
  %v1529 = vld [vmem:[%s2 + $0x4] sm:$0x3]
  %v1530 = vld [vmem:[%s701] sm:$0xf]
  %v1531 = vld [vmem:[%s701 + $0x20] sm:$0xf]
  %v1532 = vld [vmem:[%s701 + $0x40] sm:$0xf]
  %v1533 = vld [vmem:[%s701 + $0x60] sm:$0xf]
  %v1534 = vld [vmem:[%s701 + $0x80] sm:$0xf]
  %v1535 = vld [vmem:[%s701 + $0xa0] sm:$0xf]
  %v1536 = vld [vmem:[%s701 + $0xc0] sm:$0xf]
  %v1537 = vld [vmem:[%s701 + $0xe0] sm:$0xf]
  %v1538 = vld [vmem:[%s701 + $0x120] sm:$0xf]
  %v1539 = vld [vmem:[%s701 + $0x140] sm:$0xf]
  %v1540 = vld [vmem:[%s701 + $0x160] sm:$0xf]
  %v1541 = vld [vmem:[%s701 + $0x180] sm:$0xf]
  %v1542 = vld [vmem:[%s701 + $0x1a0] sm:$0xf]
  %v1543 = vld [vmem:[%s701 + $0x1c0] sm:$0xf]
  %v1544 = vld [vmem:[%s701 + $0x1e0] sm:$0xf]
  %v1545 = vld [vmem:[%s701 + $0x200] sm:$0xf]
  %v1546 = vld [vmem:[%s524] sm:$0xf]
  %v1547 = vld [vmem:[%s524 + $0x20] sm:$0xf]
  %v1548 = vld [vmem:[%s524 + $0x40] sm:$0xf]
  %v1549 = vld [vmem:[%s524 + $0x60] sm:$0xf]
  %v1550 = vld [vmem:[%s524 + $0x80] sm:$0xf]
  %v1551 = vld [vmem:[%s524 + $0xa0] sm:$0xf]
  %v1552 = vld [vmem:[%s524 + $0xc0] sm:$0xf]
  %v1553 = vld [vmem:[%s524 + $0xe0] sm:$0xf]
  %v1554 = vld [vmem:[%s524 + $0x120] sm:$0xf]
  %v1555 = vld [vmem:[%s524 + $0x140] sm:$0xf]
  %v1556 = vld [vmem:[%s524 + $0x160] sm:$0xf]
  %v1557 = vld [vmem:[%s524 + $0x180] sm:$0xf]
  %v1558 = vld [vmem:[%s524 + $0x1a0] sm:$0xf]
  %v1559 = vld [vmem:[%s524 + $0x1c0] sm:$0xf]
  %v1560 = vld [vmem:[%s524 + $0x1e0] sm:$0xf]
  %v1561 = vld [vmem:[%s524 + $0x200] sm:$0xf]
  %v1562 = vld [vmem:[%s701 + $0x4] sm:$0x1]
  %v1563 = vld [vmem:[%s701 + $0x24] sm:$0x1]
  %v1564 = vld [vmem:[%s701 + $0x44] sm:$0x1]
  %v1565 = vld [vmem:[%s701 + $0x64] sm:$0x1]
  %v1566 = vld [vmem:[%s701 + $0x84] sm:$0x1]
  %v1567 = vld [vmem:[%s701 + $0xa4] sm:$0x1]
  %v1568 = vld [vmem:[%s701 + $0xc4] sm:$0x1]
  %v1569 = vld [vmem:[%s701 + $0xe4] sm:$0x1]
  %v1570 = vld [vmem:[%s701 + $0x124] sm:$0x1]
  %v1571 = vld [vmem:[%s701 + $0x144] sm:$0x1]
  %v1572 = vld [vmem:[%s701 + $0x164] sm:$0x1]
  %v1573 = vld [vmem:[%s701 + $0x184] sm:$0x1]
  %v1574 = vld [vmem:[%s701 + $0x1a4] sm:$0x1]
  %v1575 = vld [vmem:[%s701 + $0x1c4] sm:$0x1]
  %v1576 = vld [vmem:[%s701 + $0x1e4] sm:$0x1]
  %v1577 = vld [vmem:[%s701 + $0x204] sm:$0x1]
  %v1579 = vshrl.u32 %v1530, 16
  %v1581 = vrot.slane %v1579, 4
  %v1582 = vshll.u32 %v1530, 16
  %v1584 = vrot.slane %v1582, 5
  %v1585 = vor.u32 %v1581, %v1584
  %v1586 = vrot.slane %v1585, 4
  %v1588 = vshll.u32 %v1562, 16
  %v1590 = vrot.slane %v1588, 5
  %v1591 = vsel %vm1125, %v1586, %v1590
  %v1593 = vshrl.u32 %v1531, 16
  %v1595 = vrot.slane %v1593, 4
  %v1596 = vshll.u32 %v1531, 16
  %v1598 = vrot.slane %v1596, 5
  %v1599 = vor.u32 %v1595, %v1598
  %v1600 = vrot.slane %v1599, 4
  %v1602 = vshll.u32 %v1563, 16
  %v1604 = vrot.slane %v1602, 5
  %v1605 = vsel %vm1125, %v1600, %v1604
  %v1607 = vshrl.u32 %v1532, 16
  %v1609 = vrot.slane %v1607, 4
  %v1610 = vshll.u32 %v1532, 16
  %v1612 = vrot.slane %v1610, 5
  %v1613 = vor.u32 %v1609, %v1612
  %v1614 = vrot.slane %v1613, 4
  %v1616 = vshll.u32 %v1564, 16
  %v1618 = vrot.slane %v1616, 5
  %v1619 = vsel %vm1125, %v1614, %v1618
  %v1621 = vshrl.u32 %v1533, 16
  %v1623 = vrot.slane %v1621, 4
  %v1624 = vshll.u32 %v1533, 16
  %v1626 = vrot.slane %v1624, 5
  %v1627 = vor.u32 %v1623, %v1626
  %v1628 = vrot.slane %v1627, 4
  %v1630 = vshll.u32 %v1565, 16
  %v1632 = vrot.slane %v1630, 5
  %v1633 = vsel %vm1125, %v1628, %v1632
  %v1635 = vshrl.u32 %v1534, 16
  %v1637 = vrot.slane %v1635, 4
  %v1638 = vshll.u32 %v1534, 16
  %v1640 = vrot.slane %v1638, 5
  %v1641 = vor.u32 %v1637, %v1640
  %v1642 = vrot.slane %v1641, 4
  %v1644 = vshll.u32 %v1566, 16
  %v1646 = vrot.slane %v1644, 5
  %v1647 = vsel %vm1125, %v1642, %v1646
  %v1649 = vshrl.u32 %v1535, 16
  %v1651 = vrot.slane %v1649, 4
  %v1652 = vshll.u32 %v1535, 16
  %v1654 = vrot.slane %v1652, 5
  %v1655 = vor.u32 %v1651, %v1654
  %v1656 = vrot.slane %v1655, 4
  %v1658 = vshll.u32 %v1567, 16
  %v1660 = vrot.slane %v1658, 5
  %v1661 = vsel %vm1125, %v1656, %v1660
  %v1663 = vshrl.u32 %v1536, 16
  %v1665 = vrot.slane %v1663, 4
  %v1666 = vshll.u32 %v1536, 16
  %v1668 = vrot.slane %v1666, 5
  %v1669 = vor.u32 %v1665, %v1668
  %v1670 = vrot.slane %v1669, 4
  %v1672 = vshll.u32 %v1568, 16
  %v1674 = vrot.slane %v1672, 5
  %v1675 = vsel %vm1125, %v1670, %v1674
  %v1677 = vshrl.u32 %v1537, 16
  %v1679 = vrot.slane %v1677, 4
  %v1680 = vshll.u32 %v1537, 16
  %v1682 = vrot.slane %v1680, 5
  %v1683 = vor.u32 %v1679, %v1682
  %v1684 = vrot.slane %v1683, 4
  %v1686 = vshll.u32 %v1569, 16
  %v1688 = vrot.slane %v1686, 5
  %v1689 = vsel %vm1125, %v1684, %v1688
  %v1691 = vshrl.u32 %v1538, 16
  %v1693 = vrot.slane %v1691, 4
  %v1694 = vshll.u32 %v1538, 16
  %v1696 = vrot.slane %v1694, 5
  %v1697 = vor.u32 %v1693, %v1696
  %v1698 = vrot.slane %v1697, 4
  %v1700 = vshll.u32 %v1570, 16
  %v1702 = vrot.slane %v1700, 5
  %v1703 = vsel %vm1125, %v1698, %v1702
  %v1705 = vshrl.u32 %v1539, 16
  %v1707 = vrot.slane %v1705, 4
  %v1708 = vshll.u32 %v1539, 16
  %v1710 = vrot.slane %v1708, 5
  %v1711 = vor.u32 %v1707, %v1710
  %v1712 = vrot.slane %v1711, 4
  %v1714 = vshll.u32 %v1571, 16
  %v1716 = vrot.slane %v1714, 5
  %v1717 = vsel %vm1125, %v1712, %v1716
  %v1719 = vshrl.u32 %v1540, 16
  %v1721 = vrot.slane %v1719, 4
  %v1722 = vshll.u32 %v1540, 16
  %v1724 = vrot.slane %v1722, 5
  %v1725 = vor.u32 %v1721, %v1724
  %v1726 = vrot.slane %v1725, 4
  %v1728 = vshll.u32 %v1572, 16
  %v1730 = vrot.slane %v1728, 5
  %v1731 = vsel %vm1125, %v1726, %v1730
  %v1733 = vshrl.u32 %v1541, 16
  %v1735 = vrot.slane %v1733, 4
  %v1736 = vshll.u32 %v1541, 16
  %v1738 = vrot.slane %v1736, 5
  %v1739 = vor.u32 %v1735, %v1738
  %v1740 = vrot.slane %v1739, 4
  %v1742 = vshll.u32 %v1573, 16
  %v1744 = vrot.slane %v1742, 5
  %v1745 = vsel %vm1125, %v1740, %v1744
  %v1747 = vshrl.u32 %v1542, 16
  %v1749 = vrot.slane %v1747, 4
  %v1750 = vshll.u32 %v1542, 16
  %v1752 = vrot.slane %v1750, 5
  %v1753 = vor.u32 %v1749, %v1752
  %v1754 = vrot.slane %v1753, 4
  %v1756 = vshll.u32 %v1574, 16
  %v1758 = vrot.slane %v1756, 5
  %v1759 = vsel %vm1125, %v1754, %v1758
  %v1761 = vshrl.u32 %v1543, 16
  %v1763 = vrot.slane %v1761, 4
  %v1764 = vshll.u32 %v1543, 16
  %v1766 = vrot.slane %v1764, 5
  %v1767 = vor.u32 %v1763, %v1766
  %v1768 = vrot.slane %v1767, 4
  %v1770 = vshll.u32 %v1575, 16
  %v1772 = vrot.slane %v1770, 5
  %v1773 = vsel %vm1125, %v1768, %v1772
  %v1775 = vshrl.u32 %v1544, 16
  %v1777 = vrot.slane %v1775, 4
  %v1778 = vshll.u32 %v1544, 16
  %v1780 = vrot.slane %v1778, 5
  %v1781 = vor.u32 %v1777, %v1780
  %v1782 = vrot.slane %v1781, 4
  %v1784 = vshll.u32 %v1576, 16
  %v1786 = vrot.slane %v1784, 5
  %v1787 = vsel %vm1125, %v1782, %v1786
  %v1789 = vshrl.u32 %v1545, 16
  %v1791 = vrot.slane %v1789, 4
  %v1792 = vshll.u32 %v1545, 16
  %v1794 = vrot.slane %v1792, 5
  %v1795 = vor.u32 %v1791, %v1794
  %v1796 = vrot.slane %v1795, 4
  %v1798 = vshll.u32 %v1577, 16
  %v1800 = vrot.slane %v1798, 5
  %v1801 = vsel %vm1125, %v1796, %v1800
  %v1818 = vunpack.c.l.b16 %v1530
  %v1819 = vunpack.c.l.b16 %v1531
  %v1820 = vunpack.c.l.b16 %v1532
  %v1821 = vunpack.c.l.b16 %v1533
  %v1822 = vunpack.c.l.b16 %v1534
  %v1823 = vunpack.c.l.b16 %v1535
  %v1824 = vunpack.c.l.b16 %v1536
  %v1825 = vunpack.c.l.b16 %v1537
  %v1826 = vunpack.c.l.b16 %v1538
  %v1827 = vunpack.c.l.b16 %v1539
  %v1828 = vunpack.c.l.b16 %v1540
  %v1829 = vunpack.c.l.b16 %v1541
  %v1830 = vunpack.c.l.b16 %v1542
  %v1831 = vunpack.c.l.b16 %v1543
  %v1832 = vunpack.c.l.b16 %v1544
  %v1833 = vunpack.c.l.b16 %v1545
  %v1834 = vpack.c.b16 %v1819, %v1818
  %v1835 = vpack.c.b16 %v1821, %v1820
  %v1836 = vpack.c.b16 %v1823, %v1822
  %v1837 = vpack.c.b16 %v1825, %v1824
  %v1838 = vpack.c.b16 %v1827, %v1826
  %v1839 = vpack.c.b16 %v1829, %v1828
  %v1840 = vpack.c.b16 %v1831, %v1830
  %v1841 = vpack.c.b16 %v1833, %v1832
  %v1858 = vunpack.c.l.b16 %v1546
  %v1859 = vunpack.c.l.b16 %v1547
  %v1860 = vunpack.c.l.b16 %v1548
  %v1861 = vunpack.c.l.b16 %v1549
  %v1862 = vunpack.c.l.b16 %v1550
  %v1863 = vunpack.c.l.b16 %v1551
  %v1864 = vunpack.c.l.b16 %v1552
  %v1865 = vunpack.c.l.b16 %v1553
  %v1866 = vunpack.c.l.b16 %v1554
  %v1867 = vunpack.c.l.b16 %v1555
  %v1868 = vunpack.c.l.b16 %v1556
  %v1869 = vunpack.c.l.b16 %v1557
  %v1870 = vunpack.c.l.b16 %v1558
  %v1871 = vunpack.c.l.b16 %v1559
  %v1872 = vunpack.c.l.b16 %v1560
  %v1873 = vunpack.c.l.b16 %v1561
  %v1874 = vpack.c.b16 %v1859, %v1858
  %v1875 = vpack.c.b16 %v1861, %v1860
  %v1876 = vpack.c.b16 %v1863, %v1862
  %v1877 = vpack.c.b16 %v1865, %v1864
  %v1878 = vpack.c.b16 %v1867, %v1866
  %v1879 = vpack.c.b16 %v1869, %v1868
  %v1880 = vpack.c.b16 %v1871, %v1870
  %v1881 = vpack.c.b16 %v1873, %v1872
  %1882 = vrot.lane.b32.xlu0 %v1874, 4
  %v1883 = vpop.permute.xlu0 %1882
  %1884 = vrot.lane.b32.xlu0 %v1875, 4
  %v1885 = vpop.permute.xlu0 %1884
  %1886 = vrot.lane.b32.xlu0 %v1876, 4
  %v1887 = vpop.permute.xlu0 %1886
  %1888 = vrot.lane.b32.xlu0 %v1877, 4
  %v1889 = vpop.permute.xlu0 %1888
  %1890 = vrot.lane.b32.xlu0 %v1878, 4
  %v1891 = vpop.permute.xlu0 %1890
  %1892 = vrot.lane.b32.xlu0 %v1879, 4
  %v1893 = vpop.permute.xlu0 %1892
  %1894 = vrot.lane.b32.xlu0 %v1880, 4
  %v1895 = vpop.permute.xlu0 %1894
  %1896 = vrot.lane.b32.xlu0 %v1881, 4
  %v1897 = vpop.permute.xlu0 %1896
  %v1898 = vunpack.c.l.b16 %v1591
  %v1899 = vunpack.c.l.b16 %v1605
  %v1900 = vunpack.c.l.b16 %v1619
  %v1901 = vunpack.c.l.b16 %v1633
  %v1902 = vunpack.c.l.b16 %v1647
  %v1903 = vunpack.c.l.b16 %v1661
  %v1904 = vunpack.c.l.b16 %v1675
  %v1905 = vunpack.c.l.b16 %v1689
  %v1906 = vunpack.c.l.b16 %v1703
  %v1907 = vunpack.c.l.b16 %v1717
  %v1908 = vunpack.c.l.b16 %v1731
  %v1909 = vunpack.c.l.b16 %v1745
  %v1910 = vunpack.c.l.b16 %v1759
  %v1911 = vunpack.c.l.b16 %v1773
  %v1912 = vunpack.c.l.b16 %v1787
  %v1913 = vunpack.c.l.b16 %v1801
  %v1914 = vpack.c.b16 %v1899, %v1898
  %v1915 = vpack.c.b16 %v1901, %v1900
  %v1916 = vpack.c.b16 %v1903, %v1902
  %v1917 = vpack.c.b16 %v1905, %v1904
  %v1918 = vpack.c.b16 %v1907, %v1906
  %v1919 = vpack.c.b16 %v1909, %v1908
  %v1920 = vpack.c.b16 %v1911, %v1910
  %v1921 = vpack.c.b16 %v1913, %v1912
  %1922 = vrot.lane.b32.xlu0 %v1914, 8
  %v1923 = vpop.permute.xlu0 %1922
  %1924 = vrot.lane.b32.xlu0 %v1915, 8
  %v1925 = vpop.permute.xlu0 %1924
  %1926 = vrot.lane.b32.xlu0 %v1916, 8
  %v1927 = vpop.permute.xlu0 %1926
  %1928 = vrot.lane.b32.xlu0 %v1917, 8
  %v1929 = vpop.permute.xlu0 %1928
  %1930 = vrot.lane.b32.xlu0 %v1918, 8
  %v1931 = vpop.permute.xlu0 %1930
  %1932 = vrot.lane.b32.xlu0 %v1919, 8
  %v1933 = vpop.permute.xlu0 %1932
  %1934 = vrot.lane.b32.xlu0 %v1920, 8
  %v1935 = vpop.permute.xlu0 %1934
  %1936 = vrot.lane.b32.xlu0 %v1921, 8
  %v1937 = vpop.permute.xlu0 %1936
  %v1940 = vsel %vm1486, %v1834, %v1883
  %v1943 = vsel %vm1486, %v1835, %v1885
  %v1946 = vsel %vm1486, %v1836, %v1887
  %v1949 = vsel %vm1486, %v1837, %v1889
  %v1952 = vsel %vm1486, %v1838, %v1891
  %v1955 = vsel %vm1486, %v1839, %v1893
  %v1958 = vsel %vm1486, %v1840, %v1895
  %v1961 = vsel %vm1486, %v1841, %v1897
  %v1963 = vsel %vm1511, %v1940, %v1923
  %v1965 = vsel %vm1511, %v1943, %v1925
  %v1967 = vsel %vm1511, %v1946, %v1927
  %v1969 = vsel %vm1511, %v1949, %v1929
  %v1971 = vsel %vm1511, %v1952, %v1931
  %v1973 = vsel %vm1511, %v1955, %v1933
  %v1975 = vsel %vm1511, %v1958, %v1935
  %v1977 = vsel %vm1511, %v1961, %v1937
  %s1978 = scalar_lea.vmem %s2, 8
  %v1979 = vld [vmem:[%s1978] sm:$0xf]
  %v1980 = vld [vmem:[%s1978 + $0x4] sm:$0x3]
  %v1983 = vunpack.c.l.b16 %v1979
  %v1984 = vunpack.c.l.b16 %v1980
  %v1985 = vpack.c.b16 %v1984, %v1983
  %vm1986 = vcmask 97280
  %v1987 = vsel %vm1986, %v1963, 0
  %v1989 = vsel %vm1986, %v1965, 0
  %v1991 = vsel %vm1986, %v1967, 0
  %v1993 = vsel %vm1986, %v1969, 0
  %v1995 = vsel %vm1986, %v1971, 0
  %v1997 = vsel %vm1986, %v1973, 0
  %v1999 = vsel %vm1986, %v1975, 0
  %v2001 = vsel %vm1986, %v1977, 0
  %vm2003 = vcmask 1045504
  %v2005 = vsel %vm2003, %v1985, 0
  %2007 = vmatprep.subr.bf16.mxu0 0
  %2008 = vmatpush1.bf16.msra.mxu0 %v2005
  %2009 = vmatprep.subr.bf16.mxu0 0
  %2010 = vmatpush1.bf16.msra.mxu0 0
  %2011 = vmatprep.subr.bf16.mxu0 0
  %2012 = vmatpush1.bf16.msra.mxu0 0
  %2013 = vmatprep.subr.bf16.mxu0 0
  %2014 = vmatpush1.bf16.msra.mxu0 0
  %2015 = vmatprep.subr.bf16.mxu0 0
  %2016 = vmatpush1.bf16.msra.mxu0 0
  %2017 = vmatprep.subr.bf16.mxu0 0
  %2018 = vmatpush1.bf16.msra.mxu0 0
  %2019 = vmatprep.subr.bf16.mxu0 0
  %2020 = vmatpush1.bf16.msra.mxu0 0
  %2021 = vmatprep.subr.bf16.mxu0 0
  %2022 = vmatpush1.bf16.msra.mxu0 0
  %2023 = vmatprep.subr.bf16.mxu0 0
  %2024 = vmatpush1.bf16.msra.mxu0 0
  %2025 = vmatprep.subr.bf16.mxu0 0
  %2026 = vmatpush1.bf16.msra.mxu0 0
  %2027 = vmatprep.subr.bf16.mxu0 0
  %2028 = vmatpush1.bf16.msra.mxu0 0
  %2029 = vmatprep.subr.bf16.mxu0 0
  %2030 = vmatpush1.bf16.msra.mxu0 0
  %2031 = vmatprep.subr.bf16.mxu0 0
  %2032 = vmatpush1.bf16.msra.mxu0 0
  %2033 = vmatprep.subr.bf16.mxu0 0
  %2034 = vmatpush1.bf16.msra.mxu0 0
  %2035 = vmatprep.subr.bf16.mxu0 0
  %2036 = vmatpush1.bf16.msra.mxu0 0
  %2037 = vmatprep.subr.bf16.mxu0 0
  %2038 = vmatpush1.bf16.msra.mxu0 0
  %2039 = vmatprep.mubr.bf16.mxu0 0
  %2040 = vmatmul.mubr.bf16.gmra.mrb[0].mxu0 %v1987
  %v2041 = vpop.f32.mrb[0].mxu0
  %v2042 = vadd.f32 0.0, %v2041
  %v2043 = vpop.f32.mrb[0].mxu0
  %v2044 = vpop.f32.mrb[0].mxu0
  %v2045 = vadd.f32 0.0, %v2044
  %v2046 = vpop.f32.mrb[0].mxu0
  %2047 = vmatprep.mubr.bf16.mxu0 0
  %2048 = vmatmul.mubr.bf16.gmra.mrb[0].mxu0 %v1989
  %v2049 = vpop.f32.mrb[0].mxu0
  %v2050 = vadd.f32 0.0, %v2049
  %v2051 = vpop.f32.mrb[0].mxu0
  %v2052 = vpop.f32.mrb[0].mxu0
  %v2053 = vadd.f32 0.0, %v2052
  %v2054 = vpop.f32.mrb[0].mxu0
  %2055 = vmatprep.mubr.bf16.mxu0 0
  %2056 = vmatmul.mubr.bf16.gmra.mrb[0].mxu0 %v1991
  %v2057 = vpop.f32.mrb[0].mxu0
  %v2058 = vadd.f32 0.0, %v2057
  %v2059 = vpop.f32.mrb[0].mxu0
  %v2060 = vpop.f32.mrb[0].mxu0
  %v2061 = vadd.f32 0.0, %v2060
  %v2062 = vpop.f32.mrb[0].mxu0
  %2063 = vmatprep.mubr.bf16.mxu0 0
  %2064 = vmatmul.mubr.bf16.gmra.mrb[0].mxu0 %v1993
  %v2065 = vpop.f32.mrb[0].mxu0
  %v2066 = vadd.f32 0.0, %v2065
  %v2067 = vpop.f32.mrb[0].mxu0
  %v2068 = vpop.f32.mrb[0].mxu0
  %v2069 = vadd.f32 0.0, %v2068
  %v2070 = vpop.f32.mrb[0].mxu0
  %2071 = vmatprep.mubr.bf16.mxu0 0
  %2072 = vmatmul.mubr.bf16.gmra.mrb[0].mxu0 %v1995
  %v2073 = vpop.f32.mrb[0].mxu0
  %v2074 = vadd.f32 0.0, %v2073
  %v2075 = vpop.f32.mrb[0].mxu0
  %v2076 = vpop.f32.mrb[0].mxu0
  %v2077 = vadd.f32 0.0, %v2076
  %v2078 = vpop.f32.mrb[0].mxu0
  %2079 = vmatprep.mubr.bf16.mxu0 0
  %2080 = vmatmul.mubr.bf16.gmra.mrb[0].mxu0 %v1997
  %v2081 = vpop.f32.mrb[0].mxu0
  %v2082 = vadd.f32 0.0, %v2081
  %v2083 = vpop.f32.mrb[0].mxu0
  %v2084 = vpop.f32.mrb[0].mxu0
  %v2085 = vadd.f32 0.0, %v2084
  %v2086 = vpop.f32.mrb[0].mxu0
  %2087 = vmatprep.mubr.bf16.mxu0 0
  %2088 = vmatmul.mubr.bf16.gmra.mrb[0].mxu0 %v1999
  %v2089 = vpop.f32.mrb[0].mxu0
  %v2090 = vadd.f32 0.0, %v2089
  %v2091 = vpop.f32.mrb[0].mxu0
  %v2092 = vpop.f32.mrb[0].mxu0
  %v2093 = vadd.f32 0.0, %v2092
  %v2094 = vpop.f32.mrb[0].mxu0
  %2095 = vmatprep.mubr.bf16.mxu0 0
  %2096 = vmatmul.mubr.bf16.gmra.mrb[0].mxu0 %v2001
  %v2097 = vpop.f32.mrb[0].mxu0
  %v2098 = vadd.f32 0.0, %v2097
  %v2099 = vpop.f32.mrb[0].mxu0
  %v2100 = vpop.f32.mrb[0].mxu0
  %v2101 = vadd.f32 0.0, %v2100
  %v2102 = vpop.f32.mrb[0].mxu0
  %2103 = vdwg.mxu0
  %v2106 = vunpack.c.l.b16 %v1528
  %v2107 = vunpack.c.l.b16 %v1529
  %v2108 = vpack.c.b16 %v2107, %v2106
  %v2109 = vsel %vm1986, %v1513, 0
  %v2111 = vsel %vm1986, %v1515, 0
  %v2113 = vsel %vm1986, %v1517, 0
  %v2115 = vsel %vm1986, %v1519, 0
  %v2117 = vsel %vm1986, %v1521, 0
  %v2119 = vsel %vm1986, %v1523, 0
  %v2121 = vsel %vm1986, %v1525, 0
  %v2123 = vsel %vm1986, %v1527, 0
  %v2126 = vsel %vm2003, %v2108, 0
  %2128 = vmatprep.subr.bf16.mxu0 0
  %2129 = vmatpush1.bf16.msra.mxu0 %v2126
  %2130 = vmatprep.subr.bf16.mxu0 0
  %2131 = vmatpush1.bf16.msra.mxu0 0
  %2132 = vmatprep.subr.bf16.mxu0 0
  %2133 = vmatpush1.bf16.msra.mxu0 0
  %2134 = vmatprep.subr.bf16.mxu0 0
  %2135 = vmatpush1.bf16.msra.mxu0 0
  %2136 = vmatprep.subr.bf16.mxu0 0
  %2137 = vmatpush1.bf16.msra.mxu0 0
  %2138 = vmatprep.subr.bf16.mxu0 0
  %2139 = vmatpush1.bf16.msra.mxu0 0
  %2140 = vmatprep.subr.bf16.mxu0 0
  %2141 = vmatpush1.bf16.msra.mxu0 0
  %2142 = vmatprep.subr.bf16.mxu0 0
  %2143 = vmatpush1.bf16.msra.mxu0 0
  %2144 = vmatprep.subr.bf16.mxu0 0
  %2145 = vmatpush1.bf16.msra.mxu0 0
  %2146 = vmatprep.subr.bf16.mxu0 0
  %2147 = vmatpush1.bf16.msra.mxu0 0
  %2148 = vmatprep.subr.bf16.mxu0 0
  %2149 = vmatpush1.bf16.msra.mxu0 0
  %2150 = vmatprep.subr.bf16.mxu0 0
  %2151 = vmatpush1.bf16.msra.mxu0 0
  %2152 = vmatprep.subr.bf16.mxu0 0
  %2153 = vmatpush1.bf16.msra.mxu0 0
  %2154 = vmatprep.subr.bf16.mxu0 0
  %2155 = vmatpush1.bf16.msra.mxu0 0
  %2156 = vmatprep.subr.bf16.mxu0 0
  %2157 = vmatpush1.bf16.msra.mxu0 0
  %2158 = vmatprep.subr.bf16.mxu0 0
  %2159 = vmatpush1.bf16.msra.mxu0 0
  %2160 = vmatprep.mubr.bf16.mxu0 0
  %2161 = vmatmul.mubr.bf16.gmra.mrb[0].mxu0 %v2109
  %v2162 = vpop.f32.mrb[0].mxu0
  %v2163 = vadd.f32 %v2042, %v2162
  %v2164 = vpop.f32.mrb[0].mxu0
  %v2165 = vpop.f32.mrb[0].mxu0
  %v2166 = vadd.f32 %v2045, %v2165
  %v2167 = vpop.f32.mrb[0].mxu0
  %2168 = vmatprep.mubr.bf16.mxu0 0
  %2169 = vmatmul.mubr.bf16.gmra.mrb[0].mxu0 %v2111
  %v2170 = vpop.f32.mrb[0].mxu0
  %v2171 = vadd.f32 %v2050, %v2170
  %v2172 = vpop.f32.mrb[0].mxu0
  %v2173 = vpop.f32.mrb[0].mxu0
  %v2174 = vadd.f32 %v2053, %v2173
  %v2175 = vpop.f32.mrb[0].mxu0
  %2176 = vmatprep.mubr.bf16.mxu0 0
  %2177 = vmatmul.mubr.bf16.gmra.mrb[0].mxu0 %v2113
  %v2178 = vpop.f32.mrb[0].mxu0
  %v2179 = vadd.f32 %v2058, %v2178
  %v2180 = vpop.f32.mrb[0].mxu0
  %v2181 = vpop.f32.mrb[0].mxu0
  %v2182 = vadd.f32 %v2061, %v2181
  %v2183 = vpop.f32.mrb[0].mxu0
  %2184 = vmatprep.mubr.bf16.mxu0 0
  %2185 = vmatmul.mubr.bf16.gmra.mrb[0].mxu0 %v2115
  %v2186 = vpop.f32.mrb[0].mxu0
  %v2187 = vadd.f32 %v2066, %v2186
  %v2188 = vpop.f32.mrb[0].mxu0
  %v2189 = vpop.f32.mrb[0].mxu0
  %v2190 = vadd.f32 %v2069, %v2189
  %v2191 = vpop.f32.mrb[0].mxu0
  %2192 = vmatprep.mubr.bf16.mxu0 0
  %2193 = vmatmul.mubr.bf16.gmra.mrb[0].mxu0 %v2117
  %v2194 = vpop.f32.mrb[0].mxu0
  %v2195 = vadd.f32 %v2074, %v2194
  %v2196 = vpop.f32.mrb[0].mxu0
  %v2197 = vpop.f32.mrb[0].mxu0
  %v2198 = vadd.f32 %v2077, %v2197
  %v2199 = vpop.f32.mrb[0].mxu0
  %2200 = vmatprep.mubr.bf16.mxu0 0
  %2201 = vmatmul.mubr.bf16.gmra.mrb[0].mxu0 %v2119
  %v2202 = vpop.f32.mrb[0].mxu0
  %v2203 = vadd.f32 %v2082, %v2202
  %v2204 = vpop.f32.mrb[0].mxu0
  %v2205 = vpop.f32.mrb[0].mxu0
  %v2206 = vadd.f32 %v2085, %v2205
  %v2207 = vpop.f32.mrb[0].mxu0
  %2208 = vmatprep.mubr.bf16.mxu0 0
  %2209 = vmatmul.mubr.bf16.gmra.mrb[0].mxu0 %v2121
  %v2210 = vpop.f32.mrb[0].mxu0
  %v2211 = vadd.f32 %v2090, %v2210
  %v2212 = vpop.f32.mrb[0].mxu0
  %v2213 = vpop.f32.mrb[0].mxu0
  %v2214 = vadd.f32 %v2093, %v2213
  %v2215 = vpop.f32.mrb[0].mxu0
  %2216 = vmatprep.mubr.bf16.mxu0 0
  %2217 = vmatmul.mubr.bf16.gmra.mrb[0].mxu0 %v2123
  %v2218 = vpop.f32.mrb[0].mxu0
  %v2219 = vadd.f32 %v2098, %v2218
  %v2220 = vpop.f32.mrb[0].mxu0
  %v2221 = vpop.f32.mrb[0].mxu0
  %v2222 = vadd.f32 %v2101, %v2221
  %v2223 = vpop.f32.mrb[0].mxu0
  %2224 = vdwg.mxu0
  %v2225 = vld [vmem:[%s978] sm:$0xf]
  %v2226 = vld [vmem:[%s978 + $0x20] sm:$0xf]
  %v2227 = vld [vmem:[%s978 + $0x40] sm:$0xf]
  %v2228 = vld [vmem:[%s978 + $0x60] sm:$0xf]
  %v2229 = vld [vmem:[%s978 + $0x80] sm:$0xf]
  %v2230 = vld [vmem:[%s978 + $0xa0] sm:$0xf]
  %v2231 = vld [vmem:[%s978 + $0xc0] sm:$0xf]
  %v2232 = vld [vmem:[%s978 + $0xe0] sm:$0xf]
  %v2233 = vld [vmem:[%s978 + $0x120] sm:$0xf]
  %v2234 = vld [vmem:[%s978 + $0x140] sm:$0xf]
  %v2235 = vld [vmem:[%s978 + $0x160] sm:$0xf]
  %v2236 = vld [vmem:[%s978 + $0x180] sm:$0xf]
  %v2237 = vld [vmem:[%s978 + $0x1a0] sm:$0xf]
  %v2238 = vld [vmem:[%s978 + $0x1c0] sm:$0xf]
  %v2239 = vld [vmem:[%s978 + $0x1e0] sm:$0xf]
  %v2240 = vld [vmem:[%s978 + $0x200] sm:$0xf]
  %v2241 = vld [vmem:[%s801] sm:$0xf]
  %v2242 = vld [vmem:[%s801 + $0x20] sm:$0xf]
  %v2243 = vld [vmem:[%s801 + $0x40] sm:$0xf]
  %v2244 = vld [vmem:[%s801 + $0x60] sm:$0xf]
  %v2245 = vld [vmem:[%s801 + $0x80] sm:$0xf]
  %v2246 = vld [vmem:[%s801 + $0xa0] sm:$0xf]
  %v2247 = vld [vmem:[%s801 + $0xc0] sm:$0xf]
  %v2248 = vld [vmem:[%s801 + $0xe0] sm:$0xf]
  %v2249 = vld [vmem:[%s801 + $0x120] sm:$0xf]
  %v2250 = vld [vmem:[%s801 + $0x140] sm:$0xf]
  %v2251 = vld [vmem:[%s801 + $0x160] sm:$0xf]
  %v2252 = vld [vmem:[%s801 + $0x180] sm:$0xf]
  %v2253 = vld [vmem:[%s801 + $0x1a0] sm:$0xf]
  %v2254 = vld [vmem:[%s801 + $0x1c0] sm:$0xf]
  %v2255 = vld [vmem:[%s801 + $0x1e0] sm:$0xf]
  %v2256 = vld [vmem:[%s801 + $0x200] sm:$0xf]
  %v2257 = vld [vmem:[%s978 + $0x4] sm:$0x1]
  %v2258 = vld [vmem:[%s978 + $0x24] sm:$0x1]
  %v2259 = vld [vmem:[%s978 + $0x44] sm:$0x1]
  %v2260 = vld [vmem:[%s978 + $0x64] sm:$0x1]
  %v2261 = vld [vmem:[%s978 + $0x84] sm:$0x1]
  %v2262 = vld [vmem:[%s978 + $0xa4] sm:$0x1]
  %v2263 = vld [vmem:[%s978 + $0xc4] sm:$0x1]
  %v2264 = vld [vmem:[%s978 + $0xe4] sm:$0x1]
  %v2265 = vld [vmem:[%s978 + $0x124] sm:$0x1]
  %v2266 = vld [vmem:[%s978 + $0x144] sm:$0x1]
  %v2267 = vld [vmem:[%s978 + $0x164] sm:$0x1]
  %v2268 = vld [vmem:[%s978 + $0x184] sm:$0x1]
  %v2269 = vld [vmem:[%s978 + $0x1a4] sm:$0x1]
  %v2270 = vld [vmem:[%s978 + $0x1c4] sm:$0x1]
  %v2271 = vld [vmem:[%s978 + $0x1e4] sm:$0x1]
  %v2272 = vld [vmem:[%s978 + $0x204] sm:$0x1]
  %v2274 = vshrl.u32 %v2225, 16
  %v2276 = vrot.slane %v2274, 4
  %v2277 = vshll.u32 %v2225, 16
  %v2279 = vrot.slane %v2277, 5
  %v2280 = vor.u32 %v2276, %v2279
  %v2281 = vrot.slane %v2280, 4
  %v2283 = vshll.u32 %v2257, 16
  %v2285 = vrot.slane %v2283, 5
  %v2286 = vsel %vm1125, %v2281, %v2285
  %v2288 = vshrl.u32 %v2226, 16
  %v2290 = vrot.slane %v2288, 4
  %v2291 = vshll.u32 %v2226, 16
  %v2293 = vrot.slane %v2291, 5
  %v2294 = vor.u32 %v2290, %v2293
  %v2295 = vrot.slane %v2294, 4
  %v2297 = vshll.u32 %v2258, 16
  %v2299 = vrot.slane %v2297, 5
  %v2300 = vsel %vm1125, %v2295, %v2299
  %v2302 = vshrl.u32 %v2227, 16
  %v2304 = vrot.slane %v2302, 4
  %v2305 = vshll.u32 %v2227, 16
  %v2307 = vrot.slane %v2305, 5
  %v2308 = vor.u32 %v2304, %v2307
  %v2309 = vrot.slane %v2308, 4
  %v2311 = vshll.u32 %v2259, 16
  %v2313 = vrot.slane %v2311, 5
  %v2314 = vsel %vm1125, %v2309, %v2313
  %v2316 = vshrl.u32 %v2228, 16
  %v2318 = vrot.slane %v2316, 4
  %v2319 = vshll.u32 %v2228, 16
  %v2321 = vrot.slane %v2319, 5
  %v2322 = vor.u32 %v2318, %v2321
  %v2323 = vrot.slane %v2322, 4
  %v2325 = vshll.u32 %v2260, 16
  %v2327 = vrot.slane %v2325, 5
  %v2328 = vsel %vm1125, %v2323, %v2327
  %v2330 = vshrl.u32 %v2229, 16
  %v2332 = vrot.slane %v2330, 4
  %v2333 = vshll.u32 %v2229, 16
  %v2335 = vrot.slane %v2333, 5
  %v2336 = vor.u32 %v2332, %v2335
  %v2337 = vrot.slane %v2336, 4
  %v2339 = vshll.u32 %v2261, 16
  %v2341 = vrot.slane %v2339, 5
  %v2342 = vsel %vm1125, %v2337, %v2341
  %v2344 = vshrl.u32 %v2230, 16
  %v2346 = vrot.slane %v2344, 4
  %v2347 = vshll.u32 %v2230, 16
  %v2349 = vrot.slane %v2347, 5
  %v2350 = vor.u32 %v2346, %v2349
  %v2351 = vrot.slane %v2350, 4
  %v2353 = vshll.u32 %v2262, 16
  %v2355 = vrot.slane %v2353, 5
  %v2356 = vsel %vm1125, %v2351, %v2355
  %v2358 = vshrl.u32 %v2231, 16
  %v2360 = vrot.slane %v2358, 4
  %v2361 = vshll.u32 %v2231, 16
  %v2363 = vrot.slane %v2361, 5
  %v2364 = vor.u32 %v2360, %v2363
  %v2365 = vrot.slane %v2364, 4
  %v2367 = vshll.u32 %v2263, 16
  %v2369 = vrot.slane %v2367, 5
  %v2370 = vsel %vm1125, %v2365, %v2369
  %v2372 = vshrl.u32 %v2232, 16
  %v2374 = vrot.slane %v2372, 4
  %v2375 = vshll.u32 %v2232, 16
  %v2377 = vrot.slane %v2375, 5
  %v2378 = vor.u32 %v2374, %v2377
  %v2379 = vrot.slane %v2378, 4
  %v2381 = vshll.u32 %v2264, 16
  %v2383 = vrot.slane %v2381, 5
  %v2384 = vsel %vm1125, %v2379, %v2383
  %v2386 = vshrl.u32 %v2233, 16
  %v2388 = vrot.slane %v2386, 4
  %v2389 = vshll.u32 %v2233, 16
  %v2391 = vrot.slane %v2389, 5
  %v2392 = vor.u32 %v2388, %v2391
  %v2393 = vrot.slane %v2392, 4
  %v2395 = vshll.u32 %v2265, 16
  %v2397 = vrot.slane %v2395, 5
  %v2398 = vsel %vm1125, %v2393, %v2397
  %v2400 = vshrl.u32 %v2234, 16
  %v2402 = vrot.slane %v2400, 4
  %v2403 = vshll.u32 %v2234, 16
  %v2405 = vrot.slane %v2403, 5
  %v2406 = vor.u32 %v2402, %v2405
  %v2407 = vrot.slane %v2406, 4
  %v2409 = vshll.u32 %v2266, 16
  %v2411 = vrot.slane %v2409, 5
  %v2412 = vsel %vm1125, %v2407, %v2411
  %v2414 = vshrl.u32 %v2235, 16
  %v2416 = vrot.slane %v2414, 4
  %v2417 = vshll.u32 %v2235, 16
  %v2419 = vrot.slane %v2417, 5
  %v2420 = vor.u32 %v2416, %v2419
  %v2421 = vrot.slane %v2420, 4
  %v2423 = vshll.u32 %v2267, 16
  %v2425 = vrot.slane %v2423, 5
  %v2426 = vsel %vm1125, %v2421, %v2425
  %v2428 = vshrl.u32 %v2236, 16
  %v2430 = vrot.slane %v2428, 4
  %v2431 = vshll.u32 %v2236, 16
  %v2433 = vrot.slane %v2431, 5
  %v2434 = vor.u32 %v2430, %v2433
  %v2435 = vrot.slane %v2434, 4
  %v2437 = vshll.u32 %v2268, 16
  %v2439 = vrot.slane %v2437, 5
  %v2440 = vsel %vm1125, %v2435, %v2439
  %v2442 = vshrl.u32 %v2237, 16
  %v2444 = vrot.slane %v2442, 4
  %v2445 = vshll.u32 %v2237, 16
  %v2447 = vrot.slane %v2445, 5
  %v2448 = vor.u32 %v2444, %v2447
  %v2449 = vrot.slane %v2448, 4
  %v2451 = vshll.u32 %v2269, 16
  %v2453 = vrot.slane %v2451, 5
  %v2454 = vsel %vm1125, %v2449, %v2453
  %v2456 = vshrl.u32 %v2238, 16
  %v2458 = vrot.slane %v2456, 4
  %v2459 = vshll.u32 %v2238, 16
  %v2461 = vrot.slane %v2459, 5
  %v2462 = vor.u32 %v2458, %v2461
  %v2463 = vrot.slane %v2462, 4
  %v2465 = vshll.u32 %v2270, 16
  %v2467 = vrot.slane %v2465, 5
  %v2468 = vsel %vm1125, %v2463, %v2467
  %v2470 = vshrl.u32 %v2239, 16
  %v2472 = vrot.slane %v2470, 4
  %v2473 = vshll.u32 %v2239, 16
  %v2475 = vrot.slane %v2473, 5
  %v2476 = vor.u32 %v2472, %v2475
  %v2477 = vrot.slane %v2476, 4
  %v2479 = vshll.u32 %v2271, 16
  %v2481 = vrot.slane %v2479, 5
  %v2482 = vsel %vm1125, %v2477, %v2481
  %v2484 = vshrl.u32 %v2240, 16
  %v2486 = vrot.slane %v2484, 4
  %v2487 = vshll.u32 %v2240, 16
  %v2489 = vrot.slane %v2487, 5
  %v2490 = vor.u32 %v2486, %v2489
  %v2491 = vrot.slane %v2490, 4
  %v2493 = vshll.u32 %v2272, 16
  %v2495 = vrot.slane %v2493, 5
  %v2496 = vsel %vm1125, %v2491, %v2495
  %v2513 = vunpack.c.l.b16 %v2225
  %v2514 = vunpack.c.l.b16 %v2226
  %v2515 = vunpack.c.l.b16 %v2227
  %v2516 = vunpack.c.l.b16 %v2228
  %v2517 = vunpack.c.l.b16 %v2229
  %v2518 = vunpack.c.l.b16 %v2230
  %v2519 = vunpack.c.l.b16 %v2231
  %v2520 = vunpack.c.l.b16 %v2232
  %v2521 = vunpack.c.l.b16 %v2233
  %v2522 = vunpack.c.l.b16 %v2234
  %v2523 = vunpack.c.l.b16 %v2235
  %v2524 = vunpack.c.l.b16 %v2236
  %v2525 = vunpack.c.l.b16 %v2237
  %v2526 = vunpack.c.l.b16 %v2238
  %v2527 = vunpack.c.l.b16 %v2239
  %v2528 = vunpack.c.l.b16 %v2240
  %v2529 = vpack.c.b16 %v2514, %v2513
  %v2530 = vpack.c.b16 %v2516, %v2515
  %v2531 = vpack.c.b16 %v2518, %v2517
  %v2532 = vpack.c.b16 %v2520, %v2519
  %v2533 = vpack.c.b16 %v2522, %v2521
  %v2534 = vpack.c.b16 %v2524, %v2523
  %v2535 = vpack.c.b16 %v2526, %v2525
  %v2536 = vpack.c.b16 %v2528, %v2527
  %v2553 = vunpack.c.l.b16 %v2241
  %v2554 = vunpack.c.l.b16 %v2242
  %v2555 = vunpack.c.l.b16 %v2243
  %v2556 = vunpack.c.l.b16 %v2244
  %v2557 = vunpack.c.l.b16 %v2245
  %v2558 = vunpack.c.l.b16 %v2246
  %v2559 = vunpack.c.l.b16 %v2247
  %v2560 = vunpack.c.l.b16 %v2248
  %v2561 = vunpack.c.l.b16 %v2249
  %v2562 = vunpack.c.l.b16 %v2250
  %v2563 = vunpack.c.l.b16 %v2251
  %v2564 = vunpack.c.l.b16 %v2252
  %v2565 = vunpack.c.l.b16 %v2253
  %v2566 = vunpack.c.l.b16 %v2254
  %v2567 = vunpack.c.l.b16 %v2255
  %v2568 = vunpack.c.l.b16 %v2256
  %v2569 = vpack.c.b16 %v2554, %v2553
  %v2570 = vpack.c.b16 %v2556, %v2555
  %v2571 = vpack.c.b16 %v2558, %v2557
  %v2572 = vpack.c.b16 %v2560, %v2559
  %v2573 = vpack.c.b16 %v2562, %v2561
  %v2574 = vpack.c.b16 %v2564, %v2563
  %v2575 = vpack.c.b16 %v2566, %v2565
  %v2576 = vpack.c.b16 %v2568, %v2567
  %2577 = vrot.lane.b32.xlu0 %v2569, 4
  %v2578 = vpop.permute.xlu0 %2577
  %2579 = vrot.lane.b32.xlu0 %v2570, 4
  %v2580 = vpop.permute.xlu0 %2579
  %2581 = vrot.lane.b32.xlu0 %v2571, 4
  %v2582 = vpop.permute.xlu0 %2581
  %2583 = vrot.lane.b32.xlu0 %v2572, 4
  %v2584 = vpop.permute.xlu0 %2583
  %2585 = vrot.lane.b32.xlu0 %v2573, 4
  %v2586 = vpop.permute.xlu0 %2585
  %2587 = vrot.lane.b32.xlu0 %v2574, 4
  %v2588 = vpop.permute.xlu0 %2587
  %2589 = vrot.lane.b32.xlu0 %v2575, 4
  %v2590 = vpop.permute.xlu0 %2589
  %2591 = vrot.lane.b32.xlu0 %v2576, 4
  %v2592 = vpop.permute.xlu0 %2591
  %v2593 = vunpack.c.l.b16 %v2286
  %v2594 = vunpack.c.l.b16 %v2300
  %v2595 = vunpack.c.l.b16 %v2314
  %v2596 = vunpack.c.l.b16 %v2328
  %v2597 = vunpack.c.l.b16 %v2342
  %v2598 = vunpack.c.l.b16 %v2356
  %v2599 = vunpack.c.l.b16 %v2370
  %v2600 = vunpack.c.l.b16 %v2384
  %v2601 = vunpack.c.l.b16 %v2398
  %v2602 = vunpack.c.l.b16 %v2412
  %v2603 = vunpack.c.l.b16 %v2426
  %v2604 = vunpack.c.l.b16 %v2440
  %v2605 = vunpack.c.l.b16 %v2454
  %v2606 = vunpack.c.l.b16 %v2468
  %v2607 = vunpack.c.l.b16 %v2482
  %v2608 = vunpack.c.l.b16 %v2496
  %v2609 = vpack.c.b16 %v2594, %v2593
  %v2610 = vpack.c.b16 %v2596, %v2595
  %v2611 = vpack.c.b16 %v2598, %v2597
  %v2612 = vpack.c.b16 %v2600, %v2599
  %v2613 = vpack.c.b16 %v2602, %v2601
  %v2614 = vpack.c.b16 %v2604, %v2603
  %v2615 = vpack.c.b16 %v2606, %v2605
  %v2616 = vpack.c.b16 %v2608, %v2607
  %2617 = vrot.lane.b32.xlu0 %v2609, 8
  %v2618 = vpop.permute.xlu0 %2617
  %2619 = vrot.lane.b32.xlu0 %v2610, 8
  %v2620 = vpop.permute.xlu0 %2619
  %2621 = vrot.lane.b32.xlu0 %v2611, 8
  %v2622 = vpop.permute.xlu0 %2621
  %2623 = vrot.lane.b32.xlu0 %v2612, 8
  %v2624 = vpop.permute.xlu0 %2623
  %2625 = vrot.lane.b32.xlu0 %v2613, 8
  %v2626 = vpop.permute.xlu0 %2625
  %2627 = vrot.lane.b32.xlu0 %v2614, 8
  %v2628 = vpop.permute.xlu0 %2627
  %2629 = vrot.lane.b32.xlu0 %v2615, 8
  %v2630 = vpop.permute.xlu0 %2629
  %2631 = vrot.lane.b32.xlu0 %v2616, 8
  %v2632 = vpop.permute.xlu0 %2631
  %v2635 = vsel %vm1486, %v2529, %v2578
  %v2638 = vsel %vm1486, %v2530, %v2580
  %v2641 = vsel %vm1486, %v2531, %v2582
  %v2644 = vsel %vm1486, %v2532, %v2584
  %v2647 = vsel %vm1486, %v2533, %v2586
  %v2650 = vsel %vm1486, %v2534, %v2588
  %v2653 = vsel %vm1486, %v2535, %v2590
  %v2656 = vsel %vm1486, %v2536, %v2592
  %v2658 = vsel %vm1511, %v2635, %v2618
  %v2660 = vsel %vm1511, %v2638, %v2620
  %v2662 = vsel %vm1511, %v2641, %v2622
  %v2664 = vsel %vm1511, %v2644, %v2624
  %v2666 = vsel %vm1511, %v2647, %v2626
  %v2668 = vsel %vm1511, %v2650, %v2628
  %v2670 = vsel %vm1511, %v2653, %v2630
  %v2672 = vsel %vm1511, %v2656, %v2632
  %s2673 = scalar_lea.vmem %s2, 16
  %v2674 = vld [vmem:[%s2673] sm:$0xf]
  %v2675 = vld [vmem:[%s2673 + $0x4] sm:$0x3]
  %v2678 = vunpack.c.l.b16 %v2674
  %v2679 = vunpack.c.l.b16 %v2675
  %v2680 = vpack.c.b16 %v2679, %v2678
  %v2681 = vsel %vm1986, %v2658, 0
  %v2683 = vsel %vm1986, %v2660, 0
  %v2685 = vsel %vm1986, %v2662, 0
  %v2687 = vsel %vm1986, %v2664, 0
  %v2689 = vsel %vm1986, %v2666, 0
  %v2691 = vsel %vm1986, %v2668, 0
  %v2693 = vsel %vm1986, %v2670, 0
  %v2695 = vsel %vm1986, %v2672, 0
  %v2698 = vsel %vm2003, %v2680, 0
  %2700 = vmatprep.subr.bf16.mxu0 0
  %2701 = vmatpush1.bf16.msra.mxu0 %v2698
  %2702 = vmatprep.subr.bf16.mxu0 0
  %2703 = vmatpush1.bf16.msra.mxu0 0
  %2704 = vmatprep.subr.bf16.mxu0 0
  %2705 = vmatpush1.bf16.msra.mxu0 0
  %2706 = vmatprep.subr.bf16.mxu0 0
  %2707 = vmatpush1.bf16.msra.mxu0 0
  %2708 = vmatprep.subr.bf16.mxu0 0
  %2709 = vmatpush1.bf16.msra.mxu0 0
  %2710 = vmatprep.subr.bf16.mxu0 0
  %2711 = vmatpush1.bf16.msra.mxu0 0
  %2712 = vmatprep.subr.bf16.mxu0 0
  %2713 = vmatpush1.bf16.msra.mxu0 0
  %2714 = vmatprep.subr.bf16.mxu0 0
  %2715 = vmatpush1.bf16.msra.mxu0 0
  %2716 = vmatprep.subr.bf16.mxu0 0
  %2717 = vmatpush1.bf16.msra.mxu0 0
  %2718 = vmatprep.subr.bf16.mxu0 0
  %2719 = vmatpush1.bf16.msra.mxu0 0
  %2720 = vmatprep.subr.bf16.mxu0 0
  %2721 = vmatpush1.bf16.msra.mxu0 0
  %2722 = vmatprep.subr.bf16.mxu0 0
  %2723 = vmatpush1.bf16.msra.mxu0 0
  %2724 = vmatprep.subr.bf16.mxu0 0
  %2725 = vmatpush1.bf16.msra.mxu0 0
  %2726 = vmatprep.subr.bf16.mxu0 0
  %2727 = vmatpush1.bf16.msra.mxu0 0
  %2728 = vmatprep.subr.bf16.mxu0 0
  %2729 = vmatpush1.bf16.msra.mxu0 0
  %2730 = vmatprep.subr.bf16.mxu0 0
  %2731 = vmatpush1.bf16.msra.mxu0 0
  %2732 = vmatprep.mubr.bf16.mxu0 0
  %2733 = vmatmul.mubr.bf16.gmra.mrb[0].mxu0 %v2681
  %v2734 = vpop.f32.mrb[0].mxu0
  %v2735 = vadd.f32 0.0, %v2734
  %v2736 = vpop.f32.mrb[0].mxu0
  %v2737 = vpop.f32.mrb[0].mxu0
  %v2738 = vadd.f32 0.0, %v2737
  %v2739 = vpop.f32.mrb[0].mxu0
  %2740 = vmatprep.mubr.bf16.mxu0 0
  %2741 = vmatmul.mubr.bf16.gmra.mrb[0].mxu0 %v2683
  %v2742 = vpop.f32.mrb[0].mxu0
  %v2743 = vadd.f32 0.0, %v2742
  %v2744 = vpop.f32.mrb[0].mxu0
  %v2745 = vpop.f32.mrb[0].mxu0
  %v2746 = vadd.f32 0.0, %v2745
  %v2747 = vpop.f32.mrb[0].mxu0
  %2748 = vmatprep.mubr.bf16.mxu0 0
  %2749 = vmatmul.mubr.bf16.gmra.mrb[0].mxu0 %v2685
  %v2750 = vpop.f32.mrb[0].mxu0
  %v2751 = vadd.f32 0.0, %v2750
  %v2752 = vpop.f32.mrb[0].mxu0
  %v2753 = vpop.f32.mrb[0].mxu0
  %v2754 = vadd.f32 0.0, %v2753
  %v2755 = vpop.f32.mrb[0].mxu0
  %2756 = vmatprep.mubr.bf16.mxu0 0
  %2757 = vmatmul.mubr.bf16.gmra.mrb[0].mxu0 %v2687
  %v2758 = vpop.f32.mrb[0].mxu0
  %v2759 = vadd.f32 0.0, %v2758
  %v2760 = vpop.f32.mrb[0].mxu0
  %v2761 = vpop.f32.mrb[0].mxu0
  %v2762 = vadd.f32 0.0, %v2761
  %v2763 = vpop.f32.mrb[0].mxu0
  %2764 = vmatprep.mubr.bf16.mxu0 0
  %2765 = vmatmul.mubr.bf16.gmra.mrb[0].mxu0 %v2689
  %v2766 = vpop.f32.mrb[0].mxu0
  %v2767 = vadd.f32 0.0, %v2766
  %v2768 = vpop.f32.mrb[0].mxu0
  %v2769 = vpop.f32.mrb[0].mxu0
  %v2770 = vadd.f32 0.0, %v2769
  %v2771 = vpop.f32.mrb[0].mxu0
  %2772 = vmatprep.mubr.bf16.mxu0 0
  %2773 = vmatmul.mubr.bf16.gmra.mrb[0].mxu0 %v2691
  %v2774 = vpop.f32.mrb[0].mxu0
  %v2775 = vadd.f32 0.0, %v2774
  %v2776 = vpop.f32.mrb[0].mxu0
  %v2777 = vpop.f32.mrb[0].mxu0
  %v2778 = vadd.f32 0.0, %v2777
  %v2779 = vpop.f32.mrb[0].mxu0
  %2780 = vmatprep.mubr.bf16.mxu0 0
  %2781 = vmatmul.mubr.bf16.gmra.mrb[0].mxu0 %v2693
  %v2782 = vpop.f32.mrb[0].mxu0
  %v2783 = vadd.f32 0.0, %v2782
  %v2784 = vpop.f32.mrb[0].mxu0
  %v2785 = vpop.f32.mrb[0].mxu0
  %v2786 = vadd.f32 0.0, %v2785
  %v2787 = vpop.f32.mrb[0].mxu0
  %2788 = vmatprep.mubr.bf16.mxu0 0
  %2789 = vmatmul.mubr.bf16.gmra.mrb[0].mxu0 %v2695
  %v2790 = vpop.f32.mrb[0].mxu0
  %v2791 = vadd.f32 0.0, %v2790
  %v2792 = vpop.f32.mrb[0].mxu0
  %v2793 = vpop.f32.mrb[0].mxu0
  %v2794 = vadd.f32 0.0, %v2793
  %v2795 = vpop.f32.mrb[0].mxu0
  %2796 = vdwg.mxu0
  %v2797 = vadd.f32 %v2163, %v2735
  %v2798 = vadd.f32 %v2166, %v2738
  %v2799 = vadd.f32 %v2171, %v2743
  %v2800 = vadd.f32 %v2174, %v2746
  %v2801 = vadd.f32 %v2179, %v2751
  %v2802 = vadd.f32 %v2182, %v2754
  %v2803 = vadd.f32 %v2187, %v2759
  %v2804 = vadd.f32 %v2190, %v2762
  %v2805 = vadd.f32 %v2195, %v2767
  %v2806 = vadd.f32 %v2198, %v2770
  %v2807 = vadd.f32 %v2203, %v2775
  %v2808 = vadd.f32 %v2206, %v2778
  %v2809 = vadd.f32 %v2211, %v2783
  %v2810 = vadd.f32 %v2214, %v2786
  %v2811 = vadd.f32 %v2219, %v2791
  %v2812 = vadd.f32 %v2222, %v2794
  %v2813 = vld [vmem:[%s415] sm:$0xf]
  %v2814 = vld [vmem:[%s415 + $0x4] sm:$0x1]
  %v2815 = vld [vmem:[%s415 + $0x20] sm:$0xf]
  %v2816 = vld [vmem:[%s415 + $0x24] sm:$0x1]
  %v2817 = vld [vmem:[%s415 + $0x40] sm:$0xf]
  %v2818 = vld [vmem:[%s415 + $0x44] sm:$0x1]
  %v2819 = vld [vmem:[%s415 + $0x60] sm:$0xf]
  %v2820 = vld [vmem:[%s415 + $0x64] sm:$0x1]
  %v2821 = vld [vmem:[%s415 + $0x80] sm:$0xf]
  %v2822 = vld [vmem:[%s415 + $0x84] sm:$0x1]
  %v2823 = vld [vmem:[%s415 + $0xa0] sm:$0xf]
  %v2824 = vld [vmem:[%s415 + $0xa4] sm:$0x1]
  %v2825 = vld [vmem:[%s415 + $0xc0] sm:$0xf]
  %v2826 = vld [vmem:[%s415 + $0xc4] sm:$0x1]
  %v2827 = vld [vmem:[%s415 + $0xe0] sm:$0xf]
  %v2828 = vld [vmem:[%s415 + $0xe4] sm:$0x1]
  %v2829 = vld [vmem:[%s415 + $0x120] sm:$0xf]
  %v2830 = vld [vmem:[%s415 + $0x124] sm:$0x1]
  %v2831 = vld [vmem:[%s415 + $0x140] sm:$0xf]
  %v2832 = vld [vmem:[%s415 + $0x144] sm:$0x1]
  %v2833 = vld [vmem:[%s415 + $0x160] sm:$0xf]
  %v2834 = vld [vmem:[%s415 + $0x164] sm:$0x1]
  %v2835 = vld [vmem:[%s415 + $0x180] sm:$0xf]
  %v2836 = vld [vmem:[%s415 + $0x184] sm:$0x1]
  %v2837 = vld [vmem:[%s415 + $0x1a0] sm:$0xf]
  %v2838 = vld [vmem:[%s415 + $0x1a4] sm:$0x1]
  %v2839 = vld [vmem:[%s415 + $0x1c0] sm:$0xf]
  %v2840 = vld [vmem:[%s415 + $0x1c4] sm:$0x1]
  %v2841 = vld [vmem:[%s415 + $0x1e0] sm:$0xf]
  %v2842 = vld [vmem:[%s415 + $0x1e4] sm:$0x1]
  %v2843 = vld [vmem:[%s415 + $0x200] sm:$0xf]
  %v2844 = vld [vmem:[%s415 + $0x204] sm:$0x1]
  %v2846 = vshrl.u32 %v2813, 16
  %v2848 = vrot.slane %v2846, 4
  %v2849 = vshll.u32 %v2813, 16
  %v2851 = vrot.slane %v2849, 5
  %v2852 = vor.u32 %v2848, %v2851
  %v2853 = vrot.slane %v2852, 4
  %v2855 = vshll.u32 %v2814, 16
  %v2857 = vrot.slane %v2855, 5
  %v2858 = vsel %vm1125, %v2853, %v2857
  %v2860 = vshrl.u32 %v2815, 16
  %v2862 = vrot.slane %v2860, 4
  %v2863 = vshll.u32 %v2815, 16
  %v2865 = vrot.slane %v2863, 5
  %v2866 = vor.u32 %v2862, %v2865
  %v2867 = vrot.slane %v2866, 4
  %v2869 = vshll.u32 %v2816, 16
  %v2871 = vrot.slane %v2869, 5
  %v2872 = vsel %vm1125, %v2867, %v2871
  %v2874 = vshrl.u32 %v2817, 16
  %v2876 = vrot.slane %v2874, 4
  %v2877 = vshll.u32 %v2817, 16
  %v2879 = vrot.slane %v2877, 5
  %v2880 = vor.u32 %v2876, %v2879
  %v2881 = vrot.slane %v2880, 4
  %v2883 = vshll.u32 %v2818, 16
  %v2885 = vrot.slane %v2883, 5
  %v2886 = vsel %vm1125, %v2881, %v2885
  %v2888 = vshrl.u32 %v2819, 16
  %v2890 = vrot.slane %v2888, 4
  %v2891 = vshll.u32 %v2819, 16
  %v2893 = vrot.slane %v2891, 5
  %v2894 = vor.u32 %v2890, %v2893
  %v2895 = vrot.slane %v2894, 4
  %v2897 = vshll.u32 %v2820, 16
  %v2899 = vrot.slane %v2897, 5
  %v2900 = vsel %vm1125, %v2895, %v2899
  %v2902 = vshrl.u32 %v2821, 16
  %v2904 = vrot.slane %v2902, 4
  %v2905 = vshll.u32 %v2821, 16
  %v2907 = vrot.slane %v2905, 5
  %v2908 = vor.u32 %v2904, %v2907
  %v2909 = vrot.slane %v2908, 4
  %v2911 = vshll.u32 %v2822, 16
  %v2913 = vrot.slane %v2911, 5
  %v2914 = vsel %vm1125, %v2909, %v2913
  %v2916 = vshrl.u32 %v2823, 16
  %v2918 = vrot.slane %v2916, 4
  %v2919 = vshll.u32 %v2823, 16
  %v2921 = vrot.slane %v2919, 5
  %v2922 = vor.u32 %v2918, %v2921
  %v2923 = vrot.slane %v2922, 4
  %v2925 = vshll.u32 %v2824, 16
  %v2927 = vrot.slane %v2925, 5
  %v2928 = vsel %vm1125, %v2923, %v2927
  %v2930 = vshrl.u32 %v2825, 16
  %v2932 = vrot.slane %v2930, 4
  %v2933 = vshll.u32 %v2825, 16
  %v2935 = vrot.slane %v2933, 5
  %v2936 = vor.u32 %v2932, %v2935
  %v2937 = vrot.slane %v2936, 4
  %v2939 = vshll.u32 %v2826, 16
  %v2941 = vrot.slane %v2939, 5
  %v2942 = vsel %vm1125, %v2937, %v2941
  %v2944 = vshrl.u32 %v2827, 16
  %v2946 = vrot.slane %v2944, 4
  %v2947 = vshll.u32 %v2827, 16
  %v2949 = vrot.slane %v2947, 5
  %v2950 = vor.u32 %v2946, %v2949
  %v2951 = vrot.slane %v2950, 4
  %v2953 = vshll.u32 %v2828, 16
  %v2955 = vrot.slane %v2953, 5
  %v2956 = vsel %vm1125, %v2951, %v2955
  %v2958 = vshrl.u32 %v2829, 16
  %v2960 = vrot.slane %v2958, 4
  %v2961 = vshll.u32 %v2829, 16
  %v2963 = vrot.slane %v2961, 5
  %v2964 = vor.u32 %v2960, %v2963
  %v2965 = vrot.slane %v2964, 4
  %v2967 = vshll.u32 %v2830, 16
  %v2969 = vrot.slane %v2967, 5
  %v2970 = vsel %vm1125, %v2965, %v2969
  %v2972 = vshrl.u32 %v2831, 16
  %v2974 = vrot.slane %v2972, 4
  %v2975 = vshll.u32 %v2831, 16
  %v2977 = vrot.slane %v2975, 5
  %v2978 = vor.u32 %v2974, %v2977
  %v2979 = vrot.slane %v2978, 4
  %v2981 = vshll.u32 %v2832, 16
  %v2983 = vrot.slane %v2981, 5
  %v2984 = vsel %vm1125, %v2979, %v2983
  %v2986 = vshrl.u32 %v2833, 16
  %v2988 = vrot.slane %v2986, 4
  %v2989 = vshll.u32 %v2833, 16
  %v2991 = vrot.slane %v2989, 5
  %v2992 = vor.u32 %v2988, %v2991
  %v2993 = vrot.slane %v2992, 4
  %v2995 = vshll.u32 %v2834, 16
  %v2997 = vrot.slane %v2995, 5
  %v2998 = vsel %vm1125, %v2993, %v2997
  %v3000 = vshrl.u32 %v2835, 16
  %v3002 = vrot.slane %v3000, 4
  %v3003 = vshll.u32 %v2835, 16
  %v3005 = vrot.slane %v3003, 5
  %v3006 = vor.u32 %v3002, %v3005
  %v3007 = vrot.slane %v3006, 4
  %v3009 = vshll.u32 %v2836, 16
  %v3011 = vrot.slane %v3009, 5
  %v3012 = vsel %vm1125, %v3007, %v3011
  %v3014 = vshrl.u32 %v2837, 16
  %v3016 = vrot.slane %v3014, 4
  %v3017 = vshll.u32 %v2837, 16
  %v3019 = vrot.slane %v3017, 5
  %v3020 = vor.u32 %v3016, %v3019
  %v3021 = vrot.slane %v3020, 4
  %v3023 = vshll.u32 %v2838, 16
  %v3025 = vrot.slane %v3023, 5
  %v3026 = vsel %vm1125, %v3021, %v3025
  %v3028 = vshrl.u32 %v2839, 16
  %v3030 = vrot.slane %v3028, 4
  %v3031 = vshll.u32 %v2839, 16
  %v3033 = vrot.slane %v3031, 5
  %v3034 = vor.u32 %v3030, %v3033
  %v3035 = vrot.slane %v3034, 4
  %v3037 = vshll.u32 %v2840, 16
  %v3039 = vrot.slane %v3037, 5
  %v3040 = vsel %vm1125, %v3035, %v3039
  %v3042 = vshrl.u32 %v2841, 16
  %v3044 = vrot.slane %v3042, 4
  %v3045 = vshll.u32 %v2841, 16
  %v3047 = vrot.slane %v3045, 5
  %v3048 = vor.u32 %v3044, %v3047
  %v3049 = vrot.slane %v3048, 4
  %v3051 = vshll.u32 %v2842, 16
  %v3053 = vrot.slane %v3051, 5
  %v3054 = vsel %vm1125, %v3049, %v3053
  %v3056 = vshrl.u32 %v2843, 16
  %v3058 = vrot.slane %v3056, 4
  %v3059 = vshll.u32 %v2843, 16
  %v3061 = vrot.slane %v3059, 5
  %v3062 = vor.u32 %v3058, %v3061
  %v3063 = vrot.slane %v3062, 4
  %v3065 = vshll.u32 %v2844, 16
  %v3067 = vrot.slane %v3065, 5
  %v3068 = vsel %vm1125, %v3063, %v3067
  %3069 = vrot.lane.b32.xlu0 %v1462, 4
  %v3070 = vpop.permute.xlu0 %3069
  %3071 = vrot.lane.b32.xlu0 %v1463, 4
  %v3072 = vpop.permute.xlu0 %3071
  %3073 = vrot.lane.b32.xlu0 %v1464, 4
  %v3074 = vpop.permute.xlu0 %3073
  %3075 = vrot.lane.b32.xlu0 %v1465, 4
  %v3076 = vpop.permute.xlu0 %3075
  %3077 = vrot.lane.b32.xlu0 %v1466, 4
  %v3078 = vpop.permute.xlu0 %3077
  %3079 = vrot.lane.b32.xlu0 %v1467, 4
  %v3080 = vpop.permute.xlu0 %3079
  %3081 = vrot.lane.b32.xlu0 %v1468, 4
  %v3082 = vpop.permute.xlu0 %3081
  %3083 = vrot.lane.b32.xlu0 %v1469, 4
  %v3084 = vpop.permute.xlu0 %3083
  %v3085 = vunpack.c.l.b16 %v2858
  %v3086 = vunpack.c.l.b16 %v2872
  %v3087 = vunpack.c.l.b16 %v2886
  %v3088 = vunpack.c.l.b16 %v2900
  %v3089 = vunpack.c.l.b16 %v2914
  %v3090 = vunpack.c.l.b16 %v2928
  %v3091 = vunpack.c.l.b16 %v2942
  %v3092 = vunpack.c.l.b16 %v2956
  %v3093 = vunpack.c.l.b16 %v2970
  %v3094 = vunpack.c.l.b16 %v2984
  %v3095 = vunpack.c.l.b16 %v2998
  %v3096 = vunpack.c.l.b16 %v3012
  %v3097 = vunpack.c.l.b16 %v3026
  %v3098 = vunpack.c.l.b16 %v3040
  %v3099 = vunpack.c.l.b16 %v3054
  %v3100 = vunpack.c.l.b16 %v3068
  %v3101 = vpack.c.b16 %v3086, %v3085
  %v3102 = vpack.c.b16 %v3088, %v3087
  %v3103 = vpack.c.b16 %v3090, %v3089
  %v3104 = vpack.c.b16 %v3092, %v3091
  %v3105 = vpack.c.b16 %v3094, %v3093
  %v3106 = vpack.c.b16 %v3096, %v3095
  %v3107 = vpack.c.b16 %v3098, %v3097
  %v3108 = vpack.c.b16 %v3100, %v3099
  %3109 = vrot.lane.b32.xlu0 %v3101, 8
  %v3110 = vpop.permute.xlu0 %3109
  %3111 = vrot.lane.b32.xlu0 %v3102, 8
  %v3112 = vpop.permute.xlu0 %3111
  %3113 = vrot.lane.b32.xlu0 %v3103, 8
  %v3114 = vpop.permute.xlu0 %3113
  %3115 = vrot.lane.b32.xlu0 %v3104, 8
  %v3116 = vpop.permute.xlu0 %3115
  %3117 = vrot.lane.b32.xlu0 %v3105, 8
  %v3118 = vpop.permute.xlu0 %3117
  %3119 = vrot.lane.b32.xlu0 %v3106, 8
  %v3120 = vpop.permute.xlu0 %3119
  %3121 = vrot.lane.b32.xlu0 %v3107, 8
  %v3122 = vpop.permute.xlu0 %3121
  %3123 = vrot.lane.b32.xlu0 %v3108, 8
  %v3124 = vpop.permute.xlu0 %3123
  %v3127 = vsel %vm1486, %v1422, %v3070
  %v3130 = vsel %vm1486, %v1423, %v3072
  %v3133 = vsel %vm1486, %v1424, %v3074
  %v3136 = vsel %vm1486, %v1425, %v3076
  %v3139 = vsel %vm1486, %v1426, %v3078
  %v3142 = vsel %vm1486, %v1427, %v3080
  %v3145 = vsel %vm1486, %v1428, %v3082
  %v3148 = vsel %vm1486, %v1429, %v3084
  %v3150 = vsel %vm1511, %v3127, %v3110
  %v3152 = vsel %vm1511, %v3130, %v3112
  %v3154 = vsel %vm1511, %v3133, %v3114
  %v3156 = vsel %vm1511, %v3136, %v3116
  %v3158 = vsel %vm1511, %v3139, %v3118
  %v3160 = vsel %vm1511, %v3142, %v3120
  %v3162 = vsel %vm1511, %v3145, %v3122
  %v3164 = vsel %vm1511, %v3148, %v3124
  %v3165 = vld [vmem:[%s524] sm:$0xf]
  %v3166 = vld [vmem:[%s524 + $0x4] sm:$0x1]
  %v3167 = vld [vmem:[%s524 + $0x20] sm:$0xf]
  %v3168 = vld [vmem:[%s524 + $0x24] sm:$0x1]
  %v3169 = vld [vmem:[%s524 + $0x40] sm:$0xf]
  %v3170 = vld [vmem:[%s524 + $0x44] sm:$0x1]
  %v3171 = vld [vmem:[%s524 + $0x60] sm:$0xf]
  %v3172 = vld [vmem:[%s524 + $0x64] sm:$0x1]
  %v3173 = vld [vmem:[%s524 + $0x80] sm:$0xf]
  %v3174 = vld [vmem:[%s524 + $0x84] sm:$0x1]
  %v3175 = vld [vmem:[%s524 + $0xa0] sm:$0xf]
  %v3176 = vld [vmem:[%s524 + $0xa4] sm:$0x1]
  %v3177 = vld [vmem:[%s524 + $0xc0] sm:$0xf]
  %v3178 = vld [vmem:[%s524 + $0xc4] sm:$0x1]
  %v3179 = vld [vmem:[%s524 + $0xe0] sm:$0xf]
  %v3180 = vld [vmem:[%s524 + $0xe4] sm:$0x1]
  %v3181 = vld [vmem:[%s524 + $0x120] sm:$0xf]
  %v3182 = vld [vmem:[%s524 + $0x124] sm:$0x1]
  %v3183 = vld [vmem:[%s524 + $0x140] sm:$0xf]
  %v3184 = vld [vmem:[%s524 + $0x144] sm:$0x1]
  %v3185 = vld [vmem:[%s524 + $0x160] sm:$0xf]
  %v3186 = vld [vmem:[%s524 + $0x164] sm:$0x1]
  %v3187 = vld [vmem:[%s524 + $0x180] sm:$0xf]
  %v3188 = vld [vmem:[%s524 + $0x184] sm:$0x1]
  %v3189 = vld [vmem:[%s524 + $0x1a0] sm:$0xf]
  %v3190 = vld [vmem:[%s524 + $0x1a4] sm:$0x1]
  %v3191 = vld [vmem:[%s524 + $0x1c0] sm:$0xf]
  %v3192 = vld [vmem:[%s524 + $0x1c4] sm:$0x1]
  %v3193 = vld [vmem:[%s524 + $0x1e0] sm:$0xf]
  %v3194 = vld [vmem:[%s524 + $0x1e4] sm:$0x1]
  %v3195 = vld [vmem:[%s524 + $0x200] sm:$0xf]
  %v3196 = vld [vmem:[%s524 + $0x204] sm:$0x1]
  %v3198 = vshrl.u32 %v3165, 16
  %v3200 = vrot.slane %v3198, 4
  %v3201 = vshll.u32 %v3165, 16
  %v3203 = vrot.slane %v3201, 5
  %v3204 = vor.u32 %v3200, %v3203
  %v3205 = vrot.slane %v3204, 4
  %v3207 = vshll.u32 %v3166, 16
  %v3209 = vrot.slane %v3207, 5
  %v3210 = vsel %vm1125, %v3205, %v3209
  %v3212 = vshrl.u32 %v3167, 16
  %v3214 = vrot.slane %v3212, 4
  %v3215 = vshll.u32 %v3167, 16
  %v3217 = vrot.slane %v3215, 5
  %v3218 = vor.u32 %v3214, %v3217
  %v3219 = vrot.slane %v3218, 4
  %v3221 = vshll.u32 %v3168, 16
  %v3223 = vrot.slane %v3221, 5
  %v3224 = vsel %vm1125, %v3219, %v3223
  %v3226 = vshrl.u32 %v3169, 16
  %v3228 = vrot.slane %v3226, 4
  %v3229 = vshll.u32 %v3169, 16
  %v3231 = vrot.slane %v3229, 5
  %v3232 = vor.u32 %v3228, %v3231
  %v3233 = vrot.slane %v3232, 4
  %v3235 = vshll.u32 %v3170, 16
  %v3237 = vrot.slane %v3235, 5
  %v3238 = vsel %vm1125, %v3233, %v3237
  %v3240 = vshrl.u32 %v3171, 16
  %v3242 = vrot.slane %v3240, 4
  %v3243 = vshll.u32 %v3171, 16
  %v3245 = vrot.slane %v3243, 5
  %v3246 = vor.u32 %v3242, %v3245
  %v3247 = vrot.slane %v3246, 4
  %v3249 = vshll.u32 %v3172, 16
  %v3251 = vrot.slane %v3249, 5
  %v3252 = vsel %vm1125, %v3247, %v3251
  %v3254 = vshrl.u32 %v3173, 16
  %v3256 = vrot.slane %v3254, 4
  %v3257 = vshll.u32 %v3173, 16
  %v3259 = vrot.slane %v3257, 5
  %v3260 = vor.u32 %v3256, %v3259
  %v3261 = vrot.slane %v3260, 4
  %v3263 = vshll.u32 %v3174, 16
  %v3265 = vrot.slane %v3263, 5
  %v3266 = vsel %vm1125, %v3261, %v3265
  %v3268 = vshrl.u32 %v3175, 16
  %v3270 = vrot.slane %v3268, 4
  %v3271 = vshll.u32 %v3175, 16
  %v3273 = vrot.slane %v3271, 5
  %v3274 = vor.u32 %v3270, %v3273
  %v3275 = vrot.slane %v3274, 4
  %v3277 = vshll.u32 %v3176, 16
  %v3279 = vrot.slane %v3277, 5
  %v3280 = vsel %vm1125, %v3275, %v3279
  %v3282 = vshrl.u32 %v3177, 16
  %v3284 = vrot.slane %v3282, 4
  %v3285 = vshll.u32 %v3177, 16
  %v3287 = vrot.slane %v3285, 5
  %v3288 = vor.u32 %v3284, %v3287
  %v3289 = vrot.slane %v3288, 4
  %v3291 = vshll.u32 %v3178, 16
  %v3293 = vrot.slane %v3291, 5
  %v3294 = vsel %vm1125, %v3289, %v3293
  %v3296 = vshrl.u32 %v3179, 16
  %v3298 = vrot.slane %v3296, 4
  %v3299 = vshll.u32 %v3179, 16
  %v3301 = vrot.slane %v3299, 5
  %v3302 = vor.u32 %v3298, %v3301
  %v3303 = vrot.slane %v3302, 4
  %v3305 = vshll.u32 %v3180, 16
  %v3307 = vrot.slane %v3305, 5
  %v3308 = vsel %vm1125, %v3303, %v3307
  %v3310 = vshrl.u32 %v3181, 16
  %v3312 = vrot.slane %v3310, 4
  %v3313 = vshll.u32 %v3181, 16
  %v3315 = vrot.slane %v3313, 5
  %v3316 = vor.u32 %v3312, %v3315
  %v3317 = vrot.slane %v3316, 4
  %v3319 = vshll.u32 %v3182, 16
  %v3321 = vrot.slane %v3319, 5
  %v3322 = vsel %vm1125, %v3317, %v3321
  %v3324 = vshrl.u32 %v3183, 16
  %v3326 = vrot.slane %v3324, 4
  %v3327 = vshll.u32 %v3183, 16
  %v3329 = vrot.slane %v3327, 5
  %v3330 = vor.u32 %v3326, %v3329
  %v3331 = vrot.slane %v3330, 4
  %v3333 = vshll.u32 %v3184, 16
  %v3335 = vrot.slane %v3333, 5
  %v3336 = vsel %vm1125, %v3331, %v3335
  %v3338 = vshrl.u32 %v3185, 16
  %v3340 = vrot.slane %v3338, 4
  %v3341 = vshll.u32 %v3185, 16
  %v3343 = vrot.slane %v3341, 5
  %v3344 = vor.u32 %v3340, %v3343
  %v3345 = vrot.slane %v3344, 4
  %v3347 = vshll.u32 %v3186, 16
  %v3349 = vrot.slane %v3347, 5
  %v3350 = vsel %vm1125, %v3345, %v3349
  %v3352 = vshrl.u32 %v3187, 16
  %v3354 = vrot.slane %v3352, 4
  %v3355 = vshll.u32 %v3187, 16
  %v3357 = vrot.slane %v3355, 5
  %v3358 = vor.u32 %v3354, %v3357
  %v3359 = vrot.slane %v3358, 4
  %v3361 = vshll.u32 %v3188, 16
  %v3363 = vrot.slane %v3361, 5
  %v3364 = vsel %vm1125, %v3359, %v3363
  %v3366 = vshrl.u32 %v3189, 16
  %v3368 = vrot.slane %v3366, 4
  %v3369 = vshll.u32 %v3189, 16
  %v3371 = vrot.slane %v3369, 5
  %v3372 = vor.u32 %v3368, %v3371
  %v3373 = vrot.slane %v3372, 4
  %v3375 = vshll.u32 %v3190, 16
  %v3377 = vrot.slane %v3375, 5
  %v3378 = vsel %vm1125, %v3373, %v3377
  %v3380 = vshrl.u32 %v3191, 16
  %v3382 = vrot.slane %v3380, 4
  %v3383 = vshll.u32 %v3191, 16
  %v3385 = vrot.slane %v3383, 5
  %v3386 = vor.u32 %v3382, %v3385
  %v3387 = vrot.slane %v3386, 4
  %v3389 = vshll.u32 %v3192, 16
  %v3391 = vrot.slane %v3389, 5
  %v3392 = vsel %vm1125, %v3387, %v3391
  %v3394 = vshrl.u32 %v3193, 16
  %v3396 = vrot.slane %v3394, 4
  %v3397 = vshll.u32 %v3193, 16
  %v3399 = vrot.slane %v3397, 5
  %v3400 = vor.u32 %v3396, %v3399
  %v3401 = vrot.slane %v3400, 4
  %v3403 = vshll.u32 %v3194, 16
  %v3405 = vrot.slane %v3403, 5
  %v3406 = vsel %vm1125, %v3401, %v3405
  %v3408 = vshrl.u32 %v3195, 16
  %v3410 = vrot.slane %v3408, 4
  %v3411 = vshll.u32 %v3195, 16
  %v3413 = vrot.slane %v3411, 5
  %v3414 = vor.u32 %v3410, %v3413
  %v3415 = vrot.slane %v3414, 4
  %v3417 = vshll.u32 %v3196, 16
  %v3419 = vrot.slane %v3417, 5
  %v3420 = vsel %vm1125, %v3415, %v3419
  %3421 = vrot.lane.b32.xlu0 %v1914, 4
  %v3422 = vpop.permute.xlu0 %3421
  %3423 = vrot.lane.b32.xlu0 %v1915, 4
  %v3424 = vpop.permute.xlu0 %3423
  %3425 = vrot.lane.b32.xlu0 %v1916, 4
  %v3426 = vpop.permute.xlu0 %3425
  %3427 = vrot.lane.b32.xlu0 %v1917, 4
  %v3428 = vpop.permute.xlu0 %3427
  %3429 = vrot.lane.b32.xlu0 %v1918, 4
  %v3430 = vpop.permute.xlu0 %3429
  %3431 = vrot.lane.b32.xlu0 %v1919, 4
  %v3432 = vpop.permute.xlu0 %3431
  %3433 = vrot.lane.b32.xlu0 %v1920, 4
  %v3434 = vpop.permute.xlu0 %3433
  %3435 = vrot.lane.b32.xlu0 %v1921, 4
  %v3436 = vpop.permute.xlu0 %3435
  %v3437 = vunpack.c.l.b16 %v3210
  %v3438 = vunpack.c.l.b16 %v3224
  %v3439 = vunpack.c.l.b16 %v3238
  %v3440 = vunpack.c.l.b16 %v3252
  %v3441 = vunpack.c.l.b16 %v3266
  %v3442 = vunpack.c.l.b16 %v3280
  %v3443 = vunpack.c.l.b16 %v3294
  %v3444 = vunpack.c.l.b16 %v3308
  %v3445 = vunpack.c.l.b16 %v3322
  %v3446 = vunpack.c.l.b16 %v3336
  %v3447 = vunpack.c.l.b16 %v3350
  %v3448 = vunpack.c.l.b16 %v3364
  %v3449 = vunpack.c.l.b16 %v3378
  %v3450 = vunpack.c.l.b16 %v3392
  %v3451 = vunpack.c.l.b16 %v3406
  %v3452 = vunpack.c.l.b16 %v3420
  %v3453 = vpack.c.b16 %v3438, %v3437
  %v3454 = vpack.c.b16 %v3440, %v3439
  %v3455 = vpack.c.b16 %v3442, %v3441
  %v3456 = vpack.c.b16 %v3444, %v3443
  %v3457 = vpack.c.b16 %v3446, %v3445
  %v3458 = vpack.c.b16 %v3448, %v3447
  %v3459 = vpack.c.b16 %v3450, %v3449
  %v3460 = vpack.c.b16 %v3452, %v3451
  %3461 = vrot.lane.b32.xlu0 %v3453, 8
  %v3462 = vpop.permute.xlu0 %3461
  %3463 = vrot.lane.b32.xlu0 %v3454, 8
  %v3464 = vpop.permute.xlu0 %3463
  %3465 = vrot.lane.b32.xlu0 %v3455, 8
  %v3466 = vpop.permute.xlu0 %3465
  %3467 = vrot.lane.b32.xlu0 %v3456, 8
  %v3468 = vpop.permute.xlu0 %3467
  %3469 = vrot.lane.b32.xlu0 %v3457, 8
  %v3470 = vpop.permute.xlu0 %3469
  %3471 = vrot.lane.b32.xlu0 %v3458, 8
  %v3472 = vpop.permute.xlu0 %3471
  %3473 = vrot.lane.b32.xlu0 %v3459, 8
  %v3474 = vpop.permute.xlu0 %3473
  %3475 = vrot.lane.b32.xlu0 %v3460, 8
  %v3476 = vpop.permute.xlu0 %3475
  %v3479 = vsel %vm1486, %v1874, %v3422
  %v3482 = vsel %vm1486, %v1875, %v3424
  %v3485 = vsel %vm1486, %v1876, %v3426
  %v3488 = vsel %vm1486, %v1877, %v3428
  %v3491 = vsel %vm1486, %v1878, %v3430
  %v3494 = vsel %vm1486, %v1879, %v3432
  %v3497 = vsel %vm1486, %v1880, %v3434
  %v3500 = vsel %vm1486, %v1881, %v3436
  %v3502 = vsel %vm1511, %v3479, %v3462
  %v3504 = vsel %vm1511, %v3482, %v3464
  %v3506 = vsel %vm1511, %v3485, %v3466
  %v3508 = vsel %vm1511, %v3488, %v3468
  %v3510 = vsel %vm1511, %v3491, %v3470
  %v3512 = vsel %vm1511, %v3494, %v3472
  %v3514 = vsel %vm1511, %v3497, %v3474
  %v3516 = vsel %vm1511, %v3500, %v3476
  %v3517 = vsel %vm1986, %v3502, 0
  %v3519 = vsel %vm1986, %v3504, 0
  %v3521 = vsel %vm1986, %v3506, 0
  %v3523 = vsel %vm1986, %v3508, 0
  %v3525 = vsel %vm1986, %v3510, 0
  %v3527 = vsel %vm1986, %v3512, 0
  %v3529 = vsel %vm1986, %v3514, 0
  %v3531 = vsel %vm1986, %v3516, 0
  %3533 = vmatprep.subr.bf16.mxu0 0
  %3534 = vmatpush1.bf16.msra.mxu0 %v2005
  %3535 = vmatprep.subr.bf16.mxu0 0
  %3536 = vmatpush1.bf16.msra.mxu0 0
  %3537 = vmatprep.subr.bf16.mxu0 0
  %3538 = vmatpush1.bf16.msra.mxu0 0
  %3539 = vmatprep.subr.bf16.mxu0 0
  %3540 = vmatpush1.bf16.msra.mxu0 0
  %3541 = vmatprep.subr.bf16.mxu0 0
  %3542 = vmatpush1.bf16.msra.mxu0 0
  %3543 = vmatprep.subr.bf16.mxu0 0
  %3544 = vmatpush1.bf16.msra.mxu0 0
  %3545 = vmatprep.subr.bf16.mxu0 0
  %3546 = vmatpush1.bf16.msra.mxu0 0
  %3547 = vmatprep.subr.bf16.mxu0 0
  %3548 = vmatpush1.bf16.msra.mxu0 0
  %3549 = vmatprep.subr.bf16.mxu0 0
  %3550 = vmatpush1.bf16.msra.mxu0 0
  %3551 = vmatprep.subr.bf16.mxu0 0
  %3552 = vmatpush1.bf16.msra.mxu0 0
  %3553 = vmatprep.subr.bf16.mxu0 0
  %3554 = vmatpush1.bf16.msra.mxu0 0
  %3555 = vmatprep.subr.bf16.mxu0 0
  %3556 = vmatpush1.bf16.msra.mxu0 0
  %3557 = vmatprep.subr.bf16.mxu0 0
  %3558 = vmatpush1.bf16.msra.mxu0 0
  %3559 = vmatprep.subr.bf16.mxu0 0
  %3560 = vmatpush1.bf16.msra.mxu0 0
  %3561 = vmatprep.subr.bf16.mxu0 0
  %3562 = vmatpush1.bf16.msra.mxu0 0
  %3563 = vmatprep.subr.bf16.mxu0 0
  %3564 = vmatpush1.bf16.msra.mxu0 0
  %3565 = vmatprep.mubr.bf16.mxu0 0
  %3566 = vmatmul.mubr.bf16.gmra.mrb[0].mxu0 %v3517
  %v3567 = vpop.f32.mrb[0].mxu0
  %v3568 = vadd.f32 0.0, %v3567
  %v3569 = vpop.f32.mrb[0].mxu0
  %v3570 = vpop.f32.mrb[0].mxu0
  %v3571 = vadd.f32 0.0, %v3570
  %v3572 = vpop.f32.mrb[0].mxu0
  %3573 = vmatprep.mubr.bf16.mxu0 0
  %3574 = vmatmul.mubr.bf16.gmra.mrb[0].mxu0 %v3519
  %v3575 = vpop.f32.mrb[0].mxu0
  %v3576 = vadd.f32 0.0, %v3575
  %v3577 = vpop.f32.mrb[0].mxu0
  %v3578 = vpop.f32.mrb[0].mxu0
  %v3579 = vadd.f32 0.0, %v3578
  %v3580 = vpop.f32.mrb[0].mxu0
  %3581 = vmatprep.mubr.bf16.mxu0 0
  %3582 = vmatmul.mubr.bf16.gmra.mrb[0].mxu0 %v3521
  %v3583 = vpop.f32.mrb[0].mxu0
  %v3584 = vadd.f32 0.0, %v3583
  %v3585 = vpop.f32.mrb[0].mxu0
  %v3586 = vpop.f32.mrb[0].mxu0
  %v3587 = vadd.f32 0.0, %v3586
  %v3588 = vpop.f32.mrb[0].mxu0
  %3589 = vmatprep.mubr.bf16.mxu0 0
  %3590 = vmatmul.mubr.bf16.gmra.mrb[0].mxu0 %v3523
  %v3591 = vpop.f32.mrb[0].mxu0
  %v3592 = vadd.f32 0.0, %v3591
  %v3593 = vpop.f32.mrb[0].mxu0
  %v3594 = vpop.f32.mrb[0].mxu0
  %v3595 = vadd.f32 0.0, %v3594
  %v3596 = vpop.f32.mrb[0].mxu0
  %3597 = vmatprep.mubr.bf16.mxu0 0
  %3598 = vmatmul.mubr.bf16.gmra.mrb[0].mxu0 %v3525
  %v3599 = vpop.f32.mrb[0].mxu0
  %v3600 = vadd.f32 0.0, %v3599
  %v3601 = vpop.f32.mrb[0].mxu0
  %v3602 = vpop.f32.mrb[0].mxu0
  %v3603 = vadd.f32 0.0, %v3602
  %v3604 = vpop.f32.mrb[0].mxu0
  %3605 = vmatprep.mubr.bf16.mxu0 0
  %3606 = vmatmul.mubr.bf16.gmra.mrb[0].mxu0 %v3527
  %v3607 = vpop.f32.mrb[0].mxu0
  %v3608 = vadd.f32 0.0, %v3607
  %v3609 = vpop.f32.mrb[0].mxu0
  %v3610 = vpop.f32.mrb[0].mxu0
  %v3611 = vadd.f32 0.0, %v3610
  %v3612 = vpop.f32.mrb[0].mxu0
  %3613 = vmatprep.mubr.bf16.mxu0 0
  %3614 = vmatmul.mubr.bf16.gmra.mrb[0].mxu0 %v3529
  %v3615 = vpop.f32.mrb[0].mxu0
  %v3616 = vadd.f32 0.0, %v3615
  %v3617 = vpop.f32.mrb[0].mxu0
  %v3618 = vpop.f32.mrb[0].mxu0
  %v3619 = vadd.f32 0.0, %v3618
  %v3620 = vpop.f32.mrb[0].mxu0
  %3621 = vmatprep.mubr.bf16.mxu0 0
  %3622 = vmatmul.mubr.bf16.gmra.mrb[0].mxu0 %v3531
  %v3623 = vpop.f32.mrb[0].mxu0
  %v3624 = vadd.f32 0.0, %v3623
  %v3625 = vpop.f32.mrb[0].mxu0
  %v3626 = vpop.f32.mrb[0].mxu0
  %v3627 = vadd.f32 0.0, %v3626
  %v3628 = vpop.f32.mrb[0].mxu0
  %3629 = vdwg.mxu0
  %v3630 = vsel %vm1986, %v3150, 0
  %v3632 = vsel %vm1986, %v3152, 0
  %v3634 = vsel %vm1986, %v3154, 0
  %v3636 = vsel %vm1986, %v3156, 0
  %v3638 = vsel %vm1986, %v3158, 0
  %v3640 = vsel %vm1986, %v3160, 0
  %v3642 = vsel %vm1986, %v3162, 0
  %v3644 = vsel %vm1986, %v3164, 0
  %3646 = vmatprep.subr.bf16.mxu0 0
  %3647 = vmatpush1.bf16.msra.mxu0 %v2126
  %3648 = vmatprep.subr.bf16.mxu0 0
  %3649 = vmatpush1.bf16.msra.mxu0 0
  %3650 = vmatprep.subr.bf16.mxu0 0
  %3651 = vmatpush1.bf16.msra.mxu0 0
  %3652 = vmatprep.subr.bf16.mxu0 0
  %3653 = vmatpush1.bf16.msra.mxu0 0
  %3654 = vmatprep.subr.bf16.mxu0 0
  %3655 = vmatpush1.bf16.msra.mxu0 0
  %3656 = vmatprep.subr.bf16.mxu0 0
  %3657 = vmatpush1.bf16.msra.mxu0 0
  %3658 = vmatprep.subr.bf16.mxu0 0
  %3659 = vmatpush1.bf16.msra.mxu0 0
  %3660 = vmatprep.subr.bf16.mxu0 0
  %3661 = vmatpush1.bf16.msra.mxu0 0
  %3662 = vmatprep.subr.bf16.mxu0 0
  %3663 = vmatpush1.bf16.msra.mxu0 0
  %3664 = vmatprep.subr.bf16.mxu0 0
  %3665 = vmatpush1.bf16.msra.mxu0 0
  %3666 = vmatprep.subr.bf16.mxu0 0
  %3667 = vmatpush1.bf16.msra.mxu0 0
  %3668 = vmatprep.subr.bf16.mxu0 0
  %3669 = vmatpush1.bf16.msra.mxu0 0
  %3670 = vmatprep.subr.bf16.mxu0 0
  %3671 = vmatpush1.bf16.msra.mxu0 0
  %3672 = vmatprep.subr.bf16.mxu0 0
  %3673 = vmatpush1.bf16.msra.mxu0 0
  %3674 = vmatprep.subr.bf16.mxu0 0
  %3675 = vmatpush1.bf16.msra.mxu0 0
  %3676 = vmatprep.subr.bf16.mxu0 0
  %3677 = vmatpush1.bf16.msra.mxu0 0
  %3678 = vmatprep.mubr.bf16.mxu0 0
  %3679 = vmatmul.mubr.bf16.gmra.mrb[0].mxu0 %v3630
  %v3680 = vpop.f32.mrb[0].mxu0
  %v3681 = vadd.f32 %v3568, %v3680
  %v3682 = vpop.f32.mrb[0].mxu0
  %v3683 = vpop.f32.mrb[0].mxu0
  %v3684 = vadd.f32 %v3571, %v3683
  %v3685 = vpop.f32.mrb[0].mxu0
  %3686 = vmatprep.mubr.bf16.mxu0 0
  %3687 = vmatmul.mubr.bf16.gmra.mrb[0].mxu0 %v3632
  %v3688 = vpop.f32.mrb[0].mxu0
  %v3689 = vadd.f32 %v3576, %v3688
  %v3690 = vpop.f32.mrb[0].mxu0
  %v3691 = vpop.f32.mrb[0].mxu0
  %v3692 = vadd.f32 %v3579, %v3691
  %v3693 = vpop.f32.mrb[0].mxu0
  %3694 = vmatprep.mubr.bf16.mxu0 0
  %3695 = vmatmul.mubr.bf16.gmra.mrb[0].mxu0 %v3634
  %v3696 = vpop.f32.mrb[0].mxu0
  %v3697 = vadd.f32 %v3584, %v3696
  %v3698 = vpop.f32.mrb[0].mxu0
  %v3699 = vpop.f32.mrb[0].mxu0
  %v3700 = vadd.f32 %v3587, %v3699
  %v3701 = vpop.f32.mrb[0].mxu0
  %3702 = vmatprep.mubr.bf16.mxu0 0
  %3703 = vmatmul.mubr.bf16.gmra.mrb[0].mxu0 %v3636
  %v3704 = vpop.f32.mrb[0].mxu0
  %v3705 = vadd.f32 %v3592, %v3704
  %v3706 = vpop.f32.mrb[0].mxu0
  %v3707 = vpop.f32.mrb[0].mxu0
  %v3708 = vadd.f32 %v3595, %v3707
  %v3709 = vpop.f32.mrb[0].mxu0
  %3710 = vmatprep.mubr.bf16.mxu0 0
  %3711 = vmatmul.mubr.bf16.gmra.mrb[0].mxu0 %v3638
  %v3712 = vpop.f32.mrb[0].mxu0
  %v3713 = vadd.f32 %v3600, %v3712
  %v3714 = vpop.f32.mrb[0].mxu0
  %v3715 = vpop.f32.mrb[0].mxu0
  %v3716 = vadd.f32 %v3603, %v3715
  %v3717 = vpop.f32.mrb[0].mxu0
  %3718 = vmatprep.mubr.bf16.mxu0 0
  %3719 = vmatmul.mubr.bf16.gmra.mrb[0].mxu0 %v3640
  %v3720 = vpop.f32.mrb[0].mxu0
  %v3721 = vadd.f32 %v3608, %v3720
  %v3722 = vpop.f32.mrb[0].mxu0
  %v3723 = vpop.f32.mrb[0].mxu0
  %v3724 = vadd.f32 %v3611, %v3723
  %v3725 = vpop.f32.mrb[0].mxu0
  %3726 = vmatprep.mubr.bf16.mxu0 0
  %3727 = vmatmul.mubr.bf16.gmra.mrb[0].mxu0 %v3642
  %v3728 = vpop.f32.mrb[0].mxu0
  %v3729 = vadd.f32 %v3616, %v3728
  %v3730 = vpop.f32.mrb[0].mxu0
  %v3731 = vpop.f32.mrb[0].mxu0
  %v3732 = vadd.f32 %v3619, %v3731
  %v3733 = vpop.f32.mrb[0].mxu0
  %3734 = vmatprep.mubr.bf16.mxu0 0
  %3735 = vmatmul.mubr.bf16.gmra.mrb[0].mxu0 %v3644
  %v3736 = vpop.f32.mrb[0].mxu0
  %v3737 = vadd.f32 %v3624, %v3736
  %v3738 = vpop.f32.mrb[0].mxu0
  %v3739 = vpop.f32.mrb[0].mxu0
  %v3740 = vadd.f32 %v3627, %v3739
  %v3741 = vpop.f32.mrb[0].mxu0
  %3742 = vdwg.mxu0
  %v3743 = vld [vmem:[%s801] sm:$0xf]
  %v3744 = vld [vmem:[%s801 + $0x4] sm:$0x1]
  %v3745 = vld [vmem:[%s801 + $0x20] sm:$0xf]
  %v3746 = vld [vmem:[%s801 + $0x24] sm:$0x1]
  %v3747 = vld [vmem:[%s801 + $0x40] sm:$0xf]
  %v3748 = vld [vmem:[%s801 + $0x44] sm:$0x1]
  %v3749 = vld [vmem:[%s801 + $0x60] sm:$0xf]
  %v3750 = vld [vmem:[%s801 + $0x64] sm:$0x1]
  %v3751 = vld [vmem:[%s801 + $0x80] sm:$0xf]
  %v3752 = vld [vmem:[%s801 + $0x84] sm:$0x1]
  %v3753 = vld [vmem:[%s801 + $0xa0] sm:$0xf]
  %v3754 = vld [vmem:[%s801 + $0xa4] sm:$0x1]
  %v3755 = vld [vmem:[%s801 + $0xc0] sm:$0xf]
  %v3756 = vld [vmem:[%s801 + $0xc4] sm:$0x1]
  %v3757 = vld [vmem:[%s801 + $0xe0] sm:$0xf]
  %v3758 = vld [vmem:[%s801 + $0xe4] sm:$0x1]
  %v3759 = vld [vmem:[%s801 + $0x120] sm:$0xf]
  %v3760 = vld [vmem:[%s801 + $0x124] sm:$0x1]
  %v3761 = vld [vmem:[%s801 + $0x140] sm:$0xf]
  %v3762 = vld [vmem:[%s801 + $0x144] sm:$0x1]
  %v3763 = vld [vmem:[%s801 + $0x160] sm:$0xf]
  %v3764 = vld [vmem:[%s801 + $0x164] sm:$0x1]
  %v3765 = vld [vmem:[%s801 + $0x180] sm:$0xf]
  %v3766 = vld [vmem:[%s801 + $0x184] sm:$0x1]
  %v3767 = vld [vmem:[%s801 + $0x1a0] sm:$0xf]
  %v3768 = vld [vmem:[%s801 + $0x1a4] sm:$0x1]
  %v3769 = vld [vmem:[%s801 + $0x1c0] sm:$0xf]
  %v3770 = vld [vmem:[%s801 + $0x1c4] sm:$0x1]
  %v3771 = vld [vmem:[%s801 + $0x1e0] sm:$0xf]
  %v3772 = vld [vmem:[%s801 + $0x1e4] sm:$0x1]
  %v3773 = vld [vmem:[%s801 + $0x200] sm:$0xf]
  %v3774 = vld [vmem:[%s801 + $0x204] sm:$0x1]
  %v3776 = vshrl.u32 %v3743, 16
  %v3778 = vrot.slane %v3776, 4
  %v3779 = vshll.u32 %v3743, 16
  %v3781 = vrot.slane %v3779, 5
  %v3782 = vor.u32 %v3778, %v3781
  %v3783 = vrot.slane %v3782, 4
  %v3785 = vshll.u32 %v3744, 16
  %v3787 = vrot.slane %v3785, 5
  %v3788 = vsel %vm1125, %v3783, %v3787
  %v3790 = vshrl.u32 %v3745, 16
  %v3792 = vrot.slane %v3790, 4
  %v3793 = vshll.u32 %v3745, 16
  %v3795 = vrot.slane %v3793, 5
  %v3796 = vor.u32 %v3792, %v3795
  %v3797 = vrot.slane %v3796, 4
  %v3799 = vshll.u32 %v3746, 16
  %v3801 = vrot.slane %v3799, 5
  %v3802 = vsel %vm1125, %v3797, %v3801
  %v3804 = vshrl.u32 %v3747, 16
  %v3806 = vrot.slane %v3804, 4
  %v3807 = vshll.u32 %v3747, 16
  %v3809 = vrot.slane %v3807, 5
  %v3810 = vor.u32 %v3806, %v3809
  %v3811 = vrot.slane %v3810, 4
  %v3813 = vshll.u32 %v3748, 16
  %v3815 = vrot.slane %v3813, 5
  %v3816 = vsel %vm1125, %v3811, %v3815
  %v3818 = vshrl.u32 %v3749, 16
  %v3820 = vrot.slane %v3818, 4
  %v3821 = vshll.u32 %v3749, 16
  %v3823 = vrot.slane %v3821, 5
  %v3824 = vor.u32 %v3820, %v3823
  %v3825 = vrot.slane %v3824, 4
  %v3827 = vshll.u32 %v3750, 16
  %v3829 = vrot.slane %v3827, 5
  %v3830 = vsel %vm1125, %v3825, %v3829
  %v3832 = vshrl.u32 %v3751, 16
  %v3834 = vrot.slane %v3832, 4
  %v3835 = vshll.u32 %v3751, 16
  %v3837 = vrot.slane %v3835, 5
  %v3838 = vor.u32 %v3834, %v3837
  %v3839 = vrot.slane %v3838, 4
  %v3841 = vshll.u32 %v3752, 16
  %v3843 = vrot.slane %v3841, 5
  %v3844 = vsel %vm1125, %v3839, %v3843
  %v3846 = vshrl.u32 %v3753, 16
  %v3848 = vrot.slane %v3846, 4
  %v3849 = vshll.u32 %v3753, 16
  %v3851 = vrot.slane %v3849, 5
  %v3852 = vor.u32 %v3848, %v3851
  %v3853 = vrot.slane %v3852, 4
  %v3855 = vshll.u32 %v3754, 16
  %v3857 = vrot.slane %v3855, 5
  %v3858 = vsel %vm1125, %v3853, %v3857
  %v3860 = vshrl.u32 %v3755, 16
  %v3862 = vrot.slane %v3860, 4
  %v3863 = vshll.u32 %v3755, 16
  %v3865 = vrot.slane %v3863, 5
  %v3866 = vor.u32 %v3862, %v3865
  %v3867 = vrot.slane %v3866, 4
  %v3869 = vshll.u32 %v3756, 16
  %v3871 = vrot.slane %v3869, 5
  %v3872 = vsel %vm1125, %v3867, %v3871
  %v3874 = vshrl.u32 %v3757, 16
  %v3876 = vrot.slane %v3874, 4
  %v3877 = vshll.u32 %v3757, 16
  %v3879 = vrot.slane %v3877, 5
  %v3880 = vor.u32 %v3876, %v3879
  %v3881 = vrot.slane %v3880, 4
  %v3883 = vshll.u32 %v3758, 16
  %v3885 = vrot.slane %v3883, 5
  %v3886 = vsel %vm1125, %v3881, %v3885
  %v3888 = vshrl.u32 %v3759, 16
  %v3890 = vrot.slane %v3888, 4
  %v3891 = vshll.u32 %v3759, 16
  %v3893 = vrot.slane %v3891, 5
  %v3894 = vor.u32 %v3890, %v3893
  %v3895 = vrot.slane %v3894, 4
  %v3897 = vshll.u32 %v3760, 16
  %v3899 = vrot.slane %v3897, 5
  %v3900 = vsel %vm1125, %v3895, %v3899
  %v3902 = vshrl.u32 %v3761, 16
  %v3904 = vrot.slane %v3902, 4
  %v3905 = vshll.u32 %v3761, 16
  %v3907 = vrot.slane %v3905, 5
  %v3908 = vor.u32 %v3904, %v3907
  %v3909 = vrot.slane %v3908, 4
  %v3911 = vshll.u32 %v3762, 16
  %v3913 = vrot.slane %v3911, 5
  %v3914 = vsel %vm1125, %v3909, %v3913
  %v3916 = vshrl.u32 %v3763, 16
  %v3918 = vrot.slane %v3916, 4
  %v3919 = vshll.u32 %v3763, 16
  %v3921 = vrot.slane %v3919, 5
  %v3922 = vor.u32 %v3918, %v3921
  %v3923 = vrot.slane %v3922, 4
  %v3925 = vshll.u32 %v3764, 16
  %v3927 = vrot.slane %v3925, 5
  %v3928 = vsel %vm1125, %v3923, %v3927
  %v3930 = vshrl.u32 %v3765, 16
  %v3932 = vrot.slane %v3930, 4
  %v3933 = vshll.u32 %v3765, 16
  %v3935 = vrot.slane %v3933, 5
  %v3936 = vor.u32 %v3932, %v3935
  %v3937 = vrot.slane %v3936, 4
  %v3939 = vshll.u32 %v3766, 16
  %v3941 = vrot.slane %v3939, 5
  %v3942 = vsel %vm1125, %v3937, %v3941
  %v3944 = vshrl.u32 %v3767, 16
  %v3946 = vrot.slane %v3944, 4
  %v3947 = vshll.u32 %v3767, 16
  %v3949 = vrot.slane %v3947, 5
  %v3950 = vor.u32 %v3946, %v3949
  %v3951 = vrot.slane %v3950, 4
  %v3953 = vshll.u32 %v3768, 16
  %v3955 = vrot.slane %v3953, 5
  %v3956 = vsel %vm1125, %v3951, %v3955
  %v3958 = vshrl.u32 %v3769, 16
  %v3960 = vrot.slane %v3958, 4
  %v3961 = vshll.u32 %v3769, 16
  %v3963 = vrot.slane %v3961, 5
  %v3964 = vor.u32 %v3960, %v3963
  %v3965 = vrot.slane %v3964, 4
  %v3967 = vshll.u32 %v3770, 16
  %v3969 = vrot.slane %v3967, 5
  %v3970 = vsel %vm1125, %v3965, %v3969
  %v3972 = vshrl.u32 %v3771, 16
  %v3974 = vrot.slane %v3972, 4
  %v3975 = vshll.u32 %v3771, 16
  %v3977 = vrot.slane %v3975, 5
  %v3978 = vor.u32 %v3974, %v3977
  %v3979 = vrot.slane %v3978, 4
  %v3981 = vshll.u32 %v3772, 16
  %v3983 = vrot.slane %v3981, 5
  %v3984 = vsel %vm1125, %v3979, %v3983
  %v3986 = vshrl.u32 %v3773, 16
  %v3988 = vrot.slane %v3986, 4
  %v3989 = vshll.u32 %v3773, 16
  %v3991 = vrot.slane %v3989, 5
  %v3992 = vor.u32 %v3988, %v3991
  %v3993 = vrot.slane %v3992, 4
  %v3995 = vshll.u32 %v3774, 16
  %v3997 = vrot.slane %v3995, 5
  %v3998 = vsel %vm1125, %v3993, %v3997
  %3999 = vrot.lane.b32.xlu0 %v2609, 4
  %v4000 = vpop.permute.xlu0 %3999
  %4001 = vrot.lane.b32.xlu0 %v2610, 4
  %v4002 = vpop.permute.xlu0 %4001
  %4003 = vrot.lane.b32.xlu0 %v2611, 4
  %v4004 = vpop.permute.xlu0 %4003
  %4005 = vrot.lane.b32.xlu0 %v2612, 4
  %v4006 = vpop.permute.xlu0 %4005
  %4007 = vrot.lane.b32.xlu0 %v2613, 4
  %v4008 = vpop.permute.xlu0 %4007
  %4009 = vrot.lane.b32.xlu0 %v2614, 4
  %v4010 = vpop.permute.xlu0 %4009
  %4011 = vrot.lane.b32.xlu0 %v2615, 4
  %v4012 = vpop.permute.xlu0 %4011
  %4013 = vrot.lane.b32.xlu0 %v2616, 4
  %v4014 = vpop.permute.xlu0 %4013
  %v4015 = vunpack.c.l.b16 %v3788
  %v4016 = vunpack.c.l.b16 %v3802
  %v4017 = vunpack.c.l.b16 %v3816
  %v4018 = vunpack.c.l.b16 %v3830
  %v4019 = vunpack.c.l.b16 %v3844
  %v4020 = vunpack.c.l.b16 %v3858
  %v4021 = vunpack.c.l.b16 %v3872
  %v4022 = vunpack.c.l.b16 %v3886
  %v4023 = vunpack.c.l.b16 %v3900
  %v4024 = vunpack.c.l.b16 %v3914
  %v4025 = vunpack.c.l.b16 %v3928
  %v4026 = vunpack.c.l.b16 %v3942
  %v4027 = vunpack.c.l.b16 %v3956
  %v4028 = vunpack.c.l.b16 %v3970
  %v4029 = vunpack.c.l.b16 %v3984
  %v4030 = vunpack.c.l.b16 %v3998
  %v4031 = vpack.c.b16 %v4016, %v4015
  %v4032 = vpack.c.b16 %v4018, %v4017
  %v4033 = vpack.c.b16 %v4020, %v4019
  %v4034 = vpack.c.b16 %v4022, %v4021
  %v4035 = vpack.c.b16 %v4024, %v4023
  %v4036 = vpack.c.b16 %v4026, %v4025
  %v4037 = vpack.c.b16 %v4028, %v4027
  %v4038 = vpack.c.b16 %v4030, %v4029
  %4039 = vrot.lane.b32.xlu0 %v4031, 8
  %v4040 = vpop.permute.xlu0 %4039
  %4041 = vrot.lane.b32.xlu0 %v4032, 8
  %v4042 = vpop.permute.xlu0 %4041
  %4043 = vrot.lane.b32.xlu0 %v4033, 8
  %v4044 = vpop.permute.xlu0 %4043
  %4045 = vrot.lane.b32.xlu0 %v4034, 8
  %v4046 = vpop.permute.xlu0 %4045
  %4047 = vrot.lane.b32.xlu0 %v4035, 8
  %v4048 = vpop.permute.xlu0 %4047
  %4049 = vrot.lane.b32.xlu0 %v4036, 8
  %v4050 = vpop.permute.xlu0 %4049
  %4051 = vrot.lane.b32.xlu0 %v4037, 8
  %v4052 = vpop.permute.xlu0 %4051
  %4053 = vrot.lane.b32.xlu0 %v4038, 8
  %v4054 = vpop.permute.xlu0 %4053
  %v4057 = vsel %vm1486, %v2569, %v4000
  %v4060 = vsel %vm1486, %v2570, %v4002
  %v4063 = vsel %vm1486, %v2571, %v4004
  %v4066 = vsel %vm1486, %v2572, %v4006
  %v4069 = vsel %vm1486, %v2573, %v4008
  %v4072 = vsel %vm1486, %v2574, %v4010
  %v4075 = vsel %vm1486, %v2575, %v4012
  %v4078 = vsel %vm1486, %v2576, %v4014
  %v4080 = vsel %vm1511, %v4057, %v4040
  %v4082 = vsel %vm1511, %v4060, %v4042
  %v4084 = vsel %vm1511, %v4063, %v4044
  %v4086 = vsel %vm1511, %v4066, %v4046
  %v4088 = vsel %vm1511, %v4069, %v4048
  %v4090 = vsel %vm1511, %v4072, %v4050
  %v4092 = vsel %vm1511, %v4075, %v4052
  %v4094 = vsel %vm1511, %v4078, %v4054
  %v4095 = vsel %vm1986, %v4080, 0
  %v4097 = vsel %vm1986, %v4082, 0
  %v4099 = vsel %vm1986, %v4084, 0
  %v4101 = vsel %vm1986, %v4086, 0
  %v4103 = vsel %vm1986, %v4088, 0
  %v4105 = vsel %vm1986, %v4090, 0
  %v4107 = vsel %vm1986, %v4092, 0
  %v4109 = vsel %vm1986, %v4094, 0
  %4111 = vmatprep.subr.bf16.mxu0 0
  %4112 = vmatpush1.bf16.msra.mxu0 %v2698
  %4113 = vmatprep.subr.bf16.mxu0 0
  %4114 = vmatpush1.bf16.msra.mxu0 0
  %4115 = vmatprep.subr.bf16.mxu0 0
  %4116 = vmatpush1.bf16.msra.mxu0 0
  %4117 = vmatprep.subr.bf16.mxu0 0
  %4118 = vmatpush1.bf16.msra.mxu0 0
  %4119 = vmatprep.subr.bf16.mxu0 0
  %4120 = vmatpush1.bf16.msra.mxu0 0
  %4121 = vmatprep.subr.bf16.mxu0 0
  %4122 = vmatpush1.bf16.msra.mxu0 0
  %4123 = vmatprep.subr.bf16.mxu0 0
  %4124 = vmatpush1.bf16.msra.mxu0 0
  %4125 = vmatprep.subr.bf16.mxu0 0
  %4126 = vmatpush1.bf16.msra.mxu0 0
  %4127 = vmatprep.subr.bf16.mxu0 0
  %4128 = vmatpush1.bf16.msra.mxu0 0
  %4129 = vmatprep.subr.bf16.mxu0 0
  %4130 = vmatpush1.bf16.msra.mxu0 0
  %4131 = vmatprep.subr.bf16.mxu0 0
  %4132 = vmatpush1.bf16.msra.mxu0 0
  %4133 = vmatprep.subr.bf16.mxu0 0
  %4134 = vmatpush1.bf16.msra.mxu0 0
  %4135 = vmatprep.subr.bf16.mxu0 0
  %4136 = vmatpush1.bf16.msra.mxu0 0
  %4137 = vmatprep.subr.bf16.mxu0 0
  %4138 = vmatpush1.bf16.msra.mxu0 0
  %4139 = vmatprep.subr.bf16.mxu0 0
  %4140 = vmatpush1.bf16.msra.mxu0 0
  %4141 = vmatprep.subr.bf16.mxu0 0
  %4142 = vmatpush1.bf16.msra.mxu0 0
  %4143 = vmatprep.mubr.bf16.mxu0 0
  %4144 = vmatmul.mubr.bf16.gmra.mrb[0].mxu0 %v4095
  %v4145 = vpop.f32.mrb[0].mxu0
  %v4146 = vadd.f32 0.0, %v4145
  %v4147 = vpop.f32.mrb[0].mxu0
  %v4148 = vpop.f32.mrb[0].mxu0
  %v4149 = vadd.f32 0.0, %v4148
  %v4150 = vpop.f32.mrb[0].mxu0
  %4151 = vmatprep.mubr.bf16.mxu0 0
  %4152 = vmatmul.mubr.bf16.gmra.mrb[0].mxu0 %v4097
  %v4153 = vpop.f32.mrb[0].mxu0
  %v4154 = vadd.f32 0.0, %v4153
  %v4155 = vpop.f32.mrb[0].mxu0
  %v4156 = vpop.f32.mrb[0].mxu0
  %v4157 = vadd.f32 0.0, %v4156
  %v4158 = vpop.f32.mrb[0].mxu0
  %4159 = vmatprep.mubr.bf16.mxu0 0
  %4160 = vmatmul.mubr.bf16.gmra.mrb[0].mxu0 %v4099
  %v4161 = vpop.f32.mrb[0].mxu0
  %v4162 = vadd.f32 0.0, %v4161
  %v4163 = vpop.f32.mrb[0].mxu0
  %v4164 = vpop.f32.mrb[0].mxu0
  %v4165 = vadd.f32 0.0, %v4164
  %v4166 = vpop.f32.mrb[0].mxu0
  %4167 = vmatprep.mubr.bf16.mxu0 0
  %4168 = vmatmul.mubr.bf16.gmra.mrb[0].mxu0 %v4101
  %v4169 = vpop.f32.mrb[0].mxu0
  %v4170 = vadd.f32 0.0, %v4169
  %v4171 = vpop.f32.mrb[0].mxu0
  %v4172 = vpop.f32.mrb[0].mxu0
  %v4173 = vadd.f32 0.0, %v4172
  %v4174 = vpop.f32.mrb[0].mxu0
  %4175 = vmatprep.mubr.bf16.mxu0 0
  %4176 = vmatmul.mubr.bf16.gmra.mrb[0].mxu0 %v4103
  %v4177 = vpop.f32.mrb[0].mxu0
  %v4178 = vadd.f32 0.0, %v4177
  %v4179 = vpop.f32.mrb[0].mxu0
  %v4180 = vpop.f32.mrb[0].mxu0
  %v4181 = vadd.f32 0.0, %v4180
  %v4182 = vpop.f32.mrb[0].mxu0
  %4183 = vmatprep.mubr.bf16.mxu0 0
  %4184 = vmatmul.mubr.bf16.gmra.mrb[0].mxu0 %v4105
  %v4185 = vpop.f32.mrb[0].mxu0
  %v4186 = vadd.f32 0.0, %v4185
  %v4187 = vpop.f32.mrb[0].mxu0
  %v4188 = vpop.f32.mrb[0].mxu0
  %v4189 = vadd.f32 0.0, %v4188
  %v4190 = vpop.f32.mrb[0].mxu0
  %4191 = vmatprep.mubr.bf16.mxu0 0
  %4192 = vmatmul.mubr.bf16.gmra.mrb[0].mxu0 %v4107
  %v4193 = vpop.f32.mrb[0].mxu0
  %v4194 = vadd.f32 0.0, %v4193
  %v4195 = vpop.f32.mrb[0].mxu0
  %v4196 = vpop.f32.mrb[0].mxu0
  %v4197 = vadd.f32 0.0, %v4196
  %v4198 = vpop.f32.mrb[0].mxu0
  %4199 = vmatprep.mubr.bf16.mxu0 0
  %4200 = vmatmul.mubr.bf16.gmra.mrb[0].mxu0 %v4109
  %v4201 = vpop.f32.mrb[0].mxu0
  %v4202 = vadd.f32 0.0, %v4201
  %v4203 = vpop.f32.mrb[0].mxu0
  %v4204 = vpop.f32.mrb[0].mxu0
  %v4205 = vadd.f32 0.0, %v4204
  %v4206 = vpop.f32.mrb[0].mxu0
  %4207 = vdwg.mxu0
  %v4208 = vadd.f32 %v3681, %v4146
  %v4209 = vadd.f32 %v3684, %v4149
  %v4210 = vadd.f32 %v3689, %v4154
  %v4211 = vadd.f32 %v3692, %v4157
  %v4212 = vadd.f32 %v3697, %v4162
  %v4213 = vadd.f32 %v3700, %v4165
  %v4214 = vadd.f32 %v3705, %v4170
  %v4215 = vadd.f32 %v3708, %v4173
  %v4216 = vadd.f32 %v3713, %v4178
  %v4217 = vadd.f32 %v3716, %v4181
  %v4218 = vadd.f32 %v3721, %v4186
  %v4219 = vadd.f32 %v3724, %v4189
  %v4220 = vadd.f32 %v3729, %v4194
  %v4221 = vadd.f32 %v3732, %v4197
  %v4222 = vadd.f32 %v3737, %v4202
  %v4223 = vadd.f32 %v3740, %v4205
  %4224 = vmatprep.subr.bf16.mxu0 0
  %4225 = vmatpush1.bf16.msra.mxu0 %v2005
  %4226 = vmatprep.subr.bf16.mxu0 0
  %4227 = vmatpush1.bf16.msra.mxu0 0
  %4228 = vmatprep.subr.bf16.mxu0 0
  %4229 = vmatpush1.bf16.msra.mxu0 0
  %4230 = vmatprep.subr.bf16.mxu0 0
  %4231 = vmatpush1.bf16.msra.mxu0 0
  %4232 = vmatprep.subr.bf16.mxu0 0
  %4233 = vmatpush1.bf16.msra.mxu0 0
  %4234 = vmatprep.subr.bf16.mxu0 0
  %4235 = vmatpush1.bf16.msra.mxu0 0
  %4236 = vmatprep.subr.bf16.mxu0 0
  %4237 = vmatpush1.bf16.msra.mxu0 0
  %4238 = vmatprep.subr.bf16.mxu0 0
  %4239 = vmatpush1.bf16.msra.mxu0 0
  %4240 = vmatprep.subr.bf16.mxu0 0
  %4241 = vmatpush1.bf16.msra.mxu0 0
  %4242 = vmatprep.subr.bf16.mxu0 0
  %4243 = vmatpush1.bf16.msra.mxu0 0
  %4244 = vmatprep.subr.bf16.mxu0 0
  %4245 = vmatpush1.bf16.msra.mxu0 0
  %4246 = vmatprep.subr.bf16.mxu0 0
  %4247 = vmatpush1.bf16.msra.mxu0 0
  %4248 = vmatprep.subr.bf16.mxu0 0
  %4249 = vmatpush1.bf16.msra.mxu0 0
  %4250 = vmatprep.subr.bf16.mxu0 0
  %4251 = vmatpush1.bf16.msra.mxu0 0
  %4252 = vmatprep.subr.bf16.mxu0 0
  %4253 = vmatpush1.bf16.msra.mxu0 0
  %4254 = vmatprep.subr.bf16.mxu0 0
  %4255 = vmatpush1.bf16.msra.mxu0 0
  %4256 = vmatprep.mubr.bf16.mxu0 0
  %4257 = vmatmul.mubr.bf16.gmra.mrb[0].mxu0 %v2681
  %v4258 = vpop.f32.mrb[0].mxu0
  %v4259 = vadd.f32 0.0, %v4258
  %v4260 = vpop.f32.mrb[0].mxu0
  %v4261 = vpop.f32.mrb[0].mxu0
  %v4262 = vadd.f32 0.0, %v4261
  %v4263 = vpop.f32.mrb[0].mxu0
  %4264 = vmatprep.mubr.bf16.mxu0 0
  %4265 = vmatmul.mubr.bf16.gmra.mrb[0].mxu0 %v2683
  %v4266 = vpop.f32.mrb[0].mxu0
  %v4267 = vadd.f32 0.0, %v4266
  %v4268 = vpop.f32.mrb[0].mxu0
  %v4269 = vpop.f32.mrb[0].mxu0
  %v4270 = vadd.f32 0.0, %v4269
  %v4271 = vpop.f32.mrb[0].mxu0
  %4272 = vmatprep.mubr.bf16.mxu0 0
  %4273 = vmatmul.mubr.bf16.gmra.mrb[0].mxu0 %v2685
  %v4274 = vpop.f32.mrb[0].mxu0
  %v4275 = vadd.f32 0.0, %v4274
  %v4276 = vpop.f32.mrb[0].mxu0
  %v4277 = vpop.f32.mrb[0].mxu0
  %v4278 = vadd.f32 0.0, %v4277
  %v4279 = vpop.f32.mrb[0].mxu0
  %4280 = vmatprep.mubr.bf16.mxu0 0
  %4281 = vmatmul.mubr.bf16.gmra.mrb[0].mxu0 %v2687
  %v4282 = vpop.f32.mrb[0].mxu0
  %v4283 = vadd.f32 0.0, %v4282
  %v4284 = vpop.f32.mrb[0].mxu0
  %v4285 = vpop.f32.mrb[0].mxu0
  %v4286 = vadd.f32 0.0, %v4285
  %v4287 = vpop.f32.mrb[0].mxu0
  %4288 = vmatprep.mubr.bf16.mxu0 0
  %4289 = vmatmul.mubr.bf16.gmra.mrb[0].mxu0 %v2689
  %v4290 = vpop.f32.mrb[0].mxu0
  %v4291 = vadd.f32 0.0, %v4290
  %v4292 = vpop.f32.mrb[0].mxu0
  %v4293 = vpop.f32.mrb[0].mxu0
  %v4294 = vadd.f32 0.0, %v4293
  %v4295 = vpop.f32.mrb[0].mxu0
  %4296 = vmatprep.mubr.bf16.mxu0 0
  %4297 = vmatmul.mubr.bf16.gmra.mrb[0].mxu0 %v2691
  %v4298 = vpop.f32.mrb[0].mxu0
  %v4299 = vadd.f32 0.0, %v4298
  %v4300 = vpop.f32.mrb[0].mxu0
  %v4301 = vpop.f32.mrb[0].mxu0
  %v4302 = vadd.f32 0.0, %v4301
  %v4303 = vpop.f32.mrb[0].mxu0
  %4304 = vmatprep.mubr.bf16.mxu0 0
  %4305 = vmatmul.mubr.bf16.gmra.mrb[0].mxu0 %v2693
  %v4306 = vpop.f32.mrb[0].mxu0
  %v4307 = vadd.f32 0.0, %v4306
  %v4308 = vpop.f32.mrb[0].mxu0
  %v4309 = vpop.f32.mrb[0].mxu0
  %v4310 = vadd.f32 0.0, %v4309
  %v4311 = vpop.f32.mrb[0].mxu0
  %4312 = vmatprep.mubr.bf16.mxu0 0
  %4313 = vmatmul.mubr.bf16.gmra.mrb[0].mxu0 %v2695
  %v4314 = vpop.f32.mrb[0].mxu0
  %v4315 = vadd.f32 0.0, %v4314
  %v4316 = vpop.f32.mrb[0].mxu0
  %v4317 = vpop.f32.mrb[0].mxu0
  %v4318 = vadd.f32 0.0, %v4317
  %v4319 = vpop.f32.mrb[0].mxu0
  %4320 = vdwg.mxu0
  %4321 = vmatprep.subr.bf16.mxu0 0
  %4322 = vmatpush1.bf16.msra.mxu0 %v2126
  %4323 = vmatprep.subr.bf16.mxu0 0
  %4324 = vmatpush1.bf16.msra.mxu0 0
  %4325 = vmatprep.subr.bf16.mxu0 0
  %4326 = vmatpush1.bf16.msra.mxu0 0
  %4327 = vmatprep.subr.bf16.mxu0 0
  %4328 = vmatpush1.bf16.msra.mxu0 0
  %4329 = vmatprep.subr.bf16.mxu0 0
  %4330 = vmatpush1.bf16.msra.mxu0 0
  %4331 = vmatprep.subr.bf16.mxu0 0
  %4332 = vmatpush1.bf16.msra.mxu0 0
  %4333 = vmatprep.subr.bf16.mxu0 0
  %4334 = vmatpush1.bf16.msra.mxu0 0
  %4335 = vmatprep.subr.bf16.mxu0 0
  %4336 = vmatpush1.bf16.msra.mxu0 0
  %4337 = vmatprep.subr.bf16.mxu0 0
  %4338 = vmatpush1.bf16.msra.mxu0 0
  %4339 = vmatprep.subr.bf16.mxu0 0
  %4340 = vmatpush1.bf16.msra.mxu0 0
  %4341 = vmatprep.subr.bf16.mxu0 0
  %4342 = vmatpush1.bf16.msra.mxu0 0
  %4343 = vmatprep.subr.bf16.mxu0 0
  %4344 = vmatpush1.bf16.msra.mxu0 0
  %4345 = vmatprep.subr.bf16.mxu0 0
  %4346 = vmatpush1.bf16.msra.mxu0 0
  %4347 = vmatprep.subr.bf16.mxu0 0
  %4348 = vmatpush1.bf16.msra.mxu0 0
  %4349 = vmatprep.subr.bf16.mxu0 0
  %4350 = vmatpush1.bf16.msra.mxu0 0
  %4351 = vmatprep.subr.bf16.mxu0 0
  %4352 = vmatpush1.bf16.msra.mxu0 0
  %4353 = vmatprep.mubr.bf16.mxu0 0
  %4354 = vmatmul.mubr.bf16.gmra.mrb[0].mxu0 %v1987
  %v4355 = vpop.f32.mrb[0].mxu0
  %v4356 = vadd.f32 %v4259, %v4355
  %v4357 = vpop.f32.mrb[0].mxu0
  %v4358 = vpop.f32.mrb[0].mxu0
  %v4359 = vadd.f32 %v4262, %v4358
  %v4360 = vpop.f32.mrb[0].mxu0
  %4361 = vmatprep.mubr.bf16.mxu0 0
  %4362 = vmatmul.mubr.bf16.gmra.mrb[0].mxu0 %v1989
  %v4363 = vpop.f32.mrb[0].mxu0
  %v4364 = vadd.f32 %v4267, %v4363
  %v4365 = vpop.f32.mrb[0].mxu0
  %v4366 = vpop.f32.mrb[0].mxu0
  %v4367 = vadd.f32 %v4270, %v4366
  %v4368 = vpop.f32.mrb[0].mxu0
  %4369 = vmatprep.mubr.bf16.mxu0 0
  %4370 = vmatmul.mubr.bf16.gmra.mrb[0].mxu0 %v1991
  %v4371 = vpop.f32.mrb[0].mxu0
  %v4372 = vadd.f32 %v4275, %v4371
  %v4373 = vpop.f32.mrb[0].mxu0
  %v4374 = vpop.f32.mrb[0].mxu0
  %v4375 = vadd.f32 %v4278, %v4374
  %v4376 = vpop.f32.mrb[0].mxu0
  %4377 = vmatprep.mubr.bf16.mxu0 0
  %4378 = vmatmul.mubr.bf16.gmra.mrb[0].mxu0 %v1993
  %v4379 = vpop.f32.mrb[0].mxu0
  %v4380 = vadd.f32 %v4283, %v4379
  %v4381 = vpop.f32.mrb[0].mxu0
  %v4382 = vpop.f32.mrb[0].mxu0
  %v4383 = vadd.f32 %v4286, %v4382
  %v4384 = vpop.f32.mrb[0].mxu0
  %4385 = vmatprep.mubr.bf16.mxu0 0
  %4386 = vmatmul.mubr.bf16.gmra.mrb[0].mxu0 %v1995
  %v4387 = vpop.f32.mrb[0].mxu0
  %v4388 = vadd.f32 %v4291, %v4387
  %v4389 = vpop.f32.mrb[0].mxu0
  %v4390 = vpop.f32.mrb[0].mxu0
  %v4391 = vadd.f32 %v4294, %v4390
  %v4392 = vpop.f32.mrb[0].mxu0
  %4393 = vmatprep.mubr.bf16.mxu0 0
  %4394 = vmatmul.mubr.bf16.gmra.mrb[0].mxu0 %v1997
  %v4395 = vpop.f32.mrb[0].mxu0
  %v4396 = vadd.f32 %v4299, %v4395
  %v4397 = vpop.f32.mrb[0].mxu0
  %v4398 = vpop.f32.mrb[0].mxu0
  %v4399 = vadd.f32 %v4302, %v4398
  %v4400 = vpop.f32.mrb[0].mxu0
  %4401 = vmatprep.mubr.bf16.mxu0 0
  %4402 = vmatmul.mubr.bf16.gmra.mrb[0].mxu0 %v1999
  %v4403 = vpop.f32.mrb[0].mxu0
  %v4404 = vadd.f32 %v4307, %v4403
  %v4405 = vpop.f32.mrb[0].mxu0
  %v4406 = vpop.f32.mrb[0].mxu0
  %v4407 = vadd.f32 %v4310, %v4406
  %v4408 = vpop.f32.mrb[0].mxu0
  %4409 = vmatprep.mubr.bf16.mxu0 0
  %4410 = vmatmul.mubr.bf16.gmra.mrb[0].mxu0 %v2001
  %v4411 = vpop.f32.mrb[0].mxu0
  %v4412 = vadd.f32 %v4315, %v4411
  %v4413 = vpop.f32.mrb[0].mxu0
  %v4414 = vpop.f32.mrb[0].mxu0
  %v4415 = vadd.f32 %v4318, %v4414
  %v4416 = vpop.f32.mrb[0].mxu0
  %4417 = vdwg.mxu0
  %s4418 = scalar_lea.vmem [#allocation2], 48
  %v4419 = vld [vmem:[%s4418] sm:$0xf]
  %v4420 = vld [vmem:[%s4418 + $0x20] sm:$0xf]
  %v4421 = vld [vmem:[%s4418 + $0x40] sm:$0xf]
  %v4422 = vld [vmem:[%s4418 + $0x60] sm:$0xf]
  %v4423 = vld [vmem:[%s4418 + $0x80] sm:$0xf]
  %v4424 = vld [vmem:[%s4418 + $0xa0] sm:$0xf]
  %v4425 = vld [vmem:[%s4418 + $0xc0] sm:$0xf]
  %v4426 = vld [vmem:[%s4418 + $0xe0] sm:$0xf]
  %v4427 = vld [vmem:[%s4418 + $0x120] sm:$0xf]
  %v4428 = vld [vmem:[%s4418 + $0x140] sm:$0xf]
  %v4429 = vld [vmem:[%s4418 + $0x160] sm:$0xf]
  %v4430 = vld [vmem:[%s4418 + $0x180] sm:$0xf]
  %v4431 = vld [vmem:[%s4418 + $0x1a0] sm:$0xf]
  %v4432 = vld [vmem:[%s4418 + $0x1c0] sm:$0xf]
  %v4433 = vld [vmem:[%s4418 + $0x1e0] sm:$0xf]
  %v4434 = vld [vmem:[%s4418 + $0x200] sm:$0xf]
  %s4435 = scalar_lea.vmem [#allocation2], 56
  %v4436 = vld [vmem:[%s4435] sm:$0xf]
  %v4437 = vld [vmem:[%s4435 + $0x20] sm:$0xf]
  %v4438 = vld [vmem:[%s4435 + $0x40] sm:$0xf]
  %v4439 = vld [vmem:[%s4435 + $0x60] sm:$0xf]
  %v4440 = vld [vmem:[%s4435 + $0x80] sm:$0xf]
  %v4441 = vld [vmem:[%s4435 + $0xa0] sm:$0xf]
  %v4442 = vld [vmem:[%s4435 + $0xc0] sm:$0xf]
  %v4443 = vld [vmem:[%s4435 + $0xe0] sm:$0xf]
  %v4444 = vld [vmem:[%s4435 + $0x120] sm:$0xf]
  %v4445 = vld [vmem:[%s4435 + $0x140] sm:$0xf]
  %v4446 = vld [vmem:[%s4435 + $0x160] sm:$0xf]
  %v4447 = vld [vmem:[%s4435 + $0x180] sm:$0xf]
  %v4448 = vld [vmem:[%s4435 + $0x1a0] sm:$0xf]
  %v4449 = vld [vmem:[%s4435 + $0x1c0] sm:$0xf]
  %v4450 = vld [vmem:[%s4435 + $0x1e0] sm:$0xf]
  %v4451 = vld [vmem:[%s4435 + $0x200] sm:$0xf]
  %v4452 = vld [vmem:[%s4418 + $0x4] sm:$0x1]
  %v4453 = vld [vmem:[%s4418 + $0x24] sm:$0x1]
  %v4454 = vld [vmem:[%s4418 + $0x44] sm:$0x1]
  %v4455 = vld [vmem:[%s4418 + $0x64] sm:$0x1]
  %v4456 = vld [vmem:[%s4418 + $0x84] sm:$0x1]
  %v4457 = vld [vmem:[%s4418 + $0xa4] sm:$0x1]
  %v4458 = vld [vmem:[%s4418 + $0xc4] sm:$0x1]
  %v4459 = vld [vmem:[%s4418 + $0xe4] sm:$0x1]
  %v4460 = vld [vmem:[%s4418 + $0x124] sm:$0x1]
  %v4461 = vld [vmem:[%s4418 + $0x144] sm:$0x1]
  %v4462 = vld [vmem:[%s4418 + $0x164] sm:$0x1]
  %v4463 = vld [vmem:[%s4418 + $0x184] sm:$0x1]
  %v4464 = vld [vmem:[%s4418 + $0x1a4] sm:$0x1]
  %v4465 = vld [vmem:[%s4418 + $0x1c4] sm:$0x1]
  %v4466 = vld [vmem:[%s4418 + $0x1e4] sm:$0x1]
  %v4467 = vld [vmem:[%s4418 + $0x204] sm:$0x1]
  %v4469 = vshrl.u32 %v4419, 16
  %v4471 = vrot.slane %v4469, 4
  %v4472 = vshll.u32 %v4419, 16
  %v4474 = vrot.slane %v4472, 5
  %v4475 = vor.u32 %v4471, %v4474
  %v4476 = vrot.slane %v4475, 4
  %v4478 = vshll.u32 %v4452, 16
  %v4480 = vrot.slane %v4478, 5
  %v4481 = vsel %vm1125, %v4476, %v4480
  %v4483 = vshrl.u32 %v4420, 16
  %v4485 = vrot.slane %v4483, 4
  %v4486 = vshll.u32 %v4420, 16
  %v4488 = vrot.slane %v4486, 5
  %v4489 = vor.u32 %v4485, %v4488
  %v4490 = vrot.slane %v4489, 4
  %v4492 = vshll.u32 %v4453, 16
  %v4494 = vrot.slane %v4492, 5
  %v4495 = vsel %vm1125, %v4490, %v4494
  %v4497 = vshrl.u32 %v4421, 16
  %v4499 = vrot.slane %v4497, 4
  %v4500 = vshll.u32 %v4421, 16
  %v4502 = vrot.slane %v4500, 5
  %v4503 = vor.u32 %v4499, %v4502
  %v4504 = vrot.slane %v4503, 4
  %v4506 = vshll.u32 %v4454, 16
  %v4508 = vrot.slane %v4506, 5
  %v4509 = vsel %vm1125, %v4504, %v4508
  %v4511 = vshrl.u32 %v4422, 16
  %v4513 = vrot.slane %v4511, 4
  %v4514 = vshll.u32 %v4422, 16
  %v4516 = vrot.slane %v4514, 5
  %v4517 = vor.u32 %v4513, %v4516
  %v4518 = vrot.slane %v4517, 4
  %v4520 = vshll.u32 %v4455, 16
  %v4522 = vrot.slane %v4520, 5
  %v4523 = vsel %vm1125, %v4518, %v4522
  %v4525 = vshrl.u32 %v4423, 16
  %v4527 = vrot.slane %v4525, 4
  %v4528 = vshll.u32 %v4423, 16
  %v4530 = vrot.slane %v4528, 5
  %v4531 = vor.u32 %v4527, %v4530
  %v4532 = vrot.slane %v4531, 4
  %v4534 = vshll.u32 %v4456, 16
  %v4536 = vrot.slane %v4534, 5
  %v4537 = vsel %vm1125, %v4532, %v4536
  %v4539 = vshrl.u32 %v4424, 16
  %v4541 = vrot.slane %v4539, 4
  %v4542 = vshll.u32 %v4424, 16
  %v4544 = vrot.slane %v4542, 5
  %v4545 = vor.u32 %v4541, %v4544
  %v4546 = vrot.slane %v4545, 4
  %v4548 = vshll.u32 %v4457, 16
  %v4550 = vrot.slane %v4548, 5
  %v4551 = vsel %vm1125, %v4546, %v4550
  %v4553 = vshrl.u32 %v4425, 16
  %v4555 = vrot.slane %v4553, 4
  %v4556 = vshll.u32 %v4425, 16
  %v4558 = vrot.slane %v4556, 5
  %v4559 = vor.u32 %v4555, %v4558
  %v4560 = vrot.slane %v4559, 4
  %v4562 = vshll.u32 %v4458, 16
  %v4564 = vrot.slane %v4562, 5
  %v4565 = vsel %vm1125, %v4560, %v4564
  %v4567 = vshrl.u32 %v4426, 16
  %v4569 = vrot.slane %v4567, 4
  %v4570 = vshll.u32 %v4426, 16
  %v4572 = vrot.slane %v4570, 5
  %v4573 = vor.u32 %v4569, %v4572
  %v4574 = vrot.slane %v4573, 4
  %v4576 = vshll.u32 %v4459, 16
  %v4578 = vrot.slane %v4576, 5
  %v4579 = vsel %vm1125, %v4574, %v4578
  %v4581 = vshrl.u32 %v4427, 16
  %v4583 = vrot.slane %v4581, 4
  %v4584 = vshll.u32 %v4427, 16
  %v4586 = vrot.slane %v4584, 5
  %v4587 = vor.u32 %v4583, %v4586
  %v4588 = vrot.slane %v4587, 4
  %v4590 = vshll.u32 %v4460, 16
  %v4592 = vrot.slane %v4590, 5
  %v4593 = vsel %vm1125, %v4588, %v4592
  %v4595 = vshrl.u32 %v4428, 16
  %v4597 = vrot.slane %v4595, 4
  %v4598 = vshll.u32 %v4428, 16
  %v4600 = vrot.slane %v4598, 5
  %v4601 = vor.u32 %v4597, %v4600
  %v4602 = vrot.slane %v4601, 4
  %v4604 = vshll.u32 %v4461, 16
  %v4606 = vrot.slane %v4604, 5
  %v4607 = vsel %vm1125, %v4602, %v4606
  %v4609 = vshrl.u32 %v4429, 16
  %v4611 = vrot.slane %v4609, 4
  %v4612 = vshll.u32 %v4429, 16
  %v4614 = vrot.slane %v4612, 5
  %v4615 = vor.u32 %v4611, %v4614
  %v4616 = vrot.slane %v4615, 4
  %v4618 = vshll.u32 %v4462, 16
  %v4620 = vrot.slane %v4618, 5
  %v4621 = vsel %vm1125, %v4616, %v4620
  %v4623 = vshrl.u32 %v4430, 16
  %v4625 = vrot.slane %v4623, 4
  %v4626 = vshll.u32 %v4430, 16
  %v4628 = vrot.slane %v4626, 5
  %v4629 = vor.u32 %v4625, %v4628
  %v4630 = vrot.slane %v4629, 4
  %v4632 = vshll.u32 %v4463, 16
  %v4634 = vrot.slane %v4632, 5
  %v4635 = vsel %vm1125, %v4630, %v4634
  %v4637 = vshrl.u32 %v4431, 16
  %v4639 = vrot.slane %v4637, 4
  %v4640 = vshll.u32 %v4431, 16
  %v4642 = vrot.slane %v4640, 5
  %v4643 = vor.u32 %v4639, %v4642
  %v4644 = vrot.slane %v4643, 4
  %v4646 = vshll.u32 %v4464, 16
  %v4648 = vrot.slane %v4646, 5
  %v4649 = vsel %vm1125, %v4644, %v4648
  %v4651 = vshrl.u32 %v4432, 16
  %v4653 = vrot.slane %v4651, 4
  %v4654 = vshll.u32 %v4432, 16
  %v4656 = vrot.slane %v4654, 5
  %v4657 = vor.u32 %v4653, %v4656
  %v4658 = vrot.slane %v4657, 4
  %v4660 = vshll.u32 %v4465, 16
  %v4662 = vrot.slane %v4660, 5
  %v4663 = vsel %vm1125, %v4658, %v4662
  %v4665 = vshrl.u32 %v4433, 16
  %v4667 = vrot.slane %v4665, 4
  %v4668 = vshll.u32 %v4433, 16
  %v4670 = vrot.slane %v4668, 5
  %v4671 = vor.u32 %v4667, %v4670
  %v4672 = vrot.slane %v4671, 4
  %v4674 = vshll.u32 %v4466, 16
  %v4676 = vrot.slane %v4674, 5
  %v4677 = vsel %vm1125, %v4672, %v4676
  %v4679 = vshrl.u32 %v4434, 16
  %v4681 = vrot.slane %v4679, 4
  %v4682 = vshll.u32 %v4434, 16
  %v4684 = vrot.slane %v4682, 5
  %v4685 = vor.u32 %v4681, %v4684
  %v4686 = vrot.slane %v4685, 4
  %v4688 = vshll.u32 %v4467, 16
  %v4690 = vrot.slane %v4688, 5
  %v4691 = vsel %vm1125, %v4686, %v4690
  %v4708 = vunpack.c.l.b16 %v4419
  %v4709 = vunpack.c.l.b16 %v4420
  %v4710 = vunpack.c.l.b16 %v4421
  %v4711 = vunpack.c.l.b16 %v4422
  %v4712 = vunpack.c.l.b16 %v4423
  %v4713 = vunpack.c.l.b16 %v4424
  %v4714 = vunpack.c.l.b16 %v4425
  %v4715 = vunpack.c.l.b16 %v4426
  %v4716 = vunpack.c.l.b16 %v4427
  %v4717 = vunpack.c.l.b16 %v4428
  %v4718 = vunpack.c.l.b16 %v4429
  %v4719 = vunpack.c.l.b16 %v4430
  %v4720 = vunpack.c.l.b16 %v4431
  %v4721 = vunpack.c.l.b16 %v4432
  %v4722 = vunpack.c.l.b16 %v4433
  %v4723 = vunpack.c.l.b16 %v4434
  %v4724 = vpack.c.b16 %v4709, %v4708
  %v4725 = vpack.c.b16 %v4711, %v4710
  %v4726 = vpack.c.b16 %v4713, %v4712
  %v4727 = vpack.c.b16 %v4715, %v4714
  %v4728 = vpack.c.b16 %v4717, %v4716
  %v4729 = vpack.c.b16 %v4719, %v4718
  %v4730 = vpack.c.b16 %v4721, %v4720
  %v4731 = vpack.c.b16 %v4723, %v4722
  %v4748 = vunpack.c.l.b16 %v4436
  %v4749 = vunpack.c.l.b16 %v4437
  %v4750 = vunpack.c.l.b16 %v4438
  %v4751 = vunpack.c.l.b16 %v4439
  %v4752 = vunpack.c.l.b16 %v4440
  %v4753 = vunpack.c.l.b16 %v4441
  %v4754 = vunpack.c.l.b16 %v4442
  %v4755 = vunpack.c.l.b16 %v4443
  %v4756 = vunpack.c.l.b16 %v4444
  %v4757 = vunpack.c.l.b16 %v4445
  %v4758 = vunpack.c.l.b16 %v4446
  %v4759 = vunpack.c.l.b16 %v4447
  %v4760 = vunpack.c.l.b16 %v4448
  %v4761 = vunpack.c.l.b16 %v4449
  %v4762 = vunpack.c.l.b16 %v4450
  %v4763 = vunpack.c.l.b16 %v4451
  %v4764 = vpack.c.b16 %v4749, %v4748
  %v4765 = vpack.c.b16 %v4751, %v4750
  %v4766 = vpack.c.b16 %v4753, %v4752
  %v4767 = vpack.c.b16 %v4755, %v4754
  %v4768 = vpack.c.b16 %v4757, %v4756
  %v4769 = vpack.c.b16 %v4759, %v4758
  %v4770 = vpack.c.b16 %v4761, %v4760
  %v4771 = vpack.c.b16 %v4763, %v4762
  %4772 = vrot.lane.b32.xlu0 %v4764, 4
  %v4773 = vpop.permute.xlu0 %4772
  %4774 = vrot.lane.b32.xlu0 %v4765, 4
  %v4775 = vpop.permute.xlu0 %4774
  %4776 = vrot.lane.b32.xlu0 %v4766, 4
  %v4777 = vpop.permute.xlu0 %4776
  %4778 = vrot.lane.b32.xlu0 %v4767, 4
  %v4779 = vpop.permute.xlu0 %4778
  %4780 = vrot.lane.b32.xlu0 %v4768, 4
  %v4781 = vpop.permute.xlu0 %4780
  %4782 = vrot.lane.b32.xlu0 %v4769, 4
  %v4783 = vpop.permute.xlu0 %4782
  %4784 = vrot.lane.b32.xlu0 %v4770, 4
  %v4785 = vpop.permute.xlu0 %4784
  %4786 = vrot.lane.b32.xlu0 %v4771, 4
  %v4787 = vpop.permute.xlu0 %4786
  %v4788 = vunpack.c.l.b16 %v4481
  %v4789 = vunpack.c.l.b16 %v4495
  %v4790 = vunpack.c.l.b16 %v4509
  %v4791 = vunpack.c.l.b16 %v4523
  %v4792 = vunpack.c.l.b16 %v4537
  %v4793 = vunpack.c.l.b16 %v4551
  %v4794 = vunpack.c.l.b16 %v4565
  %v4795 = vunpack.c.l.b16 %v4579
  %v4796 = vunpack.c.l.b16 %v4593
  %v4797 = vunpack.c.l.b16 %v4607
  %v4798 = vunpack.c.l.b16 %v4621
  %v4799 = vunpack.c.l.b16 %v4635
  %v4800 = vunpack.c.l.b16 %v4649
  %v4801 = vunpack.c.l.b16 %v4663
  %v4802 = vunpack.c.l.b16 %v4677
  %v4803 = vunpack.c.l.b16 %v4691
  %v4804 = vpack.c.b16 %v4789, %v4788
  %v4805 = vpack.c.b16 %v4791, %v4790
  %v4806 = vpack.c.b16 %v4793, %v4792
  %v4807 = vpack.c.b16 %v4795, %v4794
  %v4808 = vpack.c.b16 %v4797, %v4796
  %v4809 = vpack.c.b16 %v4799, %v4798
  %v4810 = vpack.c.b16 %v4801, %v4800
  %v4811 = vpack.c.b16 %v4803, %v4802
  %4812 = vrot.lane.b32.xlu0 %v4804, 8
  %v4813 = vpop.permute.xlu0 %4812
  %4814 = vrot.lane.b32.xlu0 %v4805, 8
  %v4815 = vpop.permute.xlu0 %4814
  %4816 = vrot.lane.b32.xlu0 %v4806, 8
  %v4817 = vpop.permute.xlu0 %4816
  %4818 = vrot.lane.b32.xlu0 %v4807, 8
  %v4819 = vpop.permute.xlu0 %4818
  %4820 = vrot.lane.b32.xlu0 %v4808, 8
  %v4821 = vpop.permute.xlu0 %4820
  %4822 = vrot.lane.b32.xlu0 %v4809, 8
  %v4823 = vpop.permute.xlu0 %4822
  %4824 = vrot.lane.b32.xlu0 %v4810, 8
  %v4825 = vpop.permute.xlu0 %4824
  %4826 = vrot.lane.b32.xlu0 %v4811, 8
  %v4827 = vpop.permute.xlu0 %4826
  %v4830 = vsel %vm1486, %v4724, %v4773
  %v4833 = vsel %vm1486, %v4725, %v4775
  %v4836 = vsel %vm1486, %v4726, %v4777
  %v4839 = vsel %vm1486, %v4727, %v4779
  %v4842 = vsel %vm1486, %v4728, %v4781
  %v4845 = vsel %vm1486, %v4729, %v4783
  %v4848 = vsel %vm1486, %v4730, %v4785
  %v4851 = vsel %vm1486, %v4731, %v4787
  %v4853 = vsel %vm1511, %v4830, %v4813
  %v4855 = vsel %vm1511, %v4833, %v4815
  %v4857 = vsel %vm1511, %v4836, %v4817
  %v4859 = vsel %vm1511, %v4839, %v4819
  %v4861 = vsel %vm1511, %v4842, %v4821
  %v4863 = vsel %vm1511, %v4845, %v4823
  %v4865 = vsel %vm1511, %v4848, %v4825
  %v4867 = vsel %vm1511, %v4851, %v4827
  %v4868 = vsel %vm1986, %v4853, 0
  %v4870 = vsel %vm1986, %v4855, 0
  %v4872 = vsel %vm1986, %v4857, 0
  %v4874 = vsel %vm1986, %v4859, 0
  %v4876 = vsel %vm1986, %v4861, 0
  %v4878 = vsel %vm1986, %v4863, 0
  %v4880 = vsel %vm1986, %v4865, 0
  %v4882 = vsel %vm1986, %v4867, 0
  %4884 = vmatprep.subr.bf16.mxu0 0
  %4885 = vmatpush1.bf16.msra.mxu0 %v2698
  %4886 = vmatprep.subr.bf16.mxu0 0
  %4887 = vmatpush1.bf16.msra.mxu0 0
  %4888 = vmatprep.subr.bf16.mxu0 0
  %4889 = vmatpush1.bf16.msra.mxu0 0
  %4890 = vmatprep.subr.bf16.mxu0 0
  %4891 = vmatpush1.bf16.msra.mxu0 0
  %4892 = vmatprep.subr.bf16.mxu0 0
  %4893 = vmatpush1.bf16.msra.mxu0 0
  %4894 = vmatprep.subr.bf16.mxu0 0
  %4895 = vmatpush1.bf16.msra.mxu0 0
  %4896 = vmatprep.subr.bf16.mxu0 0
  %4897 = vmatpush1.bf16.msra.mxu0 0
  %4898 = vmatprep.subr.bf16.mxu0 0
  %4899 = vmatpush1.bf16.msra.mxu0 0
  %4900 = vmatprep.subr.bf16.mxu0 0
  %4901 = vmatpush1.bf16.msra.mxu0 0
  %4902 = vmatprep.subr.bf16.mxu0 0
  %4903 = vmatpush1.bf16.msra.mxu0 0
  %4904 = vmatprep.subr.bf16.mxu0 0
  %4905 = vmatpush1.bf16.msra.mxu0 0
  %4906 = vmatprep.subr.bf16.mxu0 0
  %4907 = vmatpush1.bf16.msra.mxu0 0
  %4908 = vmatprep.subr.bf16.mxu0 0
  %4909 = vmatpush1.bf16.msra.mxu0 0
  %4910 = vmatprep.subr.bf16.mxu0 0
  %4911 = vmatpush1.bf16.msra.mxu0 0
  %4912 = vmatprep.subr.bf16.mxu0 0
  %4913 = vmatpush1.bf16.msra.mxu0 0
  %4914 = vmatprep.subr.bf16.mxu0 0
  %4915 = vmatpush1.bf16.msra.mxu0 0
  %4916 = vmatprep.mubr.bf16.mxu0 0
  %4917 = vmatmul.mubr.bf16.gmra.mrb[0].mxu0 %v4868
  %v4918 = vpop.f32.mrb[0].mxu0
  %v4919 = vadd.f32 0.0, %v4918
  %v4920 = vpop.f32.mrb[0].mxu0
  %v4921 = vpop.f32.mrb[0].mxu0
  %v4922 = vadd.f32 0.0, %v4921
  %v4923 = vpop.f32.mrb[0].mxu0
  %4924 = vmatprep.mubr.bf16.mxu0 0
  %4925 = vmatmul.mubr.bf16.gmra.mrb[0].mxu0 %v4870
  %v4926 = vpop.f32.mrb[0].mxu0
  %v4927 = vadd.f32 0.0, %v4926
  %v4928 = vpop.f32.mrb[0].mxu0
  %v4929 = vpop.f32.mrb[0].mxu0
  %v4930 = vadd.f32 0.0, %v4929
  %v4931 = vpop.f32.mrb[0].mxu0
  %4932 = vmatprep.mubr.bf16.mxu0 0
  %4933 = vmatmul.mubr.bf16.gmra.mrb[0].mxu0 %v4872
  %v4934 = vpop.f32.mrb[0].mxu0
  %v4935 = vadd.f32 0.0, %v4934
  %v4936 = vpop.f32.mrb[0].mxu0
  %v4937 = vpop.f32.mrb[0].mxu0
  %v4938 = vadd.f32 0.0, %v4937
  %v4939 = vpop.f32.mrb[0].mxu0
  %4940 = vmatprep.mubr.bf16.mxu0 0
  %4941 = vmatmul.mubr.bf16.gmra.mrb[0].mxu0 %v4874
  %v4942 = vpop.f32.mrb[0].mxu0
  %v4943 = vadd.f32 0.0, %v4942
  %v4944 = vpop.f32.mrb[0].mxu0
  %v4945 = vpop.f32.mrb[0].mxu0
  %v4946 = vadd.f32 0.0, %v4945
  %v4947 = vpop.f32.mrb[0].mxu0
  %4948 = vmatprep.mubr.bf16.mxu0 0
  %4949 = vmatmul.mubr.bf16.gmra.mrb[0].mxu0 %v4876
  %v4950 = vpop.f32.mrb[0].mxu0
  %v4951 = vadd.f32 0.0, %v4950
  %v4952 = vpop.f32.mrb[0].mxu0
  %v4953 = vpop.f32.mrb[0].mxu0
  %v4954 = vadd.f32 0.0, %v4953
  %v4955 = vpop.f32.mrb[0].mxu0
  %4956 = vmatprep.mubr.bf16.mxu0 0
  %4957 = vmatmul.mubr.bf16.gmra.mrb[0].mxu0 %v4878
  %v4958 = vpop.f32.mrb[0].mxu0
  %v4959 = vadd.f32 0.0, %v4958
  %v4960 = vpop.f32.mrb[0].mxu0
  %v4961 = vpop.f32.mrb[0].mxu0
  %v4962 = vadd.f32 0.0, %v4961
  %v4963 = vpop.f32.mrb[0].mxu0
  %4964 = vmatprep.mubr.bf16.mxu0 0
  %4965 = vmatmul.mubr.bf16.gmra.mrb[0].mxu0 %v4880
  %v4966 = vpop.f32.mrb[0].mxu0
  %v4967 = vadd.f32 0.0, %v4966
  %v4968 = vpop.f32.mrb[0].mxu0
  %v4969 = vpop.f32.mrb[0].mxu0
  %v4970 = vadd.f32 0.0, %v4969
  %v4971 = vpop.f32.mrb[0].mxu0
  %4972 = vmatprep.mubr.bf16.mxu0 0
  %4973 = vmatmul.mubr.bf16.gmra.mrb[0].mxu0 %v4882
  %v4974 = vpop.f32.mrb[0].mxu0
  %v4975 = vadd.f32 0.0, %v4974
  %v4976 = vpop.f32.mrb[0].mxu0
  %v4977 = vpop.f32.mrb[0].mxu0
  %v4978 = vadd.f32 0.0, %v4977
  %v4979 = vpop.f32.mrb[0].mxu0
  %4980 = vdwg.mxu0
  %v4981 = vadd.f32 %v4356, %v4919
  %v4982 = vadd.f32 %v4359, %v4922
  %v4983 = vadd.f32 %v4364, %v4927
  %v4984 = vadd.f32 %v4367, %v4930
  %v4985 = vadd.f32 %v4372, %v4935
  %v4986 = vadd.f32 %v4375, %v4938
  %v4987 = vadd.f32 %v4380, %v4943
  %v4988 = vadd.f32 %v4383, %v4946
  %v4989 = vadd.f32 %v4388, %v4951
  %v4990 = vadd.f32 %v4391, %v4954
  %v4991 = vadd.f32 %v4396, %v4959
  %v4992 = vadd.f32 %v4399, %v4962
  %v4993 = vadd.f32 %v4404, %v4967
  %v4994 = vadd.f32 %v4407, %v4970
  %v4995 = vadd.f32 %v4412, %v4975
  %v4996 = vadd.f32 %v4415, %v4978
  %4997 = vmatprep.subr.bf16.mxu0 0
  %4998 = vmatpush1.bf16.msra.mxu0 %v2005
  %4999 = vmatprep.subr.bf16.mxu0 0
  %5000 = vmatpush1.bf16.msra.mxu0 0
  %5001 = vmatprep.subr.bf16.mxu0 0
  %5002 = vmatpush1.bf16.msra.mxu0 0
  %5003 = vmatprep.subr.bf16.mxu0 0
  %5004 = vmatpush1.bf16.msra.mxu0 0
  %5005 = vmatprep.subr.bf16.mxu0 0
  %5006 = vmatpush1.bf16.msra.mxu0 0
  %5007 = vmatprep.subr.bf16.mxu0 0
  %5008 = vmatpush1.bf16.msra.mxu0 0
  %5009 = vmatprep.subr.bf16.mxu0 0
  %5010 = vmatpush1.bf16.msra.mxu0 0
  %5011 = vmatprep.subr.bf16.mxu0 0
  %5012 = vmatpush1.bf16.msra.mxu0 0
  %5013 = vmatprep.subr.bf16.mxu0 0
  %5014 = vmatpush1.bf16.msra.mxu0 0
  %5015 = vmatprep.subr.bf16.mxu0 0
  %5016 = vmatpush1.bf16.msra.mxu0 0
  %5017 = vmatprep.subr.bf16.mxu0 0
  %5018 = vmatpush1.bf16.msra.mxu0 0
  %5019 = vmatprep.subr.bf16.mxu0 0
  %5020 = vmatpush1.bf16.msra.mxu0 0
  %5021 = vmatprep.subr.bf16.mxu0 0
  %5022 = vmatpush1.bf16.msra.mxu0 0
  %5023 = vmatprep.subr.bf16.mxu0 0
  %5024 = vmatpush1.bf16.msra.mxu0 0
  %5025 = vmatprep.subr.bf16.mxu0 0
  %5026 = vmatpush1.bf16.msra.mxu0 0
  %5027 = vmatprep.subr.bf16.mxu0 0
  %5028 = vmatpush1.bf16.msra.mxu0 0
  %5029 = vmatprep.mubr.bf16.mxu0 0
  %5030 = vmatmul.mubr.bf16.gmra.mrb[0].mxu0 %v4095
  %v5031 = vpop.f32.mrb[0].mxu0
  %v5032 = vadd.f32 0.0, %v5031
  %v5033 = vpop.f32.mrb[0].mxu0
  %v5034 = vpop.f32.mrb[0].mxu0
  %v5035 = vadd.f32 0.0, %v5034
  %v5036 = vpop.f32.mrb[0].mxu0
  %5037 = vmatprep.mubr.bf16.mxu0 0
  %5038 = vmatmul.mubr.bf16.gmra.mrb[0].mxu0 %v4097
  %v5039 = vpop.f32.mrb[0].mxu0
  %v5040 = vadd.f32 0.0, %v5039
  %v5041 = vpop.f32.mrb[0].mxu0
  %v5042 = vpop.f32.mrb[0].mxu0
  %v5043 = vadd.f32 0.0, %v5042
  %v5044 = vpop.f32.mrb[0].mxu0
  %5045 = vmatprep.mubr.bf16.mxu0 0
  %5046 = vmatmul.mubr.bf16.gmra.mrb[0].mxu0 %v4099
  %v5047 = vpop.f32.mrb[0].mxu0
  %v5048 = vadd.f32 0.0, %v5047
  %v5049 = vpop.f32.mrb[0].mxu0
  %v5050 = vpop.f32.mrb[0].mxu0
  %v5051 = vadd.f32 0.0, %v5050
  %v5052 = vpop.f32.mrb[0].mxu0
  %5053 = vmatprep.mubr.bf16.mxu0 0
  %5054 = vmatmul.mubr.bf16.gmra.mrb[0].mxu0 %v4101
  %v5055 = vpop.f32.mrb[0].mxu0
  %v5056 = vadd.f32 0.0, %v5055
  %v5057 = vpop.f32.mrb[0].mxu0
  %v5058 = vpop.f32.mrb[0].mxu0
  %v5059 = vadd.f32 0.0, %v5058
  %v5060 = vpop.f32.mrb[0].mxu0
  %5061 = vmatprep.mubr.bf16.mxu0 0
  %5062 = vmatmul.mubr.bf16.gmra.mrb[0].mxu0 %v4103
  %v5063 = vpop.f32.mrb[0].mxu0
  %v5064 = vadd.f32 0.0, %v5063
  %v5065 = vpop.f32.mrb[0].mxu0
  %v5066 = vpop.f32.mrb[0].mxu0
  %v5067 = vadd.f32 0.0, %v5066
  %v5068 = vpop.f32.mrb[0].mxu0
  %5069 = vmatprep.mubr.bf16.mxu0 0
  %5070 = vmatmul.mubr.bf16.gmra.mrb[0].mxu0 %v4105
  %v5071 = vpop.f32.mrb[0].mxu0
  %v5072 = vadd.f32 0.0, %v5071
  %v5073 = vpop.f32.mrb[0].mxu0
  %v5074 = vpop.f32.mrb[0].mxu0
  %v5075 = vadd.f32 0.0, %v5074
  %v5076 = vpop.f32.mrb[0].mxu0
  %5077 = vmatprep.mubr.bf16.mxu0 0
  %5078 = vmatmul.mubr.bf16.gmra.mrb[0].mxu0 %v4107
  %v5079 = vpop.f32.mrb[0].mxu0
  %v5080 = vadd.f32 0.0, %v5079
  %v5081 = vpop.f32.mrb[0].mxu0
  %v5082 = vpop.f32.mrb[0].mxu0
  %v5083 = vadd.f32 0.0, %v5082
  %v5084 = vpop.f32.mrb[0].mxu0
  %5085 = vmatprep.mubr.bf16.mxu0 0
  %5086 = vmatmul.mubr.bf16.gmra.mrb[0].mxu0 %v4109
  %v5087 = vpop.f32.mrb[0].mxu0
  %v5088 = vadd.f32 0.0, %v5087
  %v5089 = vpop.f32.mrb[0].mxu0
  %v5090 = vpop.f32.mrb[0].mxu0
  %v5091 = vadd.f32 0.0, %v5090
  %v5092 = vpop.f32.mrb[0].mxu0
  %5093 = vdwg.mxu0
  %5094 = vmatprep.subr.bf16.mxu0 0
  %5095 = vmatpush1.bf16.msra.mxu0 %v2126
  %5096 = vmatprep.subr.bf16.mxu0 0
  %5097 = vmatpush1.bf16.msra.mxu0 0
  %5098 = vmatprep.subr.bf16.mxu0 0
  %5099 = vmatpush1.bf16.msra.mxu0 0
  %5100 = vmatprep.subr.bf16.mxu0 0
  %5101 = vmatpush1.bf16.msra.mxu0 0
  %5102 = vmatprep.subr.bf16.mxu0 0
  %5103 = vmatpush1.bf16.msra.mxu0 0
  %5104 = vmatprep.subr.bf16.mxu0 0
  %5105 = vmatpush1.bf16.msra.mxu0 0
  %5106 = vmatprep.subr.bf16.mxu0 0
  %5107 = vmatpush1.bf16.msra.mxu0 0
  %5108 = vmatprep.subr.bf16.mxu0 0
  %5109 = vmatpush1.bf16.msra.mxu0 0
  %5110 = vmatprep.subr.bf16.mxu0 0
  %5111 = vmatpush1.bf16.msra.mxu0 0
  %5112 = vmatprep.subr.bf16.mxu0 0
  %5113 = vmatpush1.bf16.msra.mxu0 0
  %5114 = vmatprep.subr.bf16.mxu0 0
  %5115 = vmatpush1.bf16.msra.mxu0 0
  %5116 = vmatprep.subr.bf16.mxu0 0
  %5117 = vmatpush1.bf16.msra.mxu0 0
  %5118 = vmatprep.subr.bf16.mxu0 0
  %5119 = vmatpush1.bf16.msra.mxu0 0
  %5120 = vmatprep.subr.bf16.mxu0 0
  %5121 = vmatpush1.bf16.msra.mxu0 0
  %5122 = vmatprep.subr.bf16.mxu0 0
  %5123 = vmatpush1.bf16.msra.mxu0 0
  %5124 = vmatprep.subr.bf16.mxu0 0
  %5125 = vmatpush1.bf16.msra.mxu0 0
  %5126 = vmatprep.mubr.bf16.mxu0 0
  %5127 = vmatmul.mubr.bf16.gmra.mrb[0].mxu0 %v3517
  %v5128 = vpop.f32.mrb[0].mxu0
  %v5129 = vadd.f32 %v5032, %v5128
  %v5130 = vpop.f32.mrb[0].mxu0
  %v5131 = vpop.f32.mrb[0].mxu0
  %v5132 = vadd.f32 %v5035, %v5131
  %v5133 = vpop.f32.mrb[0].mxu0
  %5134 = vmatprep.mubr.bf16.mxu0 0
  %5135 = vmatmul.mubr.bf16.gmra.mrb[0].mxu0 %v3519
  %v5136 = vpop.f32.mrb[0].mxu0
  %v5137 = vadd.f32 %v5040, %v5136
  %v5138 = vpop.f32.mrb[0].mxu0
  %v5139 = vpop.f32.mrb[0].mxu0
  %v5140 = vadd.f32 %v5043, %v5139
  %v5141 = vpop.f32.mrb[0].mxu0
  %5142 = vmatprep.mubr.bf16.mxu0 0
  %5143 = vmatmul.mubr.bf16.gmra.mrb[0].mxu0 %v3521
  %v5144 = vpop.f32.mrb[0].mxu0
  %v5145 = vadd.f32 %v5048, %v5144
  %v5146 = vpop.f32.mrb[0].mxu0
  %v5147 = vpop.f32.mrb[0].mxu0
  %v5148 = vadd.f32 %v5051, %v5147
  %v5149 = vpop.f32.mrb[0].mxu0
  %5150 = vmatprep.mubr.bf16.mxu0 0
  %5151 = vmatmul.mubr.bf16.gmra.mrb[0].mxu0 %v3523
  %v5152 = vpop.f32.mrb[0].mxu0
  %v5153 = vadd.f32 %v5056, %v5152
  %v5154 = vpop.f32.mrb[0].mxu0
  %v5155 = vpop.f32.mrb[0].mxu0
  %v5156 = vadd.f32 %v5059, %v5155
  %v5157 = vpop.f32.mrb[0].mxu0
  %5158 = vmatprep.mubr.bf16.mxu0 0
  %5159 = vmatmul.mubr.bf16.gmra.mrb[0].mxu0 %v3525
  %v5160 = vpop.f32.mrb[0].mxu0
  %v5161 = vadd.f32 %v5064, %v5160
  %v5162 = vpop.f32.mrb[0].mxu0
  %v5163 = vpop.f32.mrb[0].mxu0
  %v5164 = vadd.f32 %v5067, %v5163
  %v5165 = vpop.f32.mrb[0].mxu0
  %5166 = vmatprep.mubr.bf16.mxu0 0
  %5167 = vmatmul.mubr.bf16.gmra.mrb[0].mxu0 %v3527
  %v5168 = vpop.f32.mrb[0].mxu0
  %v5169 = vadd.f32 %v5072, %v5168
  %v5170 = vpop.f32.mrb[0].mxu0
  %v5171 = vpop.f32.mrb[0].mxu0
  %v5172 = vadd.f32 %v5075, %v5171
  %v5173 = vpop.f32.mrb[0].mxu0
  %5174 = vmatprep.mubr.bf16.mxu0 0
  %5175 = vmatmul.mubr.bf16.gmra.mrb[0].mxu0 %v3529
  %v5176 = vpop.f32.mrb[0].mxu0
  %v5177 = vadd.f32 %v5080, %v5176
  %v5178 = vpop.f32.mrb[0].mxu0
  %v5179 = vpop.f32.mrb[0].mxu0
  %v5180 = vadd.f32 %v5083, %v5179
  %v5181 = vpop.f32.mrb[0].mxu0
  %5182 = vmatprep.mubr.bf16.mxu0 0
  %5183 = vmatmul.mubr.bf16.gmra.mrb[0].mxu0 %v3531
  %v5184 = vpop.f32.mrb[0].mxu0
  %v5185 = vadd.f32 %v5088, %v5184
  %v5186 = vpop.f32.mrb[0].mxu0
  %v5187 = vpop.f32.mrb[0].mxu0
  %v5188 = vadd.f32 %v5091, %v5187
  %v5189 = vpop.f32.mrb[0].mxu0
  %5190 = vdwg.mxu0
  %v5191 = vld [vmem:[%s4435] sm:$0xf]
  %v5192 = vld [vmem:[%s4435 + $0x4] sm:$0x1]
  %v5193 = vld [vmem:[%s4435 + $0x20] sm:$0xf]
  %v5194 = vld [vmem:[%s4435 + $0x24] sm:$0x1]
  %v5195 = vld [vmem:[%s4435 + $0x40] sm:$0xf]
  %v5196 = vld [vmem:[%s4435 + $0x44] sm:$0x1]
  %v5197 = vld [vmem:[%s4435 + $0x60] sm:$0xf]
  %v5198 = vld [vmem:[%s4435 + $0x64] sm:$0x1]
  %v5199 = vld [vmem:[%s4435 + $0x80] sm:$0xf]
  %v5200 = vld [vmem:[%s4435 + $0x84] sm:$0x1]
  %v5201 = vld [vmem:[%s4435 + $0xa0] sm:$0xf]
  %v5202 = vld [vmem:[%s4435 + $0xa4] sm:$0x1]
  %v5203 = vld [vmem:[%s4435 + $0xc0] sm:$0xf]
  %v5204 = vld [vmem:[%s4435 + $0xc4] sm:$0x1]
  %v5205 = vld [vmem:[%s4435 + $0xe0] sm:$0xf]
  %v5206 = vld [vmem:[%s4435 + $0xe4] sm:$0x1]
  %v5207 = vld [vmem:[%s4435 + $0x120] sm:$0xf]
  %v5208 = vld [vmem:[%s4435 + $0x124] sm:$0x1]
  %v5209 = vld [vmem:[%s4435 + $0x140] sm:$0xf]
  %v5210 = vld [vmem:[%s4435 + $0x144] sm:$0x1]
  %v5211 = vld [vmem:[%s4435 + $0x160] sm:$0xf]
  %v5212 = vld [vmem:[%s4435 + $0x164] sm:$0x1]
  %v5213 = vld [vmem:[%s4435 + $0x180] sm:$0xf]
  %v5214 = vld [vmem:[%s4435 + $0x184] sm:$0x1]
  %v5215 = vld [vmem:[%s4435 + $0x1a0] sm:$0xf]
  %v5216 = vld [vmem:[%s4435 + $0x1a4] sm:$0x1]
  %v5217 = vld [vmem:[%s4435 + $0x1c0] sm:$0xf]
  %v5218 = vld [vmem:[%s4435 + $0x1c4] sm:$0x1]
  %v5219 = vld [vmem:[%s4435 + $0x1e0] sm:$0xf]
  %v5220 = vld [vmem:[%s4435 + $0x1e4] sm:$0x1]
  %v5221 = vld [vmem:[%s4435 + $0x200] sm:$0xf]
  %v5222 = vld [vmem:[%s4435 + $0x204] sm:$0x1]
  %v5224 = vshrl.u32 %v5191, 16
  %v5226 = vrot.slane %v5224, 4
  %v5227 = vshll.u32 %v5191, 16
  %v5229 = vrot.slane %v5227, 5
  %v5230 = vor.u32 %v5226, %v5229
  %v5231 = vrot.slane %v5230, 4
  %v5233 = vshll.u32 %v5192, 16
  %v5235 = vrot.slane %v5233, 5
  %v5236 = vsel %vm1125, %v5231, %v5235
  %v5238 = vshrl.u32 %v5193, 16
  %v5240 = vrot.slane %v5238, 4
  %v5241 = vshll.u32 %v5193, 16
  %v5243 = vrot.slane %v5241, 5
  %v5244 = vor.u32 %v5240, %v5243
  %v5245 = vrot.slane %v5244, 4
  %v5247 = vshll.u32 %v5194, 16
  %v5249 = vrot.slane %v5247, 5
  %v5250 = vsel %vm1125, %v5245, %v5249
  %v5252 = vshrl.u32 %v5195, 16
  %v5254 = vrot.slane %v5252, 4
  %v5255 = vshll.u32 %v5195, 16
  %v5257 = vrot.slane %v5255, 5
  %v5258 = vor.u32 %v5254, %v5257
  %v5259 = vrot.slane %v5258, 4
  %v5261 = vshll.u32 %v5196, 16
  %v5263 = vrot.slane %v5261, 5
  %v5264 = vsel %vm1125, %v5259, %v5263
  %v5266 = vshrl.u32 %v5197, 16
  %v5268 = vrot.slane %v5266, 4
  %v5269 = vshll.u32 %v5197, 16
  %v5271 = vrot.slane %v5269, 5
  %v5272 = vor.u32 %v5268, %v5271
  %v5273 = vrot.slane %v5272, 4
  %v5275 = vshll.u32 %v5198, 16
  %v5277 = vrot.slane %v5275, 5
  %v5278 = vsel %vm1125, %v5273, %v5277
  %v5280 = vshrl.u32 %v5199, 16
  %v5282 = vrot.slane %v5280, 4
  %v5283 = vshll.u32 %v5199, 16
  %v5285 = vrot.slane %v5283, 5
  %v5286 = vor.u32 %v5282, %v5285
  %v5287 = vrot.slane %v5286, 4
  %v5289 = vshll.u32 %v5200, 16
  %v5291 = vrot.slane %v5289, 5
  %v5292 = vsel %vm1125, %v5287, %v5291
  %v5294 = vshrl.u32 %v5201, 16
  %v5296 = vrot.slane %v5294, 4
  %v5297 = vshll.u32 %v5201, 16
  %v5299 = vrot.slane %v5297, 5
  %v5300 = vor.u32 %v5296, %v5299
  %v5301 = vrot.slane %v5300, 4
  %v5303 = vshll.u32 %v5202, 16
  %v5305 = vrot.slane %v5303, 5
  %v5306 = vsel %vm1125, %v5301, %v5305
  %v5308 = vshrl.u32 %v5203, 16
  %v5310 = vrot.slane %v5308, 4
  %v5311 = vshll.u32 %v5203, 16
  %v5313 = vrot.slane %v5311, 5
  %v5314 = vor.u32 %v5310, %v5313
  %v5315 = vrot.slane %v5314, 4
  %v5317 = vshll.u32 %v5204, 16
  %v5319 = vrot.slane %v5317, 5
  %v5320 = vsel %vm1125, %v5315, %v5319
  %v5322 = vshrl.u32 %v5205, 16
  %v5324 = vrot.slane %v5322, 4
  %v5325 = vshll.u32 %v5205, 16
  %v5327 = vrot.slane %v5325, 5
  %v5328 = vor.u32 %v5324, %v5327
  %v5329 = vrot.slane %v5328, 4
  %v5331 = vshll.u32 %v5206, 16
  %v5333 = vrot.slane %v5331, 5
  %v5334 = vsel %vm1125, %v5329, %v5333
  %v5336 = vshrl.u32 %v5207, 16
  %v5338 = vrot.slane %v5336, 4
  %v5339 = vshll.u32 %v5207, 16
  %v5341 = vrot.slane %v5339, 5
  %v5342 = vor.u32 %v5338, %v5341
  %v5343 = vrot.slane %v5342, 4
  %v5345 = vshll.u32 %v5208, 16
  %v5347 = vrot.slane %v5345, 5
  %v5348 = vsel %vm1125, %v5343, %v5347
  %v5350 = vshrl.u32 %v5209, 16
  %v5352 = vrot.slane %v5350, 4
  %v5353 = vshll.u32 %v5209, 16
  %v5355 = vrot.slane %v5353, 5
  %v5356 = vor.u32 %v5352, %v5355
  %v5357 = vrot.slane %v5356, 4
  %v5359 = vshll.u32 %v5210, 16
  %v5361 = vrot.slane %v5359, 5
  %v5362 = vsel %vm1125, %v5357, %v5361
  %v5364 = vshrl.u32 %v5211, 16
  %v5366 = vrot.slane %v5364, 4
  %v5367 = vshll.u32 %v5211, 16
  %v5369 = vrot.slane %v5367, 5
  %v5370 = vor.u32 %v5366, %v5369
  %v5371 = vrot.slane %v5370, 4
  %v5373 = vshll.u32 %v5212, 16
  %v5375 = vrot.slane %v5373, 5
  %v5376 = vsel %vm1125, %v5371, %v5375
  %v5378 = vshrl.u32 %v5213, 16
  %v5380 = vrot.slane %v5378, 4
  %v5381 = vshll.u32 %v5213, 16
  %v5383 = vrot.slane %v5381, 5
  %v5384 = vor.u32 %v5380, %v5383
  %v5385 = vrot.slane %v5384, 4
  %v5387 = vshll.u32 %v5214, 16
  %v5389 = vrot.slane %v5387, 5
  %v5390 = vsel %vm1125, %v5385, %v5389
  %v5392 = vshrl.u32 %v5215, 16
  %v5394 = vrot.slane %v5392, 4
  %v5395 = vshll.u32 %v5215, 16
  %v5397 = vrot.slane %v5395, 5
  %v5398 = vor.u32 %v5394, %v5397
  %v5399 = vrot.slane %v5398, 4
  %v5401 = vshll.u32 %v5216, 16
  %v5403 = vrot.slane %v5401, 5
  %v5404 = vsel %vm1125, %v5399, %v5403
  %v5406 = vshrl.u32 %v5217, 16
  %v5408 = vrot.slane %v5406, 4
  %v5409 = vshll.u32 %v5217, 16
  %v5411 = vrot.slane %v5409, 5
  %v5412 = vor.u32 %v5408, %v5411
  %v5413 = vrot.slane %v5412, 4
  %v5415 = vshll.u32 %v5218, 16
  %v5417 = vrot.slane %v5415, 5
  %v5418 = vsel %vm1125, %v5413, %v5417
  %v5420 = vshrl.u32 %v5219, 16
  %v5422 = vrot.slane %v5420, 4
  %v5423 = vshll.u32 %v5219, 16
  %v5425 = vrot.slane %v5423, 5
  %v5426 = vor.u32 %v5422, %v5425
  %v5427 = vrot.slane %v5426, 4
  %v5429 = vshll.u32 %v5220, 16
  %v5431 = vrot.slane %v5429, 5
  %v5432 = vsel %vm1125, %v5427, %v5431
  %v5434 = vshrl.u32 %v5221, 16
  %v5436 = vrot.slane %v5434, 4
  %v5437 = vshll.u32 %v5221, 16
  %v5439 = vrot.slane %v5437, 5
  %v5440 = vor.u32 %v5436, %v5439
  %v5441 = vrot.slane %v5440, 4
  %v5443 = vshll.u32 %v5222, 16
  %v5445 = vrot.slane %v5443, 5
  %v5446 = vsel %vm1125, %v5441, %v5445
  %5447 = vrot.lane.b32.xlu0 %v4804, 4
  %v5448 = vpop.permute.xlu0 %5447
  %5449 = vrot.lane.b32.xlu0 %v4805, 4
  %v5450 = vpop.permute.xlu0 %5449
  %5451 = vrot.lane.b32.xlu0 %v4806, 4
  %v5452 = vpop.permute.xlu0 %5451
  %5453 = vrot.lane.b32.xlu0 %v4807, 4
  %v5454 = vpop.permute.xlu0 %5453
  %5455 = vrot.lane.b32.xlu0 %v4808, 4
  %v5456 = vpop.permute.xlu0 %5455
  %5457 = vrot.lane.b32.xlu0 %v4809, 4
  %v5458 = vpop.permute.xlu0 %5457
  %5459 = vrot.lane.b32.xlu0 %v4810, 4
  %v5460 = vpop.permute.xlu0 %5459
  %5461 = vrot.lane.b32.xlu0 %v4811, 4
  %v5462 = vpop.permute.xlu0 %5461
  %v5463 = vunpack.c.l.b16 %v5236
  %v5464 = vunpack.c.l.b16 %v5250
  %v5465 = vunpack.c.l.b16 %v5264
  %v5466 = vunpack.c.l.b16 %v5278
  %v5467 = vunpack.c.l.b16 %v5292
  %v5468 = vunpack.c.l.b16 %v5306
  %v5469 = vunpack.c.l.b16 %v5320
  %v5470 = vunpack.c.l.b16 %v5334
  %v5471 = vunpack.c.l.b16 %v5348
  %v5472 = vunpack.c.l.b16 %v5362
  %v5473 = vunpack.c.l.b16 %v5376
  %v5474 = vunpack.c.l.b16 %v5390
  %v5475 = vunpack.c.l.b16 %v5404
  %v5476 = vunpack.c.l.b16 %v5418
  %v5477 = vunpack.c.l.b16 %v5432
  %v5478 = vunpack.c.l.b16 %v5446
  %v5479 = vpack.c.b16 %v5464, %v5463
  %v5480 = vpack.c.b16 %v5466, %v5465
  %v5481 = vpack.c.b16 %v5468, %v5467
  %v5482 = vpack.c.b16 %v5470, %v5469
  %v5483 = vpack.c.b16 %v5472, %v5471
  %v5484 = vpack.c.b16 %v5474, %v5473
  %v5485 = vpack.c.b16 %v5476, %v5475
  %v5486 = vpack.c.b16 %v5478, %v5477
  %5487 = vrot.lane.b32.xlu0 %v5479, 8
  %v5488 = vpop.permute.xlu0 %5487
  %5489 = vrot.lane.b32.xlu0 %v5480, 8
  %v5490 = vpop.permute.xlu0 %5489
  %5491 = vrot.lane.b32.xlu0 %v5481, 8
  %v5492 = vpop.permute.xlu0 %5491
  %5493 = vrot.lane.b32.xlu0 %v5482, 8
  %v5494 = vpop.permute.xlu0 %5493
  %5495 = vrot.lane.b32.xlu0 %v5483, 8
  %v5496 = vpop.permute.xlu0 %5495
  %5497 = vrot.lane.b32.xlu0 %v5484, 8
  %v5498 = vpop.permute.xlu0 %5497
  %5499 = vrot.lane.b32.xlu0 %v5485, 8
  %v5500 = vpop.permute.xlu0 %5499
  %5501 = vrot.lane.b32.xlu0 %v5486, 8
  %v5502 = vpop.permute.xlu0 %5501
  %v5505 = vsel %vm1486, %v4764, %v5448
  %v5508 = vsel %vm1486, %v4765, %v5450
  %v5511 = vsel %vm1486, %v4766, %v5452
  %v5514 = vsel %vm1486, %v4767, %v5454
  %v5517 = vsel %vm1486, %v4768, %v5456
  %v5520 = vsel %vm1486, %v4769, %v5458
  %v5523 = vsel %vm1486, %v4770, %v5460
  %v5526 = vsel %vm1486, %v4771, %v5462
  %v5528 = vsel %vm1511, %v5505, %v5488
  %v5530 = vsel %vm1511, %v5508, %v5490
  %v5532 = vsel %vm1511, %v5511, %v5492
  %v5534 = vsel %vm1511, %v5514, %v5494
  %v5536 = vsel %vm1511, %v5517, %v5496
  %v5538 = vsel %vm1511, %v5520, %v5498
  %v5540 = vsel %vm1511, %v5523, %v5500
  %v5542 = vsel %vm1511, %v5526, %v5502
  %v5543 = vsel %vm1986, %v5528, 0
  %v5545 = vsel %vm1986, %v5530, 0
  %v5547 = vsel %vm1986, %v5532, 0
  %v5549 = vsel %vm1986, %v5534, 0
  %v5551 = vsel %vm1986, %v5536, 0
  %v5553 = vsel %vm1986, %v5538, 0
  %v5555 = vsel %vm1986, %v5540, 0
  %v5557 = vsel %vm1986, %v5542, 0
  %5559 = vmatprep.subr.bf16.mxu0 0
  %5560 = vmatpush1.bf16.msra.mxu0 %v2698
  %5561 = vmatprep.subr.bf16.mxu0 0
  %5562 = vmatpush1.bf16.msra.mxu0 0
  %5563 = vmatprep.subr.bf16.mxu0 0
  %5564 = vmatpush1.bf16.msra.mxu0 0
  %5565 = vmatprep.subr.bf16.mxu0 0
  %5566 = vmatpush1.bf16.msra.mxu0 0
  %5567 = vmatprep.subr.bf16.mxu0 0
  %5568 = vmatpush1.bf16.msra.mxu0 0
  %5569 = vmatprep.subr.bf16.mxu0 0
  %5570 = vmatpush1.bf16.msra.mxu0 0
  %5571 = vmatprep.subr.bf16.mxu0 0
  %5572 = vmatpush1.bf16.msra.mxu0 0
  %5573 = vmatprep.subr.bf16.mxu0 0
  %5574 = vmatpush1.bf16.msra.mxu0 0
  %5575 = vmatprep.subr.bf16.mxu0 0
  %5576 = vmatpush1.bf16.msra.mxu0 0
  %5577 = vmatprep.subr.bf16.mxu0 0
  %5578 = vmatpush1.bf16.msra.mxu0 0
  %5579 = vmatprep.subr.bf16.mxu0 0
  %5580 = vmatpush1.bf16.msra.mxu0 0
  %5581 = vmatprep.subr.bf16.mxu0 0
  %5582 = vmatpush1.bf16.msra.mxu0 0
  %5583 = vmatprep.subr.bf16.mxu0 0
  %5584 = vmatpush1.bf16.msra.mxu0 0
  %5585 = vmatprep.subr.bf16.mxu0 0
  %5586 = vmatpush1.bf16.msra.mxu0 0
  %5587 = vmatprep.subr.bf16.mxu0 0
  %5588 = vmatpush1.bf16.msra.mxu0 0
  %5589 = vmatprep.subr.bf16.mxu0 0
  %5590 = vmatpush1.bf16.msra.mxu0 0
  %5591 = vmatprep.mubr.bf16.mxu0 0
  %5592 = vmatmul.mubr.bf16.gmra.mrb[0].mxu0 %v5543
  %v5593 = vpop.f32.mrb[0].mxu0
  %v5594 = vadd.f32 0.0, %v5593
  %v5595 = vpop.f32.mrb[0].mxu0
  %v5596 = vpop.f32.mrb[0].mxu0
  %v5597 = vadd.f32 0.0, %v5596
  %v5598 = vpop.f32.mrb[0].mxu0
  %5599 = vmatprep.mubr.bf16.mxu0 0
  %5600 = vmatmul.mubr.bf16.gmra.mrb[0].mxu0 %v5545
  %v5601 = vpop.f32.mrb[0].mxu0
  %v5602 = vadd.f32 0.0, %v5601
  %v5603 = vpop.f32.mrb[0].mxu0
  %v5604 = vpop.f32.mrb[0].mxu0
  %v5605 = vadd.f32 0.0, %v5604
  %v5606 = vpop.f32.mrb[0].mxu0
  %5607 = vmatprep.mubr.bf16.mxu0 0
  %5608 = vmatmul.mubr.bf16.gmra.mrb[0].mxu0 %v5547
  %v5609 = vpop.f32.mrb[0].mxu0
  %v5610 = vadd.f32 0.0, %v5609
  %v5611 = vpop.f32.mrb[0].mxu0
  %v5612 = vpop.f32.mrb[0].mxu0
  %v5613 = vadd.f32 0.0, %v5612
  %v5614 = vpop.f32.mrb[0].mxu0
  %5615 = vmatprep.mubr.bf16.mxu0 0
  %5616 = vmatmul.mubr.bf16.gmra.mrb[0].mxu0 %v5549
  %v5617 = vpop.f32.mrb[0].mxu0
  %v5618 = vadd.f32 0.0, %v5617
  %v5619 = vpop.f32.mrb[0].mxu0
  %v5620 = vpop.f32.mrb[0].mxu0
  %v5621 = vadd.f32 0.0, %v5620
  %v5622 = vpop.f32.mrb[0].mxu0
  %5623 = vmatprep.mubr.bf16.mxu0 0
  %5624 = vmatmul.mubr.bf16.gmra.mrb[0].mxu0 %v5551
  %v5625 = vpop.f32.mrb[0].mxu0
  %v5626 = vadd.f32 0.0, %v5625
  %v5627 = vpop.f32.mrb[0].mxu0
  %v5628 = vpop.f32.mrb[0].mxu0
  %v5629 = vadd.f32 0.0, %v5628
  %v5630 = vpop.f32.mrb[0].mxu0
  %5631 = vmatprep.mubr.bf16.mxu0 0
  %5632 = vmatmul.mubr.bf16.gmra.mrb[0].mxu0 %v5553
  %v5633 = vpop.f32.mrb[0].mxu0
  %v5634 = vadd.f32 0.0, %v5633
  %v5635 = vpop.f32.mrb[0].mxu0
  %v5636 = vpop.f32.mrb[0].mxu0
  %v5637 = vadd.f32 0.0, %v5636
  %v5638 = vpop.f32.mrb[0].mxu0
  %5639 = vmatprep.mubr.bf16.mxu0 0
  %5640 = vmatmul.mubr.bf16.gmra.mrb[0].mxu0 %v5555
  %v5641 = vpop.f32.mrb[0].mxu0
  %v5642 = vadd.f32 0.0, %v5641
  %v5643 = vpop.f32.mrb[0].mxu0
  %v5644 = vpop.f32.mrb[0].mxu0
  %v5645 = vadd.f32 0.0, %v5644
  %v5646 = vpop.f32.mrb[0].mxu0
  %5647 = vmatprep.mubr.bf16.mxu0 0
  %5648 = vmatmul.mubr.bf16.gmra.mrb[0].mxu0 %v5557
  %v5649 = vpop.f32.mrb[0].mxu0
  %v5650 = vadd.f32 0.0, %v5649
  %v5651 = vpop.f32.mrb[0].mxu0
  %v5652 = vpop.f32.mrb[0].mxu0
  %v5653 = vadd.f32 0.0, %v5652
  %v5654 = vpop.f32.mrb[0].mxu0
  %5655 = vdwg.mxu0
  %v5656 = vadd.f32 %v5129, %v5594
  %v5657 = vadd.f32 %v5132, %v5597
  %v5658 = vadd.f32 %v5137, %v5602
  %v5659 = vadd.f32 %v5140, %v5605
  %v5660 = vadd.f32 %v5145, %v5610
  %v5661 = vadd.f32 %v5148, %v5613
  %v5662 = vadd.f32 %v5153, %v5618
  %v5663 = vadd.f32 %v5156, %v5621
  %v5664 = vadd.f32 %v5161, %v5626
  %v5665 = vadd.f32 %v5164, %v5629
  %v5666 = vadd.f32 %v5169, %v5634
  %v5667 = vadd.f32 %v5172, %v5637
  %v5668 = vadd.f32 %v5177, %v5642
  %v5669 = vadd.f32 %v5180, %v5645
  %v5670 = vadd.f32 %v5185, %v5650
  %v5671 = vadd.f32 %v5188, %v5653
  %v5672 = vld [vmem:[%s3] sm:$0x1]
  %v5673 = vld [vmem:[%s4] sm:$0x1]
  %v5674 = vsel %vm1486, %v2797, 0.0
  %v5675 = vsel %vm1486, %v2798, 0.0
  %v5676 = vadd.f32 %v5674, %v5675
  %v5677 = vsel %vm1486, %v2799, 0.0
  %v5678 = vadd.f32 %v5676, %v5677
  %v5679 = vsel %vm1486, %v2800, 0.0
  %v5680 = vadd.f32 %v5678, %v5679
  %v5681 = vsel %vm1486, %v2801, 0.0
  %v5682 = vadd.f32 %v5680, %v5681
  %v5683 = vsel %vm1486, %v2802, 0.0
  %v5684 = vadd.f32 %v5682, %v5683
  %v5685 = vsel %vm1486, %v2803, 0.0
  %v5686 = vadd.f32 %v5684, %v5685
  %v5687 = vsel %vm1486, %v2804, 0.0
  %v5688 = vadd.f32 %v5686, %v5687
  %v5689 = vsel %vm1486, %v2805, 0.0
  %v5690 = vadd.f32 %v5688, %v5689
  %v5691 = vsel %vm1486, %v2806, 0.0
  %v5692 = vadd.f32 %v5690, %v5691
  %v5693 = vsel %vm1486, %v2807, 0.0
  %v5694 = vadd.f32 %v5692, %v5693
  %v5695 = vsel %vm1486, %v2808, 0.0
  %v5696 = vadd.f32 %v5694, %v5695
  %v5697 = vsel %vm1486, %v2809, 0.0
  %v5698 = vadd.f32 %v5696, %v5697
  %v5699 = vsel %vm1486, %v2810, 0.0
  %v5700 = vadd.f32 %v5698, %v5699
  %v5701 = vsel %vm1486, %v2811, 0.0
  %v5702 = vadd.f32 %v5700, %v5701
  %v5703 = vsel %vm1486, %v2812, 0.0
  %v5704 = vadd.f32 %v5702, %v5703
  %v5705 = vrot.slane %v5704, 4
  %v5706 = vadd.f32 %v5704, %v5705
  %v5707 = vrot.slane %v5706, 2
  %v5708 = vadd.f32 %v5706, %v5707
  %v5709 = vrot.slane %v5708, 1
  %v5710 = vadd.f32 %v5708, %v5709
  %v5711 = vadd.f32 %v5710, 0.0
  %v5712 = vsel %vm1486, %v4208, 0.0
  %v5713 = vsel %vm1486, %v4209, 0.0
  %v5714 = vadd.f32 %v5712, %v5713
  %v5715 = vsel %vm1486, %v4210, 0.0
  %v5716 = vadd.f32 %v5714, %v5715
  %v5717 = vsel %vm1486, %v4211, 0.0
  %v5718 = vadd.f32 %v5716, %v5717
  %v5719 = vsel %vm1486, %v4212, 0.0
  %v5720 = vadd.f32 %v5718, %v5719
  %v5721 = vsel %vm1486, %v4213, 0.0
  %v5722 = vadd.f32 %v5720, %v5721
  %v5723 = vsel %vm1486, %v4214, 0.0
  %v5724 = vadd.f32 %v5722, %v5723
  %v5725 = vsel %vm1486, %v4215, 0.0
  %v5726 = vadd.f32 %v5724, %v5725
  %v5727 = vsel %vm1486, %v4216, 0.0
  %v5728 = vadd.f32 %v5726, %v5727
  %v5729 = vsel %vm1486, %v4217, 0.0
  %v5730 = vadd.f32 %v5728, %v5729
  %v5731 = vsel %vm1486, %v4218, 0.0
  %v5732 = vadd.f32 %v5730, %v5731
  %v5733 = vsel %vm1486, %v4219, 0.0
  %v5734 = vadd.f32 %v5732, %v5733
  %v5735 = vsel %vm1486, %v4220, 0.0
  %v5736 = vadd.f32 %v5734, %v5735
  %v5737 = vsel %vm1486, %v4221, 0.0
  %v5738 = vadd.f32 %v5736, %v5737
  %v5739 = vsel %vm1486, %v4222, 0.0
  %v5740 = vadd.f32 %v5738, %v5739
  %v5741 = vsel %vm1486, %v4223, 0.0
  %v5742 = vadd.f32 %v5740, %v5741
  %v5743 = vrot.slane %v5742, 4
  %v5744 = vadd.f32 %v5742, %v5743
  %v5745 = vrot.slane %v5744, 2
  %v5746 = vadd.f32 %v5744, %v5745
  %v5747 = vrot.slane %v5746, 1
  %v5748 = vadd.f32 %v5746, %v5747
  %v5749 = vadd.f32 %v5711, %v5748
  %v5750 = vsel %vm1486, %v4981, 0.0
  %v5751 = vsel %vm1486, %v4982, 0.0
  %v5752 = vadd.f32 %v5750, %v5751
  %v5753 = vsel %vm1486, %v4983, 0.0
  %v5754 = vadd.f32 %v5752, %v5753
  %v5755 = vsel %vm1486, %v4984, 0.0
  %v5756 = vadd.f32 %v5754, %v5755
  %v5757 = vsel %vm1486, %v4985, 0.0
  %v5758 = vadd.f32 %v5756, %v5757
  %v5759 = vsel %vm1486, %v4986, 0.0
  %v5760 = vadd.f32 %v5758, %v5759
  %v5761 = vsel %vm1486, %v4987, 0.0
  %v5762 = vadd.f32 %v5760, %v5761
  %v5763 = vsel %vm1486, %v4988, 0.0
  %v5764 = vadd.f32 %v5762, %v5763
  %v5765 = vsel %vm1486, %v4989, 0.0
  %v5766 = vadd.f32 %v5764, %v5765
  %v5767 = vsel %vm1486, %v4990, 0.0
  %v5768 = vadd.f32 %v5766, %v5767
  %v5769 = vsel %vm1486, %v4991, 0.0
  %v5770 = vadd.f32 %v5768, %v5769
  %v5771 = vsel %vm1486, %v4992, 0.0
  %v5772 = vadd.f32 %v5770, %v5771
  %v5773 = vsel %vm1486, %v4993, 0.0
  %v5774 = vadd.f32 %v5772, %v5773
  %v5775 = vsel %vm1486, %v4994, 0.0
  %v5776 = vadd.f32 %v5774, %v5775
  %v5777 = vsel %vm1486, %v4995, 0.0
  %v5778 = vadd.f32 %v5776, %v5777
  %v5779 = vsel %vm1486, %v4996, 0.0
  %v5780 = vadd.f32 %v5778, %v5779
  %v5781 = vrot.slane %v5780, 4
  %v5782 = vadd.f32 %v5780, %v5781
  %v5783 = vrot.slane %v5782, 2
  %v5784 = vadd.f32 %v5782, %v5783
  %v5785 = vrot.slane %v5784, 1
  %v5786 = vadd.f32 %v5784, %v5785
  %v5787 = vadd.f32 %v5749, %v5786
  %v5788 = vsel %vm1486, %v5656, 0.0
  %v5789 = vsel %vm1486, %v5657, 0.0
  %v5790 = vadd.f32 %v5788, %v5789
  %v5791 = vsel %vm1486, %v5658, 0.0
  %v5792 = vadd.f32 %v5790, %v5791
  %v5793 = vsel %vm1486, %v5659, 0.0
  %v5794 = vadd.f32 %v5792, %v5793
  %v5795 = vsel %vm1486, %v5660, 0.0
  %v5796 = vadd.f32 %v5794, %v5795
  %v5797 = vsel %vm1486, %v5661, 0.0
  %v5798 = vadd.f32 %v5796, %v5797
  %v5799 = vsel %vm1486, %v5662, 0.0
  %v5800 = vadd.f32 %v5798, %v5799
  %v5801 = vsel %vm1486, %v5663, 0.0
  %v5802 = vadd.f32 %v5800, %v5801
  %v5803 = vsel %vm1486, %v5664, 0.0
  %v5804 = vadd.f32 %v5802, %v5803
  %v5805 = vsel %vm1486, %v5665, 0.0
  %v5806 = vadd.f32 %v5804, %v5805
  %v5807 = vsel %vm1486, %v5666, 0.0
  %v5808 = vadd.f32 %v5806, %v5807
  %v5809 = vsel %vm1486, %v5667, 0.0
  %v5810 = vadd.f32 %v5808, %v5809
  %v5811 = vsel %vm1486, %v5668, 0.0
  %v5812 = vadd.f32 %v5810, %v5811
  %v5813 = vsel %vm1486, %v5669, 0.0
  %v5814 = vadd.f32 %v5812, %v5813
  %v5815 = vsel %vm1486, %v5670, 0.0
  %v5816 = vadd.f32 %v5814, %v5815
  %v5817 = vsel %vm1486, %v5671, 0.0
  %v5818 = vadd.f32 %v5816, %v5817
  %v5819 = vrot.slane %v5818, 4
  %v5820 = vadd.f32 %v5818, %v5819
  %v5821 = vrot.slane %v5820, 2
  %v5822 = vadd.f32 %v5820, %v5821
  %v5823 = vrot.slane %v5822, 1
  %v5824 = vadd.f32 %v5822, %v5823
  %v5825 = vadd.f32 %v5787, %v5824
  %v5826 = vmul.f32 %v5825, 0.001953125
  %v5827 = vsub.f32 %v2797, %v5826
  %v5828 = vsub.f32 %v2798, %v5826
  %v5829 = vsub.f32 %v2799, %v5826
  %v5830 = vsub.f32 %v2800, %v5826
  %v5831 = vsub.f32 %v2801, %v5826
  %v5832 = vsub.f32 %v2802, %v5826
  %v5833 = vsub.f32 %v2803, %v5826
  %v5834 = vsub.f32 %v2804, %v5826
  %v5835 = vsub.f32 %v2805, %v5826
  %v5836 = vsub.f32 %v2806, %v5826
  %v5837 = vsub.f32 %v2807, %v5826
  %v5838 = vsub.f32 %v2808, %v5826
  %v5839 = vsub.f32 %v2809, %v5826
  %v5840 = vsub.f32 %v2810, %v5826
  %v5841 = vsub.f32 %v2811, %v5826
  %v5842 = vsub.f32 %v2812, %v5826
  %v5843 = vmul.f32 %v5827, %v5827
  %v5844 = vmul.f32 %v5828, %v5828
  %v5845 = vmul.f32 %v5829, %v5829
  %v5846 = vmul.f32 %v5830, %v5830
  %v5847 = vmul.f32 %v5831, %v5831
  %v5848 = vmul.f32 %v5832, %v5832
  %v5849 = vmul.f32 %v5833, %v5833
  %v5850 = vmul.f32 %v5834, %v5834
  %v5851 = vmul.f32 %v5835, %v5835
  %v5852 = vmul.f32 %v5836, %v5836
  %v5853 = vmul.f32 %v5837, %v5837
  %v5854 = vmul.f32 %v5838, %v5838
  %v5855 = vmul.f32 %v5839, %v5839
  %v5856 = vmul.f32 %v5840, %v5840
  %v5857 = vmul.f32 %v5841, %v5841
  %v5858 = vmul.f32 %v5842, %v5842
  %v5859 = vsel %vm1486, %v5843, 0.0
  %v5860 = vsel %vm1486, %v5844, 0.0
  %v5861 = vadd.f32 %v5859, %v5860
  %v5862 = vsel %vm1486, %v5845, 0.0
  %v5863 = vadd.f32 %v5861, %v5862
  %v5864 = vsel %vm1486, %v5846, 0.0
  %v5865 = vadd.f32 %v5863, %v5864
  %v5866 = vsel %vm1486, %v5847, 0.0
  %v5867 = vadd.f32 %v5865, %v5866
  %v5868 = vsel %vm1486, %v5848, 0.0
  %v5869 = vadd.f32 %v5867, %v5868
  %v5870 = vsel %vm1486, %v5849, 0.0
  %v5871 = vadd.f32 %v5869, %v5870
  %v5872 = vsel %vm1486, %v5850, 0.0
  %v5873 = vadd.f32 %v5871, %v5872
  %v5874 = vsel %vm1486, %v5851, 0.0
  %v5875 = vadd.f32 %v5873, %v5874
  %v5876 = vsel %vm1486, %v5852, 0.0
  %v5877 = vadd.f32 %v5875, %v5876
  %v5878 = vsel %vm1486, %v5853, 0.0
  %v5879 = vadd.f32 %v5877, %v5878
  %v5880 = vsel %vm1486, %v5854, 0.0
  %v5881 = vadd.f32 %v5879, %v5880
  %v5882 = vsel %vm1486, %v5855, 0.0
  %v5883 = vadd.f32 %v5881, %v5882
  %v5884 = vsel %vm1486, %v5856, 0.0
  %v5885 = vadd.f32 %v5883, %v5884
  %v5886 = vsel %vm1486, %v5857, 0.0
  %v5887 = vadd.f32 %v5885, %v5886
  %v5888 = vsel %vm1486, %v5858, 0.0
  %v5889 = vadd.f32 %v5887, %v5888
  %v5890 = vrot.slane %v5889, 4
  %v5891 = vadd.f32 %v5889, %v5890
  %v5892 = vrot.slane %v5891, 2
  %v5893 = vadd.f32 %v5891, %v5892
  %v5894 = vrot.slane %v5893, 1
  %v5895 = vadd.f32 %v5893, %v5894
  %v5896 = vadd.f32 %v5895, 0.0
  %v5897 = vsub.f32 %v4208, %v5826
  %v5898 = vsub.f32 %v4209, %v5826
  %v5899 = vsub.f32 %v4210, %v5826
  %v5900 = vsub.f32 %v4211, %v5826
  %v5901 = vsub.f32 %v4212, %v5826
  %v5902 = vsub.f32 %v4213, %v5826
  %v5903 = vsub.f32 %v4214, %v5826
  %v5904 = vsub.f32 %v4215, %v5826
  %v5905 = vsub.f32 %v4216, %v5826
  %v5906 = vsub.f32 %v4217, %v5826
  %v5907 = vsub.f32 %v4218, %v5826
  %v5908 = vsub.f32 %v4219, %v5826
  %v5909 = vsub.f32 %v4220, %v5826
  %v5910 = vsub.f32 %v4221, %v5826
  %v5911 = vsub.f32 %v4222, %v5826
  %v5912 = vsub.f32 %v4223, %v5826
  %v5913 = vmul.f32 %v5897, %v5897
  %v5914 = vmul.f32 %v5898, %v5898
  %v5915 = vmul.f32 %v5899, %v5899
  %v5916 = vmul.f32 %v5900, %v5900
  %v5917 = vmul.f32 %v5901, %v5901
  %v5918 = vmul.f32 %v5902, %v5902
  %v5919 = vmul.f32 %v5903, %v5903
  %v5920 = vmul.f32 %v5904, %v5904
  %v5921 = vmul.f32 %v5905, %v5905
  %v5922 = vmul.f32 %v5906, %v5906
  %v5923 = vmul.f32 %v5907, %v5907
  %v5924 = vmul.f32 %v5908, %v5908
  %v5925 = vmul.f32 %v5909, %v5909
  %v5926 = vmul.f32 %v5910, %v5910
  %v5927 = vmul.f32 %v5911, %v5911
  %v5928 = vmul.f32 %v5912, %v5912
  %v5929 = vsel %vm1486, %v5913, 0.0
  %v5930 = vsel %vm1486, %v5914, 0.0
  %v5931 = vadd.f32 %v5929, %v5930
  %v5932 = vsel %vm1486, %v5915, 0.0
  %v5933 = vadd.f32 %v5931, %v5932
  %v5934 = vsel %vm1486, %v5916, 0.0
  %v5935 = vadd.f32 %v5933, %v5934
  %v5936 = vsel %vm1486, %v5917, 0.0
  %v5937 = vadd.f32 %v5935, %v5936
  %v5938 = vsel %vm1486, %v5918, 0.0
  %v5939 = vadd.f32 %v5937, %v5938
  %v5940 = vsel %vm1486, %v5919, 0.0
  %v5941 = vadd.f32 %v5939, %v5940
  %v5942 = vsel %vm1486, %v5920, 0.0
  %v5943 = vadd.f32 %v5941, %v5942
  %v5944 = vsel %vm1486, %v5921, 0.0
  %v5945 = vadd.f32 %v5943, %v5944
  %v5946 = vsel %vm1486, %v5922, 0.0
  %v5947 = vadd.f32 %v5945, %v5946
  %v5948 = vsel %vm1486, %v5923, 0.0
  %v5949 = vadd.f32 %v5947, %v5948
  %v5950 = vsel %vm1486, %v5924, 0.0
  %v5951 = vadd.f32 %v5949, %v5950
  %v5952 = vsel %vm1486, %v5925, 0.0
  %v5953 = vadd.f32 %v5951, %v5952
  %v5954 = vsel %vm1486, %v5926, 0.0
  %v5955 = vadd.f32 %v5953, %v5954
  %v5956 = vsel %vm1486, %v5927, 0.0
  %v5957 = vadd.f32 %v5955, %v5956
  %v5958 = vsel %vm1486, %v5928, 0.0
  %v5959 = vadd.f32 %v5957, %v5958
  %v5960 = vrot.slane %v5959, 4
  %v5961 = vadd.f32 %v5959, %v5960
  %v5962 = vrot.slane %v5961, 2
  %v5963 = vadd.f32 %v5961, %v5962
  %v5964 = vrot.slane %v5963, 1
  %v5965 = vadd.f32 %v5963, %v5964
  %v5966 = vadd.f32 %v5896, %v5965
  %v5967 = vsub.f32 %v4981, %v5826
  %v5968 = vsub.f32 %v4982, %v5826
  %v5969 = vsub.f32 %v4983, %v5826
  %v5970 = vsub.f32 %v4984, %v5826
  %v5971 = vsub.f32 %v4985, %v5826
  %v5972 = vsub.f32 %v4986, %v5826
  %v5973 = vsub.f32 %v4987, %v5826
  %v5974 = vsub.f32 %v4988, %v5826
  %v5975 = vsub.f32 %v4989, %v5826
  %v5976 = vsub.f32 %v4990, %v5826
  %v5977 = vsub.f32 %v4991, %v5826
  %v5978 = vsub.f32 %v4992, %v5826
  %v5979 = vsub.f32 %v4993, %v5826
  %v5980 = vsub.f32 %v4994, %v5826
  %v5981 = vsub.f32 %v4995, %v5826
  %v5982 = vsub.f32 %v4996, %v5826
  %v5983 = vmul.f32 %v5967, %v5967
  %v5984 = vmul.f32 %v5968, %v5968
  %v5985 = vmul.f32 %v5969, %v5969
  %v5986 = vmul.f32 %v5970, %v5970
  %v5987 = vmul.f32 %v5971, %v5971
  %v5988 = vmul.f32 %v5972, %v5972
  %v5989 = vmul.f32 %v5973, %v5973
  %v5990 = vmul.f32 %v5974, %v5974
  %v5991 = vmul.f32 %v5975, %v5975
  %v5992 = vmul.f32 %v5976, %v5976
  %v5993 = vmul.f32 %v5977, %v5977
  %v5994 = vmul.f32 %v5978, %v5978
  %v5995 = vmul.f32 %v5979, %v5979
  %v5996 = vmul.f32 %v5980, %v5980
  %v5997 = vmul.f32 %v5981, %v5981
  %v5998 = vmul.f32 %v5982, %v5982
  %v5999 = vsel %vm1486, %v5983, 0.0
  %v6000 = vsel %vm1486, %v5984, 0.0
  %v6001 = vadd.f32 %v5999, %v6000
  %v6002 = vsel %vm1486, %v5985, 0.0
  %v6003 = vadd.f32 %v6001, %v6002
  %v6004 = vsel %vm1486, %v5986, 0.0
  %v6005 = vadd.f32 %v6003, %v6004
  %v6006 = vsel %vm1486, %v5987, 0.0
  %v6007 = vadd.f32 %v6005, %v6006
  %v6008 = vsel %vm1486, %v5988, 0.0
  %v6009 = vadd.f32 %v6007, %v6008
  %v6010 = vsel %vm1486, %v5989, 0.0
  %v6011 = vadd.f32 %v6009, %v6010
  %v6012 = vsel %vm1486, %v5990, 0.0
  %v6013 = vadd.f32 %v6011, %v6012
  %v6014 = vsel %vm1486, %v5991, 0.0
  %v6015 = vadd.f32 %v6013, %v6014
  %v6016 = vsel %vm1486, %v5992, 0.0
  %v6017 = vadd.f32 %v6015, %v6016
  %v6018 = vsel %vm1486, %v5993, 0.0
  %v6019 = vadd.f32 %v6017, %v6018
  %v6020 = vsel %vm1486, %v5994, 0.0
  %v6021 = vadd.f32 %v6019, %v6020
  %v6022 = vsel %vm1486, %v5995, 0.0
  %v6023 = vadd.f32 %v6021, %v6022
  %v6024 = vsel %vm1486, %v5996, 0.0
  %v6025 = vadd.f32 %v6023, %v6024
  %v6026 = vsel %vm1486, %v5997, 0.0
  %v6027 = vadd.f32 %v6025, %v6026
  %v6028 = vsel %vm1486, %v5998, 0.0
  %v6029 = vadd.f32 %v6027, %v6028
  %v6030 = vrot.slane %v6029, 4
  %v6031 = vadd.f32 %v6029, %v6030
  %v6032 = vrot.slane %v6031, 2
  %v6033 = vadd.f32 %v6031, %v6032
  %v6034 = vrot.slane %v6033, 1
  %v6035 = vadd.f32 %v6033, %v6034
  %v6036 = vadd.f32 %v5966, %v6035
  %v6037 = vsub.f32 %v5656, %v5826
  %v6038 = vsub.f32 %v5657, %v5826
  %v6039 = vsub.f32 %v5658, %v5826
  %v6040 = vsub.f32 %v5659, %v5826
  %v6041 = vsub.f32 %v5660, %v5826
  %v6042 = vsub.f32 %v5661, %v5826
  %v6043 = vsub.f32 %v5662, %v5826
  %v6044 = vsub.f32 %v5663, %v5826
  %v6045 = vsub.f32 %v5664, %v5826
  %v6046 = vsub.f32 %v5665, %v5826
  %v6047 = vsub.f32 %v5666, %v5826
  %v6048 = vsub.f32 %v5667, %v5826
  %v6049 = vsub.f32 %v5668, %v5826
  %v6050 = vsub.f32 %v5669, %v5826
  %v6051 = vsub.f32 %v5670, %v5826
  %v6052 = vsub.f32 %v5671, %v5826
  %v6053 = vmul.f32 %v6037, %v6037
  %v6054 = vmul.f32 %v6038, %v6038
  %v6055 = vmul.f32 %v6039, %v6039
  %v6056 = vmul.f32 %v6040, %v6040
  %v6057 = vmul.f32 %v6041, %v6041
  %v6058 = vmul.f32 %v6042, %v6042
  %v6059 = vmul.f32 %v6043, %v6043
  %v6060 = vmul.f32 %v6044, %v6044
  %v6061 = vmul.f32 %v6045, %v6045
  %v6062 = vmul.f32 %v6046, %v6046
  %v6063 = vmul.f32 %v6047, %v6047
  %v6064 = vmul.f32 %v6048, %v6048
  %v6065 = vmul.f32 %v6049, %v6049
  %v6066 = vmul.f32 %v6050, %v6050
  %v6067 = vmul.f32 %v6051, %v6051
  %v6068 = vmul.f32 %v6052, %v6052
  %v6069 = vsel %vm1486, %v6053, 0.0
  %v6070 = vsel %vm1486, %v6054, 0.0
  %v6071 = vadd.f32 %v6069, %v6070
  %v6072 = vsel %vm1486, %v6055, 0.0
  %v6073 = vadd.f32 %v6071, %v6072
  %v6074 = vsel %vm1486, %v6056, 0.0
  %v6075 = vadd.f32 %v6073, %v6074
  %v6076 = vsel %vm1486, %v6057, 0.0
  %v6077 = vadd.f32 %v6075, %v6076
  %v6078 = vsel %vm1486, %v6058, 0.0
  %v6079 = vadd.f32 %v6077, %v6078
  %v6080 = vsel %vm1486, %v6059, 0.0
  %v6081 = vadd.f32 %v6079, %v6080
  %v6082 = vsel %vm1486, %v6060, 0.0
  %v6083 = vadd.f32 %v6081, %v6082
  %v6084 = vsel %vm1486, %v6061, 0.0
  %v6085 = vadd.f32 %v6083, %v6084
  %v6086 = vsel %vm1486, %v6062, 0.0
  %v6087 = vadd.f32 %v6085, %v6086
  %v6088 = vsel %vm1486, %v6063, 0.0
  %v6089 = vadd.f32 %v6087, %v6088
  %v6090 = vsel %vm1486, %v6064, 0.0
  %v6091 = vadd.f32 %v6089, %v6090
  %v6092 = vsel %vm1486, %v6065, 0.0
  %v6093 = vadd.f32 %v6091, %v6092
  %v6094 = vsel %vm1486, %v6066, 0.0
  %v6095 = vadd.f32 %v6093, %v6094
  %v6096 = vsel %vm1486, %v6067, 0.0
  %v6097 = vadd.f32 %v6095, %v6096
  %v6098 = vsel %vm1486, %v6068, 0.0
  %v6099 = vadd.f32 %v6097, %v6098
  %v6100 = vrot.slane %v6099, 4
  %v6101 = vadd.f32 %v6099, %v6100
  %v6102 = vrot.slane %v6101, 2
  %v6103 = vadd.f32 %v6101, %v6102
  %v6104 = vrot.slane %v6103, 1
  %v6105 = vadd.f32 %v6103, %v6104
  %v6106 = vadd.f32 %v6036, %v6105
  %v6107 = vmul.f32 %v6106, 0.001953125
  %v6108 = vadd.f32 %v6107, 1e-05
  %v6109 = vrsqrt.pop %v6108
  %v6110 = vmul.f32 %v5672, %v6109
  %v6111 = vmul.f32 %v5826, %v6110
  %v6112 = vsub.f32 %v5673, %v6111
  %v6114 = vlaneseq
  %v6115 = vshrl.u32 %v6114, 7
  %v6116 = vsub.s32 0, %v6115
  %v6117 = vrot.slane %v6110, %v6116
  %v6119 = vmul.f32 %v2797, %v6117
  %v6120 = vmul.f32 %v2798, %v6117
  %v6121 = vmul.f32 %v2799, %v6117
  %v6122 = vmul.f32 %v2800, %v6117
  %v6123 = vmul.f32 %v2801, %v6117
  %v6124 = vmul.f32 %v2802, %v6117
  %v6125 = vmul.f32 %v2803, %v6117
  %v6126 = vmul.f32 %v2804, %v6117
  %v6127 = vmul.f32 %v2805, %v6117
  %v6128 = vmul.f32 %v2806, %v6117
  %v6129 = vmul.f32 %v2807, %v6117
  %v6130 = vmul.f32 %v2808, %v6117
  %v6131 = vmul.f32 %v2809, %v6117
  %v6132 = vmul.f32 %v2810, %v6117
  %v6133 = vmul.f32 %v2811, %v6117
  %v6134 = vmul.f32 %v2812, %v6117
  %v6136 = vlaneseq
  %v6137 = vshrl.u32 %v6136, 7
  %v6138 = vsub.s32 0, %v6137
  %v6139 = vrot.slane %v6112, %v6138
  %v6141 = vadd.f32 %v6119, %v6139
  %v6142 = vadd.f32 %v6120, %v6139
  %v6143 = vadd.f32 %v6121, %v6139
  %v6144 = vadd.f32 %v6122, %v6139
  %v6145 = vadd.f32 %v6123, %v6139
  %v6146 = vadd.f32 %v6124, %v6139
  %v6147 = vadd.f32 %v6125, %v6139
  %v6148 = vadd.f32 %v6126, %v6139
  %v6149 = vadd.f32 %v6127, %v6139
  %v6150 = vadd.f32 %v6128, %v6139
  %v6151 = vadd.f32 %v6129, %v6139
  %v6152 = vadd.f32 %v6130, %v6139
  %v6153 = vadd.f32 %v6131, %v6139
  %v6154 = vadd.f32 %v6132, %v6139
  %v6155 = vadd.f32 %v6133, %v6139
  %v6156 = vadd.f32 %v6134, %v6139
  %v6157 = vmax.f32 %v6141, 0.0
  %v6158 = vmax.f32 %v6142, 0.0
  %v6159 = vmax.f32 %v6143, 0.0
  %v6160 = vmax.f32 %v6144, 0.0
  %v6161 = vmax.f32 %v6145, 0.0
  %v6162 = vmax.f32 %v6146, 0.0
  %v6163 = vmax.f32 %v6147, 0.0
  %v6164 = vmax.f32 %v6148, 0.0
  %v6165 = vmax.f32 %v6149, 0.0
  %v6166 = vmax.f32 %v6150, 0.0
  %v6167 = vmax.f32 %v6151, 0.0
  %v6168 = vmax.f32 %v6152, 0.0
  %v6169 = vmax.f32 %v6153, 0.0
  %v6170 = vmax.f32 %v6154, 0.0
  %v6171 = vmax.f32 %v6155, 0.0
  %v6172 = vmax.f32 %v6156, 0.0
  %v6173 = vmul.f32 %v4208, %v6117
  %v6174 = vmul.f32 %v4209, %v6117
  %v6175 = vmul.f32 %v4210, %v6117
  %v6176 = vmul.f32 %v4211, %v6117
  %v6177 = vmul.f32 %v4212, %v6117
  %v6178 = vmul.f32 %v4213, %v6117
  %v6179 = vmul.f32 %v4214, %v6117
  %v6180 = vmul.f32 %v4215, %v6117
  %v6181 = vmul.f32 %v4216, %v6117
  %v6182 = vmul.f32 %v4217, %v6117
  %v6183 = vmul.f32 %v4218, %v6117
  %v6184 = vmul.f32 %v4219, %v6117
  %v6185 = vmul.f32 %v4220, %v6117
  %v6186 = vmul.f32 %v4221, %v6117
  %v6187 = vmul.f32 %v4222, %v6117
  %v6188 = vmul.f32 %v4223, %v6117
  %v6189 = vadd.f32 %v6173, %v6139
  %v6190 = vadd.f32 %v6174, %v6139
  %v6191 = vadd.f32 %v6175, %v6139
  %v6192 = vadd.f32 %v6176, %v6139
  %v6193 = vadd.f32 %v6177, %v6139
  %v6194 = vadd.f32 %v6178, %v6139
  %v6195 = vadd.f32 %v6179, %v6139
  %v6196 = vadd.f32 %v6180, %v6139
  %v6197 = vadd.f32 %v6181, %v6139
  %v6198 = vadd.f32 %v6182, %v6139
  %v6199 = vadd.f32 %v6183, %v6139
  %v6200 = vadd.f32 %v6184, %v6139
  %v6201 = vadd.f32 %v6185, %v6139
  %v6202 = vadd.f32 %v6186, %v6139
  %v6203 = vadd.f32 %v6187, %v6139
  %v6204 = vadd.f32 %v6188, %v6139
  %v6205 = vmax.f32 %v6189, 0.0
  %v6206 = vmax.f32 %v6190, 0.0
  %v6207 = vmax.f32 %v6191, 0.0
  %v6208 = vmax.f32 %v6192, 0.0
  %v6209 = vmax.f32 %v6193, 0.0
  %v6210 = vmax.f32 %v6194, 0.0
  %v6211 = vmax.f32 %v6195, 0.0
  %v6212 = vmax.f32 %v6196, 0.0
  %v6213 = vmax.f32 %v6197, 0.0
  %v6214 = vmax.f32 %v6198, 0.0
  %v6215 = vmax.f32 %v6199, 0.0
  %v6216 = vmax.f32 %v6200, 0.0
  %v6217 = vmax.f32 %v6201, 0.0
  %v6218 = vmax.f32 %v6202, 0.0
  %v6219 = vmax.f32 %v6203, 0.0
  %v6220 = vmax.f32 %v6204, 0.0
  %v6221 = vmul.f32 %v4981, %v6117
  %v6222 = vmul.f32 %v4982, %v6117
  %v6223 = vmul.f32 %v4983, %v6117
  %v6224 = vmul.f32 %v4984, %v6117
  %v6225 = vmul.f32 %v4985, %v6117
  %v6226 = vmul.f32 %v4986, %v6117
  %v6227 = vmul.f32 %v4987, %v6117
  %v6228 = vmul.f32 %v4988, %v6117
  %v6229 = vmul.f32 %v4989, %v6117
  %v6230 = vmul.f32 %v4990, %v6117
  %v6231 = vmul.f32 %v4991, %v6117
  %v6232 = vmul.f32 %v4992, %v6117
  %v6233 = vmul.f32 %v4993, %v6117
  %v6234 = vmul.f32 %v4994, %v6117
  %v6235 = vmul.f32 %v4995, %v6117
  %v6236 = vmul.f32 %v4996, %v6117
  %v6237 = vadd.f32 %v6221, %v6139
  %v6238 = vadd.f32 %v6222, %v6139
  %v6239 = vadd.f32 %v6223, %v6139
  %v6240 = vadd.f32 %v6224, %v6139
  %v6241 = vadd.f32 %v6225, %v6139
  %v6242 = vadd.f32 %v6226, %v6139
  %v6243 = vadd.f32 %v6227, %v6139
  %v6244 = vadd.f32 %v6228, %v6139
  %v6245 = vadd.f32 %v6229, %v6139
  %v6246 = vadd.f32 %v6230, %v6139
  %v6247 = vadd.f32 %v6231, %v6139
  %v6248 = vadd.f32 %v6232, %v6139
  %v6249 = vadd.f32 %v6233, %v6139
  %v6250 = vadd.f32 %v6234, %v6139
  %v6251 = vadd.f32 %v6235, %v6139
  %v6252 = vadd.f32 %v6236, %v6139
  %v6253 = vmax.f32 %v6237, 0.0
  %v6254 = vmax.f32 %v6238, 0.0
  %v6255 = vmax.f32 %v6239, 0.0
  %v6256 = vmax.f32 %v6240, 0.0
  %v6257 = vmax.f32 %v6241, 0.0
  %v6258 = vmax.f32 %v6242, 0.0
  %v6259 = vmax.f32 %v6243, 0.0
  %v6260 = vmax.f32 %v6244, 0.0
  %v6261 = vmax.f32 %v6245, 0.0
  %v6262 = vmax.f32 %v6246, 0.0
  %v6263 = vmax.f32 %v6247, 0.0
  %v6264 = vmax.f32 %v6248, 0.0
  %v6265 = vmax.f32 %v6249, 0.0
  %v6266 = vmax.f32 %v6250, 0.0
  %v6267 = vmax.f32 %v6251, 0.0
  %v6268 = vmax.f32 %v6252, 0.0
  %v6269 = vmul.f32 %v5656, %v6117
  %v6270 = vmul.f32 %v5657, %v6117
  %v6271 = vmul.f32 %v5658, %v6117
  %v6272 = vmul.f32 %v5659, %v6117
  %v6273 = vmul.f32 %v5660, %v6117
  %v6274 = vmul.f32 %v5661, %v6117
  %v6275 = vmul.f32 %v5662, %v6117
  %v6276 = vmul.f32 %v5663, %v6117
  %v6277 = vmul.f32 %v5664, %v6117
  %v6278 = vmul.f32 %v5665, %v6117
  %v6279 = vmul.f32 %v5666, %v6117
  %v6280 = vmul.f32 %v5667, %v6117
  %v6281 = vmul.f32 %v5668, %v6117
  %v6282 = vmul.f32 %v5669, %v6117
  %v6283 = vmul.f32 %v5670, %v6117
  %v6284 = vmul.f32 %v5671, %v6117
  %v6285 = vadd.f32 %v6269, %v6139
  %v6286 = vadd.f32 %v6270, %v6139
  %v6287 = vadd.f32 %v6271, %v6139
  %v6288 = vadd.f32 %v6272, %v6139
  %v6289 = vadd.f32 %v6273, %v6139
  %v6290 = vadd.f32 %v6274, %v6139
  %v6291 = vadd.f32 %v6275, %v6139
  %v6292 = vadd.f32 %v6276, %v6139
  %v6293 = vadd.f32 %v6277, %v6139
  %v6294 = vadd.f32 %v6278, %v6139
  %v6295 = vadd.f32 %v6279, %v6139
  %v6296 = vadd.f32 %v6280, %v6139
  %v6297 = vadd.f32 %v6281, %v6139
  %v6298 = vadd.f32 %v6282, %v6139
  %v6299 = vadd.f32 %v6283, %v6139
  %v6300 = vadd.f32 %v6284, %v6139
  %v6301 = vmax.f32 %v6285, 0.0
  %v6302 = vmax.f32 %v6286, 0.0
  %v6303 = vmax.f32 %v6287, 0.0
  %v6304 = vmax.f32 %v6288, 0.0
  %v6305 = vmax.f32 %v6289, 0.0
  %v6306 = vmax.f32 %v6290, 0.0
  %v6307 = vmax.f32 %v6291, 0.0
  %v6308 = vmax.f32 %v6292, 0.0
  %v6309 = vmax.f32 %v6293, 0.0
  %v6310 = vmax.f32 %v6294, 0.0
  %v6311 = vmax.f32 %v6295, 0.0
  %v6312 = vmax.f32 %v6296, 0.0
  %v6313 = vmax.f32 %v6297, 0.0
  %v6314 = vmax.f32 %v6298, 0.0
  %v6315 = vmax.f32 %v6299, 0.0
  %v6316 = vmax.f32 %v6300, 0.0
  %6317 = vst.msk [vmem:[#allocation3] sm:$0xf] %vm270, 0
  %v6318 = vld [vmem:[#allocation3 + $0x4] sm:$0x1]
  %v6319 = vsel %vm274, 0, %v6318
  %6320 = vst [vmem:[#allocation3 + $0x4] sm:$0x1] %v6319
  %6321 = vst.msk [vmem:[#allocation3 + $0x8] sm:$0xf] %vm270, 0
  %v6322 = vld [vmem:[#allocation3 + $0xc] sm:$0x1]
  %v6323 = vsel %vm274, 0, %v6322
  %6324 = vst [vmem:[#allocation3 + $0xc] sm:$0x1] %v6323
  %6325 = vst.msk [vmem:[#allocation3 + $0x120] sm:$0xf] %vm270, 0
  %v6326 = vld [vmem:[#allocation3 + $0x124] sm:$0x1]
  %v6327 = vsel %vm274, 0, %v6326
  %6328 = vst [vmem:[#allocation3 + $0x124] sm:$0x1] %v6327
  %6329 = vst.msk [vmem:[#allocation3 + $0x128] sm:$0xf] %vm270, 0
  %v6330 = vld [vmem:[#allocation3 + $0x12c] sm:$0x1]
  %v6331 = vsel %vm274, 0, %v6330
  %6332 = vst [vmem:[#allocation3 + $0x12c] sm:$0x1] %v6331
  %s6333 = scalar_lea.vmem [#allocation3], 272
  %6334 = vst.msk [vmem:[%s6333] sm:$0xf] %vm270, 0
  %v6335 = vld [vmem:[%s6333 + $0x4] sm:$0x1]
  %v6336 = vsel %vm274, 0, %v6335
  %6337 = vst [vmem:[%s6333 + $0x4] sm:$0x1] %v6336
  %6338 = vst.msk [vmem:[%s6333 + $0x8] sm:$0xf] %vm270, 0
  %v6339 = vld [vmem:[%s6333 + $0xc] sm:$0x1]
  %v6340 = vsel %vm274, 0, %v6339
  %6341 = vst [vmem:[%s6333 + $0xc] sm:$0x1] %v6340
  %6342 = vst.msk [vmem:[%s6333 + $0x120] sm:$0xf] %vm270, 0
  %v6343 = vld [vmem:[%s6333 + $0x124] sm:$0x1]
  %v6344 = vsel %vm274, 0, %v6343
  %6345 = vst [vmem:[%s6333 + $0x124] sm:$0x1] %v6344
  %6346 = vst.msk [vmem:[%s6333 + $0x128] sm:$0xf] %vm270, 0
  %v6347 = vld [vmem:[%s6333 + $0x12c] sm:$0x1]
  %v6348 = vsel %vm274, 0, %v6347
  %6349 = vst [vmem:[%s6333 + $0x12c] sm:$0x1] %v6348
  %v6350 = vld [vmem:[#allocation3] sm:$0x1]
  %v6351 = vsel %vm274, 0, %v6350
  %6352 = vst [vmem:[#allocation3] sm:$0x1] %v6351
  %v6353 = vld [vmem:[#allocation3 + $0x10] sm:$0x1]
  %v6354 = vsel %vm274, 0, %v6353
  %6355 = vst [vmem:[#allocation3 + $0x10] sm:$0x1] %v6354
  %v6356 = vld [vmem:[#allocation3 + $0x20] sm:$0x1]
  %v6357 = vsel %vm274, 0, %v6356
  %6358 = vst [vmem:[#allocation3 + $0x20] sm:$0x1] %v6357
  %v6359 = vld [vmem:[#allocation3 + $0x30] sm:$0x1]
  %v6360 = vsel %vm274, 0, %v6359
  %6361 = vst [vmem:[#allocation3 + $0x30] sm:$0x1] %v6360
  %v6362 = vld [vmem:[#allocation3 + $0x40] sm:$0x1]
  %v6363 = vsel %vm274, 0, %v6362
  %6364 = vst [vmem:[#allocation3 + $0x40] sm:$0x1] %v6363
  %v6365 = vld [vmem:[#allocation3 + $0x50] sm:$0x1]
  %v6366 = vsel %vm274, 0, %v6365
  %6367 = vst [vmem:[#allocation3 + $0x50] sm:$0x1] %v6366
  %v6368 = vld [vmem:[#allocation3 + $0x60] sm:$0x1]
  %v6369 = vsel %vm274, 0, %v6368
  %6370 = vst [vmem:[#allocation3 + $0x60] sm:$0x1] %v6369
  %v6371 = vld [vmem:[#allocation3 + $0x70] sm:$0x1]
  %v6372 = vsel %vm274, 0, %v6371
  %6373 = vst [vmem:[#allocation3 + $0x70] sm:$0x1] %v6372
  %v6374 = vld [vmem:[#allocation3 + $0x80] sm:$0x1]
  %v6375 = vsel %vm274, 0, %v6374
  %6376 = vst [vmem:[#allocation3 + $0x80] sm:$0x1] %v6375
  %v6377 = vld [vmem:[#allocation3 + $0x90] sm:$0x1]
  %v6378 = vsel %vm274, 0, %v6377
  %6379 = vst [vmem:[#allocation3 + $0x90] sm:$0x1] %v6378
  %v6380 = vld [vmem:[#allocation3 + $0xa0] sm:$0x1]
  %v6381 = vsel %vm274, 0, %v6380
  %6382 = vst [vmem:[#allocation3 + $0xa0] sm:$0x1] %v6381
  %v6383 = vld [vmem:[#allocation3 + $0xb0] sm:$0x1]
  %v6384 = vsel %vm274, 0, %v6383
  %6385 = vst [vmem:[#allocation3 + $0xb0] sm:$0x1] %v6384
  %v6386 = vld [vmem:[#allocation3 + $0xc0] sm:$0x1]
  %v6387 = vsel %vm274, 0, %v6386
  %6388 = vst [vmem:[#allocation3 + $0xc0] sm:$0x1] %v6387
  %v6389 = vld [vmem:[#allocation3 + $0xd0] sm:$0x1]
  %v6390 = vsel %vm274, 0, %v6389
  %6391 = vst [vmem:[#allocation3 + $0xd0] sm:$0x1] %v6390
  %v6392 = vld [vmem:[#allocation3 + $0xe0] sm:$0x1]
  %v6393 = vsel %vm274, 0, %v6392
  %6394 = vst [vmem:[#allocation3 + $0xe0] sm:$0x1] %v6393
  %v6395 = vld [vmem:[#allocation3 + $0xf0] sm:$0x1]
  %v6396 = vsel %vm274, 0, %v6395
  %6397 = vst [vmem:[#allocation3 + $0xf0] sm:$0x1] %v6396
  %v6398 = vld [vmem:[#allocation3 + $0x100] sm:$0x1]
  %v6399 = vsel %vm274, 0, %v6398
  %6400 = vst [vmem:[#allocation3 + $0x100] sm:$0x1] %v6399
  %v6401 = vld [vmem:[#allocation3 + $0x110] sm:$0x1]
  %v6402 = vsel %vm274, 0, %v6401
  %6403 = vst [vmem:[#allocation3 + $0x110] sm:$0x1] %v6402
  %v6404 = vld [vmem:[#allocation3 + $0x120] sm:$0x1]
  %v6405 = vsel %vm274, 0, %v6404
  %6406 = vst [vmem:[#allocation3 + $0x120] sm:$0x1] %v6405
  %v6407 = vld [vmem:[#allocation3 + $0x130] sm:$0x1]
  %v6408 = vsel %vm274, 0, %v6407
  %6409 = vst [vmem:[#allocation3 + $0x130] sm:$0x1] %v6408
  %v6410 = vld [vmem:[#allocation3 + $0x140] sm:$0x1]
  %v6411 = vsel %vm274, 0, %v6410
  %6412 = vst [vmem:[#allocation3 + $0x140] sm:$0x1] %v6411
  %v6413 = vld [vmem:[#allocation3 + $0x150] sm:$0x1]
  %v6414 = vsel %vm274, 0, %v6413
  %6415 = vst [vmem:[#allocation3 + $0x150] sm:$0x1] %v6414
  %v6416 = vld [vmem:[#allocation3 + $0x160] sm:$0x1]
  %v6417 = vsel %vm274, 0, %v6416
  %6418 = vst [vmem:[#allocation3 + $0x160] sm:$0x1] %v6417
  %v6419 = vld [vmem:[#allocation3 + $0x170] sm:$0x1]
  %v6420 = vsel %vm274, 0, %v6419
  %6421 = vst [vmem:[#allocation3 + $0x170] sm:$0x1] %v6420
  %v6422 = vld [vmem:[#allocation3 + $0x180] sm:$0x1]
  %v6423 = vsel %vm274, 0, %v6422
  %6424 = vst [vmem:[#allocation3 + $0x180] sm:$0x1] %v6423
  %v6425 = vld [vmem:[#allocation3 + $0x190] sm:$0x1]
  %v6426 = vsel %vm274, 0, %v6425
  %6427 = vst [vmem:[#allocation3 + $0x190] sm:$0x1] %v6426
  %v6428 = vld [vmem:[#allocation3 + $0x1a0] sm:$0x1]
  %v6429 = vsel %vm274, 0, %v6428
  %6430 = vst [vmem:[#allocation3 + $0x1a0] sm:$0x1] %v6429
  %v6431 = vld [vmem:[#allocation3 + $0x1b0] sm:$0x1]
  %v6432 = vsel %vm274, 0, %v6431
  %6433 = vst [vmem:[#allocation3 + $0x1b0] sm:$0x1] %v6432
  %v6434 = vld [vmem:[#allocation3 + $0x1c0] sm:$0x1]
  %v6435 = vsel %vm274, 0, %v6434
  %6436 = vst [vmem:[#allocation3 + $0x1c0] sm:$0x1] %v6435
  %v6437 = vld [vmem:[#allocation3 + $0x1d0] sm:$0x1]
  %v6438 = vsel %vm274, 0, %v6437
  %6439 = vst [vmem:[#allocation3 + $0x1d0] sm:$0x1] %v6438
  %v6440 = vld [vmem:[#allocation3 + $0x1e0] sm:$0x1]
  %v6441 = vsel %vm274, 0, %v6440
  %6442 = vst [vmem:[#allocation3 + $0x1e0] sm:$0x1] %v6441
  %v6443 = vld [vmem:[#allocation3 + $0x1f0] sm:$0x1]
  %v6444 = vsel %vm274, 0, %v6443
  %6445 = vst [vmem:[#allocation3 + $0x1f0] sm:$0x1] %v6444
  %v6446 = vld [vmem:[#allocation3 + $0x200] sm:$0x1]
  %v6447 = vsel %vm274, 0, %v6446
  %6448 = vst [vmem:[#allocation3 + $0x200] sm:$0x1] %v6447
  %v6449 = vld [vmem:[#allocation3 + $0x210] sm:$0x1]
  %v6450 = vsel %vm274, 0, %v6449
  %6451 = vst [vmem:[#allocation3 + $0x210] sm:$0x1] %v6450
  %v6452 = vld [vmem:[#allocation3 + $0x220] sm:$0x1]
  %v6453 = vsel %vm274, 0, %v6452
  %6454 = vst [vmem:[#allocation3 + $0x220] sm:$0x1] %v6453
  %v6455 = vld [vmem:[#allocation3 + $0x230] sm:$0x1]
  %v6456 = vsel %vm274, 0, %v6455
  %6457 = vst [vmem:[#allocation3 + $0x230] sm:$0x1] %v6456
  %s6458 = scalar_lea.vmem [#allocation3], 8
  %v6459 = vld [vmem:[%s6458 + $0x4] sm:$0x1]
  %v6460 = vsel %vm274, 0, %v6459
  %6461 = vst [vmem:[%s6458 + $0x4] sm:$0x1] %v6460
  %v6462 = vld [vmem:[%s6458 + $0x14] sm:$0x1]
  %v6463 = vsel %vm274, 0, %v6462
  %6464 = vst [vmem:[%s6458 + $0x14] sm:$0x1] %v6463
  %v6465 = vld [vmem:[%s6458 + $0x24] sm:$0x1]
  %v6466 = vsel %vm274, 0, %v6465
  %6467 = vst [vmem:[%s6458 + $0x24] sm:$0x1] %v6466
  %v6468 = vld [vmem:[%s6458 + $0x34] sm:$0x1]
  %v6469 = vsel %vm274, 0, %v6468
  %6470 = vst [vmem:[%s6458 + $0x34] sm:$0x1] %v6469
  %v6471 = vld [vmem:[%s6458 + $0x44] sm:$0x1]
  %v6472 = vsel %vm274, 0, %v6471
  %6473 = vst [vmem:[%s6458 + $0x44] sm:$0x1] %v6472
  %v6474 = vld [vmem:[%s6458 + $0x54] sm:$0x1]
  %v6475 = vsel %vm274, 0, %v6474
  %6476 = vst [vmem:[%s6458 + $0x54] sm:$0x1] %v6475
  %v6477 = vld [vmem:[%s6458 + $0x64] sm:$0x1]
  %v6478 = vsel %vm274, 0, %v6477
  %6479 = vst [vmem:[%s6458 + $0x64] sm:$0x1] %v6478
  %v6480 = vld [vmem:[%s6458 + $0x74] sm:$0x1]
  %v6481 = vsel %vm274, 0, %v6480
  %6482 = vst [vmem:[%s6458 + $0x74] sm:$0x1] %v6481
  %v6483 = vld [vmem:[%s6458 + $0x84] sm:$0x1]
  %v6484 = vsel %vm274, 0, %v6483
  %6485 = vst [vmem:[%s6458 + $0x84] sm:$0x1] %v6484
  %v6486 = vld [vmem:[%s6458 + $0x94] sm:$0x1]
  %v6487 = vsel %vm274, 0, %v6486
  %6488 = vst [vmem:[%s6458 + $0x94] sm:$0x1] %v6487
  %v6489 = vld [vmem:[%s6458 + $0xa4] sm:$0x1]
  %v6490 = vsel %vm274, 0, %v6489
  %6491 = vst [vmem:[%s6458 + $0xa4] sm:$0x1] %v6490
  %v6492 = vld [vmem:[%s6458 + $0xb4] sm:$0x1]
  %v6493 = vsel %vm274, 0, %v6492
  %6494 = vst [vmem:[%s6458 + $0xb4] sm:$0x1] %v6493
  %v6495 = vld [vmem:[%s6458 + $0xc4] sm:$0x1]
  %v6496 = vsel %vm274, 0, %v6495
  %6497 = vst [vmem:[%s6458 + $0xc4] sm:$0x1] %v6496
  %v6498 = vld [vmem:[%s6458 + $0xd4] sm:$0x1]
  %v6499 = vsel %vm274, 0, %v6498
  %6500 = vst [vmem:[%s6458 + $0xd4] sm:$0x1] %v6499
  %v6501 = vld [vmem:[%s6458 + $0xe4] sm:$0x1]
  %v6502 = vsel %vm274, 0, %v6501
  %6503 = vst [vmem:[%s6458 + $0xe4] sm:$0x1] %v6502
  %v6504 = vld [vmem:[%s6458 + $0xf4] sm:$0x1]
  %v6505 = vsel %vm274, 0, %v6504
  %6506 = vst [vmem:[%s6458 + $0xf4] sm:$0x1] %v6505
  %v6507 = vld [vmem:[%s6458 + $0x104] sm:$0x1]
  %v6508 = vsel %vm274, 0, %v6507
  %6509 = vst [vmem:[%s6458 + $0x104] sm:$0x1] %v6508
  %v6510 = vld [vmem:[%s6458 + $0x114] sm:$0x1]
  %v6511 = vsel %vm274, 0, %v6510
  %6512 = vst [vmem:[%s6458 + $0x114] sm:$0x1] %v6511
  %v6513 = vld [vmem:[%s6458 + $0x124] sm:$0x1]
  %v6514 = vsel %vm274, 0, %v6513
  %6515 = vst [vmem:[%s6458 + $0x124] sm:$0x1] %v6514
  %v6516 = vld [vmem:[%s6458 + $0x134] sm:$0x1]
  %v6517 = vsel %vm274, 0, %v6516
  %6518 = vst [vmem:[%s6458 + $0x134] sm:$0x1] %v6517
  %v6519 = vld [vmem:[%s6458 + $0x144] sm:$0x1]
  %v6520 = vsel %vm274, 0, %v6519
  %6521 = vst [vmem:[%s6458 + $0x144] sm:$0x1] %v6520
  %v6522 = vld [vmem:[%s6458 + $0x154] sm:$0x1]
  %v6523 = vsel %vm274, 0, %v6522
  %6524 = vst [vmem:[%s6458 + $0x154] sm:$0x1] %v6523
  %v6525 = vld [vmem:[%s6458 + $0x164] sm:$0x1]
  %v6526 = vsel %vm274, 0, %v6525
  %6527 = vst [vmem:[%s6458 + $0x164] sm:$0x1] %v6526
  %v6528 = vld [vmem:[%s6458 + $0x174] sm:$0x1]
  %v6529 = vsel %vm274, 0, %v6528
  %6530 = vst [vmem:[%s6458 + $0x174] sm:$0x1] %v6529
  %v6531 = vld [vmem:[%s6458 + $0x184] sm:$0x1]
  %v6532 = vsel %vm274, 0, %v6531
  %6533 = vst [vmem:[%s6458 + $0x184] sm:$0x1] %v6532
  %v6534 = vld [vmem:[%s6458 + $0x194] sm:$0x1]
  %v6535 = vsel %vm274, 0, %v6534
  %6536 = vst [vmem:[%s6458 + $0x194] sm:$0x1] %v6535
  %v6537 = vld [vmem:[%s6458 + $0x1a4] sm:$0x1]
  %v6538 = vsel %vm274, 0, %v6537
  %6539 = vst [vmem:[%s6458 + $0x1a4] sm:$0x1] %v6538
  %v6540 = vld [vmem:[%s6458 + $0x1b4] sm:$0x1]
  %v6541 = vsel %vm274, 0, %v6540
  %6542 = vst [vmem:[%s6458 + $0x1b4] sm:$0x1] %v6541
  %v6543 = vld [vmem:[%s6458 + $0x1c4] sm:$0x1]
  %v6544 = vsel %vm274, 0, %v6543
  %6545 = vst [vmem:[%s6458 + $0x1c4] sm:$0x1] %v6544
  %v6546 = vld [vmem:[%s6458 + $0x1d4] sm:$0x1]
  %v6547 = vsel %vm274, 0, %v6546
  %6548 = vst [vmem:[%s6458 + $0x1d4] sm:$0x1] %v6547
  %v6549 = vld [vmem:[%s6458 + $0x1e4] sm:$0x1]
  %v6550 = vsel %vm274, 0, %v6549
  %6551 = vst [vmem:[%s6458 + $0x1e4] sm:$0x1] %v6550
  %v6552 = vld [vmem:[%s6458 + $0x1f4] sm:$0x1]
  %v6553 = vsel %vm274, 0, %v6552
  %6554 = vst [vmem:[%s6458 + $0x1f4] sm:$0x1] %v6553
  %v6555 = vld [vmem:[%s6458 + $0x204] sm:$0x1]
  %v6556 = vsel %vm274, 0, %v6555
  %6557 = vst [vmem:[%s6458 + $0x204] sm:$0x1] %v6556
  %v6558 = vld [vmem:[%s6458 + $0x214] sm:$0x1]
  %v6559 = vsel %vm274, 0, %v6558
  %6560 = vst [vmem:[%s6458 + $0x214] sm:$0x1] %v6559
  %v6561 = vld [vmem:[%s6458 + $0x224] sm:$0x1]
  %v6562 = vsel %vm274, 0, %v6561
  %6563 = vst [vmem:[%s6458 + $0x224] sm:$0x1] %v6562
  %v6564 = vld [vmem:[%s6458 + $0x234] sm:$0x1]
  %v6565 = vsel %vm274, 0, %v6564
  %6566 = vst [vmem:[%s6458 + $0x234] sm:$0x1] %v6565
  %v6567 = vpack.c.bf16 %v6157, %v6157
  %v6568 = vpack.c.bf16 %v6158, %v6158
  %v6569 = vpack.c.bf16 %v6159, %v6159
  %v6570 = vpack.c.bf16 %v6160, %v6160
  %v6571 = vpack.c.bf16 %v6161, %v6161
  %v6572 = vpack.c.bf16 %v6162, %v6162
  %v6573 = vpack.c.bf16 %v6163, %v6163
  %v6574 = vpack.c.bf16 %v6164, %v6164
  %v6575 = vpack.c.bf16 %v6165, %v6165
  %v6576 = vpack.c.bf16 %v6166, %v6166
  %v6577 = vpack.c.bf16 %v6167, %v6167
  %v6578 = vpack.c.bf16 %v6168, %v6168
  %v6579 = vpack.c.bf16 %v6169, %v6169
  %v6580 = vpack.c.bf16 %v6170, %v6170
  %v6581 = vpack.c.bf16 %v6171, %v6171
  %v6582 = vpack.c.bf16 %v6172, %v6172
  %s6583 = scalar_lea.vmem [#allocation3], 24
  %6584 = vst.msk [vmem:[%s6583] sm:$0xf] %vm270, %v6567
  %6585 = vst.msk [vmem:[%s6583 + $0x20] sm:$0xf] %vm270, %v6568
  %6586 = vst.msk [vmem:[%s6583 + $0x40] sm:$0xf] %vm270, %v6569
  %6587 = vst.msk [vmem:[%s6583 + $0x60] sm:$0xf] %vm270, %v6570
  %6588 = vst.msk [vmem:[%s6583 + $0x80] sm:$0xf] %vm270, %v6571
  %6589 = vst.msk [vmem:[%s6583 + $0xa0] sm:$0xf] %vm270, %v6572
  %6590 = vst.msk [vmem:[%s6583 + $0xc0] sm:$0xf] %vm270, %v6573
  %6591 = vst.msk [vmem:[%s6583 + $0xe0] sm:$0xf] %vm270, %v6574
  %6592 = vst.msk [vmem:[%s6583 + $0x120] sm:$0xf] %vm270, %v6575
  %6593 = vst.msk [vmem:[%s6583 + $0x140] sm:$0xf] %vm270, %v6576
  %6594 = vst.msk [vmem:[%s6583 + $0x160] sm:$0xf] %vm270, %v6577
  %6595 = vst.msk [vmem:[%s6583 + $0x180] sm:$0xf] %vm270, %v6578
  %6596 = vst.msk [vmem:[%s6583 + $0x1a0] sm:$0xf] %vm270, %v6579
  %6597 = vst.msk [vmem:[%s6583 + $0x1c0] sm:$0xf] %vm270, %v6580
  %6598 = vst.msk [vmem:[%s6583 + $0x1e0] sm:$0xf] %vm270, %v6581
  %6599 = vst.msk [vmem:[%s6583 + $0x200] sm:$0xf] %vm270, %v6582
  %v6600 = vpack.c.bf16 %v6205, %v6205
  %v6601 = vpack.c.bf16 %v6206, %v6206
  %v6602 = vpack.c.bf16 %v6207, %v6207
  %v6603 = vpack.c.bf16 %v6208, %v6208
  %v6604 = vpack.c.bf16 %v6209, %v6209
  %v6605 = vpack.c.bf16 %v6210, %v6210
  %v6606 = vpack.c.bf16 %v6211, %v6211
  %v6607 = vpack.c.bf16 %v6212, %v6212
  %v6608 = vpack.c.bf16 %v6213, %v6213
  %v6609 = vpack.c.bf16 %v6214, %v6214
  %v6610 = vpack.c.bf16 %v6215, %v6215
  %v6611 = vpack.c.bf16 %v6216, %v6216
  %v6612 = vpack.c.bf16 %v6217, %v6217
  %v6613 = vpack.c.bf16 %v6218, %v6218
  %v6614 = vpack.c.bf16 %v6219, %v6219
  %v6615 = vpack.c.bf16 %v6220, %v6220
  %v6632 = vunpack.c.l.b16 %v6600
  %v6633 = vunpack.c.l.b16 %v6601
  %v6634 = vunpack.c.l.b16 %v6602
  %v6635 = vunpack.c.l.b16 %v6603
  %v6636 = vunpack.c.l.b16 %v6604
  %v6637 = vunpack.c.l.b16 %v6605
  %v6638 = vunpack.c.l.b16 %v6606
  %v6639 = vunpack.c.l.b16 %v6607
  %v6640 = vunpack.c.l.b16 %v6608
  %v6641 = vunpack.c.l.b16 %v6609
  %v6642 = vunpack.c.l.b16 %v6610
  %v6643 = vunpack.c.l.b16 %v6611
  %v6644 = vunpack.c.l.b16 %v6612
  %v6645 = vunpack.c.l.b16 %v6613
  %v6646 = vunpack.c.l.b16 %v6614
  %v6647 = vunpack.c.l.b16 %v6615
  %v6648 = vpack.c.b16 %v6632, %v6632
  %v6649 = vpack.c.b16 %v6633, %v6633
  %v6650 = vpack.c.b16 %v6634, %v6634
  %v6651 = vpack.c.b16 %v6635, %v6635
  %v6652 = vpack.c.b16 %v6636, %v6636
  %v6653 = vpack.c.b16 %v6637, %v6637
  %v6654 = vpack.c.b16 %v6638, %v6638
  %v6655 = vpack.c.b16 %v6639, %v6639
  %v6656 = vpack.c.b16 %v6640, %v6640
  %v6657 = vpack.c.b16 %v6641, %v6641
  %v6658 = vpack.c.b16 %v6642, %v6642
  %v6659 = vpack.c.b16 %v6643, %v6643
  %v6660 = vpack.c.b16 %v6644, %v6644
  %v6661 = vpack.c.b16 %v6645, %v6645
  %v6662 = vpack.c.b16 %v6646, %v6646
  %v6663 = vpack.c.b16 %v6647, %v6647
  %v6665 = vshrl.u32 %v6648, 16
  %v6667 = vrot.slane %v6665, 7
  %v6668 = vshll.u32 %v6648, 16
  %v6670 = vor.u32 %v6667, %v6668
  %v6671 = vrot.slane %v6667, 4
  %v6673 = vshrl.u32 %v6649, 16
  %v6675 = vrot.slane %v6673, 7
  %v6676 = vshll.u32 %v6649, 16
  %v6678 = vor.u32 %v6675, %v6676
  %v6679 = vrot.slane %v6675, 4
  %v6681 = vshrl.u32 %v6650, 16
  %v6683 = vrot.slane %v6681, 7
  %v6684 = vshll.u32 %v6650, 16
  %v6686 = vor.u32 %v6683, %v6684
  %v6687 = vrot.slane %v6683, 4
  %v6689 = vshrl.u32 %v6651, 16
  %v6691 = vrot.slane %v6689, 7
  %v6692 = vshll.u32 %v6651, 16
  %v6694 = vor.u32 %v6691, %v6692
  %v6695 = vrot.slane %v6691, 4
  %v6697 = vshrl.u32 %v6652, 16
  %v6699 = vrot.slane %v6697, 7
  %v6700 = vshll.u32 %v6652, 16
  %v6702 = vor.u32 %v6699, %v6700
  %v6703 = vrot.slane %v6699, 4
  %v6705 = vshrl.u32 %v6653, 16
  %v6707 = vrot.slane %v6705, 7
  %v6708 = vshll.u32 %v6653, 16
  %v6710 = vor.u32 %v6707, %v6708
  %v6711 = vrot.slane %v6707, 4
  %v6713 = vshrl.u32 %v6654, 16
  %v6715 = vrot.slane %v6713, 7
  %v6716 = vshll.u32 %v6654, 16
  %v6718 = vor.u32 %v6715, %v6716
  %v6719 = vrot.slane %v6715, 4
  %v6721 = vshrl.u32 %v6655, 16
  %v6723 = vrot.slane %v6721, 7
  %v6724 = vshll.u32 %v6655, 16
  %v6726 = vor.u32 %v6723, %v6724
  %v6727 = vrot.slane %v6723, 4
  %v6729 = vshrl.u32 %v6656, 16
  %v6731 = vrot.slane %v6729, 7
  %v6732 = vshll.u32 %v6656, 16
  %v6734 = vor.u32 %v6731, %v6732
  %v6735 = vrot.slane %v6731, 4
  %v6737 = vshrl.u32 %v6657, 16
  %v6739 = vrot.slane %v6737, 7
  %v6740 = vshll.u32 %v6657, 16
  %v6742 = vor.u32 %v6739, %v6740
  %v6743 = vrot.slane %v6739, 4
  %v6745 = vshrl.u32 %v6658, 16
  %v6747 = vrot.slane %v6745, 7
  %v6748 = vshll.u32 %v6658, 16
  %v6750 = vor.u32 %v6747, %v6748
  %v6751 = vrot.slane %v6747, 4
  %v6753 = vshrl.u32 %v6659, 16
  %v6755 = vrot.slane %v6753, 7
  %v6756 = vshll.u32 %v6659, 16
  %v6758 = vor.u32 %v6755, %v6756
  %v6759 = vrot.slane %v6755, 4
  %v6761 = vshrl.u32 %v6660, 16
  %v6763 = vrot.slane %v6761, 7
  %v6764 = vshll.u32 %v6660, 16
  %v6766 = vor.u32 %v6763, %v6764
  %v6767 = vrot.slane %v6763, 4
  %v6769 = vshrl.u32 %v6661, 16
  %v6771 = vrot.slane %v6769, 7
  %v6772 = vshll.u32 %v6661, 16
  %v6774 = vor.u32 %v6771, %v6772
  %v6775 = vrot.slane %v6771, 4
  %v6777 = vshrl.u32 %v6662, 16
  %v6779 = vrot.slane %v6777, 7
  %v6780 = vshll.u32 %v6662, 16
  %v6782 = vor.u32 %v6779, %v6780
  %v6783 = vrot.slane %v6779, 4
  %v6785 = vshrl.u32 %v6663, 16
  %v6787 = vrot.slane %v6785, 7
  %v6788 = vshll.u32 %v6663, 16
  %v6790 = vor.u32 %v6787, %v6788
  %v6791 = vrot.slane %v6787, 4
  %s6824 = scalar_lea.vmem [#allocation3], 16
  %v6825 = vld [vmem:[%s6824] sm:$0xf]
  %v6826 = vsel %vm704, %v6670, %v6825
  %6827 = vst [vmem:[%s6824] sm:$0xf] %v6826
  %v6828 = vld [vmem:[%s6824 + $0x4] sm:$0x1]
  %v6829 = vsel %vm274, %v6671, %v6828
  %6830 = vst [vmem:[%s6824 + $0x4] sm:$0x1] %v6829
  %v6831 = vld [vmem:[%s6824 + $0x20] sm:$0xf]
  %v6832 = vsel %vm704, %v6678, %v6831
  %6833 = vst [vmem:[%s6824 + $0x20] sm:$0xf] %v6832
  %v6834 = vld [vmem:[%s6824 + $0x24] sm:$0x1]
  %v6835 = vsel %vm274, %v6679, %v6834
  %6836 = vst [vmem:[%s6824 + $0x24] sm:$0x1] %v6835
  %v6837 = vld [vmem:[%s6824 + $0x40] sm:$0xf]
  %v6838 = vsel %vm704, %v6686, %v6837
  %6839 = vst [vmem:[%s6824 + $0x40] sm:$0xf] %v6838
  %v6840 = vld [vmem:[%s6824 + $0x44] sm:$0x1]
  %v6841 = vsel %vm274, %v6687, %v6840
  %6842 = vst [vmem:[%s6824 + $0x44] sm:$0x1] %v6841
  %v6843 = vld [vmem:[%s6824 + $0x60] sm:$0xf]
  %v6844 = vsel %vm704, %v6694, %v6843
  %6845 = vst [vmem:[%s6824 + $0x60] sm:$0xf] %v6844
  %v6846 = vld [vmem:[%s6824 + $0x64] sm:$0x1]
  %v6847 = vsel %vm274, %v6695, %v6846
  %6848 = vst [vmem:[%s6824 + $0x64] sm:$0x1] %v6847
  %v6849 = vld [vmem:[%s6824 + $0x80] sm:$0xf]
  %v6850 = vsel %vm704, %v6702, %v6849
  %6851 = vst [vmem:[%s6824 + $0x80] sm:$0xf] %v6850
  %v6852 = vld [vmem:[%s6824 + $0x84] sm:$0x1]
  %v6853 = vsel %vm274, %v6703, %v6852
  %6854 = vst [vmem:[%s6824 + $0x84] sm:$0x1] %v6853
  %v6855 = vld [vmem:[%s6824 + $0xa0] sm:$0xf]
  %v6856 = vsel %vm704, %v6710, %v6855
  %6857 = vst [vmem:[%s6824 + $0xa0] sm:$0xf] %v6856
  %v6858 = vld [vmem:[%s6824 + $0xa4] sm:$0x1]
  %v6859 = vsel %vm274, %v6711, %v6858
  %6860 = vst [vmem:[%s6824 + $0xa4] sm:$0x1] %v6859
  %v6861 = vld [vmem:[%s6824 + $0xc0] sm:$0xf]
  %v6862 = vsel %vm704, %v6718, %v6861
  %6863 = vst [vmem:[%s6824 + $0xc0] sm:$0xf] %v6862
  %v6864 = vld [vmem:[%s6824 + $0xc4] sm:$0x1]
  %v6865 = vsel %vm274, %v6719, %v6864
  %6866 = vst [vmem:[%s6824 + $0xc4] sm:$0x1] %v6865
  %v6867 = vld [vmem:[%s6824 + $0xe0] sm:$0xf]
  %v6868 = vsel %vm704, %v6726, %v6867
  %6869 = vst [vmem:[%s6824 + $0xe0] sm:$0xf] %v6868
  %v6870 = vld [vmem:[%s6824 + $0xe4] sm:$0x1]
  %v6871 = vsel %vm274, %v6727, %v6870
  %6872 = vst [vmem:[%s6824 + $0xe4] sm:$0x1] %v6871
  %v6873 = vld [vmem:[%s6824 + $0x120] sm:$0xf]
  %v6874 = vsel %vm704, %v6734, %v6873
  %6875 = vst [vmem:[%s6824 + $0x120] sm:$0xf] %v6874
  %v6876 = vld [vmem:[%s6824 + $0x124] sm:$0x1]
  %v6877 = vsel %vm274, %v6735, %v6876
  %6878 = vst [vmem:[%s6824 + $0x124] sm:$0x1] %v6877
  %v6879 = vld [vmem:[%s6824 + $0x140] sm:$0xf]
  %v6880 = vsel %vm704, %v6742, %v6879
  %6881 = vst [vmem:[%s6824 + $0x140] sm:$0xf] %v6880
  %v6882 = vld [vmem:[%s6824 + $0x144] sm:$0x1]
  %v6883 = vsel %vm274, %v6743, %v6882
  %6884 = vst [vmem:[%s6824 + $0x144] sm:$0x1] %v6883
  %v6885 = vld [vmem:[%s6824 + $0x160] sm:$0xf]
  %v6886 = vsel %vm704, %v6750, %v6885
  %6887 = vst [vmem:[%s6824 + $0x160] sm:$0xf] %v6886
  %v6888 = vld [vmem:[%s6824 + $0x164] sm:$0x1]
  %v6889 = vsel %vm274, %v6751, %v6888
  %6890 = vst [vmem:[%s6824 + $0x164] sm:$0x1] %v6889
  %v6891 = vld [vmem:[%s6824 + $0x180] sm:$0xf]
  %v6892 = vsel %vm704, %v6758, %v6891
  %6893 = vst [vmem:[%s6824 + $0x180] sm:$0xf] %v6892
  %v6894 = vld [vmem:[%s6824 + $0x184] sm:$0x1]
  %v6895 = vsel %vm274, %v6759, %v6894
  %6896 = vst [vmem:[%s6824 + $0x184] sm:$0x1] %v6895
  %v6897 = vld [vmem:[%s6824 + $0x1a0] sm:$0xf]
  %v6898 = vsel %vm704, %v6766, %v6897
  %6899 = vst [vmem:[%s6824 + $0x1a0] sm:$0xf] %v6898
  %v6900 = vld [vmem:[%s6824 + $0x1a4] sm:$0x1]
  %v6901 = vsel %vm274, %v6767, %v6900
  %6902 = vst [vmem:[%s6824 + $0x1a4] sm:$0x1] %v6901
  %v6903 = vld [vmem:[%s6824 + $0x1c0] sm:$0xf]
  %v6904 = vsel %vm704, %v6774, %v6903
  %6905 = vst [vmem:[%s6824 + $0x1c0] sm:$0xf] %v6904
  %v6906 = vld [vmem:[%s6824 + $0x1c4] sm:$0x1]
  %v6907 = vsel %vm274, %v6775, %v6906
  %6908 = vst [vmem:[%s6824 + $0x1c4] sm:$0x1] %v6907
  %v6909 = vld [vmem:[%s6824 + $0x1e0] sm:$0xf]
  %v6910 = vsel %vm704, %v6782, %v6909
  %6911 = vst [vmem:[%s6824 + $0x1e0] sm:$0xf] %v6910
  %v6912 = vld [vmem:[%s6824 + $0x1e4] sm:$0x1]
  %v6913 = vsel %vm274, %v6783, %v6912
  %6914 = vst [vmem:[%s6824 + $0x1e4] sm:$0x1] %v6913
  %v6915 = vld [vmem:[%s6824 + $0x200] sm:$0xf]
  %v6916 = vsel %vm704, %v6790, %v6915
  %6917 = vst [vmem:[%s6824 + $0x200] sm:$0xf] %v6916
  %v6918 = vld [vmem:[%s6824 + $0x204] sm:$0x1]
  %v6919 = vsel %vm274, %v6791, %v6918
  %6920 = vst [vmem:[%s6824 + $0x204] sm:$0x1] %v6919
  %v6921 = vpack.c.bf16 %v6253, %v6253
  %v6922 = vpack.c.bf16 %v6254, %v6254
  %v6923 = vpack.c.bf16 %v6255, %v6255
  %v6924 = vpack.c.bf16 %v6256, %v6256
  %v6925 = vpack.c.bf16 %v6257, %v6257
  %v6926 = vpack.c.bf16 %v6258, %v6258
  %v6927 = vpack.c.bf16 %v6259, %v6259
  %v6928 = vpack.c.bf16 %v6260, %v6260
  %v6929 = vpack.c.bf16 %v6261, %v6261
  %v6930 = vpack.c.bf16 %v6262, %v6262
  %v6931 = vpack.c.bf16 %v6263, %v6263
  %v6932 = vpack.c.bf16 %v6264, %v6264
  %v6933 = vpack.c.bf16 %v6265, %v6265
  %v6934 = vpack.c.bf16 %v6266, %v6266
  %v6935 = vpack.c.bf16 %v6267, %v6267
  %v6936 = vpack.c.bf16 %v6268, %v6268
  %s6937 = scalar_lea.vmem [#allocation3], 40
  %6938 = vst.msk [vmem:[%s6937] sm:$0xf] %vm270, %v6921
  %6939 = vst.msk [vmem:[%s6937 + $0x20] sm:$0xf] %vm270, %v6922
  %6940 = vst.msk [vmem:[%s6937 + $0x40] sm:$0xf] %vm270, %v6923
  %6941 = vst.msk [vmem:[%s6937 + $0x60] sm:$0xf] %vm270, %v6924
  %6942 = vst.msk [vmem:[%s6937 + $0x80] sm:$0xf] %vm270, %v6925
  %6943 = vst.msk [vmem:[%s6937 + $0xa0] sm:$0xf] %vm270, %v6926
  %6944 = vst.msk [vmem:[%s6937 + $0xc0] sm:$0xf] %vm270, %v6927
  %6945 = vst.msk [vmem:[%s6937 + $0xe0] sm:$0xf] %vm270, %v6928
  %6946 = vst.msk [vmem:[%s6937 + $0x120] sm:$0xf] %vm270, %v6929
  %6947 = vst.msk [vmem:[%s6937 + $0x140] sm:$0xf] %vm270, %v6930
  %6948 = vst.msk [vmem:[%s6937 + $0x160] sm:$0xf] %vm270, %v6931
  %6949 = vst.msk [vmem:[%s6937 + $0x180] sm:$0xf] %vm270, %v6932
  %6950 = vst.msk [vmem:[%s6937 + $0x1a0] sm:$0xf] %vm270, %v6933
  %6951 = vst.msk [vmem:[%s6937 + $0x1c0] sm:$0xf] %vm270, %v6934
  %6952 = vst.msk [vmem:[%s6937 + $0x1e0] sm:$0xf] %vm270, %v6935
  %6953 = vst.msk [vmem:[%s6937 + $0x200] sm:$0xf] %vm270, %v6936
  %v6954 = vpack.c.bf16 %v6301, %v6301
  %v6955 = vpack.c.bf16 %v6302, %v6302
  %v6956 = vpack.c.bf16 %v6303, %v6303
  %v6957 = vpack.c.bf16 %v6304, %v6304
  %v6958 = vpack.c.bf16 %v6305, %v6305
  %v6959 = vpack.c.bf16 %v6306, %v6306
  %v6960 = vpack.c.bf16 %v6307, %v6307
  %v6961 = vpack.c.bf16 %v6308, %v6308
  %v6962 = vpack.c.bf16 %v6309, %v6309
  %v6963 = vpack.c.bf16 %v6310, %v6310
  %v6964 = vpack.c.bf16 %v6311, %v6311
  %v6965 = vpack.c.bf16 %v6312, %v6312
  %v6966 = vpack.c.bf16 %v6313, %v6313
  %v6967 = vpack.c.bf16 %v6314, %v6314
  %v6968 = vpack.c.bf16 %v6315, %v6315
  %v6969 = vpack.c.bf16 %v6316, %v6316
  %v6986 = vunpack.c.l.b16 %v6954
  %v6987 = vunpack.c.l.b16 %v6955
  %v6988 = vunpack.c.l.b16 %v6956
  %v6989 = vunpack.c.l.b16 %v6957
  %v6990 = vunpack.c.l.b16 %v6958
  %v6991 = vunpack.c.l.b16 %v6959
  %v6992 = vunpack.c.l.b16 %v6960
  %v6993 = vunpack.c.l.b16 %v6961
  %v6994 = vunpack.c.l.b16 %v6962
  %v6995 = vunpack.c.l.b16 %v6963
  %v6996 = vunpack.c.l.b16 %v6964
  %v6997 = vunpack.c.l.b16 %v6965
  %v6998 = vunpack.c.l.b16 %v6966
  %v6999 = vunpack.c.l.b16 %v6967
  %v7000 = vunpack.c.l.b16 %v6968
  %v7001 = vunpack.c.l.b16 %v6969
  %v7002 = vpack.c.b16 %v6986, %v6986
  %v7003 = vpack.c.b16 %v6987, %v6987
  %v7004 = vpack.c.b16 %v6988, %v6988
  %v7005 = vpack.c.b16 %v6989, %v6989
  %v7006 = vpack.c.b16 %v6990, %v6990
  %v7007 = vpack.c.b16 %v6991, %v6991
  %v7008 = vpack.c.b16 %v6992, %v6992
  %v7009 = vpack.c.b16 %v6993, %v6993
  %v7010 = vpack.c.b16 %v6994, %v6994
  %v7011 = vpack.c.b16 %v6995, %v6995
  %v7012 = vpack.c.b16 %v6996, %v6996
  %v7013 = vpack.c.b16 %v6997, %v6997
  %v7014 = vpack.c.b16 %v6998, %v6998
  %v7015 = vpack.c.b16 %v6999, %v6999
  %v7016 = vpack.c.b16 %v7000, %v7000
  %v7017 = vpack.c.b16 %v7001, %v7001
  %v7019 = vshrl.u32 %v7002, 16
  %v7021 = vrot.slane %v7019, 7
  %v7022 = vshll.u32 %v7002, 16
  %v7024 = vor.u32 %v7021, %v7022
  %v7025 = vrot.slane %v7021, 4
  %v7027 = vshrl.u32 %v7003, 16
  %v7029 = vrot.slane %v7027, 7
  %v7030 = vshll.u32 %v7003, 16
  %v7032 = vor.u32 %v7029, %v7030
  %v7033 = vrot.slane %v7029, 4
  %v7035 = vshrl.u32 %v7004, 16
  %v7037 = vrot.slane %v7035, 7
  %v7038 = vshll.u32 %v7004, 16
  %v7040 = vor.u32 %v7037, %v7038
  %v7041 = vrot.slane %v7037, 4
  %v7043 = vshrl.u32 %v7005, 16
  %v7045 = vrot.slane %v7043, 7
  %v7046 = vshll.u32 %v7005, 16
  %v7048 = vor.u32 %v7045, %v7046
  %v7049 = vrot.slane %v7045, 4
  %v7051 = vshrl.u32 %v7006, 16
  %v7053 = vrot.slane %v7051, 7
  %v7054 = vshll.u32 %v7006, 16
  %v7056 = vor.u32 %v7053, %v7054
  %v7057 = vrot.slane %v7053, 4
  %v7059 = vshrl.u32 %v7007, 16
  %v7061 = vrot.slane %v7059, 7
  %v7062 = vshll.u32 %v7007, 16
  %v7064 = vor.u32 %v7061, %v7062
  %v7065 = vrot.slane %v7061, 4
  %v7067 = vshrl.u32 %v7008, 16
  %v7069 = vrot.slane %v7067, 7
  %v7070 = vshll.u32 %v7008, 16
  %v7072 = vor.u32 %v7069, %v7070
  %v7073 = vrot.slane %v7069, 4
  %v7075 = vshrl.u32 %v7009, 16
  %v7077 = vrot.slane %v7075, 7
  %v7078 = vshll.u32 %v7009, 16
  %v7080 = vor.u32 %v7077, %v7078
  %v7081 = vrot.slane %v7077, 4
  %v7083 = vshrl.u32 %v7010, 16
  %v7085 = vrot.slane %v7083, 7
  %v7086 = vshll.u32 %v7010, 16
  %v7088 = vor.u32 %v7085, %v7086
  %v7089 = vrot.slane %v7085, 4
  %v7091 = vshrl.u32 %v7011, 16
  %v7093 = vrot.slane %v7091, 7
  %v7094 = vshll.u32 %v7011, 16
  %v7096 = vor.u32 %v7093, %v7094
  %v7097 = vrot.slane %v7093, 4
  %v7099 = vshrl.u32 %v7012, 16
  %v7101 = vrot.slane %v7099, 7
  %v7102 = vshll.u32 %v7012, 16
  %v7104 = vor.u32 %v7101, %v7102
  %v7105 = vrot.slane %v7101, 4
  %v7107 = vshrl.u32 %v7013, 16
  %v7109 = vrot.slane %v7107, 7
  %v7110 = vshll.u32 %v7013, 16
  %v7112 = vor.u32 %v7109, %v7110
  %v7113 = vrot.slane %v7109, 4
  %v7115 = vshrl.u32 %v7014, 16
  %v7117 = vrot.slane %v7115, 7
  %v7118 = vshll.u32 %v7014, 16
  %v7120 = vor.u32 %v7117, %v7118
  %v7121 = vrot.slane %v7117, 4
  %v7123 = vshrl.u32 %v7015, 16
  %v7125 = vrot.slane %v7123, 7
  %v7126 = vshll.u32 %v7015, 16
  %v7128 = vor.u32 %v7125, %v7126
  %v7129 = vrot.slane %v7125, 4
  %v7131 = vshrl.u32 %v7016, 16
  %v7133 = vrot.slane %v7131, 7
  %v7134 = vshll.u32 %v7016, 16
  %v7136 = vor.u32 %v7133, %v7134
  %v7137 = vrot.slane %v7133, 4
  %v7139 = vshrl.u32 %v7017, 16
  %v7141 = vrot.slane %v7139, 7
  %v7142 = vshll.u32 %v7017, 16
  %v7144 = vor.u32 %v7141, %v7142
  %v7145 = vrot.slane %v7141, 4
  %s7178 = scalar_lea.vmem [#allocation3], 32
  %v7179 = vld [vmem:[%s7178] sm:$0xf]
  %v7180 = vsel %vm704, %v7024, %v7179
  %7181 = vst [vmem:[%s7178] sm:$0xf] %v7180
  %v7182 = vld [vmem:[%s7178 + $0x4] sm:$0x1]
  %v7183 = vsel %vm274, %v7025, %v7182
  %7184 = vst [vmem:[%s7178 + $0x4] sm:$0x1] %v7183
  %v7185 = vld [vmem:[%s7178 + $0x20] sm:$0xf]
  %v7186 = vsel %vm704, %v7032, %v7185
  %7187 = vst [vmem:[%s7178 + $0x20] sm:$0xf] %v7186
  %v7188 = vld [vmem:[%s7178 + $0x24] sm:$0x1]
  %v7189 = vsel %vm274, %v7033, %v7188
  %7190 = vst [vmem:[%s7178 + $0x24] sm:$0x1] %v7189
  %v7191 = vld [vmem:[%s7178 + $0x40] sm:$0xf]
  %v7192 = vsel %vm704, %v7040, %v7191
  %7193 = vst [vmem:[%s7178 + $0x40] sm:$0xf] %v7192
  %v7194 = vld [vmem:[%s7178 + $0x44] sm:$0x1]
  %v7195 = vsel %vm274, %v7041, %v7194
  %7196 = vst [vmem:[%s7178 + $0x44] sm:$0x1] %v7195
  %v7197 = vld [vmem:[%s7178 + $0x60] sm:$0xf]
  %v7198 = vsel %vm704, %v7048, %v7197
  %7199 = vst [vmem:[%s7178 + $0x60] sm:$0xf] %v7198
  %v7200 = vld [vmem:[%s7178 + $0x64] sm:$0x1]
  %v7201 = vsel %vm274, %v7049, %v7200
  %7202 = vst [vmem:[%s7178 + $0x64] sm:$0x1] %v7201
  %v7203 = vld [vmem:[%s7178 + $0x80] sm:$0xf]
  %v7204 = vsel %vm704, %v7056, %v7203
  %7205 = vst [vmem:[%s7178 + $0x80] sm:$0xf] %v7204
  %v7206 = vld [vmem:[%s7178 + $0x84] sm:$0x1]
  %v7207 = vsel %vm274, %v7057, %v7206
  %7208 = vst [vmem:[%s7178 + $0x84] sm:$0x1] %v7207
  %v7209 = vld [vmem:[%s7178 + $0xa0] sm:$0xf]
  %v7210 = vsel %vm704, %v7064, %v7209
  %7211 = vst [vmem:[%s7178 + $0xa0] sm:$0xf] %v7210
  %v7212 = vld [vmem:[%s7178 + $0xa4] sm:$0x1]
  %v7213 = vsel %vm274, %v7065, %v7212
  %7214 = vst [vmem:[%s7178 + $0xa4] sm:$0x1] %v7213
  %v7215 = vld [vmem:[%s7178 + $0xc0] sm:$0xf]
  %v7216 = vsel %vm704, %v7072, %v7215
  %7217 = vst [vmem:[%s7178 + $0xc0] sm:$0xf] %v7216
  %v7218 = vld [vmem:[%s7178 + $0xc4] sm:$0x1]
  %v7219 = vsel %vm274, %v7073, %v7218
  %7220 = vst [vmem:[%s7178 + $0xc4] sm:$0x1] %v7219
  %v7221 = vld [vmem:[%s7178 + $0xe0] sm:$0xf]
  %v7222 = vsel %vm704, %v7080, %v7221
  %7223 = vst [vmem:[%s7178 + $0xe0] sm:$0xf] %v7222
  %v7224 = vld [vmem:[%s7178 + $0xe4] sm:$0x1]
  %v7225 = vsel %vm274, %v7081, %v7224
  %7226 = vst [vmem:[%s7178 + $0xe4] sm:$0x1] %v7225
  %v7227 = vld [vmem:[%s7178 + $0x120] sm:$0xf]
  %v7228 = vsel %vm704, %v7088, %v7227
  %7229 = vst [vmem:[%s7178 + $0x120] sm:$0xf] %v7228
  %v7230 = vld [vmem:[%s7178 + $0x124] sm:$0x1]
  %v7231 = vsel %vm274, %v7089, %v7230
  %7232 = vst [vmem:[%s7178 + $0x124] sm:$0x1] %v7231
  %v7233 = vld [vmem:[%s7178 + $0x140] sm:$0xf]
  %v7234 = vsel %vm704, %v7096, %v7233
  %7235 = vst [vmem:[%s7178 + $0x140] sm:$0xf] %v7234
  %v7236 = vld [vmem:[%s7178 + $0x144] sm:$0x1]
  %v7237 = vsel %vm274, %v7097, %v7236
  %7238 = vst [vmem:[%s7178 + $0x144] sm:$0x1] %v7237
  %v7239 = vld [vmem:[%s7178 + $0x160] sm:$0xf]
  %v7240 = vsel %vm704, %v7104, %v7239
  %7241 = vst [vmem:[%s7178 + $0x160] sm:$0xf] %v7240
  %v7242 = vld [vmem:[%s7178 + $0x164] sm:$0x1]
  %v7243 = vsel %vm274, %v7105, %v7242
  %7244 = vst [vmem:[%s7178 + $0x164] sm:$0x1] %v7243
  %v7245 = vld [vmem:[%s7178 + $0x180] sm:$0xf]
  %v7246 = vsel %vm704, %v7112, %v7245
  %7247 = vst [vmem:[%s7178 + $0x180] sm:$0xf] %v7246
  %v7248 = vld [vmem:[%s7178 + $0x184] sm:$0x1]
  %v7249 = vsel %vm274, %v7113, %v7248
  %7250 = vst [vmem:[%s7178 + $0x184] sm:$0x1] %v7249
  %v7251 = vld [vmem:[%s7178 + $0x1a0] sm:$0xf]
  %v7252 = vsel %vm704, %v7120, %v7251
  %7253 = vst [vmem:[%s7178 + $0x1a0] sm:$0xf] %v7252
  %v7254 = vld [vmem:[%s7178 + $0x1a4] sm:$0x1]
  %v7255 = vsel %vm274, %v7121, %v7254
  %7256 = vst [vmem:[%s7178 + $0x1a4] sm:$0x1] %v7255
  %v7257 = vld [vmem:[%s7178 + $0x1c0] sm:$0xf]
  %v7258 = vsel %vm704, %v7128, %v7257
  %7259 = vst [vmem:[%s7178 + $0x1c0] sm:$0xf] %v7258
  %v7260 = vld [vmem:[%s7178 + $0x1c4] sm:$0x1]
  %v7261 = vsel %vm274, %v7129, %v7260
  %7262 = vst [vmem:[%s7178 + $0x1c4] sm:$0x1] %v7261
  %v7263 = vld [vmem:[%s7178 + $0x1e0] sm:$0xf]
  %v7264 = vsel %vm704, %v7136, %v7263
  %7265 = vst [vmem:[%s7178 + $0x1e0] sm:$0xf] %v7264
  %v7266 = vld [vmem:[%s7178 + $0x1e4] sm:$0x1]
  %v7267 = vsel %vm274, %v7137, %v7266
  %7268 = vst [vmem:[%s7178 + $0x1e4] sm:$0x1] %v7267
  %v7269 = vld [vmem:[%s7178 + $0x200] sm:$0xf]
  %v7270 = vsel %vm704, %v7144, %v7269
  %7271 = vst [vmem:[%s7178 + $0x200] sm:$0xf] %v7270
  %v7272 = vld [vmem:[%s7178 + $0x204] sm:$0x1]
  %v7273 = vsel %vm274, %v7145, %v7272
  %7274 = vst [vmem:[%s7178 + $0x204] sm:$0x1] %v7273
  %v7275 = vld [vmem:[#allocation3] sm:$0xf]
  %v7276 = vld [vmem:[#allocation3 + $0x20] sm:$0xf]
  %v7277 = vld [vmem:[#allocation3 + $0x40] sm:$0xf]
  %v7278 = vld [vmem:[#allocation3 + $0x60] sm:$0xf]
  %v7279 = vld [vmem:[#allocation3 + $0x80] sm:$0xf]
  %v7280 = vld [vmem:[#allocation3 + $0xa0] sm:$0xf]
  %v7281 = vld [vmem:[#allocation3 + $0xc0] sm:$0xf]
  %v7282 = vld [vmem:[#allocation3 + $0xe0] sm:$0xf]
  %v7283 = vld [vmem:[#allocation3 + $0x120] sm:$0xf]
  %v7284 = vld [vmem:[#allocation3 + $0x140] sm:$0xf]
  %v7285 = vld [vmem:[#allocation3 + $0x160] sm:$0xf]
  %v7286 = vld [vmem:[#allocation3 + $0x180] sm:$0xf]
  %v7287 = vld [vmem:[#allocation3 + $0x1a0] sm:$0xf]
  %v7288 = vld [vmem:[#allocation3 + $0x1c0] sm:$0xf]
  %v7289 = vld [vmem:[#allocation3 + $0x1e0] sm:$0xf]
  %v7290 = vld [vmem:[#allocation3 + $0x200] sm:$0xf]
  %v7291 = vld [vmem:[%s6458] sm:$0xf]
  %v7292 = vld [vmem:[%s6458 + $0x20] sm:$0xf]
  %v7293 = vld [vmem:[%s6458 + $0x40] sm:$0xf]
  %v7294 = vld [vmem:[%s6458 + $0x60] sm:$0xf]
  %v7295 = vld [vmem:[%s6458 + $0x80] sm:$0xf]
  %v7296 = vld [vmem:[%s6458 + $0xa0] sm:$0xf]
  %v7297 = vld [vmem:[%s6458 + $0xc0] sm:$0xf]
  %v7298 = vld [vmem:[%s6458 + $0xe0] sm:$0xf]
  %v7299 = vld [vmem:[%s6458 + $0x120] sm:$0xf]
  %v7300 = vld [vmem:[%s6458 + $0x140] sm:$0xf]
  %v7301 = vld [vmem:[%s6458 + $0x160] sm:$0xf]
  %v7302 = vld [vmem:[%s6458 + $0x180] sm:$0xf]
  %v7303 = vld [vmem:[%s6458 + $0x1a0] sm:$0xf]
  %v7304 = vld [vmem:[%s6458 + $0x1c0] sm:$0xf]
  %v7305 = vld [vmem:[%s6458 + $0x1e0] sm:$0xf]
  %v7306 = vld [vmem:[%s6458 + $0x200] sm:$0xf]
  %v7307 = vld [vmem:[#allocation3 + $0x4] sm:$0x1]
  %v7308 = vld [vmem:[#allocation3 + $0x24] sm:$0x1]
  %v7309 = vld [vmem:[#allocation3 + $0x44] sm:$0x1]
  %v7310 = vld [vmem:[#allocation3 + $0x64] sm:$0x1]
  %v7311 = vld [vmem:[#allocation3 + $0x84] sm:$0x1]
  %v7312 = vld [vmem:[#allocation3 + $0xa4] sm:$0x1]
  %v7313 = vld [vmem:[#allocation3 + $0xc4] sm:$0x1]
  %v7314 = vld [vmem:[#allocation3 + $0xe4] sm:$0x1]
  %v7315 = vld [vmem:[#allocation3 + $0x124] sm:$0x1]
  %v7316 = vld [vmem:[#allocation3 + $0x144] sm:$0x1]
  %v7317 = vld [vmem:[#allocation3 + $0x164] sm:$0x1]
  %v7318 = vld [vmem:[#allocation3 + $0x184] sm:$0x1]
  %v7319 = vld [vmem:[#allocation3 + $0x1a4] sm:$0x1]
  %v7320 = vld [vmem:[#allocation3 + $0x1c4] sm:$0x1]
  %v7321 = vld [vmem:[#allocation3 + $0x1e4] sm:$0x1]
  %v7322 = vld [vmem:[#allocation3 + $0x204] sm:$0x1]
  %v7324 = vshrl.u32 %v7275, 16
  %v7326 = vrot.slane %v7324, 4
  %v7327 = vshll.u32 %v7275, 16
  %v7329 = vrot.slane %v7327, 5
  %v7330 = vor.u32 %v7326, %v7329
  %v7331 = vrot.slane %v7330, 4
  %v7333 = vshll.u32 %v7307, 16
  %v7335 = vrot.slane %v7333, 5
  %v7336 = vsel %vm1125, %v7331, %v7335
  %v7338 = vshrl.u32 %v7276, 16
  %v7340 = vrot.slane %v7338, 4
  %v7341 = vshll.u32 %v7276, 16
  %v7343 = vrot.slane %v7341, 5
  %v7344 = vor.u32 %v7340, %v7343
  %v7345 = vrot.slane %v7344, 4
  %v7347 = vshll.u32 %v7308, 16
  %v7349 = vrot.slane %v7347, 5
  %v7350 = vsel %vm1125, %v7345, %v7349
  %v7352 = vshrl.u32 %v7277, 16
  %v7354 = vrot.slane %v7352, 4
  %v7355 = vshll.u32 %v7277, 16
  %v7357 = vrot.slane %v7355, 5
  %v7358 = vor.u32 %v7354, %v7357
  %v7359 = vrot.slane %v7358, 4
  %v7361 = vshll.u32 %v7309, 16
  %v7363 = vrot.slane %v7361, 5
  %v7364 = vsel %vm1125, %v7359, %v7363
  %v7366 = vshrl.u32 %v7278, 16
  %v7368 = vrot.slane %v7366, 4
  %v7369 = vshll.u32 %v7278, 16
  %v7371 = vrot.slane %v7369, 5
  %v7372 = vor.u32 %v7368, %v7371
  %v7373 = vrot.slane %v7372, 4
  %v7375 = vshll.u32 %v7310, 16
  %v7377 = vrot.slane %v7375, 5
  %v7378 = vsel %vm1125, %v7373, %v7377
  %v7380 = vshrl.u32 %v7279, 16
  %v7382 = vrot.slane %v7380, 4
  %v7383 = vshll.u32 %v7279, 16
  %v7385 = vrot.slane %v7383, 5
  %v7386 = vor.u32 %v7382, %v7385
  %v7387 = vrot.slane %v7386, 4
  %v7389 = vshll.u32 %v7311, 16
  %v7391 = vrot.slane %v7389, 5
  %v7392 = vsel %vm1125, %v7387, %v7391
  %v7394 = vshrl.u32 %v7280, 16
  %v7396 = vrot.slane %v7394, 4
  %v7397 = vshll.u32 %v7280, 16
  %v7399 = vrot.slane %v7397, 5
  %v7400 = vor.u32 %v7396, %v7399
  %v7401 = vrot.slane %v7400, 4
  %v7403 = vshll.u32 %v7312, 16
  %v7405 = vrot.slane %v7403, 5
  %v7406 = vsel %vm1125, %v7401, %v7405
  %v7408 = vshrl.u32 %v7281, 16
  %v7410 = vrot.slane %v7408, 4
  %v7411 = vshll.u32 %v7281, 16
  %v7413 = vrot.slane %v7411, 5
  %v7414 = vor.u32 %v7410, %v7413
  %v7415 = vrot.slane %v7414, 4
  %v7417 = vshll.u32 %v7313, 16
  %v7419 = vrot.slane %v7417, 5
  %v7420 = vsel %vm1125, %v7415, %v7419
  %v7422 = vshrl.u32 %v7282, 16
  %v7424 = vrot.slane %v7422, 4
  %v7425 = vshll.u32 %v7282, 16
  %v7427 = vrot.slane %v7425, 5
  %v7428 = vor.u32 %v7424, %v7427
  %v7429 = vrot.slane %v7428, 4
  %v7431 = vshll.u32 %v7314, 16
  %v7433 = vrot.slane %v7431, 5
  %v7434 = vsel %vm1125, %v7429, %v7433
  %v7436 = vshrl.u32 %v7283, 16
  %v7438 = vrot.slane %v7436, 4
  %v7439 = vshll.u32 %v7283, 16
  %v7441 = vrot.slane %v7439, 5
  %v7442 = vor.u32 %v7438, %v7441
  %v7443 = vrot.slane %v7442, 4
  %v7445 = vshll.u32 %v7315, 16
  %v7447 = vrot.slane %v7445, 5
  %v7448 = vsel %vm1125, %v7443, %v7447
  %v7450 = vshrl.u32 %v7284, 16
  %v7452 = vrot.slane %v7450, 4
  %v7453 = vshll.u32 %v7284, 16
  %v7455 = vrot.slane %v7453, 5
  %v7456 = vor.u32 %v7452, %v7455
  %v7457 = vrot.slane %v7456, 4
  %v7459 = vshll.u32 %v7316, 16
  %v7461 = vrot.slane %v7459, 5
  %v7462 = vsel %vm1125, %v7457, %v7461
  %v7464 = vshrl.u32 %v7285, 16
  %v7466 = vrot.slane %v7464, 4
  %v7467 = vshll.u32 %v7285, 16
  %v7469 = vrot.slane %v7467, 5
  %v7470 = vor.u32 %v7466, %v7469
  %v7471 = vrot.slane %v7470, 4
  %v7473 = vshll.u32 %v7317, 16
  %v7475 = vrot.slane %v7473, 5
  %v7476 = vsel %vm1125, %v7471, %v7475
  %v7478 = vshrl.u32 %v7286, 16
  %v7480 = vrot.slane %v7478, 4
  %v7481 = vshll.u32 %v7286, 16
  %v7483 = vrot.slane %v7481, 5
  %v7484 = vor.u32 %v7480, %v7483
  %v7485 = vrot.slane %v7484, 4
  %v7487 = vshll.u32 %v7318, 16
  %v7489 = vrot.slane %v7487, 5
  %v7490 = vsel %vm1125, %v7485, %v7489
  %v7492 = vshrl.u32 %v7287, 16
  %v7494 = vrot.slane %v7492, 4
  %v7495 = vshll.u32 %v7287, 16
  %v7497 = vrot.slane %v7495, 5
  %v7498 = vor.u32 %v7494, %v7497
  %v7499 = vrot.slane %v7498, 4
  %v7501 = vshll.u32 %v7319, 16
  %v7503 = vrot.slane %v7501, 5
  %v7504 = vsel %vm1125, %v7499, %v7503
  %v7506 = vshrl.u32 %v7288, 16
  %v7508 = vrot.slane %v7506, 4
  %v7509 = vshll.u32 %v7288, 16
  %v7511 = vrot.slane %v7509, 5
  %v7512 = vor.u32 %v7508, %v7511
  %v7513 = vrot.slane %v7512, 4
  %v7515 = vshll.u32 %v7320, 16
  %v7517 = vrot.slane %v7515, 5
  %v7518 = vsel %vm1125, %v7513, %v7517
  %v7520 = vshrl.u32 %v7289, 16
  %v7522 = vrot.slane %v7520, 4
  %v7523 = vshll.u32 %v7289, 16
  %v7525 = vrot.slane %v7523, 5
  %v7526 = vor.u32 %v7522, %v7525
  %v7527 = vrot.slane %v7526, 4
  %v7529 = vshll.u32 %v7321, 16
  %v7531 = vrot.slane %v7529, 5
  %v7532 = vsel %vm1125, %v7527, %v7531
  %v7534 = vshrl.u32 %v7290, 16
  %v7536 = vrot.slane %v7534, 4
  %v7537 = vshll.u32 %v7290, 16
  %v7539 = vrot.slane %v7537, 5
  %v7540 = vor.u32 %v7536, %v7539
  %v7541 = vrot.slane %v7540, 4
  %v7543 = vshll.u32 %v7322, 16
  %v7545 = vrot.slane %v7543, 5
  %v7546 = vsel %vm1125, %v7541, %v7545
  %v7563 = vunpack.c.l.b16 %v7275
  %v7564 = vunpack.c.l.b16 %v7276
  %v7565 = vunpack.c.l.b16 %v7277
  %v7566 = vunpack.c.l.b16 %v7278
  %v7567 = vunpack.c.l.b16 %v7279
  %v7568 = vunpack.c.l.b16 %v7280
  %v7569 = vunpack.c.l.b16 %v7281
  %v7570 = vunpack.c.l.b16 %v7282
  %v7571 = vunpack.c.l.b16 %v7283
  %v7572 = vunpack.c.l.b16 %v7284
  %v7573 = vunpack.c.l.b16 %v7285
  %v7574 = vunpack.c.l.b16 %v7286
  %v7575 = vunpack.c.l.b16 %v7287
  %v7576 = vunpack.c.l.b16 %v7288
  %v7577 = vunpack.c.l.b16 %v7289
  %v7578 = vunpack.c.l.b16 %v7290
  %v7579 = vpack.c.b16 %v7564, %v7563
  %v7580 = vpack.c.b16 %v7566, %v7565
  %v7581 = vpack.c.b16 %v7568, %v7567
  %v7582 = vpack.c.b16 %v7570, %v7569
  %v7583 = vpack.c.b16 %v7572, %v7571
  %v7584 = vpack.c.b16 %v7574, %v7573
  %v7585 = vpack.c.b16 %v7576, %v7575
  %v7586 = vpack.c.b16 %v7578, %v7577
  %v7603 = vunpack.c.l.b16 %v7291
  %v7604 = vunpack.c.l.b16 %v7292
  %v7605 = vunpack.c.l.b16 %v7293
  %v7606 = vunpack.c.l.b16 %v7294
  %v7607 = vunpack.c.l.b16 %v7295
  %v7608 = vunpack.c.l.b16 %v7296
  %v7609 = vunpack.c.l.b16 %v7297
  %v7610 = vunpack.c.l.b16 %v7298
  %v7611 = vunpack.c.l.b16 %v7299
  %v7612 = vunpack.c.l.b16 %v7300
  %v7613 = vunpack.c.l.b16 %v7301
  %v7614 = vunpack.c.l.b16 %v7302
  %v7615 = vunpack.c.l.b16 %v7303
  %v7616 = vunpack.c.l.b16 %v7304
  %v7617 = vunpack.c.l.b16 %v7305
  %v7618 = vunpack.c.l.b16 %v7306
  %v7619 = vpack.c.b16 %v7604, %v7603
  %v7620 = vpack.c.b16 %v7606, %v7605
  %v7621 = vpack.c.b16 %v7608, %v7607
  %v7622 = vpack.c.b16 %v7610, %v7609
  %v7623 = vpack.c.b16 %v7612, %v7611
  %v7624 = vpack.c.b16 %v7614, %v7613
  %v7625 = vpack.c.b16 %v7616, %v7615
  %v7626 = vpack.c.b16 %v7618, %v7617
  %7627 = vrot.lane.b32.xlu0 %v7619, 4
  %v7628 = vpop.permute.xlu0 %7627
  %7629 = vrot.lane.b32.xlu0 %v7620, 4
  %v7630 = vpop.permute.xlu0 %7629
  %7631 = vrot.lane.b32.xlu0 %v7621, 4
  %v7632 = vpop.permute.xlu0 %7631
  %7633 = vrot.lane.b32.xlu0 %v7622, 4
  %v7634 = vpop.permute.xlu0 %7633
  %7635 = vrot.lane.b32.xlu0 %v7623, 4
  %v7636 = vpop.permute.xlu0 %7635
  %7637 = vrot.lane.b32.xlu0 %v7624, 4
  %v7638 = vpop.permute.xlu0 %7637
  %7639 = vrot.lane.b32.xlu0 %v7625, 4
  %v7640 = vpop.permute.xlu0 %7639
  %7641 = vrot.lane.b32.xlu0 %v7626, 4
  %v7642 = vpop.permute.xlu0 %7641
  %v7643 = vunpack.c.l.b16 %v7336
  %v7644 = vunpack.c.l.b16 %v7350
  %v7645 = vunpack.c.l.b16 %v7364
  %v7646 = vunpack.c.l.b16 %v7378
  %v7647 = vunpack.c.l.b16 %v7392
  %v7648 = vunpack.c.l.b16 %v7406
  %v7649 = vunpack.c.l.b16 %v7420
  %v7650 = vunpack.c.l.b16 %v7434
  %v7651 = vunpack.c.l.b16 %v7448
  %v7652 = vunpack.c.l.b16 %v7462
  %v7653 = vunpack.c.l.b16 %v7476
  %v7654 = vunpack.c.l.b16 %v7490
  %v7655 = vunpack.c.l.b16 %v7504
  %v7656 = vunpack.c.l.b16 %v7518
  %v7657 = vunpack.c.l.b16 %v7532
  %v7658 = vunpack.c.l.b16 %v7546
  %v7659 = vpack.c.b16 %v7644, %v7643
  %v7660 = vpack.c.b16 %v7646, %v7645
  %v7661 = vpack.c.b16 %v7648, %v7647
  %v7662 = vpack.c.b16 %v7650, %v7649
  %v7663 = vpack.c.b16 %v7652, %v7651
  %v7664 = vpack.c.b16 %v7654, %v7653
  %v7665 = vpack.c.b16 %v7656, %v7655
  %v7666 = vpack.c.b16 %v7658, %v7657
  %7667 = vrot.lane.b32.xlu0 %v7659, 8
  %v7668 = vpop.permute.xlu0 %7667
  %7669 = vrot.lane.b32.xlu0 %v7660, 8
  %v7670 = vpop.permute.xlu0 %7669
  %7671 = vrot.lane.b32.xlu0 %v7661, 8
  %v7672 = vpop.permute.xlu0 %7671
  %7673 = vrot.lane.b32.xlu0 %v7662, 8
  %v7674 = vpop.permute.xlu0 %7673
  %7675 = vrot.lane.b32.xlu0 %v7663, 8
  %v7676 = vpop.permute.xlu0 %7675
  %7677 = vrot.lane.b32.xlu0 %v7664, 8
  %v7678 = vpop.permute.xlu0 %7677
  %7679 = vrot.lane.b32.xlu0 %v7665, 8
  %v7680 = vpop.permute.xlu0 %7679
  %7681 = vrot.lane.b32.xlu0 %v7666, 8
  %v7682 = vpop.permute.xlu0 %7681
  %v7685 = vsel %vm1486, %v7579, %v7628
  %v7688 = vsel %vm1486, %v7580, %v7630
  %v7691 = vsel %vm1486, %v7581, %v7632
  %v7694 = vsel %vm1486, %v7582, %v7634
  %v7697 = vsel %vm1486, %v7583, %v7636
  %v7700 = vsel %vm1486, %v7584, %v7638
  %v7703 = vsel %vm1486, %v7585, %v7640
  %v7706 = vsel %vm1486, %v7586, %v7642
  %v7708 = vsel %vm1511, %v7685, %v7668
  %v7710 = vsel %vm1511, %v7688, %v7670
  %v7712 = vsel %vm1511, %v7691, %v7672
  %v7714 = vsel %vm1511, %v7694, %v7674
  %v7716 = vsel %vm1511, %v7697, %v7676
  %v7718 = vsel %vm1511, %v7700, %v7678
  %v7720 = vsel %vm1511, %v7703, %v7680
  %v7722 = vsel %vm1511, %v7706, %v7682
  %v7723 = vld [vmem:[%s5] sm:$0xf]
  %v7724 = vld [vmem:[%s5 + $0x4] sm:$0x3]
  %v7725 = vld [vmem:[%s6824] sm:$0xf]
  %v7726 = vld [vmem:[%s6824 + $0x20] sm:$0xf]
  %v7727 = vld [vmem:[%s6824 + $0x40] sm:$0xf]
  %v7728 = vld [vmem:[%s6824 + $0x60] sm:$0xf]
  %v7729 = vld [vmem:[%s6824 + $0x80] sm:$0xf]
  %v7730 = vld [vmem:[%s6824 + $0xa0] sm:$0xf]
  %v7731 = vld [vmem:[%s6824 + $0xc0] sm:$0xf]
  %v7732 = vld [vmem:[%s6824 + $0xe0] sm:$0xf]
  %v7733 = vld [vmem:[%s6824 + $0x120] sm:$0xf]
  %v7734 = vld [vmem:[%s6824 + $0x140] sm:$0xf]
  %v7735 = vld [vmem:[%s6824 + $0x160] sm:$0xf]
  %v7736 = vld [vmem:[%s6824 + $0x180] sm:$0xf]
  %v7737 = vld [vmem:[%s6824 + $0x1a0] sm:$0xf]
  %v7738 = vld [vmem:[%s6824 + $0x1c0] sm:$0xf]
  %v7739 = vld [vmem:[%s6824 + $0x1e0] sm:$0xf]
  %v7740 = vld [vmem:[%s6824 + $0x200] sm:$0xf]
  %v7741 = vld [vmem:[%s6583] sm:$0xf]
  %v7742 = vld [vmem:[%s6583 + $0x20] sm:$0xf]
  %v7743 = vld [vmem:[%s6583 + $0x40] sm:$0xf]
  %v7744 = vld [vmem:[%s6583 + $0x60] sm:$0xf]
  %v7745 = vld [vmem:[%s6583 + $0x80] sm:$0xf]
  %v7746 = vld [vmem:[%s6583 + $0xa0] sm:$0xf]
  %v7747 = vld [vmem:[%s6583 + $0xc0] sm:$0xf]
  %v7748 = vld [vmem:[%s6583 + $0xe0] sm:$0xf]
  %v7749 = vld [vmem:[%s6583 + $0x120] sm:$0xf]
  %v7750 = vld [vmem:[%s6583 + $0x140] sm:$0xf]
  %v7751 = vld [vmem:[%s6583 + $0x160] sm:$0xf]
  %v7752 = vld [vmem:[%s6583 + $0x180] sm:$0xf]
  %v7753 = vld [vmem:[%s6583 + $0x1a0] sm:$0xf]
  %v7754 = vld [vmem:[%s6583 + $0x1c0] sm:$0xf]
  %v7755 = vld [vmem:[%s6583 + $0x1e0] sm:$0xf]
  %v7756 = vld [vmem:[%s6583 + $0x200] sm:$0xf]
  %v7757 = vld [vmem:[%s6824 + $0x4] sm:$0x1]
  %v7758 = vld [vmem:[%s6824 + $0x24] sm:$0x1]
  %v7759 = vld [vmem:[%s6824 + $0x44] sm:$0x1]
  %v7760 = vld [vmem:[%s6824 + $0x64] sm:$0x1]
  %v7761 = vld [vmem:[%s6824 + $0x84] sm:$0x1]
  %v7762 = vld [vmem:[%s6824 + $0xa4] sm:$0x1]
  %v7763 = vld [vmem:[%s6824 + $0xc4] sm:$0x1]
  %v7764 = vld [vmem:[%s6824 + $0xe4] sm:$0x1]
  %v7765 = vld [vmem:[%s6824 + $0x124] sm:$0x1]
  %v7766 = vld [vmem:[%s6824 + $0x144] sm:$0x1]
  %v7767 = vld [vmem:[%s6824 + $0x164] sm:$0x1]
  %v7768 = vld [vmem:[%s6824 + $0x184] sm:$0x1]
  %v7769 = vld [vmem:[%s6824 + $0x1a4] sm:$0x1]
  %v7770 = vld [vmem:[%s6824 + $0x1c4] sm:$0x1]
  %v7771 = vld [vmem:[%s6824 + $0x1e4] sm:$0x1]
  %v7772 = vld [vmem:[%s6824 + $0x204] sm:$0x1]
  %v7774 = vshrl.u32 %v7725, 16
  %v7776 = vrot.slane %v7774, 4
  %v7777 = vshll.u32 %v7725, 16
  %v7779 = vrot.slane %v7777, 5
  %v7780 = vor.u32 %v7776, %v7779
  %v7781 = vrot.slane %v7780, 4
  %v7783 = vshll.u32 %v7757, 16
  %v7785 = vrot.slane %v7783, 5
  %v7786 = vsel %vm1125, %v7781, %v7785
  %v7788 = vshrl.u32 %v7726, 16
  %v7790 = vrot.slane %v7788, 4
  %v7791 = vshll.u32 %v7726, 16
  %v7793 = vrot.slane %v7791, 5
  %v7794 = vor.u32 %v7790, %v7793
  %v7795 = vrot.slane %v7794, 4
  %v7797 = vshll.u32 %v7758, 16
  %v7799 = vrot.slane %v7797, 5
  %v7800 = vsel %vm1125, %v7795, %v7799
  %v7802 = vshrl.u32 %v7727, 16
  %v7804 = vrot.slane %v7802, 4
  %v7805 = vshll.u32 %v7727, 16
  %v7807 = vrot.slane %v7805, 5
  %v7808 = vor.u32 %v7804, %v7807
  %v7809 = vrot.slane %v7808, 4
  %v7811 = vshll.u32 %v7759, 16
  %v7813 = vrot.slane %v7811, 5
  %v7814 = vsel %vm1125, %v7809, %v7813
  %v7816 = vshrl.u32 %v7728, 16
  %v7818 = vrot.slane %v7816, 4
  %v7819 = vshll.u32 %v7728, 16
  %v7821 = vrot.slane %v7819, 5
  %v7822 = vor.u32 %v7818, %v7821
  %v7823 = vrot.slane %v7822, 4
  %v7825 = vshll.u32 %v7760, 16
  %v7827 = vrot.slane %v7825, 5
  %v7828 = vsel %vm1125, %v7823, %v7827
  %v7830 = vshrl.u32 %v7729, 16
  %v7832 = vrot.slane %v7830, 4
  %v7833 = vshll.u32 %v7729, 16
  %v7835 = vrot.slane %v7833, 5
  %v7836 = vor.u32 %v7832, %v7835
  %v7837 = vrot.slane %v7836, 4
  %v7839 = vshll.u32 %v7761, 16
  %v7841 = vrot.slane %v7839, 5
  %v7842 = vsel %vm1125, %v7837, %v7841
  %v7844 = vshrl.u32 %v7730, 16
  %v7846 = vrot.slane %v7844, 4
  %v7847 = vshll.u32 %v7730, 16
  %v7849 = vrot.slane %v7847, 5
  %v7850 = vor.u32 %v7846, %v7849
  %v7851 = vrot.slane %v7850, 4
  %v7853 = vshll.u32 %v7762, 16
  %v7855 = vrot.slane %v7853, 5
  %v7856 = vsel %vm1125, %v7851, %v7855
  %v7858 = vshrl.u32 %v7731, 16
  %v7860 = vrot.slane %v7858, 4
  %v7861 = vshll.u32 %v7731, 16
  %v7863 = vrot.slane %v7861, 5
  %v7864 = vor.u32 %v7860, %v7863
  %v7865 = vrot.slane %v7864, 4
  %v7867 = vshll.u32 %v7763, 16
  %v7869 = vrot.slane %v7867, 5
  %v7870 = vsel %vm1125, %v7865, %v7869
  %v7872 = vshrl.u32 %v7732, 16
  %v7874 = vrot.slane %v7872, 4
  %v7875 = vshll.u32 %v7732, 16
  %v7877 = vrot.slane %v7875, 5
  %v7878 = vor.u32 %v7874, %v7877
  %v7879 = vrot.slane %v7878, 4
  %v7881 = vshll.u32 %v7764, 16
  %v7883 = vrot.slane %v7881, 5
  %v7884 = vsel %vm1125, %v7879, %v7883
  %v7886 = vshrl.u32 %v7733, 16
  %v7888 = vrot.slane %v7886, 4
  %v7889 = vshll.u32 %v7733, 16
  %v7891 = vrot.slane %v7889, 5
  %v7892 = vor.u32 %v7888, %v7891
  %v7893 = vrot.slane %v7892, 4
  %v7895 = vshll.u32 %v7765, 16
  %v7897 = vrot.slane %v7895, 5
  %v7898 = vsel %vm1125, %v7893, %v7897
  %v7900 = vshrl.u32 %v7734, 16
  %v7902 = vrot.slane %v7900, 4
  %v7903 = vshll.u32 %v7734, 16
  %v7905 = vrot.slane %v7903, 5
  %v7906 = vor.u32 %v7902, %v7905
  %v7907 = vrot.slane %v7906, 4
  %v7909 = vshll.u32 %v7766, 16
  %v7911 = vrot.slane %v7909, 5
  %v7912 = vsel %vm1125, %v7907, %v7911
  %v7914 = vshrl.u32 %v7735, 16
  %v7916 = vrot.slane %v7914, 4
  %v7917 = vshll.u32 %v7735, 16
  %v7919 = vrot.slane %v7917, 5
  %v7920 = vor.u32 %v7916, %v7919
  %v7921 = vrot.slane %v7920, 4
  %v7923 = vshll.u32 %v7767, 16
  %v7925 = vrot.slane %v7923, 5
  %v7926 = vsel %vm1125, %v7921, %v7925
  %v7928 = vshrl.u32 %v7736, 16
  %v7930 = vrot.slane %v7928, 4
  %v7931 = vshll.u32 %v7736, 16
  %v7933 = vrot.slane %v7931, 5
  %v7934 = vor.u32 %v7930, %v7933
  %v7935 = vrot.slane %v7934, 4
  %v7937 = vshll.u32 %v7768, 16
  %v7939 = vrot.slane %v7937, 5
  %v7940 = vsel %vm1125, %v7935, %v7939
  %v7942 = vshrl.u32 %v7737, 16
  %v7944 = vrot.slane %v7942, 4
  %v7945 = vshll.u32 %v7737, 16
  %v7947 = vrot.slane %v7945, 5
  %v7948 = vor.u32 %v7944, %v7947
  %v7949 = vrot.slane %v7948, 4
  %v7951 = vshll.u32 %v7769, 16
  %v7953 = vrot.slane %v7951, 5
  %v7954 = vsel %vm1125, %v7949, %v7953
  %v7956 = vshrl.u32 %v7738, 16
  %v7958 = vrot.slane %v7956, 4
  %v7959 = vshll.u32 %v7738, 16
  %v7961 = vrot.slane %v7959, 5
  %v7962 = vor.u32 %v7958, %v7961
  %v7963 = vrot.slane %v7962, 4
  %v7965 = vshll.u32 %v7770, 16
  %v7967 = vrot.slane %v7965, 5
  %v7968 = vsel %vm1125, %v7963, %v7967
  %v7970 = vshrl.u32 %v7739, 16
  %v7972 = vrot.slane %v7970, 4
  %v7973 = vshll.u32 %v7739, 16
  %v7975 = vrot.slane %v7973, 5
  %v7976 = vor.u32 %v7972, %v7975
  %v7977 = vrot.slane %v7976, 4
  %v7979 = vshll.u32 %v7771, 16
  %v7981 = vrot.slane %v7979, 5
  %v7982 = vsel %vm1125, %v7977, %v7981
  %v7984 = vshrl.u32 %v7740, 16
  %v7986 = vrot.slane %v7984, 4
  %v7987 = vshll.u32 %v7740, 16
  %v7989 = vrot.slane %v7987, 5
  %v7990 = vor.u32 %v7986, %v7989
  %v7991 = vrot.slane %v7990, 4
  %v7993 = vshll.u32 %v7772, 16
  %v7995 = vrot.slane %v7993, 5
  %v7996 = vsel %vm1125, %v7991, %v7995
  %v8013 = vunpack.c.l.b16 %v7725
  %v8014 = vunpack.c.l.b16 %v7726
  %v8015 = vunpack.c.l.b16 %v7727
  %v8016 = vunpack.c.l.b16 %v7728
  %v8017 = vunpack.c.l.b16 %v7729
  %v8018 = vunpack.c.l.b16 %v7730
  %v8019 = vunpack.c.l.b16 %v7731
  %v8020 = vunpack.c.l.b16 %v7732
  %v8021 = vunpack.c.l.b16 %v7733
  %v8022 = vunpack.c.l.b16 %v7734
  %v8023 = vunpack.c.l.b16 %v7735
  %v8024 = vunpack.c.l.b16 %v7736
  %v8025 = vunpack.c.l.b16 %v7737
  %v8026 = vunpack.c.l.b16 %v7738
  %v8027 = vunpack.c.l.b16 %v7739
  %v8028 = vunpack.c.l.b16 %v7740
  %v8029 = vpack.c.b16 %v8014, %v8013
  %v8030 = vpack.c.b16 %v8016, %v8015
  %v8031 = vpack.c.b16 %v8018, %v8017
  %v8032 = vpack.c.b16 %v8020, %v8019
  %v8033 = vpack.c.b16 %v8022, %v8021
  %v8034 = vpack.c.b16 %v8024, %v8023
  %v8035 = vpack.c.b16 %v8026, %v8025
  %v8036 = vpack.c.b16 %v8028, %v8027
  %v8053 = vunpack.c.l.b16 %v7741
  %v8054 = vunpack.c.l.b16 %v7742
  %v8055 = vunpack.c.l.b16 %v7743
  %v8056 = vunpack.c.l.b16 %v7744
  %v8057 = vunpack.c.l.b16 %v7745
  %v8058 = vunpack.c.l.b16 %v7746
  %v8059 = vunpack.c.l.b16 %v7747
  %v8060 = vunpack.c.l.b16 %v7748
  %v8061 = vunpack.c.l.b16 %v7749
  %v8062 = vunpack.c.l.b16 %v7750
  %v8063 = vunpack.c.l.b16 %v7751
  %v8064 = vunpack.c.l.b16 %v7752
  %v8065 = vunpack.c.l.b16 %v7753
  %v8066 = vunpack.c.l.b16 %v7754
  %v8067 = vunpack.c.l.b16 %v7755
  %v8068 = vunpack.c.l.b16 %v7756
  %v8069 = vpack.c.b16 %v8054, %v8053
  %v8070 = vpack.c.b16 %v8056, %v8055
  %v8071 = vpack.c.b16 %v8058, %v8057
  %v8072 = vpack.c.b16 %v8060, %v8059
  %v8073 = vpack.c.b16 %v8062, %v8061
  %v8074 = vpack.c.b16 %v8064, %v8063
  %v8075 = vpack.c.b16 %v8066, %v8065
  %v8076 = vpack.c.b16 %v8068, %v8067
  %8077 = vrot.lane.b32.xlu0 %v8069, 4
  %v8078 = vpop.permute.xlu0 %8077
  %8079 = vrot.lane.b32.xlu0 %v8070, 4
  %v8080 = vpop.permute.xlu0 %8079
  %8081 = vrot.lane.b32.xlu0 %v8071, 4
  %v8082 = vpop.permute.xlu0 %8081
  %8083 = vrot.lane.b32.xlu0 %v8072, 4
  %v8084 = vpop.permute.xlu0 %8083
  %8085 = vrot.lane.b32.xlu0 %v8073, 4
  %v8086 = vpop.permute.xlu0 %8085
  %8087 = vrot.lane.b32.xlu0 %v8074, 4
  %v8088 = vpop.permute.xlu0 %8087
  %8089 = vrot.lane.b32.xlu0 %v8075, 4
  %v8090 = vpop.permute.xlu0 %8089
  %8091 = vrot.lane.b32.xlu0 %v8076, 4
  %v8092 = vpop.permute.xlu0 %8091
  %v8093 = vunpack.c.l.b16 %v7786
  %v8094 = vunpack.c.l.b16 %v7800
  %v8095 = vunpack.c.l.b16 %v7814
  %v8096 = vunpack.c.l.b16 %v7828
  %v8097 = vunpack.c.l.b16 %v7842
  %v8098 = vunpack.c.l.b16 %v7856
  %v8099 = vunpack.c.l.b16 %v7870
  %v8100 = vunpack.c.l.b16 %v7884
  %v8101 = vunpack.c.l.b16 %v7898
  %v8102 = vunpack.c.l.b16 %v7912
  %v8103 = vunpack.c.l.b16 %v7926
  %v8104 = vunpack.c.l.b16 %v7940
  %v8105 = vunpack.c.l.b16 %v7954
  %v8106 = vunpack.c.l.b16 %v7968
  %v8107 = vunpack.c.l.b16 %v7982
  %v8108 = vunpack.c.l.b16 %v7996
  %v8109 = vpack.c.b16 %v8094, %v8093
  %v8110 = vpack.c.b16 %v8096, %v8095
  %v8111 = vpack.c.b16 %v8098, %v8097
  %v8112 = vpack.c.b16 %v8100, %v8099
  %v8113 = vpack.c.b16 %v8102, %v8101
  %v8114 = vpack.c.b16 %v8104, %v8103
  %v8115 = vpack.c.b16 %v8106, %v8105
  %v8116 = vpack.c.b16 %v8108, %v8107
  %8117 = vrot.lane.b32.xlu0 %v8109, 8
  %v8118 = vpop.permute.xlu0 %8117
  %8119 = vrot.lane.b32.xlu0 %v8110, 8
  %v8120 = vpop.permute.xlu0 %8119
  %8121 = vrot.lane.b32.xlu0 %v8111, 8
  %v8122 = vpop.permute.xlu0 %8121
  %8123 = vrot.lane.b32.xlu0 %v8112, 8
  %v8124 = vpop.permute.xlu0 %8123
  %8125 = vrot.lane.b32.xlu0 %v8113, 8
  %v8126 = vpop.permute.xlu0 %8125
  %8127 = vrot.lane.b32.xlu0 %v8114, 8
  %v8128 = vpop.permute.xlu0 %8127
  %8129 = vrot.lane.b32.xlu0 %v8115, 8
  %v8130 = vpop.permute.xlu0 %8129
  %8131 = vrot.lane.b32.xlu0 %v8116, 8
  %v8132 = vpop.permute.xlu0 %8131
  %v8135 = vsel %vm1486, %v8029, %v8078
  %v8138 = vsel %vm1486, %v8030, %v8080
  %v8141 = vsel %vm1486, %v8031, %v8082
  %v8144 = vsel %vm1486, %v8032, %v8084
  %v8147 = vsel %vm1486, %v8033, %v8086
  %v8150 = vsel %vm1486, %v8034, %v8088
  %v8153 = vsel %vm1486, %v8035, %v8090
  %v8156 = vsel %vm1486, %v8036, %v8092
  %v8158 = vsel %vm1511, %v8135, %v8118
  %v8160 = vsel %vm1511, %v8138, %v8120
  %v8162 = vsel %vm1511, %v8141, %v8122
  %v8164 = vsel %vm1511, %v8144, %v8124
  %v8166 = vsel %vm1511, %v8147, %v8126
  %v8168 = vsel %vm1511, %v8150, %v8128
  %v8170 = vsel %vm1511, %v8153, %v8130
  %v8172 = vsel %vm1511, %v8156, %v8132
  %s8173 = scalar_lea.vmem %s5, 8
  %v8174 = vld [vmem:[%s8173] sm:$0xf]
  %v8175 = vld [vmem:[%s8173 + $0x4] sm:$0x3]
  %v8178 = vunpack.c.l.b16 %v8174
  %v8179 = vunpack.c.l.b16 %v8175
  %v8180 = vpack.c.b16 %v8179, %v8178
  %v8181 = vsel %vm1986, %v8158, 0
  %v8183 = vsel %vm1986, %v8160, 0
  %v8185 = vsel %vm1986, %v8162, 0
  %v8187 = vsel %vm1986, %v8164, 0
  %v8189 = vsel %vm1986, %v8166, 0
  %v8191 = vsel %vm1986, %v8168, 0
  %v8193 = vsel %vm1986, %v8170, 0
  %v8195 = vsel %vm1986, %v8172, 0
  %v8198 = vsel %vm2003, %v8180, 0
  %8200 = vmatprep.subr.bf16.mxu0 0
  %8201 = vmatpush1.bf16.msra.mxu0 %v8198
  %8202 = vmatprep.subr.bf16.mxu0 0
  %8203 = vmatpush1.bf16.msra.mxu0 0
  %8204 = vmatprep.subr.bf16.mxu0 0
  %8205 = vmatpush1.bf16.msra.mxu0 0
  %8206 = vmatprep.subr.bf16.mxu0 0
  %8207 = vmatpush1.bf16.msra.mxu0 0
  %8208 = vmatprep.subr.bf16.mxu0 0
  %8209 = vmatpush1.bf16.msra.mxu0 0
  %8210 = vmatprep.subr.bf16.mxu0 0
  %8211 = vmatpush1.bf16.msra.mxu0 0
  %8212 = vmatprep.subr.bf16.mxu0 0
  %8213 = vmatpush1.bf16.msra.mxu0 0
  %8214 = vmatprep.subr.bf16.mxu0 0
  %8215 = vmatpush1.bf16.msra.mxu0 0
  %8216 = vmatprep.subr.bf16.mxu0 0
  %8217 = vmatpush1.bf16.msra.mxu0 0
  %8218 = vmatprep.subr.bf16.mxu0 0
  %8219 = vmatpush1.bf16.msra.mxu0 0
  %8220 = vmatprep.subr.bf16.mxu0 0
  %8221 = vmatpush1.bf16.msra.mxu0 0
  %8222 = vmatprep.subr.bf16.mxu0 0
  %8223 = vmatpush1.bf16.msra.mxu0 0
  %8224 = vmatprep.subr.bf16.mxu0 0
  %8225 = vmatpush1.bf16.msra.mxu0 0
  %8226 = vmatprep.subr.bf16.mxu0 0
  %8227 = vmatpush1.bf16.msra.mxu0 0
  %8228 = vmatprep.subr.bf16.mxu0 0
  %8229 = vmatpush1.bf16.msra.mxu0 0
  %8230 = vmatprep.subr.bf16.mxu0 0
  %8231 = vmatpush1.bf16.msra.mxu0 0
  %8232 = vmatprep.mubr.bf16.mxu0 0
  %8233 = vmatmul.mubr.bf16.gmra.mrb[0].mxu0 %v8181
  %v8234 = vpop.f32.mrb[0].mxu0
  %v8235 = vadd.f32 0.0, %v8234
  %v8236 = vpop.f32.mrb[0].mxu0
  %v8237 = vpop.f32.mrb[0].mxu0
  %v8238 = vadd.f32 0.0, %v8237
  %v8239 = vpop.f32.mrb[0].mxu0
  %8240 = vmatprep.mubr.bf16.mxu0 0
  %8241 = vmatmul.mubr.bf16.gmra.mrb[0].mxu0 %v8183
  %v8242 = vpop.f32.mrb[0].mxu0
  %v8243 = vadd.f32 0.0, %v8242
  %v8244 = vpop.f32.mrb[0].mxu0
  %v8245 = vpop.f32.mrb[0].mxu0
  %v8246 = vadd.f32 0.0, %v8245
  %v8247 = vpop.f32.mrb[0].mxu0
  %8248 = vmatprep.mubr.bf16.mxu0 0
  %8249 = vmatmul.mubr.bf16.gmra.mrb[0].mxu0 %v8185
  %v8250 = vpop.f32.mrb[0].mxu0
  %v8251 = vadd.f32 0.0, %v8250
  %v8252 = vpop.f32.mrb[0].mxu0
  %v8253 = vpop.f32.mrb[0].mxu0
  %v8254 = vadd.f32 0.0, %v8253
  %v8255 = vpop.f32.mrb[0].mxu0
  %8256 = vmatprep.mubr.bf16.mxu0 0
  %8257 = vmatmul.mubr.bf16.gmra.mrb[0].mxu0 %v8187
  %v8258 = vpop.f32.mrb[0].mxu0
  %v8259 = vadd.f32 0.0, %v8258
  %v8260 = vpop.f32.mrb[0].mxu0
  %v8261 = vpop.f32.mrb[0].mxu0
  %v8262 = vadd.f32 0.0, %v8261
  %v8263 = vpop.f32.mrb[0].mxu0
  %8264 = vmatprep.mubr.bf16.mxu0 0
  %8265 = vmatmul.mubr.bf16.gmra.mrb[0].mxu0 %v8189
  %v8266 = vpop.f32.mrb[0].mxu0
  %v8267 = vadd.f32 0.0, %v8266
  %v8268 = vpop.f32.mrb[0].mxu0
  %v8269 = vpop.f32.mrb[0].mxu0
  %v8270 = vadd.f32 0.0, %v8269
  %v8271 = vpop.f32.mrb[0].mxu0
  %8272 = vmatprep.mubr.bf16.mxu0 0
  %8273 = vmatmul.mubr.bf16.gmra.mrb[0].mxu0 %v8191
  %v8274 = vpop.f32.mrb[0].mxu0
  %v8275 = vadd.f32 0.0, %v8274
  %v8276 = vpop.f32.mrb[0].mxu0
  %v8277 = vpop.f32.mrb[0].mxu0
  %v8278 = vadd.f32 0.0, %v8277
  %v8279 = vpop.f32.mrb[0].mxu0
  %8280 = vmatprep.mubr.bf16.mxu0 0
  %8281 = vmatmul.mubr.bf16.gmra.mrb[0].mxu0 %v8193
  %v8282 = vpop.f32.mrb[0].mxu0
  %v8283 = vadd.f32 0.0, %v8282
  %v8284 = vpop.f32.mrb[0].mxu0
  %v8285 = vpop.f32.mrb[0].mxu0
  %v8286 = vadd.f32 0.0, %v8285
  %v8287 = vpop.f32.mrb[0].mxu0
  %8288 = vmatprep.mubr.bf16.mxu0 0
  %8289 = vmatmul.mubr.bf16.gmra.mrb[0].mxu0 %v8195
  %v8290 = vpop.f32.mrb[0].mxu0
  %v8291 = vadd.f32 0.0, %v8290
  %v8292 = vpop.f32.mrb[0].mxu0
  %v8293 = vpop.f32.mrb[0].mxu0
  %v8294 = vadd.f32 0.0, %v8293
  %v8295 = vpop.f32.mrb[0].mxu0
  %8296 = vdwg.mxu0
  %v8299 = vunpack.c.l.b16 %v7723
  %v8300 = vunpack.c.l.b16 %v7724
  %v8301 = vpack.c.b16 %v8300, %v8299
  %v8302 = vsel %vm1986, %v7708, 0
  %v8304 = vsel %vm1986, %v7710, 0
  %v8306 = vsel %vm1986, %v7712, 0
  %v8308 = vsel %vm1986, %v7714, 0
  %v8310 = vsel %vm1986, %v7716, 0
  %v8312 = vsel %vm1986, %v7718, 0
  %v8314 = vsel %vm1986, %v7720, 0
  %v8316 = vsel %vm1986, %v7722, 0
  %v8319 = vsel %vm2003, %v8301, 0
  %8321 = vmatprep.subr.bf16.mxu0 0
  %8322 = vmatpush1.bf16.msra.mxu0 %v8319
  %8323 = vmatprep.subr.bf16.mxu0 0
  %8324 = vmatpush1.bf16.msra.mxu0 0
  %8325 = vmatprep.subr.bf16.mxu0 0
  %8326 = vmatpush1.bf16.msra.mxu0 0
  %8327 = vmatprep.subr.bf16.mxu0 0
  %8328 = vmatpush1.bf16.msra.mxu0 0
  %8329 = vmatprep.subr.bf16.mxu0 0
  %8330 = vmatpush1.bf16.msra.mxu0 0
  %8331 = vmatprep.subr.bf16.mxu0 0
  %8332 = vmatpush1.bf16.msra.mxu0 0
  %8333 = vmatprep.subr.bf16.mxu0 0
  %8334 = vmatpush1.bf16.msra.mxu0 0
  %8335 = vmatprep.subr.bf16.mxu0 0
  %8336 = vmatpush1.bf16.msra.mxu0 0
  %8337 = vmatprep.subr.bf16.mxu0 0
  %8338 = vmatpush1.bf16.msra.mxu0 0
  %8339 = vmatprep.subr.bf16.mxu0 0
  %8340 = vmatpush1.bf16.msra.mxu0 0
  %8341 = vmatprep.subr.bf16.mxu0 0
  %8342 = vmatpush1.bf16.msra.mxu0 0
  %8343 = vmatprep.subr.bf16.mxu0 0
  %8344 = vmatpush1.bf16.msra.mxu0 0
  %8345 = vmatprep.subr.bf16.mxu0 0
  %8346 = vmatpush1.bf16.msra.mxu0 0
  %8347 = vmatprep.subr.bf16.mxu0 0
  %8348 = vmatpush1.bf16.msra.mxu0 0
  %8349 = vmatprep.subr.bf16.mxu0 0
  %8350 = vmatpush1.bf16.msra.mxu0 0
  %8351 = vmatprep.subr.bf16.mxu0 0
  %8352 = vmatpush1.bf16.msra.mxu0 0
  %8353 = vmatprep.mubr.bf16.mxu0 0
  %8354 = vmatmul.mubr.bf16.gmra.mrb[0].mxu0 %v8302
  %v8355 = vpop.f32.mrb[0].mxu0
  %v8356 = vadd.f32 %v8235, %v8355
  %v8357 = vpop.f32.mrb[0].mxu0
  %v8358 = vpop.f32.mrb[0].mxu0
  %v8359 = vadd.f32 %v8238, %v8358
  %v8360 = vpop.f32.mrb[0].mxu0
  %8361 = vmatprep.mubr.bf16.mxu0 0
  %8362 = vmatmul.mubr.bf16.gmra.mrb[0].mxu0 %v8304
  %v8363 = vpop.f32.mrb[0].mxu0
  %v8364 = vadd.f32 %v8243, %v8363
  %v8365 = vpop.f32.mrb[0].mxu0
  %v8366 = vpop.f32.mrb[0].mxu0
  %v8367 = vadd.f32 %v8246, %v8366
  %v8368 = vpop.f32.mrb[0].mxu0
  %8369 = vmatprep.mubr.bf16.mxu0 0
  %8370 = vmatmul.mubr.bf16.gmra.mrb[0].mxu0 %v8306
  %v8371 = vpop.f32.mrb[0].mxu0
  %v8372 = vadd.f32 %v8251, %v8371
  %v8373 = vpop.f32.mrb[0].mxu0
  %v8374 = vpop.f32.mrb[0].mxu0
  %v8375 = vadd.f32 %v8254, %v8374
  %v8376 = vpop.f32.mrb[0].mxu0
  %8377 = vmatprep.mubr.bf16.mxu0 0
  %8378 = vmatmul.mubr.bf16.gmra.mrb[0].mxu0 %v8308
  %v8379 = vpop.f32.mrb[0].mxu0
  %v8380 = vadd.f32 %v8259, %v8379
  %v8381 = vpop.f32.mrb[0].mxu0
  %v8382 = vpop.f32.mrb[0].mxu0
  %v8383 = vadd.f32 %v8262, %v8382
  %v8384 = vpop.f32.mrb[0].mxu0
  %8385 = vmatprep.mubr.bf16.mxu0 0
  %8386 = vmatmul.mubr.bf16.gmra.mrb[0].mxu0 %v8310
  %v8387 = vpop.f32.mrb[0].mxu0
  %v8388 = vadd.f32 %v8267, %v8387
  %v8389 = vpop.f32.mrb[0].mxu0
  %v8390 = vpop.f32.mrb[0].mxu0
  %v8391 = vadd.f32 %v8270, %v8390
  %v8392 = vpop.f32.mrb[0].mxu0
  %8393 = vmatprep.mubr.bf16.mxu0 0
  %8394 = vmatmul.mubr.bf16.gmra.mrb[0].mxu0 %v8312
  %v8395 = vpop.f32.mrb[0].mxu0
  %v8396 = vadd.f32 %v8275, %v8395
  %v8397 = vpop.f32.mrb[0].mxu0
  %v8398 = vpop.f32.mrb[0].mxu0
  %v8399 = vadd.f32 %v8278, %v8398
  %v8400 = vpop.f32.mrb[0].mxu0
  %8401 = vmatprep.mubr.bf16.mxu0 0
  %8402 = vmatmul.mubr.bf16.gmra.mrb[0].mxu0 %v8314
  %v8403 = vpop.f32.mrb[0].mxu0
  %v8404 = vadd.f32 %v8283, %v8403
  %v8405 = vpop.f32.mrb[0].mxu0
  %v8406 = vpop.f32.mrb[0].mxu0
  %v8407 = vadd.f32 %v8286, %v8406
  %v8408 = vpop.f32.mrb[0].mxu0
  %8409 = vmatprep.mubr.bf16.mxu0 0
  %8410 = vmatmul.mubr.bf16.gmra.mrb[0].mxu0 %v8316
  %v8411 = vpop.f32.mrb[0].mxu0
  %v8412 = vadd.f32 %v8291, %v8411
  %v8413 = vpop.f32.mrb[0].mxu0
  %v8414 = vpop.f32.mrb[0].mxu0
  %v8415 = vadd.f32 %v8294, %v8414
  %v8416 = vpop.f32.mrb[0].mxu0
  %8417 = vdwg.mxu0
  %v8418 = vld [vmem:[%s7178] sm:$0xf]
  %v8419 = vld [vmem:[%s7178 + $0x20] sm:$0xf]
  %v8420 = vld [vmem:[%s7178 + $0x40] sm:$0xf]
  %v8421 = vld [vmem:[%s7178 + $0x60] sm:$0xf]
  %v8422 = vld [vmem:[%s7178 + $0x80] sm:$0xf]
  %v8423 = vld [vmem:[%s7178 + $0xa0] sm:$0xf]
  %v8424 = vld [vmem:[%s7178 + $0xc0] sm:$0xf]
  %v8425 = vld [vmem:[%s7178 + $0xe0] sm:$0xf]
  %v8426 = vld [vmem:[%s7178 + $0x120] sm:$0xf]
  %v8427 = vld [vmem:[%s7178 + $0x140] sm:$0xf]
  %v8428 = vld [vmem:[%s7178 + $0x160] sm:$0xf]
  %v8429 = vld [vmem:[%s7178 + $0x180] sm:$0xf]
  %v8430 = vld [vmem:[%s7178 + $0x1a0] sm:$0xf]
  %v8431 = vld [vmem:[%s7178 + $0x1c0] sm:$0xf]
  %v8432 = vld [vmem:[%s7178 + $0x1e0] sm:$0xf]
  %v8433 = vld [vmem:[%s7178 + $0x200] sm:$0xf]
  %v8434 = vld [vmem:[%s6937] sm:$0xf]
  %v8435 = vld [vmem:[%s6937 + $0x20] sm:$0xf]
  %v8436 = vld [vmem:[%s6937 + $0x40] sm:$0xf]
  %v8437 = vld [vmem:[%s6937 + $0x60] sm:$0xf]
  %v8438 = vld [vmem:[%s6937 + $0x80] sm:$0xf]
  %v8439 = vld [vmem:[%s6937 + $0xa0] sm:$0xf]
  %v8440 = vld [vmem:[%s6937 + $0xc0] sm:$0xf]
  %v8441 = vld [vmem:[%s6937 + $0xe0] sm:$0xf]
  %v8442 = vld [vmem:[%s6937 + $0x120] sm:$0xf]
  %v8443 = vld [vmem:[%s6937 + $0x140] sm:$0xf]
  %v8444 = vld [vmem:[%s6937 + $0x160] sm:$0xf]
  %v8445 = vld [vmem:[%s6937 + $0x180] sm:$0xf]
  %v8446 = vld [vmem:[%s6937 + $0x1a0] sm:$0xf]
  %v8447 = vld [vmem:[%s6937 + $0x1c0] sm:$0xf]
  %v8448 = vld [vmem:[%s6937 + $0x1e0] sm:$0xf]
  %v8449 = vld [vmem:[%s6937 + $0x200] sm:$0xf]
  %v8450 = vld [vmem:[%s7178 + $0x4] sm:$0x1]
  %v8451 = vld [vmem:[%s7178 + $0x24] sm:$0x1]
  %v8452 = vld [vmem:[%s7178 + $0x44] sm:$0x1]
  %v8453 = vld [vmem:[%s7178 + $0x64] sm:$0x1]
  %v8454 = vld [vmem:[%s7178 + $0x84] sm:$0x1]
  %v8455 = vld [vmem:[%s7178 + $0xa4] sm:$0x1]
  %v8456 = vld [vmem:[%s7178 + $0xc4] sm:$0x1]
  %v8457 = vld [vmem:[%s7178 + $0xe4] sm:$0x1]
  %v8458 = vld [vmem:[%s7178 + $0x124] sm:$0x1]
  %v8459 = vld [vmem:[%s7178 + $0x144] sm:$0x1]
  %v8460 = vld [vmem:[%s7178 + $0x164] sm:$0x1]
  %v8461 = vld [vmem:[%s7178 + $0x184] sm:$0x1]
  %v8462 = vld [vmem:[%s7178 + $0x1a4] sm:$0x1]
  %v8463 = vld [vmem:[%s7178 + $0x1c4] sm:$0x1]
  %v8464 = vld [vmem:[%s7178 + $0x1e4] sm:$0x1]
  %v8465 = vld [vmem:[%s7178 + $0x204] sm:$0x1]
  %v8467 = vshrl.u32 %v8418, 16
  %v8469 = vrot.slane %v8467, 4
  %v8470 = vshll.u32 %v8418, 16
  %v8472 = vrot.slane %v8470, 5
  %v8473 = vor.u32 %v8469, %v8472
  %v8474 = vrot.slane %v8473, 4
  %v8476 = vshll.u32 %v8450, 16
  %v8478 = vrot.slane %v8476, 5
  %v8479 = vsel %vm1125, %v8474, %v8478
  %v8481 = vshrl.u32 %v8419, 16
  %v8483 = vrot.slane %v8481, 4
  %v8484 = vshll.u32 %v8419, 16
  %v8486 = vrot.slane %v8484, 5
  %v8487 = vor.u32 %v8483, %v8486
  %v8488 = vrot.slane %v8487, 4
  %v8490 = vshll.u32 %v8451, 16
  %v8492 = vrot.slane %v8490, 5
  %v8493 = vsel %vm1125, %v8488, %v8492
  %v8495 = vshrl.u32 %v8420, 16
  %v8497 = vrot.slane %v8495, 4
  %v8498 = vshll.u32 %v8420, 16
  %v8500 = vrot.slane %v8498, 5
  %v8501 = vor.u32 %v8497, %v8500
  %v8502 = vrot.slane %v8501, 4
  %v8504 = vshll.u32 %v8452, 16
  %v8506 = vrot.slane %v8504, 5
  %v8507 = vsel %vm1125, %v8502, %v8506
  %v8509 = vshrl.u32 %v8421, 16
  %v8511 = vrot.slane %v8509, 4
  %v8512 = vshll.u32 %v8421, 16
  %v8514 = vrot.slane %v8512, 5
  %v8515 = vor.u32 %v8511, %v8514
  %v8516 = vrot.slane %v8515, 4
  %v8518 = vshll.u32 %v8453, 16
  %v8520 = vrot.slane %v8518, 5
  %v8521 = vsel %vm1125, %v8516, %v8520
  %v8523 = vshrl.u32 %v8422, 16
  %v8525 = vrot.slane %v8523, 4
  %v8526 = vshll.u32 %v8422, 16
  %v8528 = vrot.slane %v8526, 5
  %v8529 = vor.u32 %v8525, %v8528
  %v8530 = vrot.slane %v8529, 4
  %v8532 = vshll.u32 %v8454, 16
  %v8534 = vrot.slane %v8532, 5
  %v8535 = vsel %vm1125, %v8530, %v8534
  %v8537 = vshrl.u32 %v8423, 16
  %v8539 = vrot.slane %v8537, 4
  %v8540 = vshll.u32 %v8423, 16
  %v8542 = vrot.slane %v8540, 5
  %v8543 = vor.u32 %v8539, %v8542
  %v8544 = vrot.slane %v8543, 4
  %v8546 = vshll.u32 %v8455, 16
  %v8548 = vrot.slane %v8546, 5
  %v8549 = vsel %vm1125, %v8544, %v8548
  %v8551 = vshrl.u32 %v8424, 16
  %v8553 = vrot.slane %v8551, 4
  %v8554 = vshll.u32 %v8424, 16
  %v8556 = vrot.slane %v8554, 5
  %v8557 = vor.u32 %v8553, %v8556
  %v8558 = vrot.slane %v8557, 4
  %v8560 = vshll.u32 %v8456, 16
  %v8562 = vrot.slane %v8560, 5
  %v8563 = vsel %vm1125, %v8558, %v8562
  %v8565 = vshrl.u32 %v8425, 16
  %v8567 = vrot.slane %v8565, 4
  %v8568 = vshll.u32 %v8425, 16
  %v8570 = vrot.slane %v8568, 5
  %v8571 = vor.u32 %v8567, %v8570
  %v8572 = vrot.slane %v8571, 4
  %v8574 = vshll.u32 %v8457, 16
  %v8576 = vrot.slane %v8574, 5
  %v8577 = vsel %vm1125, %v8572, %v8576
  %v8579 = vshrl.u32 %v8426, 16
  %v8581 = vrot.slane %v8579, 4
  %v8582 = vshll.u32 %v8426, 16
  %v8584 = vrot.slane %v8582, 5
  %v8585 = vor.u32 %v8581, %v8584
  %v8586 = vrot.slane %v8585, 4
  %v8588 = vshll.u32 %v8458, 16
  %v8590 = vrot.slane %v8588, 5
  %v8591 = vsel %vm1125, %v8586, %v8590
  %v8593 = vshrl.u32 %v8427, 16
  %v8595 = vrot.slane %v8593, 4
  %v8596 = vshll.u32 %v8427, 16
  %v8598 = vrot.slane %v8596, 5
  %v8599 = vor.u32 %v8595, %v8598
  %v8600 = vrot.slane %v8599, 4
  %v8602 = vshll.u32 %v8459, 16
  %v8604 = vrot.slane %v8602, 5
  %v8605 = vsel %vm1125, %v8600, %v8604
  %v8607 = vshrl.u32 %v8428, 16
  %v8609 = vrot.slane %v8607, 4
  %v8610 = vshll.u32 %v8428, 16
  %v8612 = vrot.slane %v8610, 5
  %v8613 = vor.u32 %v8609, %v8612
  %v8614 = vrot.slane %v8613, 4
  %v8616 = vshll.u32 %v8460, 16
  %v8618 = vrot.slane %v8616, 5
  %v8619 = vsel %vm1125, %v8614, %v8618
  %v8621 = vshrl.u32 %v8429, 16
  %v8623 = vrot.slane %v8621, 4
  %v8624 = vshll.u32 %v8429, 16
  %v8626 = vrot.slane %v8624, 5
  %v8627 = vor.u32 %v8623, %v8626
  %v8628 = vrot.slane %v8627, 4
  %v8630 = vshll.u32 %v8461, 16
  %v8632 = vrot.slane %v8630, 5
  %v8633 = vsel %vm1125, %v8628, %v8632
  %v8635 = vshrl.u32 %v8430, 16
  %v8637 = vrot.slane %v8635, 4
  %v8638 = vshll.u32 %v8430, 16
  %v8640 = vrot.slane %v8638, 5
  %v8641 = vor.u32 %v8637, %v8640
  %v8642 = vrot.slane %v8641, 4
  %v8644 = vshll.u32 %v8462, 16
  %v8646 = vrot.slane %v8644, 5
  %v8647 = vsel %vm1125, %v8642, %v8646
  %v8649 = vshrl.u32 %v8431, 16
  %v8651 = vrot.slane %v8649, 4
  %v8652 = vshll.u32 %v8431, 16
  %v8654 = vrot.slane %v8652, 5
  %v8655 = vor.u32 %v8651, %v8654
  %v8656 = vrot.slane %v8655, 4
  %v8658 = vshll.u32 %v8463, 16
  %v8660 = vrot.slane %v8658, 5
  %v8661 = vsel %vm1125, %v8656, %v8660
  %v8663 = vshrl.u32 %v8432, 16
  %v8665 = vrot.slane %v8663, 4
  %v8666 = vshll.u32 %v8432, 16
  %v8668 = vrot.slane %v8666, 5
  %v8669 = vor.u32 %v8665, %v8668
  %v8670 = vrot.slane %v8669, 4
  %v8672 = vshll.u32 %v8464, 16
  %v8674 = vrot.slane %v8672, 5
  %v8675 = vsel %vm1125, %v8670, %v8674
  %v8677 = vshrl.u32 %v8433, 16
  %v8679 = vrot.slane %v8677, 4
  %v8680 = vshll.u32 %v8433, 16
  %v8682 = vrot.slane %v8680, 5
  %v8683 = vor.u32 %v8679, %v8682
  %v8684 = vrot.slane %v8683, 4
  %v8686 = vshll.u32 %v8465, 16
  %v8688 = vrot.slane %v8686, 5
  %v8689 = vsel %vm1125, %v8684, %v8688
  %v8706 = vunpack.c.l.b16 %v8418
  %v8707 = vunpack.c.l.b16 %v8419
  %v8708 = vunpack.c.l.b16 %v8420
  %v8709 = vunpack.c.l.b16 %v8421
  %v8710 = vunpack.c.l.b16 %v8422
  %v8711 = vunpack.c.l.b16 %v8423
  %v8712 = vunpack.c.l.b16 %v8424
  %v8713 = vunpack.c.l.b16 %v8425
  %v8714 = vunpack.c.l.b16 %v8426
  %v8715 = vunpack.c.l.b16 %v8427
  %v8716 = vunpack.c.l.b16 %v8428
  %v8717 = vunpack.c.l.b16 %v8429
  %v8718 = vunpack.c.l.b16 %v8430
  %v8719 = vunpack.c.l.b16 %v8431
  %v8720 = vunpack.c.l.b16 %v8432
  %v8721 = vunpack.c.l.b16 %v8433
  %v8722 = vpack.c.b16 %v8707, %v8706
  %v8723 = vpack.c.b16 %v8709, %v8708
  %v8724 = vpack.c.b16 %v8711, %v8710
  %v8725 = vpack.c.b16 %v8713, %v8712
  %v8726 = vpack.c.b16 %v8715, %v8714
  %v8727 = vpack.c.b16 %v8717, %v8716
  %v8728 = vpack.c.b16 %v8719, %v8718
  %v8729 = vpack.c.b16 %v8721, %v8720
  %v8746 = vunpack.c.l.b16 %v8434
  %v8747 = vunpack.c.l.b16 %v8435
  %v8748 = vunpack.c.l.b16 %v8436
  %v8749 = vunpack.c.l.b16 %v8437
  %v8750 = vunpack.c.l.b16 %v8438
  %v8751 = vunpack.c.l.b16 %v8439
  %v8752 = vunpack.c.l.b16 %v8440
  %v8753 = vunpack.c.l.b16 %v8441
  %v8754 = vunpack.c.l.b16 %v8442
  %v8755 = vunpack.c.l.b16 %v8443
  %v8756 = vunpack.c.l.b16 %v8444
  %v8757 = vunpack.c.l.b16 %v8445
  %v8758 = vunpack.c.l.b16 %v8446
  %v8759 = vunpack.c.l.b16 %v8447
  %v8760 = vunpack.c.l.b16 %v8448
  %v8761 = vunpack.c.l.b16 %v8449
  %v8762 = vpack.c.b16 %v8747, %v8746
  %v8763 = vpack.c.b16 %v8749, %v8748
  %v8764 = vpack.c.b16 %v8751, %v8750
  %v8765 = vpack.c.b16 %v8753, %v8752
  %v8766 = vpack.c.b16 %v8755, %v8754
  %v8767 = vpack.c.b16 %v8757, %v8756
  %v8768 = vpack.c.b16 %v8759, %v8758
  %v8769 = vpack.c.b16 %v8761, %v8760
  %8770 = vrot.lane.b32.xlu0 %v8762, 4
  %v8771 = vpop.permute.xlu0 %8770
  %8772 = vrot.lane.b32.xlu0 %v8763, 4
  %v8773 = vpop.permute.xlu0 %8772
  %8774 = vrot.lane.b32.xlu0 %v8764, 4
  %v8775 = vpop.permute.xlu0 %8774
  %8776 = vrot.lane.b32.xlu0 %v8765, 4
  %v8777 = vpop.permute.xlu0 %8776
  %8778 = vrot.lane.b32.xlu0 %v8766, 4
  %v8779 = vpop.permute.xlu0 %8778
  %8780 = vrot.lane.b32.xlu0 %v8767, 4
  %v8781 = vpop.permute.xlu0 %8780
  %8782 = vrot.lane.b32.xlu0 %v8768, 4
  %v8783 = vpop.permute.xlu0 %8782
  %8784 = vrot.lane.b32.xlu0 %v8769, 4
  %v8785 = vpop.permute.xlu0 %8784
  %v8786 = vunpack.c.l.b16 %v8479
  %v8787 = vunpack.c.l.b16 %v8493
  %v8788 = vunpack.c.l.b16 %v8507
  %v8789 = vunpack.c.l.b16 %v8521
  %v8790 = vunpack.c.l.b16 %v8535
  %v8791 = vunpack.c.l.b16 %v8549
  %v8792 = vunpack.c.l.b16 %v8563
  %v8793 = vunpack.c.l.b16 %v8577
  %v8794 = vunpack.c.l.b16 %v8591
  %v8795 = vunpack.c.l.b16 %v8605
  %v8796 = vunpack.c.l.b16 %v8619
  %v8797 = vunpack.c.l.b16 %v8633
  %v8798 = vunpack.c.l.b16 %v8647
  %v8799 = vunpack.c.l.b16 %v8661
  %v8800 = vunpack.c.l.b16 %v8675
  %v8801 = vunpack.c.l.b16 %v8689
  %v8802 = vpack.c.b16 %v8787, %v8786
  %v8803 = vpack.c.b16 %v8789, %v8788
  %v8804 = vpack.c.b16 %v8791, %v8790
  %v8805 = vpack.c.b16 %v8793, %v8792
  %v8806 = vpack.c.b16 %v8795, %v8794
  %v8807 = vpack.c.b16 %v8797, %v8796
  %v8808 = vpack.c.b16 %v8799, %v8798
  %v8809 = vpack.c.b16 %v8801, %v8800
  %8810 = vrot.lane.b32.xlu0 %v8802, 8
  %v8811 = vpop.permute.xlu0 %8810
  %8812 = vrot.lane.b32.xlu0 %v8803, 8
  %v8813 = vpop.permute.xlu0 %8812
  %8814 = vrot.lane.b32.xlu0 %v8804, 8
  %v8815 = vpop.permute.xlu0 %8814
  %8816 = vrot.lane.b32.xlu0 %v8805, 8
  %v8817 = vpop.permute.xlu0 %8816
  %8818 = vrot.lane.b32.xlu0 %v8806, 8
  %v8819 = vpop.permute.xlu0 %8818
  %8820 = vrot.lane.b32.xlu0 %v8807, 8
  %v8821 = vpop.permute.xlu0 %8820
  %8822 = vrot.lane.b32.xlu0 %v8808, 8
  %v8823 = vpop.permute.xlu0 %8822
  %8824 = vrot.lane.b32.xlu0 %v8809, 8
  %v8825 = vpop.permute.xlu0 %8824
  %v8828 = vsel %vm1486, %v8722, %v8771
  %v8831 = vsel %vm1486, %v8723, %v8773
  %v8834 = vsel %vm1486, %v8724, %v8775
  %v8837 = vsel %vm1486, %v8725, %v8777
  %v8840 = vsel %vm1486, %v8726, %v8779
  %v8843 = vsel %vm1486, %v8727, %v8781
  %v8846 = vsel %vm1486, %v8728, %v8783
  %v8849 = vsel %vm1486, %v8729, %v8785
  %v8851 = vsel %vm1511, %v8828, %v8811
  %v8853 = vsel %vm1511, %v8831, %v8813
  %v8855 = vsel %vm1511, %v8834, %v8815
  %v8857 = vsel %vm1511, %v8837, %v8817
  %v8859 = vsel %vm1511, %v8840, %v8819
  %v8861 = vsel %vm1511, %v8843, %v8821
  %v8863 = vsel %vm1511, %v8846, %v8823
  %v8865 = vsel %vm1511, %v8849, %v8825
  %s8866 = scalar_lea.vmem %s5, 16
  %v8867 = vld [vmem:[%s8866] sm:$0xf]
  %v8868 = vld [vmem:[%s8866 + $0x4] sm:$0x3]
  %v8871 = vunpack.c.l.b16 %v8867
  %v8872 = vunpack.c.l.b16 %v8868
  %v8873 = vpack.c.b16 %v8872, %v8871
  %v8874 = vsel %vm1986, %v8851, 0
  %v8876 = vsel %vm1986, %v8853, 0
  %v8878 = vsel %vm1986, %v8855, 0
  %v8880 = vsel %vm1986, %v8857, 0
  %v8882 = vsel %vm1986, %v8859, 0
  %v8884 = vsel %vm1986, %v8861, 0
  %v8886 = vsel %vm1986, %v8863, 0
  %v8888 = vsel %vm1986, %v8865, 0
  %v8891 = vsel %vm2003, %v8873, 0
  %8893 = vmatprep.subr.bf16.mxu0 0
  %8894 = vmatpush1.bf16.msra.mxu0 %v8891
  %8895 = vmatprep.subr.bf16.mxu0 0
  %8896 = vmatpush1.bf16.msra.mxu0 0
  %8897 = vmatprep.subr.bf16.mxu0 0
  %8898 = vmatpush1.bf16.msra.mxu0 0
  %8899 = vmatprep.subr.bf16.mxu0 0
  %8900 = vmatpush1.bf16.msra.mxu0 0
  %8901 = vmatprep.subr.bf16.mxu0 0
  %8902 = vmatpush1.bf16.msra.mxu0 0
  %8903 = vmatprep.subr.bf16.mxu0 0
  %8904 = vmatpush1.bf16.msra.mxu0 0
  %8905 = vmatprep.subr.bf16.mxu0 0
  %8906 = vmatpush1.bf16.msra.mxu0 0
  %8907 = vmatprep.subr.bf16.mxu0 0
  %8908 = vmatpush1.bf16.msra.mxu0 0
  %8909 = vmatprep.subr.bf16.mxu0 0
  %8910 = vmatpush1.bf16.msra.mxu0 0
  %8911 = vmatprep.subr.bf16.mxu0 0
  %8912 = vmatpush1.bf16.msra.mxu0 0
  %8913 = vmatprep.subr.bf16.mxu0 0
  %8914 = vmatpush1.bf16.msra.mxu0 0
  %8915 = vmatprep.subr.bf16.mxu0 0
  %8916 = vmatpush1.bf16.msra.mxu0 0
  %8917 = vmatprep.subr.bf16.mxu0 0
  %8918 = vmatpush1.bf16.msra.mxu0 0
  %8919 = vmatprep.subr.bf16.mxu0 0
  %8920 = vmatpush1.bf16.msra.mxu0 0
  %8921 = vmatprep.subr.bf16.mxu0 0
  %8922 = vmatpush1.bf16.msra.mxu0 0
  %8923 = vmatprep.subr.bf16.mxu0 0
  %8924 = vmatpush1.bf16.msra.mxu0 0
  %8925 = vmatprep.mubr.bf16.mxu0 0
  %8926 = vmatmul.mubr.bf16.gmra.mrb[0].mxu0 %v8874
  %v8927 = vpop.f32.mrb[0].mxu0
  %v8928 = vadd.f32 0.0, %v8927
  %v8929 = vpop.f32.mrb[0].mxu0
  %v8930 = vpop.f32.mrb[0].mxu0
  %v8931 = vadd.f32 0.0, %v8930
  %v8932 = vpop.f32.mrb[0].mxu0
  %8933 = vmatprep.mubr.bf16.mxu0 0
  %8934 = vmatmul.mubr.bf16.gmra.mrb[0].mxu0 %v8876
  %v8935 = vpop.f32.mrb[0].mxu0
  %v8936 = vadd.f32 0.0, %v8935
  %v8937 = vpop.f32.mrb[0].mxu0
  %v8938 = vpop.f32.mrb[0].mxu0
  %v8939 = vadd.f32 0.0, %v8938
  %v8940 = vpop.f32.mrb[0].mxu0
  %8941 = vmatprep.mubr.bf16.mxu0 0
  %8942 = vmatmul.mubr.bf16.gmra.mrb[0].mxu0 %v8878
  %v8943 = vpop.f32.mrb[0].mxu0
  %v8944 = vadd.f32 0.0, %v8943
  %v8945 = vpop.f32.mrb[0].mxu0
  %v8946 = vpop.f32.mrb[0].mxu0
  %v8947 = vadd.f32 0.0, %v8946
  %v8948 = vpop.f32.mrb[0].mxu0
  %8949 = vmatprep.mubr.bf16.mxu0 0
  %8950 = vmatmul.mubr.bf16.gmra.mrb[0].mxu0 %v8880
  %v8951 = vpop.f32.mrb[0].mxu0
  %v8952 = vadd.f32 0.0, %v8951
  %v8953 = vpop.f32.mrb[0].mxu0
  %v8954 = vpop.f32.mrb[0].mxu0
  %v8955 = vadd.f32 0.0, %v8954
  %v8956 = vpop.f32.mrb[0].mxu0
  %8957 = vmatprep.mubr.bf16.mxu0 0
  %8958 = vmatmul.mubr.bf16.gmra.mrb[0].mxu0 %v8882
  %v8959 = vpop.f32.mrb[0].mxu0
  %v8960 = vadd.f32 0.0, %v8959
  %v8961 = vpop.f32.mrb[0].mxu0
  %v8962 = vpop.f32.mrb[0].mxu0
  %v8963 = vadd.f32 0.0, %v8962
  %v8964 = vpop.f32.mrb[0].mxu0
  %8965 = vmatprep.mubr.bf16.mxu0 0
  %8966 = vmatmul.mubr.bf16.gmra.mrb[0].mxu0 %v8884
  %v8967 = vpop.f32.mrb[0].mxu0
  %v8968 = vadd.f32 0.0, %v8967
  %v8969 = vpop.f32.mrb[0].mxu0
  %v8970 = vpop.f32.mrb[0].mxu0
  %v8971 = vadd.f32 0.0, %v8970
  %v8972 = vpop.f32.mrb[0].mxu0
  %8973 = vmatprep.mubr.bf16.mxu0 0
  %8974 = vmatmul.mubr.bf16.gmra.mrb[0].mxu0 %v8886
  %v8975 = vpop.f32.mrb[0].mxu0
  %v8976 = vadd.f32 0.0, %v8975
  %v8977 = vpop.f32.mrb[0].mxu0
  %v8978 = vpop.f32.mrb[0].mxu0
  %v8979 = vadd.f32 0.0, %v8978
  %v8980 = vpop.f32.mrb[0].mxu0
  %8981 = vmatprep.mubr.bf16.mxu0 0
  %8982 = vmatmul.mubr.bf16.gmra.mrb[0].mxu0 %v8888
  %v8983 = vpop.f32.mrb[0].mxu0
  %v8984 = vadd.f32 0.0, %v8983
  %v8985 = vpop.f32.mrb[0].mxu0
  %v8986 = vpop.f32.mrb[0].mxu0
  %v8987 = vadd.f32 0.0, %v8986
  %v8988 = vpop.f32.mrb[0].mxu0
  %8989 = vdwg.mxu0
  %v8990 = vadd.f32 %v8356, %v8928
  %v8991 = vadd.f32 %v8359, %v8931
  %v8992 = vadd.f32 %v8364, %v8936
  %v8993 = vadd.f32 %v8367, %v8939
  %v8994 = vadd.f32 %v8372, %v8944
  %v8995 = vadd.f32 %v8375, %v8947
  %v8996 = vadd.f32 %v8380, %v8952
  %v8997 = vadd.f32 %v8383, %v8955
  %v8998 = vadd.f32 %v8388, %v8960
  %v8999 = vadd.f32 %v8391, %v8963
  %v9000 = vadd.f32 %v8396, %v8968
  %v9001 = vadd.f32 %v8399, %v8971
  %v9002 = vadd.f32 %v8404, %v8976
  %v9003 = vadd.f32 %v8407, %v8979
  %v9004 = vadd.f32 %v8412, %v8984
  %v9005 = vadd.f32 %v8415, %v8987
  %v9006 = vld [vmem:[%s6458] sm:$0xf]
  %v9007 = vld [vmem:[%s6458 + $0x4] sm:$0x1]
  %v9008 = vld [vmem:[%s6458 + $0x20] sm:$0xf]
  %v9009 = vld [vmem:[%s6458 + $0x24] sm:$0x1]
  %v9010 = vld [vmem:[%s6458 + $0x40] sm:$0xf]
  %v9011 = vld [vmem:[%s6458 + $0x44] sm:$0x1]
  %v9012 = vld [vmem:[%s6458 + $0x60] sm:$0xf]
  %v9013 = vld [vmem:[%s6458 + $0x64] sm:$0x1]
  %v9014 = vld [vmem:[%s6458 + $0x80] sm:$0xf]
  %v9015 = vld [vmem:[%s6458 + $0x84] sm:$0x1]
  %v9016 = vld [vmem:[%s6458 + $0xa0] sm:$0xf]
  %v9017 = vld [vmem:[%s6458 + $0xa4] sm:$0x1]
  %v9018 = vld [vmem:[%s6458 + $0xc0] sm:$0xf]
  %v9019 = vld [vmem:[%s6458 + $0xc4] sm:$0x1]
  %v9020 = vld [vmem:[%s6458 + $0xe0] sm:$0xf]
  %v9021 = vld [vmem:[%s6458 + $0xe4] sm:$0x1]
  %v9022 = vld [vmem:[%s6458 + $0x120] sm:$0xf]
  %v9023 = vld [vmem:[%s6458 + $0x124] sm:$0x1]
  %v9024 = vld [vmem:[%s6458 + $0x140] sm:$0xf]
  %v9025 = vld [vmem:[%s6458 + $0x144] sm:$0x1]
  %v9026 = vld [vmem:[%s6458 + $0x160] sm:$0xf]
  %v9027 = vld [vmem:[%s6458 + $0x164] sm:$0x1]
  %v9028 = vld [vmem:[%s6458 + $0x180] sm:$0xf]
  %v9029 = vld [vmem:[%s6458 + $0x184] sm:$0x1]
  %v9030 = vld [vmem:[%s6458 + $0x1a0] sm:$0xf]
  %v9031 = vld [vmem:[%s6458 + $0x1a4] sm:$0x1]
  %v9032 = vld [vmem:[%s6458 + $0x1c0] sm:$0xf]
  %v9033 = vld [vmem:[%s6458 + $0x1c4] sm:$0x1]
  %v9034 = vld [vmem:[%s6458 + $0x1e0] sm:$0xf]
  %v9035 = vld [vmem:[%s6458 + $0x1e4] sm:$0x1]
  %v9036 = vld [vmem:[%s6458 + $0x200] sm:$0xf]
  %v9037 = vld [vmem:[%s6458 + $0x204] sm:$0x1]
  %v9039 = vshrl.u32 %v9006, 16
  %v9041 = vrot.slane %v9039, 4
  %v9042 = vshll.u32 %v9006, 16
  %v9044 = vrot.slane %v9042, 5
  %v9045 = vor.u32 %v9041, %v9044
  %v9046 = vrot.slane %v9045, 4
  %v9048 = vshll.u32 %v9007, 16
  %v9050 = vrot.slane %v9048, 5
  %v9051 = vsel %vm1125, %v9046, %v9050
  %v9053 = vshrl.u32 %v9008, 16
  %v9055 = vrot.slane %v9053, 4
  %v9056 = vshll.u32 %v9008, 16
  %v9058 = vrot.slane %v9056, 5
  %v9059 = vor.u32 %v9055, %v9058
  %v9060 = vrot.slane %v9059, 4
  %v9062 = vshll.u32 %v9009, 16
  %v9064 = vrot.slane %v9062, 5
  %v9065 = vsel %vm1125, %v9060, %v9064
  %v9067 = vshrl.u32 %v9010, 16
  %v9069 = vrot.slane %v9067, 4
  %v9070 = vshll.u32 %v9010, 16
  %v9072 = vrot.slane %v9070, 5
  %v9073 = vor.u32 %v9069, %v9072
  %v9074 = vrot.slane %v9073, 4
  %v9076 = vshll.u32 %v9011, 16
  %v9078 = vrot.slane %v9076, 5
  %v9079 = vsel %vm1125, %v9074, %v9078
  %v9081 = vshrl.u32 %v9012, 16
  %v9083 = vrot.slane %v9081, 4
  %v9084 = vshll.u32 %v9012, 16
  %v9086 = vrot.slane %v9084, 5
  %v9087 = vor.u32 %v9083, %v9086
  %v9088 = vrot.slane %v9087, 4
  %v9090 = vshll.u32 %v9013, 16
  %v9092 = vrot.slane %v9090, 5
  %v9093 = vsel %vm1125, %v9088, %v9092
  %v9095 = vshrl.u32 %v9014, 16
  %v9097 = vrot.slane %v9095, 4
  %v9098 = vshll.u32 %v9014, 16
  %v9100 = vrot.slane %v9098, 5
  %v9101 = vor.u32 %v9097, %v9100
  %v9102 = vrot.slane %v9101, 4
  %v9104 = vshll.u32 %v9015, 16
  %v9106 = vrot.slane %v9104, 5
  %v9107 = vsel %vm1125, %v9102, %v9106
  %v9109 = vshrl.u32 %v9016, 16
  %v9111 = vrot.slane %v9109, 4
  %v9112 = vshll.u32 %v9016, 16
  %v9114 = vrot.slane %v9112, 5
  %v9115 = vor.u32 %v9111, %v9114
  %v9116 = vrot.slane %v9115, 4
  %v9118 = vshll.u32 %v9017, 16
  %v9120 = vrot.slane %v9118, 5
  %v9121 = vsel %vm1125, %v9116, %v9120
  %v9123 = vshrl.u32 %v9018, 16
  %v9125 = vrot.slane %v9123, 4
  %v9126 = vshll.u32 %v9018, 16
  %v9128 = vrot.slane %v9126, 5
  %v9129 = vor.u32 %v9125, %v9128
  %v9130 = vrot.slane %v9129, 4
  %v9132 = vshll.u32 %v9019, 16
  %v9134 = vrot.slane %v9132, 5
  %v9135 = vsel %vm1125, %v9130, %v9134
  %v9137 = vshrl.u32 %v9020, 16
  %v9139 = vrot.slane %v9137, 4
  %v9140 = vshll.u32 %v9020, 16
  %v9142 = vrot.slane %v9140, 5
  %v9143 = vor.u32 %v9139, %v9142
  %v9144 = vrot.slane %v9143, 4
  %v9146 = vshll.u32 %v9021, 16
  %v9148 = vrot.slane %v9146, 5
  %v9149 = vsel %vm1125, %v9144, %v9148
  %v9151 = vshrl.u32 %v9022, 16
  %v9153 = vrot.slane %v9151, 4
  %v9154 = vshll.u32 %v9022, 16
  %v9156 = vrot.slane %v9154, 5
  %v9157 = vor.u32 %v9153, %v9156
  %v9158 = vrot.slane %v9157, 4
  %v9160 = vshll.u32 %v9023, 16
  %v9162 = vrot.slane %v9160, 5
  %v9163 = vsel %vm1125, %v9158, %v9162
  %v9165 = vshrl.u32 %v9024, 16
  %v9167 = vrot.slane %v9165, 4
  %v9168 = vshll.u32 %v9024, 16
  %v9170 = vrot.slane %v9168, 5
  %v9171 = vor.u32 %v9167, %v9170
  %v9172 = vrot.slane %v9171, 4
  %v9174 = vshll.u32 %v9025, 16
  %v9176 = vrot.slane %v9174, 5
  %v9177 = vsel %vm1125, %v9172, %v9176
  %v9179 = vshrl.u32 %v9026, 16
  %v9181 = vrot.slane %v9179, 4
  %v9182 = vshll.u32 %v9026, 16
  %v9184 = vrot.slane %v9182, 5
  %v9185 = vor.u32 %v9181, %v9184
  %v9186 = vrot.slane %v9185, 4
  %v9188 = vshll.u32 %v9027, 16
  %v9190 = vrot.slane %v9188, 5
  %v9191 = vsel %vm1125, %v9186, %v9190
  %v9193 = vshrl.u32 %v9028, 16
  %v9195 = vrot.slane %v9193, 4
  %v9196 = vshll.u32 %v9028, 16
  %v9198 = vrot.slane %v9196, 5
  %v9199 = vor.u32 %v9195, %v9198
  %v9200 = vrot.slane %v9199, 4
  %v9202 = vshll.u32 %v9029, 16
  %v9204 = vrot.slane %v9202, 5
  %v9205 = vsel %vm1125, %v9200, %v9204
  %v9207 = vshrl.u32 %v9030, 16
  %v9209 = vrot.slane %v9207, 4
  %v9210 = vshll.u32 %v9030, 16
  %v9212 = vrot.slane %v9210, 5
  %v9213 = vor.u32 %v9209, %v9212
  %v9214 = vrot.slane %v9213, 4
  %v9216 = vshll.u32 %v9031, 16
  %v9218 = vrot.slane %v9216, 5
  %v9219 = vsel %vm1125, %v9214, %v9218
  %v9221 = vshrl.u32 %v9032, 16
  %v9223 = vrot.slane %v9221, 4
  %v9224 = vshll.u32 %v9032, 16
  %v9226 = vrot.slane %v9224, 5
  %v9227 = vor.u32 %v9223, %v9226
  %v9228 = vrot.slane %v9227, 4
  %v9230 = vshll.u32 %v9033, 16
  %v9232 = vrot.slane %v9230, 5
  %v9233 = vsel %vm1125, %v9228, %v9232
  %v9235 = vshrl.u32 %v9034, 16
  %v9237 = vrot.slane %v9235, 4
  %v9238 = vshll.u32 %v9034, 16
  %v9240 = vrot.slane %v9238, 5
  %v9241 = vor.u32 %v9237, %v9240
  %v9242 = vrot.slane %v9241, 4
  %v9244 = vshll.u32 %v9035, 16
  %v9246 = vrot.slane %v9244, 5
  %v9247 = vsel %vm1125, %v9242, %v9246
  %v9249 = vshrl.u32 %v9036, 16
  %v9251 = vrot.slane %v9249, 4
  %v9252 = vshll.u32 %v9036, 16
  %v9254 = vrot.slane %v9252, 5
  %v9255 = vor.u32 %v9251, %v9254
  %v9256 = vrot.slane %v9255, 4
  %v9258 = vshll.u32 %v9037, 16
  %v9260 = vrot.slane %v9258, 5
  %v9261 = vsel %vm1125, %v9256, %v9260
  %9262 = vrot.lane.b32.xlu0 %v7659, 4
  %v9263 = vpop.permute.xlu0 %9262
  %9264 = vrot.lane.b32.xlu0 %v7660, 4
  %v9265 = vpop.permute.xlu0 %9264
  %9266 = vrot.lane.b32.xlu0 %v7661, 4
  %v9267 = vpop.permute.xlu0 %9266
  %9268 = vrot.lane.b32.xlu0 %v7662, 4
  %v9269 = vpop.permute.xlu0 %9268
  %9270 = vrot.lane.b32.xlu0 %v7663, 4
  %v9271 = vpop.permute.xlu0 %9270
  %9272 = vrot.lane.b32.xlu0 %v7664, 4
  %v9273 = vpop.permute.xlu0 %9272
  %9274 = vrot.lane.b32.xlu0 %v7665, 4
  %v9275 = vpop.permute.xlu0 %9274
  %9276 = vrot.lane.b32.xlu0 %v7666, 4
  %v9277 = vpop.permute.xlu0 %9276
  %v9278 = vunpack.c.l.b16 %v9051
  %v9279 = vunpack.c.l.b16 %v9065
  %v9280 = vunpack.c.l.b16 %v9079
  %v9281 = vunpack.c.l.b16 %v9093
  %v9282 = vunpack.c.l.b16 %v9107
  %v9283 = vunpack.c.l.b16 %v9121
  %v9284 = vunpack.c.l.b16 %v9135
  %v9285 = vunpack.c.l.b16 %v9149
  %v9286 = vunpack.c.l.b16 %v9163
  %v9287 = vunpack.c.l.b16 %v9177
  %v9288 = vunpack.c.l.b16 %v9191
  %v9289 = vunpack.c.l.b16 %v9205
  %v9290 = vunpack.c.l.b16 %v9219
  %v9291 = vunpack.c.l.b16 %v9233
  %v9292 = vunpack.c.l.b16 %v9247
  %v9293 = vunpack.c.l.b16 %v9261
  %v9294 = vpack.c.b16 %v9279, %v9278
  %v9295 = vpack.c.b16 %v9281, %v9280
  %v9296 = vpack.c.b16 %v9283, %v9282
  %v9297 = vpack.c.b16 %v9285, %v9284
  %v9298 = vpack.c.b16 %v9287, %v9286
  %v9299 = vpack.c.b16 %v9289, %v9288
  %v9300 = vpack.c.b16 %v9291, %v9290
  %v9301 = vpack.c.b16 %v9293, %v9292
  %9302 = vrot.lane.b32.xlu0 %v9294, 8
  %v9303 = vpop.permute.xlu0 %9302
  %9304 = vrot.lane.b32.xlu0 %v9295, 8
  %v9305 = vpop.permute.xlu0 %9304
  %9306 = vrot.lane.b32.xlu0 %v9296, 8
  %v9307 = vpop.permute.xlu0 %9306
  %9308 = vrot.lane.b32.xlu0 %v9297, 8
  %v9309 = vpop.permute.xlu0 %9308
  %9310 = vrot.lane.b32.xlu0 %v9298, 8
  %v9311 = vpop.permute.xlu0 %9310
  %9312 = vrot.lane.b32.xlu0 %v9299, 8
  %v9313 = vpop.permute.xlu0 %9312
  %9314 = vrot.lane.b32.xlu0 %v9300, 8
  %v9315 = vpop.permute.xlu0 %9314
  %9316 = vrot.lane.b32.xlu0 %v9301, 8
  %v9317 = vpop.permute.xlu0 %9316
  %v9320 = vsel %vm1486, %v7619, %v9263
  %v9323 = vsel %vm1486, %v7620, %v9265
  %v9326 = vsel %vm1486, %v7621, %v9267
  %v9329 = vsel %vm1486, %v7622, %v9269
  %v9332 = vsel %vm1486, %v7623, %v9271
  %v9335 = vsel %vm1486, %v7624, %v9273
  %v9338 = vsel %vm1486, %v7625, %v9275
  %v9341 = vsel %vm1486, %v7626, %v9277
  %v9343 = vsel %vm1511, %v9320, %v9303
  %v9345 = vsel %vm1511, %v9323, %v9305
  %v9347 = vsel %vm1511, %v9326, %v9307
  %v9349 = vsel %vm1511, %v9329, %v9309
  %v9351 = vsel %vm1511, %v9332, %v9311
  %v9353 = vsel %vm1511, %v9335, %v9313
  %v9355 = vsel %vm1511, %v9338, %v9315
  %v9357 = vsel %vm1511, %v9341, %v9317
  %v9358 = vld [vmem:[%s6583] sm:$0xf]
  %v9359 = vld [vmem:[%s6583 + $0x4] sm:$0x1]
  %v9360 = vld [vmem:[%s6583 + $0x20] sm:$0xf]
  %v9361 = vld [vmem:[%s6583 + $0x24] sm:$0x1]
  %v9362 = vld [vmem:[%s6583 + $0x40] sm:$0xf]
  %v9363 = vld [vmem:[%s6583 + $0x44] sm:$0x1]
  %v9364 = vld [vmem:[%s6583 + $0x60] sm:$0xf]
  %v9365 = vld [vmem:[%s6583 + $0x64] sm:$0x1]
  %v9366 = vld [vmem:[%s6583 + $0x80] sm:$0xf]
  %v9367 = vld [vmem:[%s6583 + $0x84] sm:$0x1]
  %v9368 = vld [vmem:[%s6583 + $0xa0] sm:$0xf]
  %v9369 = vld [vmem:[%s6583 + $0xa4] sm:$0x1]
  %v9370 = vld [vmem:[%s6583 + $0xc0] sm:$0xf]
  %v9371 = vld [vmem:[%s6583 + $0xc4] sm:$0x1]
  %v9372 = vld [vmem:[%s6583 + $0xe0] sm:$0xf]
  %v9373 = vld [vmem:[%s6583 + $0xe4] sm:$0x1]
  %v9374 = vld [vmem:[%s6583 + $0x120] sm:$0xf]
  %v9375 = vld [vmem:[%s6583 + $0x124] sm:$0x1]
  %v9376 = vld [vmem:[%s6583 + $0x140] sm:$0xf]
  %v9377 = vld [vmem:[%s6583 + $0x144] sm:$0x1]
  %v9378 = vld [vmem:[%s6583 + $0x160] sm:$0xf]
  %v9379 = vld [vmem:[%s6583 + $0x164] sm:$0x1]
  %v9380 = vld [vmem:[%s6583 + $0x180] sm:$0xf]
  %v9381 = vld [vmem:[%s6583 + $0x184] sm:$0x1]
  %v9382 = vld [vmem:[%s6583 + $0x1a0] sm:$0xf]
  %v9383 = vld [vmem:[%s6583 + $0x1a4] sm:$0x1]
  %v9384 = vld [vmem:[%s6583 + $0x1c0] sm:$0xf]
  %v9385 = vld [vmem:[%s6583 + $0x1c4] sm:$0x1]
  %v9386 = vld [vmem:[%s6583 + $0x1e0] sm:$0xf]
  %v9387 = vld [vmem:[%s6583 + $0x1e4] sm:$0x1]
  %v9388 = vld [vmem:[%s6583 + $0x200] sm:$0xf]
  %v9389 = vld [vmem:[%s6583 + $0x204] sm:$0x1]
  %v9391 = vshrl.u32 %v9358, 16
  %v9393 = vrot.slane %v9391, 4
  %v9394 = vshll.u32 %v9358, 16
  %v9396 = vrot.slane %v9394, 5
  %v9397 = vor.u32 %v9393, %v9396
  %v9398 = vrot.slane %v9397, 4
  %v9400 = vshll.u32 %v9359, 16
  %v9402 = vrot.slane %v9400, 5
  %v9403 = vsel %vm1125, %v9398, %v9402
  %v9405 = vshrl.u32 %v9360, 16
  %v9407 = vrot.slane %v9405, 4
  %v9408 = vshll.u32 %v9360, 16
  %v9410 = vrot.slane %v9408, 5
  %v9411 = vor.u32 %v9407, %v9410
  %v9412 = vrot.slane %v9411, 4
  %v9414 = vshll.u32 %v9361, 16
  %v9416 = vrot.slane %v9414, 5
  %v9417 = vsel %vm1125, %v9412, %v9416
  %v9419 = vshrl.u32 %v9362, 16
  %v9421 = vrot.slane %v9419, 4
  %v9422 = vshll.u32 %v9362, 16
  %v9424 = vrot.slane %v9422, 5
  %v9425 = vor.u32 %v9421, %v9424
  %v9426 = vrot.slane %v9425, 4
  %v9428 = vshll.u32 %v9363, 16
  %v9430 = vrot.slane %v9428, 5
  %v9431 = vsel %vm1125, %v9426, %v9430
  %v9433 = vshrl.u32 %v9364, 16
  %v9435 = vrot.slane %v9433, 4
  %v9436 = vshll.u32 %v9364, 16
  %v9438 = vrot.slane %v9436, 5
  %v9439 = vor.u32 %v9435, %v9438
  %v9440 = vrot.slane %v9439, 4
  %v9442 = vshll.u32 %v9365, 16
  %v9444 = vrot.slane %v9442, 5
  %v9445 = vsel %vm1125, %v9440, %v9444
  %v9447 = vshrl.u32 %v9366, 16
  %v9449 = vrot.slane %v9447, 4
  %v9450 = vshll.u32 %v9366, 16
  %v9452 = vrot.slane %v9450, 5
  %v9453 = vor.u32 %v9449, %v9452
  %v9454 = vrot.slane %v9453, 4
  %v9456 = vshll.u32 %v9367, 16
  %v9458 = vrot.slane %v9456, 5
  %v9459 = vsel %vm1125, %v9454, %v9458
  %v9461 = vshrl.u32 %v9368, 16
  %v9463 = vrot.slane %v9461, 4
  %v9464 = vshll.u32 %v9368, 16
  %v9466 = vrot.slane %v9464, 5
  %v9467 = vor.u32 %v9463, %v9466
  %v9468 = vrot.slane %v9467, 4
  %v9470 = vshll.u32 %v9369, 16
  %v9472 = vrot.slane %v9470, 5
  %v9473 = vsel %vm1125, %v9468, %v9472
  %v9475 = vshrl.u32 %v9370, 16
  %v9477 = vrot.slane %v9475, 4
  %v9478 = vshll.u32 %v9370, 16
  %v9480 = vrot.slane %v9478, 5
  %v9481 = vor.u32 %v9477, %v9480
  %v9482 = vrot.slane %v9481, 4
  %v9484 = vshll.u32 %v9371, 16
  %v9486 = vrot.slane %v9484, 5
  %v9487 = vsel %vm1125, %v9482, %v9486
  %v9489 = vshrl.u32 %v9372, 16
  %v9491 = vrot.slane %v9489, 4
  %v9492 = vshll.u32 %v9372, 16
  %v9494 = vrot.slane %v9492, 5
  %v9495 = vor.u32 %v9491, %v9494
  %v9496 = vrot.slane %v9495, 4
  %v9498 = vshll.u32 %v9373, 16
  %v9500 = vrot.slane %v9498, 5
  %v9501 = vsel %vm1125, %v9496, %v9500
  %v9503 = vshrl.u32 %v9374, 16
  %v9505 = vrot.slane %v9503, 4
  %v9506 = vshll.u32 %v9374, 16
  %v9508 = vrot.slane %v9506, 5
  %v9509 = vor.u32 %v9505, %v9508
  %v9510 = vrot.slane %v9509, 4
  %v9512 = vshll.u32 %v9375, 16
  %v9514 = vrot.slane %v9512, 5
  %v9515 = vsel %vm1125, %v9510, %v9514
  %v9517 = vshrl.u32 %v9376, 16
  %v9519 = vrot.slane %v9517, 4
  %v9520 = vshll.u32 %v9376, 16
  %v9522 = vrot.slane %v9520, 5
  %v9523 = vor.u32 %v9519, %v9522
  %v9524 = vrot.slane %v9523, 4
  %v9526 = vshll.u32 %v9377, 16
  %v9528 = vrot.slane %v9526, 5
  %v9529 = vsel %vm1125, %v9524, %v9528
  %v9531 = vshrl.u32 %v9378, 16
  %v9533 = vrot.slane %v9531, 4
  %v9534 = vshll.u32 %v9378, 16
  %v9536 = vrot.slane %v9534, 5
  %v9537 = vor.u32 %v9533, %v9536
  %v9538 = vrot.slane %v9537, 4
  %v9540 = vshll.u32 %v9379, 16
  %v9542 = vrot.slane %v9540, 5
  %v9543 = vsel %vm1125, %v9538, %v9542
  %v9545 = vshrl.u32 %v9380, 16
  %v9547 = vrot.slane %v9545, 4
  %v9548 = vshll.u32 %v9380, 16
  %v9550 = vrot.slane %v9548, 5
  %v9551 = vor.u32 %v9547, %v9550
  %v9552 = vrot.slane %v9551, 4
  %v9554 = vshll.u32 %v9381, 16
  %v9556 = vrot.slane %v9554, 5
  %v9557 = vsel %vm1125, %v9552, %v9556
  %v9559 = vshrl.u32 %v9382, 16
  %v9561 = vrot.slane %v9559, 4
  %v9562 = vshll.u32 %v9382, 16
  %v9564 = vrot.slane %v9562, 5
  %v9565 = vor.u32 %v9561, %v9564
  %v9566 = vrot.slane %v9565, 4
  %v9568 = vshll.u32 %v9383, 16
  %v9570 = vrot.slane %v9568, 5
  %v9571 = vsel %vm1125, %v9566, %v9570
  %v9573 = vshrl.u32 %v9384, 16
  %v9575 = vrot.slane %v9573, 4
  %v9576 = vshll.u32 %v9384, 16
  %v9578 = vrot.slane %v9576, 5
  %v9579 = vor.u32 %v9575, %v9578
  %v9580 = vrot.slane %v9579, 4
  %v9582 = vshll.u32 %v9385, 16
  %v9584 = vrot.slane %v9582, 5
  %v9585 = vsel %vm1125, %v9580, %v9584
  %v9587 = vshrl.u32 %v9386, 16
  %v9589 = vrot.slane %v9587, 4
  %v9590 = vshll.u32 %v9386, 16
  %v9592 = vrot.slane %v9590, 5
  %v9593 = vor.u32 %v9589, %v9592
  %v9594 = vrot.slane %v9593, 4
  %v9596 = vshll.u32 %v9387, 16
  %v9598 = vrot.slane %v9596, 5
  %v9599 = vsel %vm1125, %v9594, %v9598
  %v9601 = vshrl.u32 %v9388, 16
  %v9603 = vrot.slane %v9601, 4
  %v9604 = vshll.u32 %v9388, 16
  %v9606 = vrot.slane %v9604, 5
  %v9607 = vor.u32 %v9603, %v9606
  %v9608 = vrot.slane %v9607, 4
  %v9610 = vshll.u32 %v9389, 16
  %v9612 = vrot.slane %v9610, 5
  %v9613 = vsel %vm1125, %v9608, %v9612
  %9614 = vrot.lane.b32.xlu0 %v8109, 4
  %v9615 = vpop.permute.xlu0 %9614
  %9616 = vrot.lane.b32.xlu0 %v8110, 4
  %v9617 = vpop.permute.xlu0 %9616
  %9618 = vrot.lane.b32.xlu0 %v8111, 4
  %v9619 = vpop.permute.xlu0 %9618
  %9620 = vrot.lane.b32.xlu0 %v8112, 4
  %v9621 = vpop.permute.xlu0 %9620
  %9622 = vrot.lane.b32.xlu0 %v8113, 4
  %v9623 = vpop.permute.xlu0 %9622
  %9624 = vrot.lane.b32.xlu0 %v8114, 4
  %v9625 = vpop.permute.xlu0 %9624
  %9626 = vrot.lane.b32.xlu0 %v8115, 4
  %v9627 = vpop.permute.xlu0 %9626
  %9628 = vrot.lane.b32.xlu0 %v8116, 4
  %v9629 = vpop.permute.xlu0 %9628
  %v9630 = vunpack.c.l.b16 %v9403
  %v9631 = vunpack.c.l.b16 %v9417
  %v9632 = vunpack.c.l.b16 %v9431
  %v9633 = vunpack.c.l.b16 %v9445
  %v9634 = vunpack.c.l.b16 %v9459
  %v9635 = vunpack.c.l.b16 %v9473
  %v9636 = vunpack.c.l.b16 %v9487
  %v9637 = vunpack.c.l.b16 %v9501
  %v9638 = vunpack.c.l.b16 %v9515
  %v9639 = vunpack.c.l.b16 %v9529
  %v9640 = vunpack.c.l.b16 %v9543
  %v9641 = vunpack.c.l.b16 %v9557
  %v9642 = vunpack.c.l.b16 %v9571
  %v9643 = vunpack.c.l.b16 %v9585
  %v9644 = vunpack.c.l.b16 %v9599
  %v9645 = vunpack.c.l.b16 %v9613
  %v9646 = vpack.c.b16 %v9631, %v9630
  %v9647 = vpack.c.b16 %v9633, %v9632
  %v9648 = vpack.c.b16 %v9635, %v9634
  %v9649 = vpack.c.b16 %v9637, %v9636
  %v9650 = vpack.c.b16 %v9639, %v9638
  %v9651 = vpack.c.b16 %v9641, %v9640
  %v9652 = vpack.c.b16 %v9643, %v9642
  %v9653 = vpack.c.b16 %v9645, %v9644
  %9654 = vrot.lane.b32.xlu0 %v9646, 8
  %v9655 = vpop.permute.xlu0 %9654
  %9656 = vrot.lane.b32.xlu0 %v9647, 8
  %v9657 = vpop.permute.xlu0 %9656
  %9658 = vrot.lane.b32.xlu0 %v9648, 8
  %v9659 = vpop.permute.xlu0 %9658
  %9660 = vrot.lane.b32.xlu0 %v9649, 8
  %v9661 = vpop.permute.xlu0 %9660
  %9662 = vrot.lane.b32.xlu0 %v9650, 8
  %v9663 = vpop.permute.xlu0 %9662
  %9664 = vrot.lane.b32.xlu0 %v9651, 8
  %v9665 = vpop.permute.xlu0 %9664
  %9666 = vrot.lane.b32.xlu0 %v9652, 8
  %v9667 = vpop.permute.xlu0 %9666
  %9668 = vrot.lane.b32.xlu0 %v9653, 8
  %v9669 = vpop.permute.xlu0 %9668
  %v9672 = vsel %vm1486, %v8069, %v9615
  %v9675 = vsel %vm1486, %v8070, %v9617
  %v9678 = vsel %vm1486, %v8071, %v9619
  %v9681 = vsel %vm1486, %v8072, %v9621
  %v9684 = vsel %vm1486, %v8073, %v9623
  %v9687 = vsel %vm1486, %v8074, %v9625
  %v9690 = vsel %vm1486, %v8075, %v9627
  %v9693 = vsel %vm1486, %v8076, %v9629
  %v9695 = vsel %vm1511, %v9672, %v9655
  %v9697 = vsel %vm1511, %v9675, %v9657
  %v9699 = vsel %vm1511, %v9678, %v9659
  %v9701 = vsel %vm1511, %v9681, %v9661
  %v9703 = vsel %vm1511, %v9684, %v9663
  %v9705 = vsel %vm1511, %v9687, %v9665
  %v9707 = vsel %vm1511, %v9690, %v9667
  %v9709 = vsel %vm1511, %v9693, %v9669
  %v9710 = vsel %vm1986, %v9695, 0
  %v9712 = vsel %vm1986, %v9697, 0
  %v9714 = vsel %vm1986, %v9699, 0
  %v9716 = vsel %vm1986, %v9701, 0
  %v9718 = vsel %vm1986, %v9703, 0
  %v9720 = vsel %vm1986, %v9705, 0
  %v9722 = vsel %vm1986, %v9707, 0
  %v9724 = vsel %vm1986, %v9709, 0
  %9726 = vmatprep.subr.bf16.mxu0 0
  %9727 = vmatpush1.bf16.msra.mxu0 %v8198
  %9728 = vmatprep.subr.bf16.mxu0 0
  %9729 = vmatpush1.bf16.msra.mxu0 0
  %9730 = vmatprep.subr.bf16.mxu0 0
  %9731 = vmatpush1.bf16.msra.mxu0 0
  %9732 = vmatprep.subr.bf16.mxu0 0
  %9733 = vmatpush1.bf16.msra.mxu0 0
  %9734 = vmatprep.subr.bf16.mxu0 0
  %9735 = vmatpush1.bf16.msra.mxu0 0
  %9736 = vmatprep.subr.bf16.mxu0 0
  %9737 = vmatpush1.bf16.msra.mxu0 0
  %9738 = vmatprep.subr.bf16.mxu0 0
  %9739 = vmatpush1.bf16.msra.mxu0 0
  %9740 = vmatprep.subr.bf16.mxu0 0
  %9741 = vmatpush1.bf16.msra.mxu0 0
  %9742 = vmatprep.subr.bf16.mxu0 0
  %9743 = vmatpush1.bf16.msra.mxu0 0
  %9744 = vmatprep.subr.bf16.mxu0 0
  %9745 = vmatpush1.bf16.msra.mxu0 0
  %9746 = vmatprep.subr.bf16.mxu0 0
  %9747 = vmatpush1.bf16.msra.mxu0 0
  %9748 = vmatprep.subr.bf16.mxu0 0
  %9749 = vmatpush1.bf16.msra.mxu0 0
  %9750 = vmatprep.subr.bf16.mxu0 0
  %9751 = vmatpush1.bf16.msra.mxu0 0
  %9752 = vmatprep.subr.bf16.mxu0 0
  %9753 = vmatpush1.bf16.msra.mxu0 0
  %9754 = vmatprep.subr.bf16.mxu0 0
  %9755 = vmatpush1.bf16.msra.mxu0 0
  %9756 = vmatprep.subr.bf16.mxu0 0
  %9757 = vmatpush1.bf16.msra.mxu0 0
  %9758 = vmatprep.mubr.bf16.mxu0 0
  %9759 = vmatmul.mubr.bf16.gmra.mrb[0].mxu0 %v9710
  %v9760 = vpop.f32.mrb[0].mxu0
  %v9761 = vadd.f32 0.0, %v9760
  %v9762 = vpop.f32.mrb[0].mxu0
  %v9763 = vpop.f32.mrb[0].mxu0
  %v9764 = vadd.f32 0.0, %v9763
  %v9765 = vpop.f32.mrb[0].mxu0
  %9766 = vmatprep.mubr.bf16.mxu0 0
  %9767 = vmatmul.mubr.bf16.gmra.mrb[0].mxu0 %v9712
  %v9768 = vpop.f32.mrb[0].mxu0
  %v9769 = vadd.f32 0.0, %v9768
  %v9770 = vpop.f32.mrb[0].mxu0
  %v9771 = vpop.f32.mrb[0].mxu0
  %v9772 = vadd.f32 0.0, %v9771
  %v9773 = vpop.f32.mrb[0].mxu0
  %9774 = vmatprep.mubr.bf16.mxu0 0
  %9775 = vmatmul.mubr.bf16.gmra.mrb[0].mxu0 %v9714
  %v9776 = vpop.f32.mrb[0].mxu0
  %v9777 = vadd.f32 0.0, %v9776
  %v9778 = vpop.f32.mrb[0].mxu0
  %v9779 = vpop.f32.mrb[0].mxu0
  %v9780 = vadd.f32 0.0, %v9779
  %v9781 = vpop.f32.mrb[0].mxu0
  %9782 = vmatprep.mubr.bf16.mxu0 0
  %9783 = vmatmul.mubr.bf16.gmra.mrb[0].mxu0 %v9716
  %v9784 = vpop.f32.mrb[0].mxu0
  %v9785 = vadd.f32 0.0, %v9784
  %v9786 = vpop.f32.mrb[0].mxu0
  %v9787 = vpop.f32.mrb[0].mxu0
  %v9788 = vadd.f32 0.0, %v9787
  %v9789 = vpop.f32.mrb[0].mxu0
  %9790 = vmatprep.mubr.bf16.mxu0 0
  %9791 = vmatmul.mubr.bf16.gmra.mrb[0].mxu0 %v9718
  %v9792 = vpop.f32.mrb[0].mxu0
  %v9793 = vadd.f32 0.0, %v9792
  %v9794 = vpop.f32.mrb[0].mxu0
  %v9795 = vpop.f32.mrb[0].mxu0
  %v9796 = vadd.f32 0.0, %v9795
  %v9797 = vpop.f32.mrb[0].mxu0
  %9798 = vmatprep.mubr.bf16.mxu0 0
  %9799 = vmatmul.mubr.bf16.gmra.mrb[0].mxu0 %v9720
  %v9800 = vpop.f32.mrb[0].mxu0
  %v9801 = vadd.f32 0.0, %v9800
  %v9802 = vpop.f32.mrb[0].mxu0
  %v9803 = vpop.f32.mrb[0].mxu0
  %v9804 = vadd.f32 0.0, %v9803
  %v9805 = vpop.f32.mrb[0].mxu0
  %9806 = vmatprep.mubr.bf16.mxu0 0
  %9807 = vmatmul.mubr.bf16.gmra.mrb[0].mxu0 %v9722
  %v9808 = vpop.f32.mrb[0].mxu0
  %v9809 = vadd.f32 0.0, %v9808
  %v9810 = vpop.f32.mrb[0].mxu0
  %v9811 = vpop.f32.mrb[0].mxu0
  %v9812 = vadd.f32 0.0, %v9811
  %v9813 = vpop.f32.mrb[0].mxu0
  %9814 = vmatprep.mubr.bf16.mxu0 0
  %9815 = vmatmul.mubr.bf16.gmra.mrb[0].mxu0 %v9724
  %v9816 = vpop.f32.mrb[0].mxu0
  %v9817 = vadd.f32 0.0, %v9816
  %v9818 = vpop.f32.mrb[0].mxu0
  %v9819 = vpop.f32.mrb[0].mxu0
  %v9820 = vadd.f32 0.0, %v9819
  %v9821 = vpop.f32.mrb[0].mxu0
  %9822 = vdwg.mxu0
  %v9823 = vsel %vm1986, %v9343, 0
  %v9825 = vsel %vm1986, %v9345, 0
  %v9827 = vsel %vm1986, %v9347, 0
  %v9829 = vsel %vm1986, %v9349, 0
  %v9831 = vsel %vm1986, %v9351, 0
  %v9833 = vsel %vm1986, %v9353, 0
  %v9835 = vsel %vm1986, %v9355, 0
  %v9837 = vsel %vm1986, %v9357, 0
  %9839 = vmatprep.subr.bf16.mxu0 0
  %9840 = vmatpush1.bf16.msra.mxu0 %v8319
  %9841 = vmatprep.subr.bf16.mxu0 0
  %9842 = vmatpush1.bf16.msra.mxu0 0
  %9843 = vmatprep.subr.bf16.mxu0 0
  %9844 = vmatpush1.bf16.msra.mxu0 0
  %9845 = vmatprep.subr.bf16.mxu0 0
  %9846 = vmatpush1.bf16.msra.mxu0 0
  %9847 = vmatprep.subr.bf16.mxu0 0
  %9848 = vmatpush1.bf16.msra.mxu0 0
  %9849 = vmatprep.subr.bf16.mxu0 0
  %9850 = vmatpush1.bf16.msra.mxu0 0
  %9851 = vmatprep.subr.bf16.mxu0 0
  %9852 = vmatpush1.bf16.msra.mxu0 0
  %9853 = vmatprep.subr.bf16.mxu0 0
  %9854 = vmatpush1.bf16.msra.mxu0 0
  %9855 = vmatprep.subr.bf16.mxu0 0
  %9856 = vmatpush1.bf16.msra.mxu0 0
  %9857 = vmatprep.subr.bf16.mxu0 0
  %9858 = vmatpush1.bf16.msra.mxu0 0
  %9859 = vmatprep.subr.bf16.mxu0 0
  %9860 = vmatpush1.bf16.msra.mxu0 0
  %9861 = vmatprep.subr.bf16.mxu0 0
  %9862 = vmatpush1.bf16.msra.mxu0 0
  %9863 = vmatprep.subr.bf16.mxu0 0
  %9864 = vmatpush1.bf16.msra.mxu0 0
  %9865 = vmatprep.subr.bf16.mxu0 0
  %9866 = vmatpush1.bf16.msra.mxu0 0
  %9867 = vmatprep.subr.bf16.mxu0 0
  %9868 = vmatpush1.bf16.msra.mxu0 0
  %9869 = vmatprep.subr.bf16.mxu0 0
  %9870 = vmatpush1.bf16.msra.mxu0 0
  %9871 = vmatprep.mubr.bf16.mxu0 0
  %9872 = vmatmul.mubr.bf16.gmra.mrb[0].mxu0 %v9823
  %v9873 = vpop.f32.mrb[0].mxu0
  %v9874 = vadd.f32 %v9761, %v9873
  %v9875 = vpop.f32.mrb[0].mxu0
  %v9876 = vpop.f32.mrb[0].mxu0
  %v9877 = vadd.f32 %v9764, %v9876
  %v9878 = vpop.f32.mrb[0].mxu0
  %9879 = vmatprep.mubr.bf16.mxu0 0
  %9880 = vmatmul.mubr.bf16.gmra.mrb[0].mxu0 %v9825
  %v9881 = vpop.f32.mrb[0].mxu0
  %v9882 = vadd.f32 %v9769, %v9881
  %v9883 = vpop.f32.mrb[0].mxu0
  %v9884 = vpop.f32.mrb[0].mxu0
  %v9885 = vadd.f32 %v9772, %v9884
  %v9886 = vpop.f32.mrb[0].mxu0
  %9887 = vmatprep.mubr.bf16.mxu0 0
  %9888 = vmatmul.mubr.bf16.gmra.mrb[0].mxu0 %v9827
  %v9889 = vpop.f32.mrb[0].mxu0
  %v9890 = vadd.f32 %v9777, %v9889
  %v9891 = vpop.f32.mrb[0].mxu0
  %v9892 = vpop.f32.mrb[0].mxu0
  %v9893 = vadd.f32 %v9780, %v9892
  %v9894 = vpop.f32.mrb[0].mxu0
  %9895 = vmatprep.mubr.bf16.mxu0 0
  %9896 = vmatmul.mubr.bf16.gmra.mrb[0].mxu0 %v9829
  %v9897 = vpop.f32.mrb[0].mxu0
  %v9898 = vadd.f32 %v9785, %v9897
  %v9899 = vpop.f32.mrb[0].mxu0
  %v9900 = vpop.f32.mrb[0].mxu0
  %v9901 = vadd.f32 %v9788, %v9900
  %v9902 = vpop.f32.mrb[0].mxu0
  %9903 = vmatprep.mubr.bf16.mxu0 0
  %9904 = vmatmul.mubr.bf16.gmra.mrb[0].mxu0 %v9831
  %v9905 = vpop.f32.mrb[0].mxu0
  %v9906 = vadd.f32 %v9793, %v9905
  %v9907 = vpop.f32.mrb[0].mxu0
  %v9908 = vpop.f32.mrb[0].mxu0
  %v9909 = vadd.f32 %v9796, %v9908
  %v9910 = vpop.f32.mrb[0].mxu0
  %9911 = vmatprep.mubr.bf16.mxu0 0
  %9912 = vmatmul.mubr.bf16.gmra.mrb[0].mxu0 %v9833
  %v9913 = vpop.f32.mrb[0].mxu0
  %v9914 = vadd.f32 %v9801, %v9913
  %v9915 = vpop.f32.mrb[0].mxu0
  %v9916 = vpop.f32.mrb[0].mxu0
  %v9917 = vadd.f32 %v9804, %v9916
  %v9918 = vpop.f32.mrb[0].mxu0
  %9919 = vmatprep.mubr.bf16.mxu0 0
  %9920 = vmatmul.mubr.bf16.gmra.mrb[0].mxu0 %v9835
  %v9921 = vpop.f32.mrb[0].mxu0
  %v9922 = vadd.f32 %v9809, %v9921
  %v9923 = vpop.f32.mrb[0].mxu0
  %v9924 = vpop.f32.mrb[0].mxu0
  %v9925 = vadd.f32 %v9812, %v9924
  %v9926 = vpop.f32.mrb[0].mxu0
  %9927 = vmatprep.mubr.bf16.mxu0 0
  %9928 = vmatmul.mubr.bf16.gmra.mrb[0].mxu0 %v9837
  %v9929 = vpop.f32.mrb[0].mxu0
  %v9930 = vadd.f32 %v9817, %v9929
  %v9931 = vpop.f32.mrb[0].mxu0
  %v9932 = vpop.f32.mrb[0].mxu0
  %v9933 = vadd.f32 %v9820, %v9932
  %v9934 = vpop.f32.mrb[0].mxu0
  %9935 = vdwg.mxu0
  %v9936 = vld [vmem:[%s6937] sm:$0xf]
  %v9937 = vld [vmem:[%s6937 + $0x4] sm:$0x1]
  %v9938 = vld [vmem:[%s6937 + $0x20] sm:$0xf]
  %v9939 = vld [vmem:[%s6937 + $0x24] sm:$0x1]
  %v9940 = vld [vmem:[%s6937 + $0x40] sm:$0xf]
  %v9941 = vld [vmem:[%s6937 + $0x44] sm:$0x1]
  %v9942 = vld [vmem:[%s6937 + $0x60] sm:$0xf]
  %v9943 = vld [vmem:[%s6937 + $0x64] sm:$0x1]
  %v9944 = vld [vmem:[%s6937 + $0x80] sm:$0xf]
  %v9945 = vld [vmem:[%s6937 + $0x84] sm:$0x1]
  %v9946 = vld [vmem:[%s6937 + $0xa0] sm:$0xf]
  %v9947 = vld [vmem:[%s6937 + $0xa4] sm:$0x1]
  %v9948 = vld [vmem:[%s6937 + $0xc0] sm:$0xf]
  %v9949 = vld [vmem:[%s6937 + $0xc4] sm:$0x1]
  %v9950 = vld [vmem:[%s6937 + $0xe0] sm:$0xf]
  %v9951 = vld [vmem:[%s6937 + $0xe4] sm:$0x1]
  %v9952 = vld [vmem:[%s6937 + $0x120] sm:$0xf]
  %v9953 = vld [vmem:[%s6937 + $0x124] sm:$0x1]
  %v9954 = vld [vmem:[%s6937 + $0x140] sm:$0xf]
  %v9955 = vld [vmem:[%s6937 + $0x144] sm:$0x1]
  %v9956 = vld [vmem:[%s6937 + $0x160] sm:$0xf]
  %v9957 = vld [vmem:[%s6937 + $0x164] sm:$0x1]
  %v9958 = vld [vmem:[%s6937 + $0x180] sm:$0xf]
  %v9959 = vld [vmem:[%s6937 + $0x184] sm:$0x1]
  %v9960 = vld [vmem:[%s6937 + $0x1a0] sm:$0xf]
  %v9961 = vld [vmem:[%s6937 + $0x1a4] sm:$0x1]
  %v9962 = vld [vmem:[%s6937 + $0x1c0] sm:$0xf]
  %v9963 = vld [vmem:[%s6937 + $0x1c4] sm:$0x1]
  %v9964 = vld [vmem:[%s6937 + $0x1e0] sm:$0xf]
  %v9965 = vld [vmem:[%s6937 + $0x1e4] sm:$0x1]
  %v9966 = vld [vmem:[%s6937 + $0x200] sm:$0xf]
  %v9967 = vld [vmem:[%s6937 + $0x204] sm:$0x1]
  %v9969 = vshrl.u32 %v9936, 16
  %v9971 = vrot.slane %v9969, 4
  %v9972 = vshll.u32 %v9936, 16
  %v9974 = vrot.slane %v9972, 5
  %v9975 = vor.u32 %v9971, %v9974
  %v9976 = vrot.slane %v9975, 4
  %v9978 = vshll.u32 %v9937, 16
  %v9980 = vrot.slane %v9978, 5
  %v9981 = vsel %vm1125, %v9976, %v9980
  %v9983 = vshrl.u32 %v9938, 16
  %v9985 = vrot.slane %v9983, 4
  %v9986 = vshll.u32 %v9938, 16
  %v9988 = vrot.slane %v9986, 5
  %v9989 = vor.u32 %v9985, %v9988
  %v9990 = vrot.slane %v9989, 4
  %v9992 = vshll.u32 %v9939, 16
  %v9994 = vrot.slane %v9992, 5
  %v9995 = vsel %vm1125, %v9990, %v9994
  %v9997 = vshrl.u32 %v9940, 16
  %v9999 = vrot.slane %v9997, 4
  %v10000 = vshll.u32 %v9940, 16
  %v10002 = vrot.slane %v10000, 5
  %v10003 = vor.u32 %v9999, %v10002
  %v10004 = vrot.slane %v10003, 4
  %v10006 = vshll.u32 %v9941, 16
  %v10008 = vrot.slane %v10006, 5
  %v10009 = vsel %vm1125, %v10004, %v10008
  %v10011 = vshrl.u32 %v9942, 16
  %v10013 = vrot.slane %v10011, 4
  %v10014 = vshll.u32 %v9942, 16
  %v10016 = vrot.slane %v10014, 5
  %v10017 = vor.u32 %v10013, %v10016
  %v10018 = vrot.slane %v10017, 4
  %v10020 = vshll.u32 %v9943, 16
  %v10022 = vrot.slane %v10020, 5
  %v10023 = vsel %vm1125, %v10018, %v10022
  %v10025 = vshrl.u32 %v9944, 16
  %v10027 = vrot.slane %v10025, 4
  %v10028 = vshll.u32 %v9944, 16
  %v10030 = vrot.slane %v10028, 5
  %v10031 = vor.u32 %v10027, %v10030
  %v10032 = vrot.slane %v10031, 4
  %v10034 = vshll.u32 %v9945, 16
  %v10036 = vrot.slane %v10034, 5
  %v10037 = vsel %vm1125, %v10032, %v10036
  %v10039 = vshrl.u32 %v9946, 16
  %v10041 = vrot.slane %v10039, 4
  %v10042 = vshll.u32 %v9946, 16
  %v10044 = vrot.slane %v10042, 5
  %v10045 = vor.u32 %v10041, %v10044
  %v10046 = vrot.slane %v10045, 4
  %v10048 = vshll.u32 %v9947, 16
  %v10050 = vrot.slane %v10048, 5
  %v10051 = vsel %vm1125, %v10046, %v10050
  %v10053 = vshrl.u32 %v9948, 16
  %v10055 = vrot.slane %v10053, 4
  %v10056 = vshll.u32 %v9948, 16
  %v10058 = vrot.slane %v10056, 5
  %v10059 = vor.u32 %v10055, %v10058
  %v10060 = vrot.slane %v10059, 4
  %v10062 = vshll.u32 %v9949, 16
  %v10064 = vrot.slane %v10062, 5
  %v10065 = vsel %vm1125, %v10060, %v10064
  %v10067 = vshrl.u32 %v9950, 16
  %v10069 = vrot.slane %v10067, 4
  %v10070 = vshll.u32 %v9950, 16
  %v10072 = vrot.slane %v10070, 5
  %v10073 = vor.u32 %v10069, %v10072
  %v10074 = vrot.slane %v10073, 4
  %v10076 = vshll.u32 %v9951, 16
  %v10078 = vrot.slane %v10076, 5
  %v10079 = vsel %vm1125, %v10074, %v10078
  %v10081 = vshrl.u32 %v9952, 16
  %v10083 = vrot.slane %v10081, 4
  %v10084 = vshll.u32 %v9952, 16
  %v10086 = vrot.slane %v10084, 5
  %v10087 = vor.u32 %v10083, %v10086
  %v10088 = vrot.slane %v10087, 4
  %v10090 = vshll.u32 %v9953, 16
  %v10092 = vrot.slane %v10090, 5
  %v10093 = vsel %vm1125, %v10088, %v10092
  %v10095 = vshrl.u32 %v9954, 16
  %v10097 = vrot.slane %v10095, 4
  %v10098 = vshll.u32 %v9954, 16
  %v10100 = vrot.slane %v10098, 5
  %v10101 = vor.u32 %v10097, %v10100
  %v10102 = vrot.slane %v10101, 4
  %v10104 = vshll.u32 %v9955, 16
  %v10106 = vrot.slane %v10104, 5
  %v10107 = vsel %vm1125, %v10102, %v10106
  %v10109 = vshrl.u32 %v9956, 16
  %v10111 = vrot.slane %v10109, 4
  %v10112 = vshll.u32 %v9956, 16
  %v10114 = vrot.slane %v10112, 5
  %v10115 = vor.u32 %v10111, %v10114
  %v10116 = vrot.slane %v10115, 4
  %v10118 = vshll.u32 %v9957, 16
  %v10120 = vrot.slane %v10118, 5
  %v10121 = vsel %vm1125, %v10116, %v10120
  %v10123 = vshrl.u32 %v9958, 16
  %v10125 = vrot.slane %v10123, 4
  %v10126 = vshll.u32 %v9958, 16
  %v10128 = vrot.slane %v10126, 5
  %v10129 = vor.u32 %v10125, %v10128
  %v10130 = vrot.slane %v10129, 4
  %v10132 = vshll.u32 %v9959, 16
  %v10134 = vrot.slane %v10132, 5
  %v10135 = vsel %vm1125, %v10130, %v10134
  %v10137 = vshrl.u32 %v9960, 16
  %v10139 = vrot.slane %v10137, 4
  %v10140 = vshll.u32 %v9960, 16
  %v10142 = vrot.slane %v10140, 5
  %v10143 = vor.u32 %v10139, %v10142
  %v10144 = vrot.slane %v10143, 4
  %v10146 = vshll.u32 %v9961, 16
  %v10148 = vrot.slane %v10146, 5
  %v10149 = vsel %vm1125, %v10144, %v10148
  %v10151 = vshrl.u32 %v9962, 16
  %v10153 = vrot.slane %v10151, 4
  %v10154 = vshll.u32 %v9962, 16
  %v10156 = vrot.slane %v10154, 5
  %v10157 = vor.u32 %v10153, %v10156
  %v10158 = vrot.slane %v10157, 4
  %v10160 = vshll.u32 %v9963, 16
  %v10162 = vrot.slane %v10160, 5
  %v10163 = vsel %vm1125, %v10158, %v10162
  %v10165 = vshrl.u32 %v9964, 16
  %v10167 = vrot.slane %v10165, 4
  %v10168 = vshll.u32 %v9964, 16
  %v10170 = vrot.slane %v10168, 5
  %v10171 = vor.u32 %v10167, %v10170
  %v10172 = vrot.slane %v10171, 4
  %v10174 = vshll.u32 %v9965, 16
  %v10176 = vrot.slane %v10174, 5
  %v10177 = vsel %vm1125, %v10172, %v10176
  %v10179 = vshrl.u32 %v9966, 16
  %v10181 = vrot.slane %v10179, 4
  %v10182 = vshll.u32 %v9966, 16
  %v10184 = vrot.slane %v10182, 5
  %v10185 = vor.u32 %v10181, %v10184
  %v10186 = vrot.slane %v10185, 4
  %v10188 = vshll.u32 %v9967, 16
  %v10190 = vrot.slane %v10188, 5
  %v10191 = vsel %vm1125, %v10186, %v10190
  %10192 = vrot.lane.b32.xlu0 %v8802, 4
  %v10193 = vpop.permute.xlu0 %10192
  %10194 = vrot.lane.b32.xlu0 %v8803, 4
  %v10195 = vpop.permute.xlu0 %10194
  %10196 = vrot.lane.b32.xlu0 %v8804, 4
  %v10197 = vpop.permute.xlu0 %10196
  %10198 = vrot.lane.b32.xlu0 %v8805, 4
  %v10199 = vpop.permute.xlu0 %10198
  %10200 = vrot.lane.b32.xlu0 %v8806, 4
  %v10201 = vpop.permute.xlu0 %10200
  %10202 = vrot.lane.b32.xlu0 %v8807, 4
  %v10203 = vpop.permute.xlu0 %10202
  %10204 = vrot.lane.b32.xlu0 %v8808, 4
  %v10205 = vpop.permute.xlu0 %10204
  %10206 = vrot.lane.b32.xlu0 %v8809, 4
  %v10207 = vpop.permute.xlu0 %10206
  %v10208 = vunpack.c.l.b16 %v9981
  %v10209 = vunpack.c.l.b16 %v9995
  %v10210 = vunpack.c.l.b16 %v10009
  %v10211 = vunpack.c.l.b16 %v10023
  %v10212 = vunpack.c.l.b16 %v10037
  %v10213 = vunpack.c.l.b16 %v10051
  %v10214 = vunpack.c.l.b16 %v10065
  %v10215 = vunpack.c.l.b16 %v10079
  %v10216 = vunpack.c.l.b16 %v10093
  %v10217 = vunpack.c.l.b16 %v10107
  %v10218 = vunpack.c.l.b16 %v10121
  %v10219 = vunpack.c.l.b16 %v10135
  %v10220 = vunpack.c.l.b16 %v10149
  %v10221 = vunpack.c.l.b16 %v10163
  %v10222 = vunpack.c.l.b16 %v10177
  %v10223 = vunpack.c.l.b16 %v10191
  %v10224 = vpack.c.b16 %v10209, %v10208
  %v10225 = vpack.c.b16 %v10211, %v10210
  %v10226 = vpack.c.b16 %v10213, %v10212
  %v10227 = vpack.c.b16 %v10215, %v10214
  %v10228 = vpack.c.b16 %v10217, %v10216
  %v10229 = vpack.c.b16 %v10219, %v10218
  %v10230 = vpack.c.b16 %v10221, %v10220
  %v10231 = vpack.c.b16 %v10223, %v10222
  %10232 = vrot.lane.b32.xlu0 %v10224, 8
  %v10233 = vpop.permute.xlu0 %10232
  %10234 = vrot.lane.b32.xlu0 %v10225, 8
  %v10235 = vpop.permute.xlu0 %10234
  %10236 = vrot.lane.b32.xlu0 %v10226, 8
  %v10237 = vpop.permute.xlu0 %10236
  %10238 = vrot.lane.b32.xlu0 %v10227, 8
  %v10239 = vpop.permute.xlu0 %10238
  %10240 = vrot.lane.b32.xlu0 %v10228, 8
  %v10241 = vpop.permute.xlu0 %10240
  %10242 = vrot.lane.b32.xlu0 %v10229, 8
  %v10243 = vpop.permute.xlu0 %10242
  %10244 = vrot.lane.b32.xlu0 %v10230, 8
  %v10245 = vpop.permute.xlu0 %10244
  %10246 = vrot.lane.b32.xlu0 %v10231, 8
  %v10247 = vpop.permute.xlu0 %10246
  %v10250 = vsel %vm1486, %v8762, %v10193
  %v10253 = vsel %vm1486, %v8763, %v10195
  %v10256 = vsel %vm1486, %v8764, %v10197
  %v10259 = vsel %vm1486, %v8765, %v10199
  %v10262 = vsel %vm1486, %v8766, %v10201
  %v10265 = vsel %vm1486, %v8767, %v10203
  %v10268 = vsel %vm1486, %v8768, %v10205
  %v10271 = vsel %vm1486, %v8769, %v10207
  %v10273 = vsel %vm1511, %v10250, %v10233
  %v10275 = vsel %vm1511, %v10253, %v10235
  %v10277 = vsel %vm1511, %v10256, %v10237
  %v10279 = vsel %vm1511, %v10259, %v10239
  %v10281 = vsel %vm1511, %v10262, %v10241
  %v10283 = vsel %vm1511, %v10265, %v10243
  %v10285 = vsel %vm1511, %v10268, %v10245
  %v10287 = vsel %vm1511, %v10271, %v10247
  %v10288 = vsel %vm1986, %v10273, 0
  %v10290 = vsel %vm1986, %v10275, 0
  %v10292 = vsel %vm1986, %v10277, 0
  %v10294 = vsel %vm1986, %v10279, 0
  %v10296 = vsel %vm1986, %v10281, 0
  %v10298 = vsel %vm1986, %v10283, 0
  %v10300 = vsel %vm1986, %v10285, 0
  %v10302 = vsel %vm1986, %v10287, 0
  %10304 = vmatprep.subr.bf16.mxu0 0
  %10305 = vmatpush1.bf16.msra.mxu0 %v8891
  %10306 = vmatprep.subr.bf16.mxu0 0
  %10307 = vmatpush1.bf16.msra.mxu0 0
  %10308 = vmatprep.subr.bf16.mxu0 0
  %10309 = vmatpush1.bf16.msra.mxu0 0
  %10310 = vmatprep.subr.bf16.mxu0 0
  %10311 = vmatpush1.bf16.msra.mxu0 0
  %10312 = vmatprep.subr.bf16.mxu0 0
  %10313 = vmatpush1.bf16.msra.mxu0 0
  %10314 = vmatprep.subr.bf16.mxu0 0
  %10315 = vmatpush1.bf16.msra.mxu0 0
  %10316 = vmatprep.subr.bf16.mxu0 0
  %10317 = vmatpush1.bf16.msra.mxu0 0
  %10318 = vmatprep.subr.bf16.mxu0 0
  %10319 = vmatpush1.bf16.msra.mxu0 0
  %10320 = vmatprep.subr.bf16.mxu0 0
  %10321 = vmatpush1.bf16.msra.mxu0 0
  %10322 = vmatprep.subr.bf16.mxu0 0
  %10323 = vmatpush1.bf16.msra.mxu0 0
  %10324 = vmatprep.subr.bf16.mxu0 0
  %10325 = vmatpush1.bf16.msra.mxu0 0
  %10326 = vmatprep.subr.bf16.mxu0 0
  %10327 = vmatpush1.bf16.msra.mxu0 0
  %10328 = vmatprep.subr.bf16.mxu0 0
  %10329 = vmatpush1.bf16.msra.mxu0 0
  %10330 = vmatprep.subr.bf16.mxu0 0
  %10331 = vmatpush1.bf16.msra.mxu0 0
  %10332 = vmatprep.subr.bf16.mxu0 0
  %10333 = vmatpush1.bf16.msra.mxu0 0
  %10334 = vmatprep.subr.bf16.mxu0 0
  %10335 = vmatpush1.bf16.msra.mxu0 0
  %10336 = vmatprep.mubr.bf16.mxu0 0
  %10337 = vmatmul.mubr.bf16.gmra.mrb[0].mxu0 %v10288
  %v10338 = vpop.f32.mrb[0].mxu0
  %v10339 = vadd.f32 0.0, %v10338
  %v10340 = vpop.f32.mrb[0].mxu0
  %v10341 = vpop.f32.mrb[0].mxu0
  %v10342 = vadd.f32 0.0, %v10341
  %v10343 = vpop.f32.mrb[0].mxu0
  %10344 = vmatprep.mubr.bf16.mxu0 0
  %10345 = vmatmul.mubr.bf16.gmra.mrb[0].mxu0 %v10290
  %v10346 = vpop.f32.mrb[0].mxu0
  %v10347 = vadd.f32 0.0, %v10346
  %v10348 = vpop.f32.mrb[0].mxu0
  %v10349 = vpop.f32.mrb[0].mxu0
  %v10350 = vadd.f32 0.0, %v10349
  %v10351 = vpop.f32.mrb[0].mxu0
  %10352 = vmatprep.mubr.bf16.mxu0 0
  %10353 = vmatmul.mubr.bf16.gmra.mrb[0].mxu0 %v10292
  %v10354 = vpop.f32.mrb[0].mxu0
  %v10355 = vadd.f32 0.0, %v10354
  %v10356 = vpop.f32.mrb[0].mxu0
  %v10357 = vpop.f32.mrb[0].mxu0
  %v10358 = vadd.f32 0.0, %v10357
  %v10359 = vpop.f32.mrb[0].mxu0
  %10360 = vmatprep.mubr.bf16.mxu0 0
  %10361 = vmatmul.mubr.bf16.gmra.mrb[0].mxu0 %v10294
  %v10362 = vpop.f32.mrb[0].mxu0
  %v10363 = vadd.f32 0.0, %v10362
  %v10364 = vpop.f32.mrb[0].mxu0
  %v10365 = vpop.f32.mrb[0].mxu0
  %v10366 = vadd.f32 0.0, %v10365
  %v10367 = vpop.f32.mrb[0].mxu0
  %10368 = vmatprep.mubr.bf16.mxu0 0
  %10369 = vmatmul.mubr.bf16.gmra.mrb[0].mxu0 %v10296
  %v10370 = vpop.f32.mrb[0].mxu0
  %v10371 = vadd.f32 0.0, %v10370
  %v10372 = vpop.f32.mrb[0].mxu0
  %v10373 = vpop.f32.mrb[0].mxu0
  %v10374 = vadd.f32 0.0, %v10373
  %v10375 = vpop.f32.mrb[0].mxu0
  %10376 = vmatprep.mubr.bf16.mxu0 0
  %10377 = vmatmul.mubr.bf16.gmra.mrb[0].mxu0 %v10298
  %v10378 = vpop.f32.mrb[0].mxu0
  %v10379 = vadd.f32 0.0, %v10378
  %v10380 = vpop.f32.mrb[0].mxu0
  %v10381 = vpop.f32.mrb[0].mxu0
  %v10382 = vadd.f32 0.0, %v10381
  %v10383 = vpop.f32.mrb[0].mxu0
  %10384 = vmatprep.mubr.bf16.mxu0 0
  %10385 = vmatmul.mubr.bf16.gmra.mrb[0].mxu0 %v10300
  %v10386 = vpop.f32.mrb[0].mxu0
  %v10387 = vadd.f32 0.0, %v10386
  %v10388 = vpop.f32.mrb[0].mxu0
  %v10389 = vpop.f32.mrb[0].mxu0
  %v10390 = vadd.f32 0.0, %v10389
  %v10391 = vpop.f32.mrb[0].mxu0
  %10392 = vmatprep.mubr.bf16.mxu0 0
  %10393 = vmatmul.mubr.bf16.gmra.mrb[0].mxu0 %v10302
  %v10394 = vpop.f32.mrb[0].mxu0
  %v10395 = vadd.f32 0.0, %v10394
  %v10396 = vpop.f32.mrb[0].mxu0
  %v10397 = vpop.f32.mrb[0].mxu0
  %v10398 = vadd.f32 0.0, %v10397
  %v10399 = vpop.f32.mrb[0].mxu0
  %10400 = vdwg.mxu0
  %v10401 = vadd.f32 %v9874, %v10339
  %v10402 = vadd.f32 %v9877, %v10342
  %v10403 = vadd.f32 %v9882, %v10347
  %v10404 = vadd.f32 %v9885, %v10350
  %v10405 = vadd.f32 %v9890, %v10355
  %v10406 = vadd.f32 %v9893, %v10358
  %v10407 = vadd.f32 %v9898, %v10363
  %v10408 = vadd.f32 %v9901, %v10366
  %v10409 = vadd.f32 %v9906, %v10371
  %v10410 = vadd.f32 %v9909, %v10374
  %v10411 = vadd.f32 %v9914, %v10379
  %v10412 = vadd.f32 %v9917, %v10382
  %v10413 = vadd.f32 %v9922, %v10387
  %v10414 = vadd.f32 %v9925, %v10390
  %v10415 = vadd.f32 %v9930, %v10395
  %v10416 = vadd.f32 %v9933, %v10398
  %10417 = vmatprep.subr.bf16.mxu0 0
  %10418 = vmatpush1.bf16.msra.mxu0 %v8198
  %10419 = vmatprep.subr.bf16.mxu0 0
  %10420 = vmatpush1.bf16.msra.mxu0 0
  %10421 = vmatprep.subr.bf16.mxu0 0
  %10422 = vmatpush1.bf16.msra.mxu0 0
  %10423 = vmatprep.subr.bf16.mxu0 0
  %10424 = vmatpush1.bf16.msra.mxu0 0
  %10425 = vmatprep.subr.bf16.mxu0 0
  %10426 = vmatpush1.bf16.msra.mxu0 0
  %10427 = vmatprep.subr.bf16.mxu0 0
  %10428 = vmatpush1.bf16.msra.mxu0 0
  %10429 = vmatprep.subr.bf16.mxu0 0
  %10430 = vmatpush1.bf16.msra.mxu0 0
  %10431 = vmatprep.subr.bf16.mxu0 0
  %10432 = vmatpush1.bf16.msra.mxu0 0
  %10433 = vmatprep.subr.bf16.mxu0 0
  %10434 = vmatpush1.bf16.msra.mxu0 0
  %10435 = vmatprep.subr.bf16.mxu0 0
  %10436 = vmatpush1.bf16.msra.mxu0 0
  %10437 = vmatprep.subr.bf16.mxu0 0
  %10438 = vmatpush1.bf16.msra.mxu0 0
  %10439 = vmatprep.subr.bf16.mxu0 0
  %10440 = vmatpush1.bf16.msra.mxu0 0
  %10441 = vmatprep.subr.bf16.mxu0 0
  %10442 = vmatpush1.bf16.msra.mxu0 0
  %10443 = vmatprep.subr.bf16.mxu0 0
  %10444 = vmatpush1.bf16.msra.mxu0 0
  %10445 = vmatprep.subr.bf16.mxu0 0
  %10446 = vmatpush1.bf16.msra.mxu0 0
  %10447 = vmatprep.subr.bf16.mxu0 0
  %10448 = vmatpush1.bf16.msra.mxu0 0
  %10449 = vmatprep.mubr.bf16.mxu0 0
  %10450 = vmatmul.mubr.bf16.gmra.mrb[0].mxu0 %v8874
  %v10451 = vpop.f32.mrb[0].mxu0
  %v10452 = vadd.f32 0.0, %v10451
  %v10453 = vpop.f32.mrb[0].mxu0
  %v10454 = vpop.f32.mrb[0].mxu0
  %v10455 = vadd.f32 0.0, %v10454
  %v10456 = vpop.f32.mrb[0].mxu0
  %10457 = vmatprep.mubr.bf16.mxu0 0
  %10458 = vmatmul.mubr.bf16.gmra.mrb[0].mxu0 %v8876
  %v10459 = vpop.f32.mrb[0].mxu0
  %v10460 = vadd.f32 0.0, %v10459
  %v10461 = vpop.f32.mrb[0].mxu0
  %v10462 = vpop.f32.mrb[0].mxu0
  %v10463 = vadd.f32 0.0, %v10462
  %v10464 = vpop.f32.mrb[0].mxu0
  %10465 = vmatprep.mubr.bf16.mxu0 0
  %10466 = vmatmul.mubr.bf16.gmra.mrb[0].mxu0 %v8878
  %v10467 = vpop.f32.mrb[0].mxu0
  %v10468 = vadd.f32 0.0, %v10467
  %v10469 = vpop.f32.mrb[0].mxu0
  %v10470 = vpop.f32.mrb[0].mxu0
  %v10471 = vadd.f32 0.0, %v10470
  %v10472 = vpop.f32.mrb[0].mxu0
  %10473 = vmatprep.mubr.bf16.mxu0 0
  %10474 = vmatmul.mubr.bf16.gmra.mrb[0].mxu0 %v8880
  %v10475 = vpop.f32.mrb[0].mxu0
  %v10476 = vadd.f32 0.0, %v10475
  %v10477 = vpop.f32.mrb[0].mxu0
  %v10478 = vpop.f32.mrb[0].mxu0
  %v10479 = vadd.f32 0.0, %v10478
  %v10480 = vpop.f32.mrb[0].mxu0
  %10481 = vmatprep.mubr.bf16.mxu0 0
  %10482 = vmatmul.mubr.bf16.gmra.mrb[0].mxu0 %v8882
  %v10483 = vpop.f32.mrb[0].mxu0
  %v10484 = vadd.f32 0.0, %v10483
  %v10485 = vpop.f32.mrb[0].mxu0
  %v10486 = vpop.f32.mrb[0].mxu0
  %v10487 = vadd.f32 0.0, %v10486
  %v10488 = vpop.f32.mrb[0].mxu0
  %10489 = vmatprep.mubr.bf16.mxu0 0
  %10490 = vmatmul.mubr.bf16.gmra.mrb[0].mxu0 %v8884
  %v10491 = vpop.f32.mrb[0].mxu0
  %v10492 = vadd.f32 0.0, %v10491
  %v10493 = vpop.f32.mrb[0].mxu0
  %v10494 = vpop.f32.mrb[0].mxu0
  %v10495 = vadd.f32 0.0, %v10494
  %v10496 = vpop.f32.mrb[0].mxu0
  %10497 = vmatprep.mubr.bf16.mxu0 0
  %10498 = vmatmul.mubr.bf16.gmra.mrb[0].mxu0 %v8886
  %v10499 = vpop.f32.mrb[0].mxu0
  %v10500 = vadd.f32 0.0, %v10499
  %v10501 = vpop.f32.mrb[0].mxu0
  %v10502 = vpop.f32.mrb[0].mxu0
  %v10503 = vadd.f32 0.0, %v10502
  %v10504 = vpop.f32.mrb[0].mxu0
  %10505 = vmatprep.mubr.bf16.mxu0 0
  %10506 = vmatmul.mubr.bf16.gmra.mrb[0].mxu0 %v8888
  %v10507 = vpop.f32.mrb[0].mxu0
  %v10508 = vadd.f32 0.0, %v10507
  %v10509 = vpop.f32.mrb[0].mxu0
  %v10510 = vpop.f32.mrb[0].mxu0
  %v10511 = vadd.f32 0.0, %v10510
  %v10512 = vpop.f32.mrb[0].mxu0
  %10513 = vdwg.mxu0
  %10514 = vmatprep.subr.bf16.mxu0 0
  %10515 = vmatpush1.bf16.msra.mxu0 %v8319
  %10516 = vmatprep.subr.bf16.mxu0 0
  %10517 = vmatpush1.bf16.msra.mxu0 0
  %10518 = vmatprep.subr.bf16.mxu0 0
  %10519 = vmatpush1.bf16.msra.mxu0 0
  %10520 = vmatprep.subr.bf16.mxu0 0
  %10521 = vmatpush1.bf16.msra.mxu0 0
  %10522 = vmatprep.subr.bf16.mxu0 0
  %10523 = vmatpush1.bf16.msra.mxu0 0
  %10524 = vmatprep.subr.bf16.mxu0 0
  %10525 = vmatpush1.bf16.msra.mxu0 0
  %10526 = vmatprep.subr.bf16.mxu0 0
  %10527 = vmatpush1.bf16.msra.mxu0 0
  %10528 = vmatprep.subr.bf16.mxu0 0
  %10529 = vmatpush1.bf16.msra.mxu0 0
  %10530 = vmatprep.subr.bf16.mxu0 0
  %10531 = vmatpush1.bf16.msra.mxu0 0
  %10532 = vmatprep.subr.bf16.mxu0 0
  %10533 = vmatpush1.bf16.msra.mxu0 0
  %10534 = vmatprep.subr.bf16.mxu0 0
  %10535 = vmatpush1.bf16.msra.mxu0 0
  %10536 = vmatprep.subr.bf16.mxu0 0
  %10537 = vmatpush1.bf16.msra.mxu0 0
  %10538 = vmatprep.subr.bf16.mxu0 0
  %10539 = vmatpush1.bf16.msra.mxu0 0
  %10540 = vmatprep.subr.bf16.mxu0 0
  %10541 = vmatpush1.bf16.msra.mxu0 0
  %10542 = vmatprep.subr.bf16.mxu0 0
  %10543 = vmatpush1.bf16.msra.mxu0 0
  %10544 = vmatprep.subr.bf16.mxu0 0
  %10545 = vmatpush1.bf16.msra.mxu0 0
  %10546 = vmatprep.mubr.bf16.mxu0 0
  %10547 = vmatmul.mubr.bf16.gmra.mrb[0].mxu0 %v8181
  %v10548 = vpop.f32.mrb[0].mxu0
  %v10549 = vadd.f32 %v10452, %v10548
  %v10550 = vpop.f32.mrb[0].mxu0
  %v10551 = vpop.f32.mrb[0].mxu0
  %v10552 = vadd.f32 %v10455, %v10551
  %v10553 = vpop.f32.mrb[0].mxu0
  %10554 = vmatprep.mubr.bf16.mxu0 0
  %10555 = vmatmul.mubr.bf16.gmra.mrb[0].mxu0 %v8183
  %v10556 = vpop.f32.mrb[0].mxu0
  %v10557 = vadd.f32 %v10460, %v10556
  %v10558 = vpop.f32.mrb[0].mxu0
  %v10559 = vpop.f32.mrb[0].mxu0
  %v10560 = vadd.f32 %v10463, %v10559
  %v10561 = vpop.f32.mrb[0].mxu0
  %10562 = vmatprep.mubr.bf16.mxu0 0
  %10563 = vmatmul.mubr.bf16.gmra.mrb[0].mxu0 %v8185
  %v10564 = vpop.f32.mrb[0].mxu0
  %v10565 = vadd.f32 %v10468, %v10564
  %v10566 = vpop.f32.mrb[0].mxu0
  %v10567 = vpop.f32.mrb[0].mxu0
  %v10568 = vadd.f32 %v10471, %v10567
  %v10569 = vpop.f32.mrb[0].mxu0
  %10570 = vmatprep.mubr.bf16.mxu0 0
  %10571 = vmatmul.mubr.bf16.gmra.mrb[0].mxu0 %v8187
  %v10572 = vpop.f32.mrb[0].mxu0
  %v10573 = vadd.f32 %v10476, %v10572
  %v10574 = vpop.f32.mrb[0].mxu0
  %v10575 = vpop.f32.mrb[0].mxu0
  %v10576 = vadd.f32 %v10479, %v10575
  %v10577 = vpop.f32.mrb[0].mxu0
  %10578 = vmatprep.mubr.bf16.mxu0 0
  %10579 = vmatmul.mubr.bf16.gmra.mrb[0].mxu0 %v8189
  %v10580 = vpop.f32.mrb[0].mxu0
  %v10581 = vadd.f32 %v10484, %v10580
  %v10582 = vpop.f32.mrb[0].mxu0
  %v10583 = vpop.f32.mrb[0].mxu0
  %v10584 = vadd.f32 %v10487, %v10583
  %v10585 = vpop.f32.mrb[0].mxu0
  %10586 = vmatprep.mubr.bf16.mxu0 0
  %10587 = vmatmul.mubr.bf16.gmra.mrb[0].mxu0 %v8191
  %v10588 = vpop.f32.mrb[0].mxu0
  %v10589 = vadd.f32 %v10492, %v10588
  %v10590 = vpop.f32.mrb[0].mxu0
  %v10591 = vpop.f32.mrb[0].mxu0
  %v10592 = vadd.f32 %v10495, %v10591
  %v10593 = vpop.f32.mrb[0].mxu0
  %10594 = vmatprep.mubr.bf16.mxu0 0
  %10595 = vmatmul.mubr.bf16.gmra.mrb[0].mxu0 %v8193
  %v10596 = vpop.f32.mrb[0].mxu0
  %v10597 = vadd.f32 %v10500, %v10596
  %v10598 = vpop.f32.mrb[0].mxu0
  %v10599 = vpop.f32.mrb[0].mxu0
  %v10600 = vadd.f32 %v10503, %v10599
  %v10601 = vpop.f32.mrb[0].mxu0
  %10602 = vmatprep.mubr.bf16.mxu0 0
  %10603 = vmatmul.mubr.bf16.gmra.mrb[0].mxu0 %v8195
  %v10604 = vpop.f32.mrb[0].mxu0
  %v10605 = vadd.f32 %v10508, %v10604
  %v10606 = vpop.f32.mrb[0].mxu0
  %v10607 = vpop.f32.mrb[0].mxu0
  %v10608 = vadd.f32 %v10511, %v10607
  %v10609 = vpop.f32.mrb[0].mxu0
  %10610 = vdwg.mxu0
  %s10611 = scalar_lea.vmem [#allocation3], 48
  %v10612 = vld [vmem:[%s10611] sm:$0xf]
  %v10613 = vld [vmem:[%s10611 + $0x20] sm:$0xf]
  %v10614 = vld [vmem:[%s10611 + $0x40] sm:$0xf]
  %v10615 = vld [vmem:[%s10611 + $0x60] sm:$0xf]
  %v10616 = vld [vmem:[%s10611 + $0x80] sm:$0xf]
  %v10617 = vld [vmem:[%s10611 + $0xa0] sm:$0xf]
  %v10618 = vld [vmem:[%s10611 + $0xc0] sm:$0xf]
  %v10619 = vld [vmem:[%s10611 + $0xe0] sm:$0xf]
  %v10620 = vld [vmem:[%s10611 + $0x120] sm:$0xf]
  %v10621 = vld [vmem:[%s10611 + $0x140] sm:$0xf]
  %v10622 = vld [vmem:[%s10611 + $0x160] sm:$0xf]
  %v10623 = vld [vmem:[%s10611 + $0x180] sm:$0xf]
  %v10624 = vld [vmem:[%s10611 + $0x1a0] sm:$0xf]
  %v10625 = vld [vmem:[%s10611 + $0x1c0] sm:$0xf]
  %v10626 = vld [vmem:[%s10611 + $0x1e0] sm:$0xf]
  %v10627 = vld [vmem:[%s10611 + $0x200] sm:$0xf]
  %s10628 = scalar_lea.vmem [#allocation3], 56
  %v10629 = vld [vmem:[%s10628] sm:$0xf]
  %v10630 = vld [vmem:[%s10628 + $0x20] sm:$0xf]
  %v10631 = vld [vmem:[%s10628 + $0x40] sm:$0xf]
  %v10632 = vld [vmem:[%s10628 + $0x60] sm:$0xf]
  %v10633 = vld [vmem:[%s10628 + $0x80] sm:$0xf]
  %v10634 = vld [vmem:[%s10628 + $0xa0] sm:$0xf]
  %v10635 = vld [vmem:[%s10628 + $0xc0] sm:$0xf]
  %v10636 = vld [vmem:[%s10628 + $0xe0] sm:$0xf]
  %v10637 = vld [vmem:[%s10628 + $0x120] sm:$0xf]
  %v10638 = vld [vmem:[%s10628 + $0x140] sm:$0xf]
  %v10639 = vld [vmem:[%s10628 + $0x160] sm:$0xf]
  %v10640 = vld [vmem:[%s10628 + $0x180] sm:$0xf]
  %v10641 = vld [vmem:[%s10628 + $0x1a0] sm:$0xf]
  %v10642 = vld [vmem:[%s10628 + $0x1c0] sm:$0xf]
  %v10643 = vld [vmem:[%s10628 + $0x1e0] sm:$0xf]
  %v10644 = vld [vmem:[%s10628 + $0x200] sm:$0xf]
  %v10645 = vld [vmem:[%s10611 + $0x4] sm:$0x1]
  %v10646 = vld [vmem:[%s10611 + $0x24] sm:$0x1]
  %v10647 = vld [vmem:[%s10611 + $0x44] sm:$0x1]
  %v10648 = vld [vmem:[%s10611 + $0x64] sm:$0x1]
  %v10649 = vld [vmem:[%s10611 + $0x84] sm:$0x1]
  %v10650 = vld [vmem:[%s10611 + $0xa4] sm:$0x1]
  %v10651 = vld [vmem:[%s10611 + $0xc4] sm:$0x1]
  %v10652 = vld [vmem:[%s10611 + $0xe4] sm:$0x1]
  %v10653 = vld [vmem:[%s10611 + $0x124] sm:$0x1]
  %v10654 = vld [vmem:[%s10611 + $0x144] sm:$0x1]
  %v10655 = vld [vmem:[%s10611 + $0x164] sm:$0x1]
  %v10656 = vld [vmem:[%s10611 + $0x184] sm:$0x1]
  %v10657 = vld [vmem:[%s10611 + $0x1a4] sm:$0x1]
  %v10658 = vld [vmem:[%s10611 + $0x1c4] sm:$0x1]
  %v10659 = vld [vmem:[%s10611 + $0x1e4] sm:$0x1]
  %v10660 = vld [vmem:[%s10611 + $0x204] sm:$0x1]
  %v10662 = vshrl.u32 %v10612, 16
  %v10664 = vrot.slane %v10662, 4
  %v10665 = vshll.u32 %v10612, 16
  %v10667 = vrot.slane %v10665, 5
  %v10668 = vor.u32 %v10664, %v10667
  %v10669 = vrot.slane %v10668, 4
  %v10671 = vshll.u32 %v10645, 16
  %v10673 = vrot.slane %v10671, 5
  %v10674 = vsel %vm1125, %v10669, %v10673
  %v10676 = vshrl.u32 %v10613, 16
  %v10678 = vrot.slane %v10676, 4
  %v10679 = vshll.u32 %v10613, 16
  %v10681 = vrot.slane %v10679, 5
  %v10682 = vor.u32 %v10678, %v10681
  %v10683 = vrot.slane %v10682, 4
  %v10685 = vshll.u32 %v10646, 16
  %v10687 = vrot.slane %v10685, 5
  %v10688 = vsel %vm1125, %v10683, %v10687
  %v10690 = vshrl.u32 %v10614, 16
  %v10692 = vrot.slane %v10690, 4
  %v10693 = vshll.u32 %v10614, 16
  %v10695 = vrot.slane %v10693, 5
  %v10696 = vor.u32 %v10692, %v10695
  %v10697 = vrot.slane %v10696, 4
  %v10699 = vshll.u32 %v10647, 16
  %v10701 = vrot.slane %v10699, 5
  %v10702 = vsel %vm1125, %v10697, %v10701
  %v10704 = vshrl.u32 %v10615, 16
  %v10706 = vrot.slane %v10704, 4
  %v10707 = vshll.u32 %v10615, 16
  %v10709 = vrot.slane %v10707, 5
  %v10710 = vor.u32 %v10706, %v10709
  %v10711 = vrot.slane %v10710, 4
  %v10713 = vshll.u32 %v10648, 16
  %v10715 = vrot.slane %v10713, 5
  %v10716 = vsel %vm1125, %v10711, %v10715
  %v10718 = vshrl.u32 %v10616, 16
  %v10720 = vrot.slane %v10718, 4
  %v10721 = vshll.u32 %v10616, 16
  %v10723 = vrot.slane %v10721, 5
  %v10724 = vor.u32 %v10720, %v10723
  %v10725 = vrot.slane %v10724, 4
  %v10727 = vshll.u32 %v10649, 16
  %v10729 = vrot.slane %v10727, 5
  %v10730 = vsel %vm1125, %v10725, %v10729
  %v10732 = vshrl.u32 %v10617, 16
  %v10734 = vrot.slane %v10732, 4
  %v10735 = vshll.u32 %v10617, 16
  %v10737 = vrot.slane %v10735, 5
  %v10738 = vor.u32 %v10734, %v10737
  %v10739 = vrot.slane %v10738, 4
  %v10741 = vshll.u32 %v10650, 16
  %v10743 = vrot.slane %v10741, 5
  %v10744 = vsel %vm1125, %v10739, %v10743
  %v10746 = vshrl.u32 %v10618, 16
  %v10748 = vrot.slane %v10746, 4
  %v10749 = vshll.u32 %v10618, 16
  %v10751 = vrot.slane %v10749, 5
  %v10752 = vor.u32 %v10748, %v10751
  %v10753 = vrot.slane %v10752, 4
  %v10755 = vshll.u32 %v10651, 16
  %v10757 = vrot.slane %v10755, 5
  %v10758 = vsel %vm1125, %v10753, %v10757
  %v10760 = vshrl.u32 %v10619, 16
  %v10762 = vrot.slane %v10760, 4
  %v10763 = vshll.u32 %v10619, 16
  %v10765 = vrot.slane %v10763, 5
  %v10766 = vor.u32 %v10762, %v10765
  %v10767 = vrot.slane %v10766, 4
  %v10769 = vshll.u32 %v10652, 16
  %v10771 = vrot.slane %v10769, 5
  %v10772 = vsel %vm1125, %v10767, %v10771
  %v10774 = vshrl.u32 %v10620, 16
  %v10776 = vrot.slane %v10774, 4
  %v10777 = vshll.u32 %v10620, 16
  %v10779 = vrot.slane %v10777, 5
  %v10780 = vor.u32 %v10776, %v10779
  %v10781 = vrot.slane %v10780, 4
  %v10783 = vshll.u32 %v10653, 16
  %v10785 = vrot.slane %v10783, 5
  %v10786 = vsel %vm1125, %v10781, %v10785
  %v10788 = vshrl.u32 %v10621, 16
  %v10790 = vrot.slane %v10788, 4
  %v10791 = vshll.u32 %v10621, 16
  %v10793 = vrot.slane %v10791, 5
  %v10794 = vor.u32 %v10790, %v10793
  %v10795 = vrot.slane %v10794, 4
  %v10797 = vshll.u32 %v10654, 16
  %v10799 = vrot.slane %v10797, 5
  %v10800 = vsel %vm1125, %v10795, %v10799
  %v10802 = vshrl.u32 %v10622, 16
  %v10804 = vrot.slane %v10802, 4
  %v10805 = vshll.u32 %v10622, 16
  %v10807 = vrot.slane %v10805, 5
  %v10808 = vor.u32 %v10804, %v10807
  %v10809 = vrot.slane %v10808, 4
  %v10811 = vshll.u32 %v10655, 16
  %v10813 = vrot.slane %v10811, 5
  %v10814 = vsel %vm1125, %v10809, %v10813
  %v10816 = vshrl.u32 %v10623, 16
  %v10818 = vrot.slane %v10816, 4
  %v10819 = vshll.u32 %v10623, 16
  %v10821 = vrot.slane %v10819, 5
  %v10822 = vor.u32 %v10818, %v10821
  %v10823 = vrot.slane %v10822, 4
  %v10825 = vshll.u32 %v10656, 16
  %v10827 = vrot.slane %v10825, 5
  %v10828 = vsel %vm1125, %v10823, %v10827
  %v10830 = vshrl.u32 %v10624, 16
  %v10832 = vrot.slane %v10830, 4
  %v10833 = vshll.u32 %v10624, 16
  %v10835 = vrot.slane %v10833, 5
  %v10836 = vor.u32 %v10832, %v10835
  %v10837 = vrot.slane %v10836, 4
  %v10839 = vshll.u32 %v10657, 16
  %v10841 = vrot.slane %v10839, 5
  %v10842 = vsel %vm1125, %v10837, %v10841
  %v10844 = vshrl.u32 %v10625, 16
  %v10846 = vrot.slane %v10844, 4
  %v10847 = vshll.u32 %v10625, 16
  %v10849 = vrot.slane %v10847, 5
  %v10850 = vor.u32 %v10846, %v10849
  %v10851 = vrot.slane %v10850, 4
  %v10853 = vshll.u32 %v10658, 16
  %v10855 = vrot.slane %v10853, 5
  %v10856 = vsel %vm1125, %v10851, %v10855
  %v10858 = vshrl.u32 %v10626, 16
  %v10860 = vrot.slane %v10858, 4
  %v10861 = vshll.u32 %v10626, 16
  %v10863 = vrot.slane %v10861, 5
  %v10864 = vor.u32 %v10860, %v10863
  %v10865 = vrot.slane %v10864, 4
  %v10867 = vshll.u32 %v10659, 16
  %v10869 = vrot.slane %v10867, 5
  %v10870 = vsel %vm1125, %v10865, %v10869
  %v10872 = vshrl.u32 %v10627, 16
  %v10874 = vrot.slane %v10872, 4
  %v10875 = vshll.u32 %v10627, 16
  %v10877 = vrot.slane %v10875, 5
  %v10878 = vor.u32 %v10874, %v10877
  %v10879 = vrot.slane %v10878, 4
  %v10881 = vshll.u32 %v10660, 16
  %v10883 = vrot.slane %v10881, 5
  %v10884 = vsel %vm1125, %v10879, %v10883
  %v10901 = vunpack.c.l.b16 %v10612
  %v10902 = vunpack.c.l.b16 %v10613
  %v10903 = vunpack.c.l.b16 %v10614
  %v10904 = vunpack.c.l.b16 %v10615
  %v10905 = vunpack.c.l.b16 %v10616
  %v10906 = vunpack.c.l.b16 %v10617
  %v10907 = vunpack.c.l.b16 %v10618
  %v10908 = vunpack.c.l.b16 %v10619
  %v10909 = vunpack.c.l.b16 %v10620
  %v10910 = vunpack.c.l.b16 %v10621
  %v10911 = vunpack.c.l.b16 %v10622
  %v10912 = vunpack.c.l.b16 %v10623
  %v10913 = vunpack.c.l.b16 %v10624
  %v10914 = vunpack.c.l.b16 %v10625
  %v10915 = vunpack.c.l.b16 %v10626
  %v10916 = vunpack.c.l.b16 %v10627
  %v10917 = vpack.c.b16 %v10902, %v10901
  %v10918 = vpack.c.b16 %v10904, %v10903
  %v10919 = vpack.c.b16 %v10906, %v10905
  %v10920 = vpack.c.b16 %v10908, %v10907
  %v10921 = vpack.c.b16 %v10910, %v10909
  %v10922 = vpack.c.b16 %v10912, %v10911
  %v10923 = vpack.c.b16 %v10914, %v10913
  %v10924 = vpack.c.b16 %v10916, %v10915
  %v10941 = vunpack.c.l.b16 %v10629
  %v10942 = vunpack.c.l.b16 %v10630
  %v10943 = vunpack.c.l.b16 %v10631
  %v10944 = vunpack.c.l.b16 %v10632
  %v10945 = vunpack.c.l.b16 %v10633
  %v10946 = vunpack.c.l.b16 %v10634
  %v10947 = vunpack.c.l.b16 %v10635
  %v10948 = vunpack.c.l.b16 %v10636
  %v10949 = vunpack.c.l.b16 %v10637
  %v10950 = vunpack.c.l.b16 %v10638
  %v10951 = vunpack.c.l.b16 %v10639
  %v10952 = vunpack.c.l.b16 %v10640
  %v10953 = vunpack.c.l.b16 %v10641
  %v10954 = vunpack.c.l.b16 %v10642
  %v10955 = vunpack.c.l.b16 %v10643
  %v10956 = vunpack.c.l.b16 %v10644
  %v10957 = vpack.c.b16 %v10942, %v10941
  %v10958 = vpack.c.b16 %v10944, %v10943
  %v10959 = vpack.c.b16 %v10946, %v10945
  %v10960 = vpack.c.b16 %v10948, %v10947
  %v10961 = vpack.c.b16 %v10950, %v10949
  %v10962 = vpack.c.b16 %v10952, %v10951
  %v10963 = vpack.c.b16 %v10954, %v10953
  %v10964 = vpack.c.b16 %v10956, %v10955
  %10965 = vrot.lane.b32.xlu0 %v10957, 4
  %v10966 = vpop.permute.xlu0 %10965
  %10967 = vrot.lane.b32.xlu0 %v10958, 4
  %v10968 = vpop.permute.xlu0 %10967
  %10969 = vrot.lane.b32.xlu0 %v10959, 4
  %v10970 = vpop.permute.xlu0 %10969
  %10971 = vrot.lane.b32.xlu0 %v10960, 4
  %v10972 = vpop.permute.xlu0 %10971
  %10973 = vrot.lane.b32.xlu0 %v10961, 4
  %v10974 = vpop.permute.xlu0 %10973
  %10975 = vrot.lane.b32.xlu0 %v10962, 4
  %v10976 = vpop.permute.xlu0 %10975
  %10977 = vrot.lane.b32.xlu0 %v10963, 4
  %v10978 = vpop.permute.xlu0 %10977
  %10979 = vrot.lane.b32.xlu0 %v10964, 4
  %v10980 = vpop.permute.xlu0 %10979
  %v10981 = vunpack.c.l.b16 %v10674
  %v10982 = vunpack.c.l.b16 %v10688
  %v10983 = vunpack.c.l.b16 %v10702
  %v10984 = vunpack.c.l.b16 %v10716
  %v10985 = vunpack.c.l.b16 %v10730
  %v10986 = vunpack.c.l.b16 %v10744
  %v10987 = vunpack.c.l.b16 %v10758
  %v10988 = vunpack.c.l.b16 %v10772
  %v10989 = vunpack.c.l.b16 %v10786
  %v10990 = vunpack.c.l.b16 %v10800
  %v10991 = vunpack.c.l.b16 %v10814
  %v10992 = vunpack.c.l.b16 %v10828
  %v10993 = vunpack.c.l.b16 %v10842
  %v10994 = vunpack.c.l.b16 %v10856
  %v10995 = vunpack.c.l.b16 %v10870
  %v10996 = vunpack.c.l.b16 %v10884
  %v10997 = vpack.c.b16 %v10982, %v10981
  %v10998 = vpack.c.b16 %v10984, %v10983
  %v10999 = vpack.c.b16 %v10986, %v10985
  %v11000 = vpack.c.b16 %v10988, %v10987
  %v11001 = vpack.c.b16 %v10990, %v10989
  %v11002 = vpack.c.b16 %v10992, %v10991
  %v11003 = vpack.c.b16 %v10994, %v10993
  %v11004 = vpack.c.b16 %v10996, %v10995
  %11005 = vrot.lane.b32.xlu0 %v10997, 8
  %v11006 = vpop.permute.xlu0 %11005
  %11007 = vrot.lane.b32.xlu0 %v10998, 8
  %v11008 = vpop.permute.xlu0 %11007
  %11009 = vrot.lane.b32.xlu0 %v10999, 8
  %v11010 = vpop.permute.xlu0 %11009
  %11011 = vrot.lane.b32.xlu0 %v11000, 8
  %v11012 = vpop.permute.xlu0 %11011
  %11013 = vrot.lane.b32.xlu0 %v11001, 8
  %v11014 = vpop.permute.xlu0 %11013
  %11015 = vrot.lane.b32.xlu0 %v11002, 8
  %v11016 = vpop.permute.xlu0 %11015
  %11017 = vrot.lane.b32.xlu0 %v11003, 8
  %v11018 = vpop.permute.xlu0 %11017
  %11019 = vrot.lane.b32.xlu0 %v11004, 8
  %v11020 = vpop.permute.xlu0 %11019
  %v11023 = vsel %vm1486, %v10917, %v10966
  %v11026 = vsel %vm1486, %v10918, %v10968
  %v11029 = vsel %vm1486, %v10919, %v10970
  %v11032 = vsel %vm1486, %v10920, %v10972
  %v11035 = vsel %vm1486, %v10921, %v10974
  %v11038 = vsel %vm1486, %v10922, %v10976
  %v11041 = vsel %vm1486, %v10923, %v10978
  %v11044 = vsel %vm1486, %v10924, %v10980
  %v11046 = vsel %vm1511, %v11023, %v11006
  %v11048 = vsel %vm1511, %v11026, %v11008
  %v11050 = vsel %vm1511, %v11029, %v11010
  %v11052 = vsel %vm1511, %v11032, %v11012
  %v11054 = vsel %vm1511, %v11035, %v11014
  %v11056 = vsel %vm1511, %v11038, %v11016
  %v11058 = vsel %vm1511, %v11041, %v11018
  %v11060 = vsel %vm1511, %v11044, %v11020
  %v11061 = vsel %vm1986, %v11046, 0
  %v11063 = vsel %vm1986, %v11048, 0
  %v11065 = vsel %vm1986, %v11050, 0
  %v11067 = vsel %vm1986, %v11052, 0
  %v11069 = vsel %vm1986, %v11054, 0
  %v11071 = vsel %vm1986, %v11056, 0
  %v11073 = vsel %vm1986, %v11058, 0
  %v11075 = vsel %vm1986, %v11060, 0
  %11077 = vmatprep.subr.bf16.mxu0 0
  %11078 = vmatpush1.bf16.msra.mxu0 %v8891
  %11079 = vmatprep.subr.bf16.mxu0 0
  %11080 = vmatpush1.bf16.msra.mxu0 0
  %11081 = vmatprep.subr.bf16.mxu0 0
  %11082 = vmatpush1.bf16.msra.mxu0 0
  %11083 = vmatprep.subr.bf16.mxu0 0
  %11084 = vmatpush1.bf16.msra.mxu0 0
  %11085 = vmatprep.subr.bf16.mxu0 0
  %11086 = vmatpush1.bf16.msra.mxu0 0
  %11087 = vmatprep.subr.bf16.mxu0 0
  %11088 = vmatpush1.bf16.msra.mxu0 0
  %11089 = vmatprep.subr.bf16.mxu0 0
  %11090 = vmatpush1.bf16.msra.mxu0 0
  %11091 = vmatprep.subr.bf16.mxu0 0
  %11092 = vmatpush1.bf16.msra.mxu0 0
  %11093 = vmatprep.subr.bf16.mxu0 0
  %11094 = vmatpush1.bf16.msra.mxu0 0
  %11095 = vmatprep.subr.bf16.mxu0 0
  %11096 = vmatpush1.bf16.msra.mxu0 0
  %11097 = vmatprep.subr.bf16.mxu0 0
  %11098 = vmatpush1.bf16.msra.mxu0 0
  %11099 = vmatprep.subr.bf16.mxu0 0
  %11100 = vmatpush1.bf16.msra.mxu0 0
  %11101 = vmatprep.subr.bf16.mxu0 0
  %11102 = vmatpush1.bf16.msra.mxu0 0
  %11103 = vmatprep.subr.bf16.mxu0 0
  %11104 = vmatpush1.bf16.msra.mxu0 0
  %11105 = vmatprep.subr.bf16.mxu0 0
  %11106 = vmatpush1.bf16.msra.mxu0 0
  %11107 = vmatprep.subr.bf16.mxu0 0
  %11108 = vmatpush1.bf16.msra.mxu0 0
  %11109 = vmatprep.mubr.bf16.mxu0 0
  %11110 = vmatmul.mubr.bf16.gmra.mrb[0].mxu0 %v11061
  %v11111 = vpop.f32.mrb[0].mxu0
  %v11112 = vadd.f32 0.0, %v11111
  %v11113 = vpop.f32.mrb[0].mxu0
  %v11114 = vpop.f32.mrb[0].mxu0
  %v11115 = vadd.f32 0.0, %v11114
  %v11116 = vpop.f32.mrb[0].mxu0
  %11117 = vmatprep.mubr.bf16.mxu0 0
  %11118 = vmatmul.mubr.bf16.gmra.mrb[0].mxu0 %v11063
  %v11119 = vpop.f32.mrb[0].mxu0
  %v11120 = vadd.f32 0.0, %v11119
  %v11121 = vpop.f32.mrb[0].mxu0
  %v11122 = vpop.f32.mrb[0].mxu0
  %v11123 = vadd.f32 0.0, %v11122
  %v11124 = vpop.f32.mrb[0].mxu0
  %11125 = vmatprep.mubr.bf16.mxu0 0
  %11126 = vmatmul.mubr.bf16.gmra.mrb[0].mxu0 %v11065
  %v11127 = vpop.f32.mrb[0].mxu0
  %v11128 = vadd.f32 0.0, %v11127
  %v11129 = vpop.f32.mrb[0].mxu0
  %v11130 = vpop.f32.mrb[0].mxu0
  %v11131 = vadd.f32 0.0, %v11130
  %v11132 = vpop.f32.mrb[0].mxu0
  %11133 = vmatprep.mubr.bf16.mxu0 0
  %11134 = vmatmul.mubr.bf16.gmra.mrb[0].mxu0 %v11067
  %v11135 = vpop.f32.mrb[0].mxu0
  %v11136 = vadd.f32 0.0, %v11135
  %v11137 = vpop.f32.mrb[0].mxu0
  %v11138 = vpop.f32.mrb[0].mxu0
  %v11139 = vadd.f32 0.0, %v11138
  %v11140 = vpop.f32.mrb[0].mxu0
  %11141 = vmatprep.mubr.bf16.mxu0 0
  %11142 = vmatmul.mubr.bf16.gmra.mrb[0].mxu0 %v11069
  %v11143 = vpop.f32.mrb[0].mxu0
  %v11144 = vadd.f32 0.0, %v11143
  %v11145 = vpop.f32.mrb[0].mxu0
  %v11146 = vpop.f32.mrb[0].mxu0
  %v11147 = vadd.f32 0.0, %v11146
  %v11148 = vpop.f32.mrb[0].mxu0
  %11149 = vmatprep.mubr.bf16.mxu0 0
  %11150 = vmatmul.mubr.bf16.gmra.mrb[0].mxu0 %v11071
  %v11151 = vpop.f32.mrb[0].mxu0
  %v11152 = vadd.f32 0.0, %v11151
  %v11153 = vpop.f32.mrb[0].mxu0
  %v11154 = vpop.f32.mrb[0].mxu0
  %v11155 = vadd.f32 0.0, %v11154
  %v11156 = vpop.f32.mrb[0].mxu0
  %11157 = vmatprep.mubr.bf16.mxu0 0
  %11158 = vmatmul.mubr.bf16.gmra.mrb[0].mxu0 %v11073
  %v11159 = vpop.f32.mrb[0].mxu0
  %v11160 = vadd.f32 0.0, %v11159
  %v11161 = vpop.f32.mrb[0].mxu0
  %v11162 = vpop.f32.mrb[0].mxu0
  %v11163 = vadd.f32 0.0, %v11162
  %v11164 = vpop.f32.mrb[0].mxu0
  %11165 = vmatprep.mubr.bf16.mxu0 0
  %11166 = vmatmul.mubr.bf16.gmra.mrb[0].mxu0 %v11075
  %v11167 = vpop.f32.mrb[0].mxu0
  %v11168 = vadd.f32 0.0, %v11167
  %v11169 = vpop.f32.mrb[0].mxu0
  %v11170 = vpop.f32.mrb[0].mxu0
  %v11171 = vadd.f32 0.0, %v11170
  %v11172 = vpop.f32.mrb[0].mxu0
  %11173 = vdwg.mxu0
  %v11174 = vadd.f32 %v10549, %v11112
  %v11175 = vadd.f32 %v10552, %v11115
  %v11176 = vadd.f32 %v10557, %v11120
  %v11177 = vadd.f32 %v10560, %v11123
  %v11178 = vadd.f32 %v10565, %v11128
  %v11179 = vadd.f32 %v10568, %v11131
  %v11180 = vadd.f32 %v10573, %v11136
  %v11181 = vadd.f32 %v10576, %v11139
  %v11182 = vadd.f32 %v10581, %v11144
  %v11183 = vadd.f32 %v10584, %v11147
  %v11184 = vadd.f32 %v10589, %v11152
  %v11185 = vadd.f32 %v10592, %v11155
  %v11186 = vadd.f32 %v10597, %v11160
  %v11187 = vadd.f32 %v10600, %v11163
  %v11188 = vadd.f32 %v10605, %v11168
  %v11189 = vadd.f32 %v10608, %v11171
  %11190 = vmatprep.subr.bf16.mxu0 0
  %11191 = vmatpush1.bf16.msra.mxu0 %v8198
  %11192 = vmatprep.subr.bf16.mxu0 0
  %11193 = vmatpush1.bf16.msra.mxu0 0
  %11194 = vmatprep.subr.bf16.mxu0 0
  %11195 = vmatpush1.bf16.msra.mxu0 0
  %11196 = vmatprep.subr.bf16.mxu0 0
  %11197 = vmatpush1.bf16.msra.mxu0 0
  %11198 = vmatprep.subr.bf16.mxu0 0
  %11199 = vmatpush1.bf16.msra.mxu0 0
  %11200 = vmatprep.subr.bf16.mxu0 0
  %11201 = vmatpush1.bf16.msra.mxu0 0
  %11202 = vmatprep.subr.bf16.mxu0 0
  %11203 = vmatpush1.bf16.msra.mxu0 0
  %11204 = vmatprep.subr.bf16.mxu0 0
  %11205 = vmatpush1.bf16.msra.mxu0 0
  %11206 = vmatprep.subr.bf16.mxu0 0
  %11207 = vmatpush1.bf16.msra.mxu0 0
  %11208 = vmatprep.subr.bf16.mxu0 0
  %11209 = vmatpush1.bf16.msra.mxu0 0
  %11210 = vmatprep.subr.bf16.mxu0 0
  %11211 = vmatpush1.bf16.msra.mxu0 0
  %11212 = vmatprep.subr.bf16.mxu0 0
  %11213 = vmatpush1.bf16.msra.mxu0 0
  %11214 = vmatprep.subr.bf16.mxu0 0
  %11215 = vmatpush1.bf16.msra.mxu0 0
  %11216 = vmatprep.subr.bf16.mxu0 0
  %11217 = vmatpush1.bf16.msra.mxu0 0
  %11218 = vmatprep.subr.bf16.mxu0 0
  %11219 = vmatpush1.bf16.msra.mxu0 0
  %11220 = vmatprep.subr.bf16.mxu0 0
  %11221 = vmatpush1.bf16.msra.mxu0 0
  %11222 = vmatprep.mubr.bf16.mxu0 0
  %11223 = vmatmul.mubr.bf16.gmra.mrb[0].mxu0 %v10288
  %v11224 = vpop.f32.mrb[0].mxu0
  %v11225 = vadd.f32 0.0, %v11224
  %v11226 = vpop.f32.mrb[0].mxu0
  %v11227 = vpop.f32.mrb[0].mxu0
  %v11228 = vadd.f32 0.0, %v11227
  %v11229 = vpop.f32.mrb[0].mxu0
  %11230 = vmatprep.mubr.bf16.mxu0 0
  %11231 = vmatmul.mubr.bf16.gmra.mrb[0].mxu0 %v10290
  %v11232 = vpop.f32.mrb[0].mxu0
  %v11233 = vadd.f32 0.0, %v11232
  %v11234 = vpop.f32.mrb[0].mxu0
  %v11235 = vpop.f32.mrb[0].mxu0
  %v11236 = vadd.f32 0.0, %v11235
  %v11237 = vpop.f32.mrb[0].mxu0
  %11238 = vmatprep.mubr.bf16.mxu0 0
  %11239 = vmatmul.mubr.bf16.gmra.mrb[0].mxu0 %v10292
  %v11240 = vpop.f32.mrb[0].mxu0
  %v11241 = vadd.f32 0.0, %v11240
  %v11242 = vpop.f32.mrb[0].mxu0
  %v11243 = vpop.f32.mrb[0].mxu0
  %v11244 = vadd.f32 0.0, %v11243
  %v11245 = vpop.f32.mrb[0].mxu0
  %11246 = vmatprep.mubr.bf16.mxu0 0
  %11247 = vmatmul.mubr.bf16.gmra.mrb[0].mxu0 %v10294
  %v11248 = vpop.f32.mrb[0].mxu0
  %v11249 = vadd.f32 0.0, %v11248
  %v11250 = vpop.f32.mrb[0].mxu0
  %v11251 = vpop.f32.mrb[0].mxu0
  %v11252 = vadd.f32 0.0, %v11251
  %v11253 = vpop.f32.mrb[0].mxu0
  %11254 = vmatprep.mubr.bf16.mxu0 0
  %11255 = vmatmul.mubr.bf16.gmra.mrb[0].mxu0 %v10296
  %v11256 = vpop.f32.mrb[0].mxu0
  %v11257 = vadd.f32 0.0, %v11256
  %v11258 = vpop.f32.mrb[0].mxu0
  %v11259 = vpop.f32.mrb[0].mxu0
  %v11260 = vadd.f32 0.0, %v11259
  %v11261 = vpop.f32.mrb[0].mxu0
  %11262 = vmatprep.mubr.bf16.mxu0 0
  %11263 = vmatmul.mubr.bf16.gmra.mrb[0].mxu0 %v10298
  %v11264 = vpop.f32.mrb[0].mxu0
  %v11265 = vadd.f32 0.0, %v11264
  %v11266 = vpop.f32.mrb[0].mxu0
  %v11267 = vpop.f32.mrb[0].mxu0
  %v11268 = vadd.f32 0.0, %v11267
  %v11269 = vpop.f32.mrb[0].mxu0
  %11270 = vmatprep.mubr.bf16.mxu0 0
  %11271 = vmatmul.mubr.bf16.gmra.mrb[0].mxu0 %v10300
  %v11272 = vpop.f32.mrb[0].mxu0
  %v11273 = vadd.f32 0.0, %v11272
  %v11274 = vpop.f32.mrb[0].mxu0
  %v11275 = vpop.f32.mrb[0].mxu0
  %v11276 = vadd.f32 0.0, %v11275
  %v11277 = vpop.f32.mrb[0].mxu0
  %11278 = vmatprep.mubr.bf16.mxu0 0
  %11279 = vmatmul.mubr.bf16.gmra.mrb[0].mxu0 %v10302
  %v11280 = vpop.f32.mrb[0].mxu0
  %v11281 = vadd.f32 0.0, %v11280
  %v11282 = vpop.f32.mrb[0].mxu0
  %v11283 = vpop.f32.mrb[0].mxu0
  %v11284 = vadd.f32 0.0, %v11283
  %v11285 = vpop.f32.mrb[0].mxu0
  %11286 = vdwg.mxu0
  %11287 = vmatprep.subr.bf16.mxu0 0
  %11288 = vmatpush1.bf16.msra.mxu0 %v8319
  %11289 = vmatprep.subr.bf16.mxu0 0
  %11290 = vmatpush1.bf16.msra.mxu0 0
  %11291 = vmatprep.subr.bf16.mxu0 0
  %11292 = vmatpush1.bf16.msra.mxu0 0
  %11293 = vmatprep.subr.bf16.mxu0 0
  %11294 = vmatpush1.bf16.msra.mxu0 0
  %11295 = vmatprep.subr.bf16.mxu0 0
  %11296 = vmatpush1.bf16.msra.mxu0 0
  %11297 = vmatprep.subr.bf16.mxu0 0
  %11298 = vmatpush1.bf16.msra.mxu0 0
  %11299 = vmatprep.subr.bf16.mxu0 0
  %11300 = vmatpush1.bf16.msra.mxu0 0
  %11301 = vmatprep.subr.bf16.mxu0 0
  %11302 = vmatpush1.bf16.msra.mxu0 0
  %11303 = vmatprep.subr.bf16.mxu0 0
  %11304 = vmatpush1.bf16.msra.mxu0 0
  %11305 = vmatprep.subr.bf16.mxu0 0
  %11306 = vmatpush1.bf16.msra.mxu0 0
  %11307 = vmatprep.subr.bf16.mxu0 0
  %11308 = vmatpush1.bf16.msra.mxu0 0
  %11309 = vmatprep.subr.bf16.mxu0 0
  %11310 = vmatpush1.bf16.msra.mxu0 0
  %11311 = vmatprep.subr.bf16.mxu0 0
  %11312 = vmatpush1.bf16.msra.mxu0 0
  %11313 = vmatprep.subr.bf16.mxu0 0
  %11314 = vmatpush1.bf16.msra.mxu0 0
  %11315 = vmatprep.subr.bf16.mxu0 0
  %11316 = vmatpush1.bf16.msra.mxu0 0
  %11317 = vmatprep.subr.bf16.mxu0 0
  %11318 = vmatpush1.bf16.msra.mxu0 0
  %11319 = vmatprep.mubr.bf16.mxu0 0
  %11320 = vmatmul.mubr.bf16.gmra.mrb[0].mxu0 %v9710
  %v11321 = vpop.f32.mrb[0].mxu0
  %v11322 = vadd.f32 %v11225, %v11321
  %v11323 = vpop.f32.mrb[0].mxu0
  %v11324 = vpop.f32.mrb[0].mxu0
  %v11325 = vadd.f32 %v11228, %v11324
  %v11326 = vpop.f32.mrb[0].mxu0
  %11327 = vmatprep.mubr.bf16.mxu0 0
  %11328 = vmatmul.mubr.bf16.gmra.mrb[0].mxu0 %v9712
  %v11329 = vpop.f32.mrb[0].mxu0
  %v11330 = vadd.f32 %v11233, %v11329
  %v11331 = vpop.f32.mrb[0].mxu0
  %v11332 = vpop.f32.mrb[0].mxu0
  %v11333 = vadd.f32 %v11236, %v11332
  %v11334 = vpop.f32.mrb[0].mxu0
  %11335 = vmatprep.mubr.bf16.mxu0 0
  %11336 = vmatmul.mubr.bf16.gmra.mrb[0].mxu0 %v9714
  %v11337 = vpop.f32.mrb[0].mxu0
  %v11338 = vadd.f32 %v11241, %v11337
  %v11339 = vpop.f32.mrb[0].mxu0
  %v11340 = vpop.f32.mrb[0].mxu0
  %v11341 = vadd.f32 %v11244, %v11340
  %v11342 = vpop.f32.mrb[0].mxu0
  %11343 = vmatprep.mubr.bf16.mxu0 0
  %11344 = vmatmul.mubr.bf16.gmra.mrb[0].mxu0 %v9716
  %v11345 = vpop.f32.mrb[0].mxu0
  %v11346 = vadd.f32 %v11249, %v11345
  %v11347 = vpop.f32.mrb[0].mxu0
  %v11348 = vpop.f32.mrb[0].mxu0
  %v11349 = vadd.f32 %v11252, %v11348
  %v11350 = vpop.f32.mrb[0].mxu0
  %11351 = vmatprep.mubr.bf16.mxu0 0
  %11352 = vmatmul.mubr.bf16.gmra.mrb[0].mxu0 %v9718
  %v11353 = vpop.f32.mrb[0].mxu0
  %v11354 = vadd.f32 %v11257, %v11353
  %v11355 = vpop.f32.mrb[0].mxu0
  %v11356 = vpop.f32.mrb[0].mxu0
  %v11357 = vadd.f32 %v11260, %v11356
  %v11358 = vpop.f32.mrb[0].mxu0
  %11359 = vmatprep.mubr.bf16.mxu0 0
  %11360 = vmatmul.mubr.bf16.gmra.mrb[0].mxu0 %v9720
  %v11361 = vpop.f32.mrb[0].mxu0
  %v11362 = vadd.f32 %v11265, %v11361
  %v11363 = vpop.f32.mrb[0].mxu0
  %v11364 = vpop.f32.mrb[0].mxu0
  %v11365 = vadd.f32 %v11268, %v11364
  %v11366 = vpop.f32.mrb[0].mxu0
  %11367 = vmatprep.mubr.bf16.mxu0 0
  %11368 = vmatmul.mubr.bf16.gmra.mrb[0].mxu0 %v9722
  %v11369 = vpop.f32.mrb[0].mxu0
  %v11370 = vadd.f32 %v11273, %v11369
  %v11371 = vpop.f32.mrb[0].mxu0
  %v11372 = vpop.f32.mrb[0].mxu0
  %v11373 = vadd.f32 %v11276, %v11372
  %v11374 = vpop.f32.mrb[0].mxu0
  %11375 = vmatprep.mubr.bf16.mxu0 0
  %11376 = vmatmul.mubr.bf16.gmra.mrb[0].mxu0 %v9724
  %v11377 = vpop.f32.mrb[0].mxu0
  %v11378 = vadd.f32 %v11281, %v11377
  %v11379 = vpop.f32.mrb[0].mxu0
  %v11380 = vpop.f32.mrb[0].mxu0
  %v11381 = vadd.f32 %v11284, %v11380
  %v11382 = vpop.f32.mrb[0].mxu0
  %11383 = vdwg.mxu0
  %v11384 = vld [vmem:[%s10628] sm:$0xf]
  %v11385 = vld [vmem:[%s10628 + $0x4] sm:$0x1]
  %v11386 = vld [vmem:[%s10628 + $0x20] sm:$0xf]
  %v11387 = vld [vmem:[%s10628 + $0x24] sm:$0x1]
  %v11388 = vld [vmem:[%s10628 + $0x40] sm:$0xf]
  %v11389 = vld [vmem:[%s10628 + $0x44] sm:$0x1]
  %v11390 = vld [vmem:[%s10628 + $0x60] sm:$0xf]
  %v11391 = vld [vmem:[%s10628 + $0x64] sm:$0x1]
  %v11392 = vld [vmem:[%s10628 + $0x80] sm:$0xf]
  %v11393 = vld [vmem:[%s10628 + $0x84] sm:$0x1]
  %v11394 = vld [vmem:[%s10628 + $0xa0] sm:$0xf]
  %v11395 = vld [vmem:[%s10628 + $0xa4] sm:$0x1]
  %v11396 = vld [vmem:[%s10628 + $0xc0] sm:$0xf]
  %v11397 = vld [vmem:[%s10628 + $0xc4] sm:$0x1]
  %v11398 = vld [vmem:[%s10628 + $0xe0] sm:$0xf]
  %v11399 = vld [vmem:[%s10628 + $0xe4] sm:$0x1]
  %v11400 = vld [vmem:[%s10628 + $0x120] sm:$0xf]
  %v11401 = vld [vmem:[%s10628 + $0x124] sm:$0x1]
  %v11402 = vld [vmem:[%s10628 + $0x140] sm:$0xf]
  %v11403 = vld [vmem:[%s10628 + $0x144] sm:$0x1]
  %v11404 = vld [vmem:[%s10628 + $0x160] sm:$0xf]
  %v11405 = vld [vmem:[%s10628 + $0x164] sm:$0x1]
  %v11406 = vld [vmem:[%s10628 + $0x180] sm:$0xf]
  %v11407 = vld [vmem:[%s10628 + $0x184] sm:$0x1]
  %v11408 = vld [vmem:[%s10628 + $0x1a0] sm:$0xf]
  %v11409 = vld [vmem:[%s10628 + $0x1a4] sm:$0x1]
  %v11410 = vld [vmem:[%s10628 + $0x1c0] sm:$0xf]
  %v11411 = vld [vmem:[%s10628 + $0x1c4] sm:$0x1]
  %v11412 = vld [vmem:[%s10628 + $0x1e0] sm:$0xf]
  %v11413 = vld [vmem:[%s10628 + $0x1e4] sm:$0x1]
  %v11414 = vld [vmem:[%s10628 + $0x200] sm:$0xf]
  %v11415 = vld [vmem:[%s10628 + $0x204] sm:$0x1]
  %v11417 = vshrl.u32 %v11384, 16
  %v11419 = vrot.slane %v11417, 4
  %v11420 = vshll.u32 %v11384, 16
  %v11422 = vrot.slane %v11420, 5
  %v11423 = vor.u32 %v11419, %v11422
  %v11424 = vrot.slane %v11423, 4
  %v11426 = vshll.u32 %v11385, 16
  %v11428 = vrot.slane %v11426, 5
  %v11429 = vsel %vm1125, %v11424, %v11428
  %v11431 = vshrl.u32 %v11386, 16
  %v11433 = vrot.slane %v11431, 4
  %v11434 = vshll.u32 %v11386, 16
  %v11436 = vrot.slane %v11434, 5
  %v11437 = vor.u32 %v11433, %v11436
  %v11438 = vrot.slane %v11437, 4
  %v11440 = vshll.u32 %v11387, 16
  %v11442 = vrot.slane %v11440, 5
  %v11443 = vsel %vm1125, %v11438, %v11442
  %v11445 = vshrl.u32 %v11388, 16
  %v11447 = vrot.slane %v11445, 4
  %v11448 = vshll.u32 %v11388, 16
  %v11450 = vrot.slane %v11448, 5
  %v11451 = vor.u32 %v11447, %v11450
  %v11452 = vrot.slane %v11451, 4
  %v11454 = vshll.u32 %v11389, 16
  %v11456 = vrot.slane %v11454, 5
  %v11457 = vsel %vm1125, %v11452, %v11456
  %v11459 = vshrl.u32 %v11390, 16
  %v11461 = vrot.slane %v11459, 4
  %v11462 = vshll.u32 %v11390, 16
  %v11464 = vrot.slane %v11462, 5
  %v11465 = vor.u32 %v11461, %v11464
  %v11466 = vrot.slane %v11465, 4
  %v11468 = vshll.u32 %v11391, 16
  %v11470 = vrot.slane %v11468, 5
  %v11471 = vsel %vm1125, %v11466, %v11470
  %v11473 = vshrl.u32 %v11392, 16
  %v11475 = vrot.slane %v11473, 4
  %v11476 = vshll.u32 %v11392, 16
  %v11478 = vrot.slane %v11476, 5
  %v11479 = vor.u32 %v11475, %v11478
  %v11480 = vrot.slane %v11479, 4
  %v11482 = vshll.u32 %v11393, 16
  %v11484 = vrot.slane %v11482, 5
  %v11485 = vsel %vm1125, %v11480, %v11484
  %v11487 = vshrl.u32 %v11394, 16
  %v11489 = vrot.slane %v11487, 4
  %v11490 = vshll.u32 %v11394, 16
  %v11492 = vrot.slane %v11490, 5
  %v11493 = vor.u32 %v11489, %v11492
  %v11494 = vrot.slane %v11493, 4
  %v11496 = vshll.u32 %v11395, 16
  %v11498 = vrot.slane %v11496, 5
  %v11499 = vsel %vm1125, %v11494, %v11498
  %v11501 = vshrl.u32 %v11396, 16
  %v11503 = vrot.slane %v11501, 4
  %v11504 = vshll.u32 %v11396, 16
  %v11506 = vrot.slane %v11504, 5
  %v11507 = vor.u32 %v11503, %v11506
  %v11508 = vrot.slane %v11507, 4
  %v11510 = vshll.u32 %v11397, 16
  %v11512 = vrot.slane %v11510, 5
  %v11513 = vsel %vm1125, %v11508, %v11512
  %v11515 = vshrl.u32 %v11398, 16
  %v11517 = vrot.slane %v11515, 4
  %v11518 = vshll.u32 %v11398, 16
  %v11520 = vrot.slane %v11518, 5
  %v11521 = vor.u32 %v11517, %v11520
  %v11522 = vrot.slane %v11521, 4
  %v11524 = vshll.u32 %v11399, 16
  %v11526 = vrot.slane %v11524, 5
  %v11527 = vsel %vm1125, %v11522, %v11526
  %v11529 = vshrl.u32 %v11400, 16
  %v11531 = vrot.slane %v11529, 4
  %v11532 = vshll.u32 %v11400, 16
  %v11534 = vrot.slane %v11532, 5
  %v11535 = vor.u32 %v11531, %v11534
  %v11536 = vrot.slane %v11535, 4
  %v11538 = vshll.u32 %v11401, 16
  %v11540 = vrot.slane %v11538, 5
  %v11541 = vsel %vm1125, %v11536, %v11540
  %v11543 = vshrl.u32 %v11402, 16
  %v11545 = vrot.slane %v11543, 4
  %v11546 = vshll.u32 %v11402, 16
  %v11548 = vrot.slane %v11546, 5
  %v11549 = vor.u32 %v11545, %v11548
  %v11550 = vrot.slane %v11549, 4
  %v11552 = vshll.u32 %v11403, 16
  %v11554 = vrot.slane %v11552, 5
  %v11555 = vsel %vm1125, %v11550, %v11554
  %v11557 = vshrl.u32 %v11404, 16
  %v11559 = vrot.slane %v11557, 4
  %v11560 = vshll.u32 %v11404, 16
  %v11562 = vrot.slane %v11560, 5
  %v11563 = vor.u32 %v11559, %v11562
  %v11564 = vrot.slane %v11563, 4
  %v11566 = vshll.u32 %v11405, 16
  %v11568 = vrot.slane %v11566, 5
  %v11569 = vsel %vm1125, %v11564, %v11568
  %v11571 = vshrl.u32 %v11406, 16
  %v11573 = vrot.slane %v11571, 4
  %v11574 = vshll.u32 %v11406, 16
  %v11576 = vrot.slane %v11574, 5
  %v11577 = vor.u32 %v11573, %v11576
  %v11578 = vrot.slane %v11577, 4
  %v11580 = vshll.u32 %v11407, 16
  %v11582 = vrot.slane %v11580, 5
  %v11583 = vsel %vm1125, %v11578, %v11582
  %v11585 = vshrl.u32 %v11408, 16
  %v11587 = vrot.slane %v11585, 4
  %v11588 = vshll.u32 %v11408, 16
  %v11590 = vrot.slane %v11588, 5
  %v11591 = vor.u32 %v11587, %v11590
  %v11592 = vrot.slane %v11591, 4
  %v11594 = vshll.u32 %v11409, 16
  %v11596 = vrot.slane %v11594, 5
  %v11597 = vsel %vm1125, %v11592, %v11596
  %v11599 = vshrl.u32 %v11410, 16
  %v11601 = vrot.slane %v11599, 4
  %v11602 = vshll.u32 %v11410, 16
  %v11604 = vrot.slane %v11602, 5
  %v11605 = vor.u32 %v11601, %v11604
  %v11606 = vrot.slane %v11605, 4
  %v11608 = vshll.u32 %v11411, 16
  %v11610 = vrot.slane %v11608, 5
  %v11611 = vsel %vm1125, %v11606, %v11610
  %v11613 = vshrl.u32 %v11412, 16
  %v11615 = vrot.slane %v11613, 4
  %v11616 = vshll.u32 %v11412, 16
  %v11618 = vrot.slane %v11616, 5
  %v11619 = vor.u32 %v11615, %v11618
  %v11620 = vrot.slane %v11619, 4
  %v11622 = vshll.u32 %v11413, 16
  %v11624 = vrot.slane %v11622, 5
  %v11625 = vsel %vm1125, %v11620, %v11624
  %v11627 = vshrl.u32 %v11414, 16
  %v11629 = vrot.slane %v11627, 4
  %v11630 = vshll.u32 %v11414, 16
  %v11632 = vrot.slane %v11630, 5
  %v11633 = vor.u32 %v11629, %v11632
  %v11634 = vrot.slane %v11633, 4
  %v11636 = vshll.u32 %v11415, 16
  %v11638 = vrot.slane %v11636, 5
  %v11639 = vsel %vm1125, %v11634, %v11638
  %11640 = vrot.lane.b32.xlu0 %v10997, 4
  %v11641 = vpop.permute.xlu0 %11640
  %11642 = vrot.lane.b32.xlu0 %v10998, 4
  %v11643 = vpop.permute.xlu0 %11642
  %11644 = vrot.lane.b32.xlu0 %v10999, 4
  %v11645 = vpop.permute.xlu0 %11644
  %11646 = vrot.lane.b32.xlu0 %v11000, 4
  %v11647 = vpop.permute.xlu0 %11646
  %11648 = vrot.lane.b32.xlu0 %v11001, 4
  %v11649 = vpop.permute.xlu0 %11648
  %11650 = vrot.lane.b32.xlu0 %v11002, 4
  %v11651 = vpop.permute.xlu0 %11650
  %11652 = vrot.lane.b32.xlu0 %v11003, 4
  %v11653 = vpop.permute.xlu0 %11652
  %11654 = vrot.lane.b32.xlu0 %v11004, 4
  %v11655 = vpop.permute.xlu0 %11654
  %v11656 = vunpack.c.l.b16 %v11429
  %v11657 = vunpack.c.l.b16 %v11443
  %v11658 = vunpack.c.l.b16 %v11457
  %v11659 = vunpack.c.l.b16 %v11471
  %v11660 = vunpack.c.l.b16 %v11485
  %v11661 = vunpack.c.l.b16 %v11499
  %v11662 = vunpack.c.l.b16 %v11513
  %v11663 = vunpack.c.l.b16 %v11527
  %v11664 = vunpack.c.l.b16 %v11541
  %v11665 = vunpack.c.l.b16 %v11555
  %v11666 = vunpack.c.l.b16 %v11569
  %v11667 = vunpack.c.l.b16 %v11583
  %v11668 = vunpack.c.l.b16 %v11597
  %v11669 = vunpack.c.l.b16 %v11611
  %v11670 = vunpack.c.l.b16 %v11625
  %v11671 = vunpack.c.l.b16 %v11639
  %v11672 = vpack.c.b16 %v11657, %v11656
  %v11673 = vpack.c.b16 %v11659, %v11658
  %v11674 = vpack.c.b16 %v11661, %v11660
  %v11675 = vpack.c.b16 %v11663, %v11662
  %v11676 = vpack.c.b16 %v11665, %v11664
  %v11677 = vpack.c.b16 %v11667, %v11666
  %v11678 = vpack.c.b16 %v11669, %v11668
  %v11679 = vpack.c.b16 %v11671, %v11670
  %11680 = vrot.lane.b32.xlu0 %v11672, 8
  %v11681 = vpop.permute.xlu0 %11680
  %11682 = vrot.lane.b32.xlu0 %v11673, 8
  %v11683 = vpop.permute.xlu0 %11682
  %11684 = vrot.lane.b32.xlu0 %v11674, 8
  %v11685 = vpop.permute.xlu0 %11684
  %11686 = vrot.lane.b32.xlu0 %v11675, 8
  %v11687 = vpop.permute.xlu0 %11686
  %11688 = vrot.lane.b32.xlu0 %v11676, 8
  %v11689 = vpop.permute.xlu0 %11688
  %11690 = vrot.lane.b32.xlu0 %v11677, 8
  %v11691 = vpop.permute.xlu0 %11690
  %11692 = vrot.lane.b32.xlu0 %v11678, 8
  %v11693 = vpop.permute.xlu0 %11692
  %11694 = vrot.lane.b32.xlu0 %v11679, 8
  %v11695 = vpop.permute.xlu0 %11694
  %v11698 = vsel %vm1486, %v10957, %v11641
  %v11701 = vsel %vm1486, %v10958, %v11643
  %v11704 = vsel %vm1486, %v10959, %v11645
  %v11707 = vsel %vm1486, %v10960, %v11647
  %v11710 = vsel %vm1486, %v10961, %v11649
  %v11713 = vsel %vm1486, %v10962, %v11651
  %v11716 = vsel %vm1486, %v10963, %v11653
  %v11719 = vsel %vm1486, %v10964, %v11655
  %v11721 = vsel %vm1511, %v11698, %v11681
  %v11723 = vsel %vm1511, %v11701, %v11683
  %v11725 = vsel %vm1511, %v11704, %v11685
  %v11727 = vsel %vm1511, %v11707, %v11687
  %v11729 = vsel %vm1511, %v11710, %v11689
  %v11731 = vsel %vm1511, %v11713, %v11691
  %v11733 = vsel %vm1511, %v11716, %v11693
  %v11735 = vsel %vm1511, %v11719, %v11695
  %v11736 = vsel %vm1986, %v11721, 0
  %v11738 = vsel %vm1986, %v11723, 0
  %v11740 = vsel %vm1986, %v11725, 0
  %v11742 = vsel %vm1986, %v11727, 0
  %v11744 = vsel %vm1986, %v11729, 0
  %v11746 = vsel %vm1986, %v11731, 0
  %v11748 = vsel %vm1986, %v11733, 0
  %v11750 = vsel %vm1986, %v11735, 0
  %11752 = vmatprep.subr.bf16.mxu0 0
  %11753 = vmatpush1.bf16.msra.mxu0 %v8891
  %11754 = vmatprep.subr.bf16.mxu0 0
  %11755 = vmatpush1.bf16.msra.mxu0 0
  %11756 = vmatprep.subr.bf16.mxu0 0
  %11757 = vmatpush1.bf16.msra.mxu0 0
  %11758 = vmatprep.subr.bf16.mxu0 0
  %11759 = vmatpush1.bf16.msra.mxu0 0
  %11760 = vmatprep.subr.bf16.mxu0 0
  %11761 = vmatpush1.bf16.msra.mxu0 0
  %11762 = vmatprep.subr.bf16.mxu0 0
  %11763 = vmatpush1.bf16.msra.mxu0 0
  %11764 = vmatprep.subr.bf16.mxu0 0
  %11765 = vmatpush1.bf16.msra.mxu0 0
  %11766 = vmatprep.subr.bf16.mxu0 0
  %11767 = vmatpush1.bf16.msra.mxu0 0
  %11768 = vmatprep.subr.bf16.mxu0 0
  %11769 = vmatpush1.bf16.msra.mxu0 0
  %11770 = vmatprep.subr.bf16.mxu0 0
  %11771 = vmatpush1.bf16.msra.mxu0 0
  %11772 = vmatprep.subr.bf16.mxu0 0
  %11773 = vmatpush1.bf16.msra.mxu0 0
  %11774 = vmatprep.subr.bf16.mxu0 0
  %11775 = vmatpush1.bf16.msra.mxu0 0
  %11776 = vmatprep.subr.bf16.mxu0 0
  %11777 = vmatpush1.bf16.msra.mxu0 0
  %11778 = vmatprep.subr.bf16.mxu0 0
  %11779 = vmatpush1.bf16.msra.mxu0 0
  %11780 = vmatprep.subr.bf16.mxu0 0
  %11781 = vmatpush1.bf16.msra.mxu0 0
  %11782 = vmatprep.subr.bf16.mxu0 0
  %11783 = vmatpush1.bf16.msra.mxu0 0
  %11784 = vmatprep.mubr.bf16.mxu0 0
  %11785 = vmatmul.mubr.bf16.gmra.mrb[0].mxu0 %v11736
  %v11786 = vpop.f32.mrb[0].mxu0
  %v11787 = vadd.f32 0.0, %v11786
  %v11788 = vpop.f32.mrb[0].mxu0
  %v11789 = vpop.f32.mrb[0].mxu0
  %v11790 = vadd.f32 0.0, %v11789
  %v11791 = vpop.f32.mrb[0].mxu0
  %11792 = vmatprep.mubr.bf16.mxu0 0
  %11793 = vmatmul.mubr.bf16.gmra.mrb[0].mxu0 %v11738
  %v11794 = vpop.f32.mrb[0].mxu0
  %v11795 = vadd.f32 0.0, %v11794
  %v11796 = vpop.f32.mrb[0].mxu0
  %v11797 = vpop.f32.mrb[0].mxu0
  %v11798 = vadd.f32 0.0, %v11797
  %v11799 = vpop.f32.mrb[0].mxu0
  %11800 = vmatprep.mubr.bf16.mxu0 0
  %11801 = vmatmul.mubr.bf16.gmra.mrb[0].mxu0 %v11740
  %v11802 = vpop.f32.mrb[0].mxu0
  %v11803 = vadd.f32 0.0, %v11802
  %v11804 = vpop.f32.mrb[0].mxu0
  %v11805 = vpop.f32.mrb[0].mxu0
  %v11806 = vadd.f32 0.0, %v11805
  %v11807 = vpop.f32.mrb[0].mxu0
  %11808 = vmatprep.mubr.bf16.mxu0 0
  %11809 = vmatmul.mubr.bf16.gmra.mrb[0].mxu0 %v11742
  %v11810 = vpop.f32.mrb[0].mxu0
  %v11811 = vadd.f32 0.0, %v11810
  %v11812 = vpop.f32.mrb[0].mxu0
  %v11813 = vpop.f32.mrb[0].mxu0
  %v11814 = vadd.f32 0.0, %v11813
  %v11815 = vpop.f32.mrb[0].mxu0
  %11816 = vmatprep.mubr.bf16.mxu0 0
  %11817 = vmatmul.mubr.bf16.gmra.mrb[0].mxu0 %v11744
  %v11818 = vpop.f32.mrb[0].mxu0
  %v11819 = vadd.f32 0.0, %v11818
  %v11820 = vpop.f32.mrb[0].mxu0
  %v11821 = vpop.f32.mrb[0].mxu0
  %v11822 = vadd.f32 0.0, %v11821
  %v11823 = vpop.f32.mrb[0].mxu0
  %11824 = vmatprep.mubr.bf16.mxu0 0
  %11825 = vmatmul.mubr.bf16.gmra.mrb[0].mxu0 %v11746
  %v11826 = vpop.f32.mrb[0].mxu0
  %v11827 = vadd.f32 0.0, %v11826
  %v11828 = vpop.f32.mrb[0].mxu0
  %v11829 = vpop.f32.mrb[0].mxu0
  %v11830 = vadd.f32 0.0, %v11829
  %v11831 = vpop.f32.mrb[0].mxu0
  %11832 = vmatprep.mubr.bf16.mxu0 0
  %11833 = vmatmul.mubr.bf16.gmra.mrb[0].mxu0 %v11748
  %v11834 = vpop.f32.mrb[0].mxu0
  %v11835 = vadd.f32 0.0, %v11834
  %v11836 = vpop.f32.mrb[0].mxu0
  %v11837 = vpop.f32.mrb[0].mxu0
  %v11838 = vadd.f32 0.0, %v11837
  %v11839 = vpop.f32.mrb[0].mxu0
  %11840 = vmatprep.mubr.bf16.mxu0 0
  %11841 = vmatmul.mubr.bf16.gmra.mrb[0].mxu0 %v11750
  %v11842 = vpop.f32.mrb[0].mxu0
  %v11843 = vadd.f32 0.0, %v11842
  %v11844 = vpop.f32.mrb[0].mxu0
  %v11845 = vpop.f32.mrb[0].mxu0
  %v11846 = vadd.f32 0.0, %v11845
  %v11847 = vpop.f32.mrb[0].mxu0
  %11848 = vdwg.mxu0
  %v11849 = vadd.f32 %v11322, %v11787
  %v11850 = vadd.f32 %v11325, %v11790
  %v11851 = vadd.f32 %v11330, %v11795
  %v11852 = vadd.f32 %v11333, %v11798
  %v11853 = vadd.f32 %v11338, %v11803
  %v11854 = vadd.f32 %v11341, %v11806
  %v11855 = vadd.f32 %v11346, %v11811
  %v11856 = vadd.f32 %v11349, %v11814
  %v11857 = vadd.f32 %v11354, %v11819
  %v11858 = vadd.f32 %v11357, %v11822
  %v11859 = vadd.f32 %v11362, %v11827
  %v11860 = vadd.f32 %v11365, %v11830
  %v11861 = vadd.f32 %v11370, %v11835
  %v11862 = vadd.f32 %v11373, %v11838
  %v11863 = vadd.f32 %v11378, %v11843
  %v11864 = vadd.f32 %v11381, %v11846
  %v11865 = vld [vmem:[%s6] sm:$0x1]
  %v11866 = vld [vmem:[%s7] sm:$0x1]
  %v11867 = vsel %vm1486, %v8990, 0.0
  %v11868 = vsel %vm1486, %v8991, 0.0
  %v11869 = vadd.f32 %v11867, %v11868
  %v11870 = vsel %vm1486, %v8992, 0.0
  %v11871 = vadd.f32 %v11869, %v11870
  %v11872 = vsel %vm1486, %v8993, 0.0
  %v11873 = vadd.f32 %v11871, %v11872
  %v11874 = vsel %vm1486, %v8994, 0.0
  %v11875 = vadd.f32 %v11873, %v11874
  %v11876 = vsel %vm1486, %v8995, 0.0
  %v11877 = vadd.f32 %v11875, %v11876
  %v11878 = vsel %vm1486, %v8996, 0.0
  %v11879 = vadd.f32 %v11877, %v11878
  %v11880 = vsel %vm1486, %v8997, 0.0
  %v11881 = vadd.f32 %v11879, %v11880
  %v11882 = vsel %vm1486, %v8998, 0.0
  %v11883 = vadd.f32 %v11881, %v11882
  %v11884 = vsel %vm1486, %v8999, 0.0
  %v11885 = vadd.f32 %v11883, %v11884
  %v11886 = vsel %vm1486, %v9000, 0.0
  %v11887 = vadd.f32 %v11885, %v11886
  %v11888 = vsel %vm1486, %v9001, 0.0
  %v11889 = vadd.f32 %v11887, %v11888
  %v11890 = vsel %vm1486, %v9002, 0.0
  %v11891 = vadd.f32 %v11889, %v11890
  %v11892 = vsel %vm1486, %v9003, 0.0
  %v11893 = vadd.f32 %v11891, %v11892
  %v11894 = vsel %vm1486, %v9004, 0.0
  %v11895 = vadd.f32 %v11893, %v11894
  %v11896 = vsel %vm1486, %v9005, 0.0
  %v11897 = vadd.f32 %v11895, %v11896
  %v11898 = vrot.slane %v11897, 4
  %v11899 = vadd.f32 %v11897, %v11898
  %v11900 = vrot.slane %v11899, 2
  %v11901 = vadd.f32 %v11899, %v11900
  %v11902 = vrot.slane %v11901, 1
  %v11903 = vadd.f32 %v11901, %v11902
  %v11904 = vadd.f32 %v11903, 0.0
  %v11905 = vsel %vm1486, %v10401, 0.0
  %v11906 = vsel %vm1486, %v10402, 0.0
  %v11907 = vadd.f32 %v11905, %v11906
  %v11908 = vsel %vm1486, %v10403, 0.0
  %v11909 = vadd.f32 %v11907, %v11908
  %v11910 = vsel %vm1486, %v10404, 0.0
  %v11911 = vadd.f32 %v11909, %v11910
  %v11912 = vsel %vm1486, %v10405, 0.0
  %v11913 = vadd.f32 %v11911, %v11912
  %v11914 = vsel %vm1486, %v10406, 0.0
  %v11915 = vadd.f32 %v11913, %v11914
  %v11916 = vsel %vm1486, %v10407, 0.0
  %v11917 = vadd.f32 %v11915, %v11916
  %v11918 = vsel %vm1486, %v10408, 0.0
  %v11919 = vadd.f32 %v11917, %v11918
  %v11920 = vsel %vm1486, %v10409, 0.0
  %v11921 = vadd.f32 %v11919, %v11920
  %v11922 = vsel %vm1486, %v10410, 0.0
  %v11923 = vadd.f32 %v11921, %v11922
  %v11924 = vsel %vm1486, %v10411, 0.0
  %v11925 = vadd.f32 %v11923, %v11924
  %v11926 = vsel %vm1486, %v10412, 0.0
  %v11927 = vadd.f32 %v11925, %v11926
  %v11928 = vsel %vm1486, %v10413, 0.0
  %v11929 = vadd.f32 %v11927, %v11928
  %v11930 = vsel %vm1486, %v10414, 0.0
  %v11931 = vadd.f32 %v11929, %v11930
  %v11932 = vsel %vm1486, %v10415, 0.0
  %v11933 = vadd.f32 %v11931, %v11932
  %v11934 = vsel %vm1486, %v10416, 0.0
  %v11935 = vadd.f32 %v11933, %v11934
  %v11936 = vrot.slane %v11935, 4
  %v11937 = vadd.f32 %v11935, %v11936
  %v11938 = vrot.slane %v11937, 2
  %v11939 = vadd.f32 %v11937, %v11938
  %v11940 = vrot.slane %v11939, 1
  %v11941 = vadd.f32 %v11939, %v11940
  %v11942 = vadd.f32 %v11904, %v11941
  %v11943 = vsel %vm1486, %v11174, 0.0
  %v11944 = vsel %vm1486, %v11175, 0.0
  %v11945 = vadd.f32 %v11943, %v11944
  %v11946 = vsel %vm1486, %v11176, 0.0
  %v11947 = vadd.f32 %v11945, %v11946
  %v11948 = vsel %vm1486, %v11177, 0.0
  %v11949 = vadd.f32 %v11947, %v11948
  %v11950 = vsel %vm1486, %v11178, 0.0
  %v11951 = vadd.f32 %v11949, %v11950
  %v11952 = vsel %vm1486, %v11179, 0.0
  %v11953 = vadd.f32 %v11951, %v11952
  %v11954 = vsel %vm1486, %v11180, 0.0
  %v11955 = vadd.f32 %v11953, %v11954
  %v11956 = vsel %vm1486, %v11181, 0.0
  %v11957 = vadd.f32 %v11955, %v11956
  %v11958 = vsel %vm1486, %v11182, 0.0
  %v11959 = vadd.f32 %v11957, %v11958
  %v11960 = vsel %vm1486, %v11183, 0.0
  %v11961 = vadd.f32 %v11959, %v11960
  %v11962 = vsel %vm1486, %v11184, 0.0
  %v11963 = vadd.f32 %v11961, %v11962
  %v11964 = vsel %vm1486, %v11185, 0.0
  %v11965 = vadd.f32 %v11963, %v11964
  %v11966 = vsel %vm1486, %v11186, 0.0
  %v11967 = vadd.f32 %v11965, %v11966
  %v11968 = vsel %vm1486, %v11187, 0.0
  %v11969 = vadd.f32 %v11967, %v11968
  %v11970 = vsel %vm1486, %v11188, 0.0
  %v11971 = vadd.f32 %v11969, %v11970
  %v11972 = vsel %vm1486, %v11189, 0.0
  %v11973 = vadd.f32 %v11971, %v11972
  %v11974 = vrot.slane %v11973, 4
  %v11975 = vadd.f32 %v11973, %v11974
  %v11976 = vrot.slane %v11975, 2
  %v11977 = vadd.f32 %v11975, %v11976
  %v11978 = vrot.slane %v11977, 1
  %v11979 = vadd.f32 %v11977, %v11978
  %v11980 = vadd.f32 %v11942, %v11979
  %v11981 = vsel %vm1486, %v11849, 0.0
  %v11982 = vsel %vm1486, %v11850, 0.0
  %v11983 = vadd.f32 %v11981, %v11982
  %v11984 = vsel %vm1486, %v11851, 0.0
  %v11985 = vadd.f32 %v11983, %v11984
  %v11986 = vsel %vm1486, %v11852, 0.0
  %v11987 = vadd.f32 %v11985, %v11986
  %v11988 = vsel %vm1486, %v11853, 0.0
  %v11989 = vadd.f32 %v11987, %v11988
  %v11990 = vsel %vm1486, %v11854, 0.0
  %v11991 = vadd.f32 %v11989, %v11990
  %v11992 = vsel %vm1486, %v11855, 0.0
  %v11993 = vadd.f32 %v11991, %v11992
  %v11994 = vsel %vm1486, %v11856, 0.0
  %v11995 = vadd.f32 %v11993, %v11994
  %v11996 = vsel %vm1486, %v11857, 0.0
  %v11997 = vadd.f32 %v11995, %v11996
  %v11998 = vsel %vm1486, %v11858, 0.0
  %v11999 = vadd.f32 %v11997, %v11998
  %v12000 = vsel %vm1486, %v11859, 0.0
  %v12001 = vadd.f32 %v11999, %v12000
  %v12002 = vsel %vm1486, %v11860, 0.0
  %v12003 = vadd.f32 %v12001, %v12002
  %v12004 = vsel %vm1486, %v11861, 0.0
  %v12005 = vadd.f32 %v12003, %v12004
  %v12006 = vsel %vm1486, %v11862, 0.0
  %v12007 = vadd.f32 %v12005, %v12006
  %v12008 = vsel %vm1486, %v11863, 0.0
  %v12009 = vadd.f32 %v12007, %v12008
  %v12010 = vsel %vm1486, %v11864, 0.0
  %v12011 = vadd.f32 %v12009, %v12010
  %v12012 = vrot.slane %v12011, 4
  %v12013 = vadd.f32 %v12011, %v12012
  %v12014 = vrot.slane %v12013, 2
  %v12015 = vadd.f32 %v12013, %v12014
  %v12016 = vrot.slane %v12015, 1
  %v12017 = vadd.f32 %v12015, %v12016
  %v12018 = vadd.f32 %v11980, %v12017
  %v12019 = vmul.f32 %v12018, 0.001953125
  %v12020 = vsub.f32 %v8990, %v12019
  %v12021 = vsub.f32 %v8991, %v12019
  %v12022 = vsub.f32 %v8992, %v12019
  %v12023 = vsub.f32 %v8993, %v12019
  %v12024 = vsub.f32 %v8994, %v12019
  %v12025 = vsub.f32 %v8995, %v12019
  %v12026 = vsub.f32 %v8996, %v12019
  %v12027 = vsub.f32 %v8997, %v12019
  %v12028 = vsub.f32 %v8998, %v12019
  %v12029 = vsub.f32 %v8999, %v12019
  %v12030 = vsub.f32 %v9000, %v12019
  %v12031 = vsub.f32 %v9001, %v12019
  %v12032 = vsub.f32 %v9002, %v12019
  %v12033 = vsub.f32 %v9003, %v12019
  %v12034 = vsub.f32 %v9004, %v12019
  %v12035 = vsub.f32 %v9005, %v12019
  %v12036 = vmul.f32 %v12020, %v12020
  %v12037 = vmul.f32 %v12021, %v12021
  %v12038 = vmul.f32 %v12022, %v12022
  %v12039 = vmul.f32 %v12023, %v12023
  %v12040 = vmul.f32 %v12024, %v12024
  %v12041 = vmul.f32 %v12025, %v12025
  %v12042 = vmul.f32 %v12026, %v12026
  %v12043 = vmul.f32 %v12027, %v12027
  %v12044 = vmul.f32 %v12028, %v12028
  %v12045 = vmul.f32 %v12029, %v12029
  %v12046 = vmul.f32 %v12030, %v12030
  %v12047 = vmul.f32 %v12031, %v12031
  %v12048 = vmul.f32 %v12032, %v12032
  %v12049 = vmul.f32 %v12033, %v12033
  %v12050 = vmul.f32 %v12034, %v12034
  %v12051 = vmul.f32 %v12035, %v12035
  %v12052 = vsel %vm1486, %v12036, 0.0
  %v12053 = vsel %vm1486, %v12037, 0.0
  %v12054 = vadd.f32 %v12052, %v12053
  %v12055 = vsel %vm1486, %v12038, 0.0
  %v12056 = vadd.f32 %v12054, %v12055
  %v12057 = vsel %vm1486, %v12039, 0.0
  %v12058 = vadd.f32 %v12056, %v12057
  %v12059 = vsel %vm1486, %v12040, 0.0
  %v12060 = vadd.f32 %v12058, %v12059
  %v12061 = vsel %vm1486, %v12041, 0.0
  %v12062 = vadd.f32 %v12060, %v12061
  %v12063 = vsel %vm1486, %v12042, 0.0
  %v12064 = vadd.f32 %v12062, %v12063
  %v12065 = vsel %vm1486, %v12043, 0.0
  %v12066 = vadd.f32 %v12064, %v12065
  %v12067 = vsel %vm1486, %v12044, 0.0
  %v12068 = vadd.f32 %v12066, %v12067
  %v12069 = vsel %vm1486, %v12045, 0.0
  %v12070 = vadd.f32 %v12068, %v12069
  %v12071 = vsel %vm1486, %v12046, 0.0
  %v12072 = vadd.f32 %v12070, %v12071
  %v12073 = vsel %vm1486, %v12047, 0.0
  %v12074 = vadd.f32 %v12072, %v12073
  %v12075 = vsel %vm1486, %v12048, 0.0
  %v12076 = vadd.f32 %v12074, %v12075
  %v12077 = vsel %vm1486, %v12049, 0.0
  %v12078 = vadd.f32 %v12076, %v12077
  %v12079 = vsel %vm1486, %v12050, 0.0
  %v12080 = vadd.f32 %v12078, %v12079
  %v12081 = vsel %vm1486, %v12051, 0.0
  %v12082 = vadd.f32 %v12080, %v12081
  %v12083 = vrot.slane %v12082, 4
  %v12084 = vadd.f32 %v12082, %v12083
  %v12085 = vrot.slane %v12084, 2
  %v12086 = vadd.f32 %v12084, %v12085
  %v12087 = vrot.slane %v12086, 1
  %v12088 = vadd.f32 %v12086, %v12087
  %v12089 = vadd.f32 %v12088, 0.0
  %v12090 = vsub.f32 %v10401, %v12019
  %v12091 = vsub.f32 %v10402, %v12019
  %v12092 = vsub.f32 %v10403, %v12019
  %v12093 = vsub.f32 %v10404, %v12019
  %v12094 = vsub.f32 %v10405, %v12019
  %v12095 = vsub.f32 %v10406, %v12019
  %v12096 = vsub.f32 %v10407, %v12019
  %v12097 = vsub.f32 %v10408, %v12019
  %v12098 = vsub.f32 %v10409, %v12019
  %v12099 = vsub.f32 %v10410, %v12019
  %v12100 = vsub.f32 %v10411, %v12019
  %v12101 = vsub.f32 %v10412, %v12019
  %v12102 = vsub.f32 %v10413, %v12019
  %v12103 = vsub.f32 %v10414, %v12019
  %v12104 = vsub.f32 %v10415, %v12019
  %v12105 = vsub.f32 %v10416, %v12019
  %v12106 = vmul.f32 %v12090, %v12090
  %v12107 = vmul.f32 %v12091, %v12091
  %v12108 = vmul.f32 %v12092, %v12092
  %v12109 = vmul.f32 %v12093, %v12093
  %v12110 = vmul.f32 %v12094, %v12094
  %v12111 = vmul.f32 %v12095, %v12095
  %v12112 = vmul.f32 %v12096, %v12096
  %v12113 = vmul.f32 %v12097, %v12097
  %v12114 = vmul.f32 %v12098, %v12098
  %v12115 = vmul.f32 %v12099, %v12099
  %v12116 = vmul.f32 %v12100, %v12100
  %v12117 = vmul.f32 %v12101, %v12101
  %v12118 = vmul.f32 %v12102, %v12102
  %v12119 = vmul.f32 %v12103, %v12103
  %v12120 = vmul.f32 %v12104, %v12104
  %v12121 = vmul.f32 %v12105, %v12105
  %v12122 = vsel %vm1486, %v12106, 0.0
  %v12123 = vsel %vm1486, %v12107, 0.0
  %v12124 = vadd.f32 %v12122, %v12123
  %v12125 = vsel %vm1486, %v12108, 0.0
  %v12126 = vadd.f32 %v12124, %v12125
  %v12127 = vsel %vm1486, %v12109, 0.0
  %v12128 = vadd.f32 %v12126, %v12127
  %v12129 = vsel %vm1486, %v12110, 0.0
  %v12130 = vadd.f32 %v12128, %v12129
  %v12131 = vsel %vm1486, %v12111, 0.0
  %v12132 = vadd.f32 %v12130, %v12131
  %v12133 = vsel %vm1486, %v12112, 0.0
  %v12134 = vadd.f32 %v12132, %v12133
  %v12135 = vsel %vm1486, %v12113, 0.0
  %v12136 = vadd.f32 %v12134, %v12135
  %v12137 = vsel %vm1486, %v12114, 0.0
  %v12138 = vadd.f32 %v12136, %v12137
  %v12139 = vsel %vm1486, %v12115, 0.0
  %v12140 = vadd.f32 %v12138, %v12139
  %v12141 = vsel %vm1486, %v12116, 0.0
  %v12142 = vadd.f32 %v12140, %v12141
  %v12143 = vsel %vm1486, %v12117, 0.0
  %v12144 = vadd.f32 %v12142, %v12143
  %v12145 = vsel %vm1486, %v12118, 0.0
  %v12146 = vadd.f32 %v12144, %v12145
  %v12147 = vsel %vm1486, %v12119, 0.0
  %v12148 = vadd.f32 %v12146, %v12147
  %v12149 = vsel %vm1486, %v12120, 0.0
  %v12150 = vadd.f32 %v12148, %v12149
  %v12151 = vsel %vm1486, %v12121, 0.0
  %v12152 = vadd.f32 %v12150, %v12151
  %v12153 = vrot.slane %v12152, 4
  %v12154 = vadd.f32 %v12152, %v12153
  %v12155 = vrot.slane %v12154, 2
  %v12156 = vadd.f32 %v12154, %v12155
  %v12157 = vrot.slane %v12156, 1
  %v12158 = vadd.f32 %v12156, %v12157
  %v12159 = vadd.f32 %v12089, %v12158
  %v12160 = vsub.f32 %v11174, %v12019
  %v12161 = vsub.f32 %v11175, %v12019
  %v12162 = vsub.f32 %v11176, %v12019
  %v12163 = vsub.f32 %v11177, %v12019
  %v12164 = vsub.f32 %v11178, %v12019
  %v12165 = vsub.f32 %v11179, %v12019
  %v12166 = vsub.f32 %v11180, %v12019
  %v12167 = vsub.f32 %v11181, %v12019
  %v12168 = vsub.f32 %v11182, %v12019
  %v12169 = vsub.f32 %v11183, %v12019
  %v12170 = vsub.f32 %v11184, %v12019
  %v12171 = vsub.f32 %v11185, %v12019
  %v12172 = vsub.f32 %v11186, %v12019
  %v12173 = vsub.f32 %v11187, %v12019
  %v12174 = vsub.f32 %v11188, %v12019
  %v12175 = vsub.f32 %v11189, %v12019
  %v12176 = vmul.f32 %v12160, %v12160
  %v12177 = vmul.f32 %v12161, %v12161
  %v12178 = vmul.f32 %v12162, %v12162
  %v12179 = vmul.f32 %v12163, %v12163
  %v12180 = vmul.f32 %v12164, %v12164
  %v12181 = vmul.f32 %v12165, %v12165
  %v12182 = vmul.f32 %v12166, %v12166
  %v12183 = vmul.f32 %v12167, %v12167
  %v12184 = vmul.f32 %v12168, %v12168
  %v12185 = vmul.f32 %v12169, %v12169
  %v12186 = vmul.f32 %v12170, %v12170
  %v12187 = vmul.f32 %v12171, %v12171
  %v12188 = vmul.f32 %v12172, %v12172
  %v12189 = vmul.f32 %v12173, %v12173
  %v12190 = vmul.f32 %v12174, %v12174
  %v12191 = vmul.f32 %v12175, %v12175
  %v12192 = vsel %vm1486, %v12176, 0.0
  %v12193 = vsel %vm1486, %v12177, 0.0
  %v12194 = vadd.f32 %v12192, %v12193
  %v12195 = vsel %vm1486, %v12178, 0.0
  %v12196 = vadd.f32 %v12194, %v12195
  %v12197 = vsel %vm1486, %v12179, 0.0
  %v12198 = vadd.f32 %v12196, %v12197
  %v12199 = vsel %vm1486, %v12180, 0.0
  %v12200 = vadd.f32 %v12198, %v12199
  %v12201 = vsel %vm1486, %v12181, 0.0
  %v12202 = vadd.f32 %v12200, %v12201
  %v12203 = vsel %vm1486, %v12182, 0.0
  %v12204 = vadd.f32 %v12202, %v12203
  %v12205 = vsel %vm1486, %v12183, 0.0
  %v12206 = vadd.f32 %v12204, %v12205
  %v12207 = vsel %vm1486, %v12184, 0.0
  %v12208 = vadd.f32 %v12206, %v12207
  %v12209 = vsel %vm1486, %v12185, 0.0
  %v12210 = vadd.f32 %v12208, %v12209
  %v12211 = vsel %vm1486, %v12186, 0.0
  %v12212 = vadd.f32 %v12210, %v12211
  %v12213 = vsel %vm1486, %v12187, 0.0
  %v12214 = vadd.f32 %v12212, %v12213
  %v12215 = vsel %vm1486, %v12188, 0.0
  %v12216 = vadd.f32 %v12214, %v12215
  %v12217 = vsel %vm1486, %v12189, 0.0
  %v12218 = vadd.f32 %v12216, %v12217
  %v12219 = vsel %vm1486, %v12190, 0.0
  %v12220 = vadd.f32 %v12218, %v12219
  %v12221 = vsel %vm1486, %v12191, 0.0
  %v12222 = vadd.f32 %v12220, %v12221
  %v12223 = vrot.slane %v12222, 4
  %v12224 = vadd.f32 %v12222, %v12223
  %v12225 = vrot.slane %v12224, 2
  %v12226 = vadd.f32 %v12224, %v12225
  %v12227 = vrot.slane %v12226, 1
  %v12228 = vadd.f32 %v12226, %v12227
  %v12229 = vadd.f32 %v12159, %v12228
  %v12230 = vsub.f32 %v11849, %v12019
  %v12231 = vsub.f32 %v11850, %v12019
  %v12232 = vsub.f32 %v11851, %v12019
  %v12233 = vsub.f32 %v11852, %v12019
  %v12234 = vsub.f32 %v11853, %v12019
  %v12235 = vsub.f32 %v11854, %v12019
  %v12236 = vsub.f32 %v11855, %v12019
  %v12237 = vsub.f32 %v11856, %v12019
  %v12238 = vsub.f32 %v11857, %v12019
  %v12239 = vsub.f32 %v11858, %v12019
  %v12240 = vsub.f32 %v11859, %v12019
  %v12241 = vsub.f32 %v11860, %v12019
  %v12242 = vsub.f32 %v11861, %v12019
  %v12243 = vsub.f32 %v11862, %v12019
  %v12244 = vsub.f32 %v11863, %v12019
  %v12245 = vsub.f32 %v11864, %v12019
  %v12246 = vmul.f32 %v12230, %v12230
  %v12247 = vmul.f32 %v12231, %v12231
  %v12248 = vmul.f32 %v12232, %v12232
  %v12249 = vmul.f32 %v12233, %v12233
  %v12250 = vmul.f32 %v12234, %v12234
  %v12251 = vmul.f32 %v12235, %v12235
  %v12252 = vmul.f32 %v12236, %v12236
  %v12253 = vmul.f32 %v12237, %v12237
  %v12254 = vmul.f32 %v12238, %v12238
  %v12255 = vmul.f32 %v12239, %v12239
  %v12256 = vmul.f32 %v12240, %v12240
  %v12257 = vmul.f32 %v12241, %v12241
  %v12258 = vmul.f32 %v12242, %v12242
  %v12259 = vmul.f32 %v12243, %v12243
  %v12260 = vmul.f32 %v12244, %v12244
  %v12261 = vmul.f32 %v12245, %v12245
  %v12262 = vsel %vm1486, %v12246, 0.0
  %v12263 = vsel %vm1486, %v12247, 0.0
  %v12264 = vadd.f32 %v12262, %v12263
  %v12265 = vsel %vm1486, %v12248, 0.0
  %v12266 = vadd.f32 %v12264, %v12265
  %v12267 = vsel %vm1486, %v12249, 0.0
  %v12268 = vadd.f32 %v12266, %v12267
  %v12269 = vsel %vm1486, %v12250, 0.0
  %v12270 = vadd.f32 %v12268, %v12269
  %v12271 = vsel %vm1486, %v12251, 0.0
  %v12272 = vadd.f32 %v12270, %v12271
  %v12273 = vsel %vm1486, %v12252, 0.0
  %v12274 = vadd.f32 %v12272, %v12273
  %v12275 = vsel %vm1486, %v12253, 0.0
  %v12276 = vadd.f32 %v12274, %v12275
  %v12277 = vsel %vm1486, %v12254, 0.0
  %v12278 = vadd.f32 %v12276, %v12277
  %v12279 = vsel %vm1486, %v12255, 0.0
  %v12280 = vadd.f32 %v12278, %v12279
  %v12281 = vsel %vm1486, %v12256, 0.0
  %v12282 = vadd.f32 %v12280, %v12281
  %v12283 = vsel %vm1486, %v12257, 0.0
  %v12284 = vadd.f32 %v12282, %v12283
  %v12285 = vsel %vm1486, %v12258, 0.0
  %v12286 = vadd.f32 %v12284, %v12285
  %v12287 = vsel %vm1486, %v12259, 0.0
  %v12288 = vadd.f32 %v12286, %v12287
  %v12289 = vsel %vm1486, %v12260, 0.0
  %v12290 = vadd.f32 %v12288, %v12289
  %v12291 = vsel %vm1486, %v12261, 0.0
  %v12292 = vadd.f32 %v12290, %v12291
  %v12293 = vrot.slane %v12292, 4
  %v12294 = vadd.f32 %v12292, %v12293
  %v12295 = vrot.slane %v12294, 2
  %v12296 = vadd.f32 %v12294, %v12295
  %v12297 = vrot.slane %v12296, 1
  %v12298 = vadd.f32 %v12296, %v12297
  %v12299 = vadd.f32 %v12229, %v12298
  %v12300 = vmul.f32 %v12299, 0.001953125
  %v12301 = vadd.f32 %v12300, 1e-05
  %v12302 = vrsqrt.pop %v12301
  %v12303 = vmul.f32 %v11865, %v12302
  %v12304 = vmul.f32 %v12019, %v12303
  %v12305 = vsub.f32 %v11866, %v12304
  %v12307 = vlaneseq
  %v12308 = vshrl.u32 %v12307, 7
  %v12309 = vsub.s32 0, %v12308
  %v12310 = vrot.slane %v12303, %v12309
  %v12312 = vmul.f32 %v8990, %v12310
  %v12313 = vmul.f32 %v8991, %v12310
  %v12314 = vmul.f32 %v8992, %v12310
  %v12315 = vmul.f32 %v8993, %v12310
  %v12316 = vmul.f32 %v8994, %v12310
  %v12317 = vmul.f32 %v8995, %v12310
  %v12318 = vmul.f32 %v8996, %v12310
  %v12319 = vmul.f32 %v8997, %v12310
  %v12320 = vmul.f32 %v8998, %v12310
  %v12321 = vmul.f32 %v8999, %v12310
  %v12322 = vmul.f32 %v9000, %v12310
  %v12323 = vmul.f32 %v9001, %v12310
  %v12324 = vmul.f32 %v9002, %v12310
  %v12325 = vmul.f32 %v9003, %v12310
  %v12326 = vmul.f32 %v9004, %v12310
  %v12327 = vmul.f32 %v9005, %v12310
  %v12329 = vlaneseq
  %v12330 = vshrl.u32 %v12329, 7
  %v12331 = vsub.s32 0, %v12330
  %v12332 = vrot.slane %v12305, %v12331
  %v12334 = vadd.f32 %v12312, %v12332
  %v12335 = vadd.f32 %v12313, %v12332
  %v12336 = vadd.f32 %v12314, %v12332
  %v12337 = vadd.f32 %v12315, %v12332
  %v12338 = vadd.f32 %v12316, %v12332
  %v12339 = vadd.f32 %v12317, %v12332
  %v12340 = vadd.f32 %v12318, %v12332
  %v12341 = vadd.f32 %v12319, %v12332
  %v12342 = vadd.f32 %v12320, %v12332
  %v12343 = vadd.f32 %v12321, %v12332
  %v12344 = vadd.f32 %v12322, %v12332
  %v12345 = vadd.f32 %v12323, %v12332
  %v12346 = vadd.f32 %v12324, %v12332
  %v12347 = vadd.f32 %v12325, %v12332
  %v12348 = vadd.f32 %v12326, %v12332
  %v12349 = vadd.f32 %v12327, %v12332
  %v12350 = vmax.f32 %v12334, 0.0
  %v12351 = vmax.f32 %v12335, 0.0
  %v12352 = vmax.f32 %v12336, 0.0
  %v12353 = vmax.f32 %v12337, 0.0
  %v12354 = vmax.f32 %v12338, 0.0
  %v12355 = vmax.f32 %v12339, 0.0
  %v12356 = vmax.f32 %v12340, 0.0
  %v12357 = vmax.f32 %v12341, 0.0
  %v12358 = vmax.f32 %v12342, 0.0
  %v12359 = vmax.f32 %v12343, 0.0
  %v12360 = vmax.f32 %v12344, 0.0
  %v12361 = vmax.f32 %v12345, 0.0
  %v12362 = vmax.f32 %v12346, 0.0
  %v12363 = vmax.f32 %v12347, 0.0
  %v12364 = vmax.f32 %v12348, 0.0
  %v12365 = vmax.f32 %v12349, 0.0
  %v12366 = vmul.f32 %v10401, %v12310
  %v12367 = vmul.f32 %v10402, %v12310
  %v12368 = vmul.f32 %v10403, %v12310
  %v12369 = vmul.f32 %v10404, %v12310
  %v12370 = vmul.f32 %v10405, %v12310
  %v12371 = vmul.f32 %v10406, %v12310
  %v12372 = vmul.f32 %v10407, %v12310
  %v12373 = vmul.f32 %v10408, %v12310
  %v12374 = vmul.f32 %v10409, %v12310
  %v12375 = vmul.f32 %v10410, %v12310
  %v12376 = vmul.f32 %v10411, %v12310
  %v12377 = vmul.f32 %v10412, %v12310
  %v12378 = vmul.f32 %v10413, %v12310
  %v12379 = vmul.f32 %v10414, %v12310
  %v12380 = vmul.f32 %v10415, %v12310
  %v12381 = vmul.f32 %v10416, %v12310
  %v12382 = vadd.f32 %v12366, %v12332
  %v12383 = vadd.f32 %v12367, %v12332
  %v12384 = vadd.f32 %v12368, %v12332
  %v12385 = vadd.f32 %v12369, %v12332
  %v12386 = vadd.f32 %v12370, %v12332
  %v12387 = vadd.f32 %v12371, %v12332
  %v12388 = vadd.f32 %v12372, %v12332
  %v12389 = vadd.f32 %v12373, %v12332
  %v12390 = vadd.f32 %v12374, %v12332
  %v12391 = vadd.f32 %v12375, %v12332
  %v12392 = vadd.f32 %v12376, %v12332
  %v12393 = vadd.f32 %v12377, %v12332
  %v12394 = vadd.f32 %v12378, %v12332
  %v12395 = vadd.f32 %v12379, %v12332
  %v12396 = vadd.f32 %v12380, %v12332
  %v12397 = vadd.f32 %v12381, %v12332
  %v12398 = vmax.f32 %v12382, 0.0
  %v12399 = vmax.f32 %v12383, 0.0
  %v12400 = vmax.f32 %v12384, 0.0
  %v12401 = vmax.f32 %v12385, 0.0
  %v12402 = vmax.f32 %v12386, 0.0
  %v12403 = vmax.f32 %v12387, 0.0
  %v12404 = vmax.f32 %v12388, 0.0
  %v12405 = vmax.f32 %v12389, 0.0
  %v12406 = vmax.f32 %v12390, 0.0
  %v12407 = vmax.f32 %v12391, 0.0
  %v12408 = vmax.f32 %v12392, 0.0
  %v12409 = vmax.f32 %v12393, 0.0
  %v12410 = vmax.f32 %v12394, 0.0
  %v12411 = vmax.f32 %v12395, 0.0
  %v12412 = vmax.f32 %v12396, 0.0
  %v12413 = vmax.f32 %v12397, 0.0
  %v12414 = vmul.f32 %v11174, %v12310
  %v12415 = vmul.f32 %v11175, %v12310
  %v12416 = vmul.f32 %v11176, %v12310
  %v12417 = vmul.f32 %v11177, %v12310
  %v12418 = vmul.f32 %v11178, %v12310
  %v12419 = vmul.f32 %v11179, %v12310
  %v12420 = vmul.f32 %v11180, %v12310
  %v12421 = vmul.f32 %v11181, %v12310
  %v12422 = vmul.f32 %v11182, %v12310
  %v12423 = vmul.f32 %v11183, %v12310
  %v12424 = vmul.f32 %v11184, %v12310
  %v12425 = vmul.f32 %v11185, %v12310
  %v12426 = vmul.f32 %v11186, %v12310
  %v12427 = vmul.f32 %v11187, %v12310
  %v12428 = vmul.f32 %v11188, %v12310
  %v12429 = vmul.f32 %v11189, %v12310
  %v12430 = vadd.f32 %v12414, %v12332
  %v12431 = vadd.f32 %v12415, %v12332
  %v12432 = vadd.f32 %v12416, %v12332
  %v12433 = vadd.f32 %v12417, %v12332
  %v12434 = vadd.f32 %v12418, %v12332
  %v12435 = vadd.f32 %v12419, %v12332
  %v12436 = vadd.f32 %v12420, %v12332
  %v12437 = vadd.f32 %v12421, %v12332
  %v12438 = vadd.f32 %v12422, %v12332
  %v12439 = vadd.f32 %v12423, %v12332
  %v12440 = vadd.f32 %v12424, %v12332
  %v12441 = vadd.f32 %v12425, %v12332
  %v12442 = vadd.f32 %v12426, %v12332
  %v12443 = vadd.f32 %v12427, %v12332
  %v12444 = vadd.f32 %v12428, %v12332
  %v12445 = vadd.f32 %v12429, %v12332
  %v12446 = vmax.f32 %v12430, 0.0
  %v12447 = vmax.f32 %v12431, 0.0
  %v12448 = vmax.f32 %v12432, 0.0
  %v12449 = vmax.f32 %v12433, 0.0
  %v12450 = vmax.f32 %v12434, 0.0
  %v12451 = vmax.f32 %v12435, 0.0
  %v12452 = vmax.f32 %v12436, 0.0
  %v12453 = vmax.f32 %v12437, 0.0
  %v12454 = vmax.f32 %v12438, 0.0
  %v12455 = vmax.f32 %v12439, 0.0
  %v12456 = vmax.f32 %v12440, 0.0
  %v12457 = vmax.f32 %v12441, 0.0
  %v12458 = vmax.f32 %v12442, 0.0
  %v12459 = vmax.f32 %v12443, 0.0
  %v12460 = vmax.f32 %v12444, 0.0
  %v12461 = vmax.f32 %v12445, 0.0
  %v12462 = vmul.f32 %v11849, %v12310
  %v12463 = vmul.f32 %v11850, %v12310
  %v12464 = vmul.f32 %v11851, %v12310
  %v12465 = vmul.f32 %v11852, %v12310
  %v12466 = vmul.f32 %v11853, %v12310
  %v12467 = vmul.f32 %v11854, %v12310
  %v12468 = vmul.f32 %v11855, %v12310
  %v12469 = vmul.f32 %v11856, %v12310
  %v12470 = vmul.f32 %v11857, %v12310
  %v12471 = vmul.f32 %v11858, %v12310
  %v12472 = vmul.f32 %v11859, %v12310
  %v12473 = vmul.f32 %v11860, %v12310
  %v12474 = vmul.f32 %v11861, %v12310
  %v12475 = vmul.f32 %v11862, %v12310
  %v12476 = vmul.f32 %v11863, %v12310
  %v12477 = vmul.f32 %v11864, %v12310
  %v12478 = vadd.f32 %v12462, %v12332
  %v12479 = vadd.f32 %v12463, %v12332
  %v12480 = vadd.f32 %v12464, %v12332
  %v12481 = vadd.f32 %v12465, %v12332
  %v12482 = vadd.f32 %v12466, %v12332
  %v12483 = vadd.f32 %v12467, %v12332
  %v12484 = vadd.f32 %v12468, %v12332
  %v12485 = vadd.f32 %v12469, %v12332
  %v12486 = vadd.f32 %v12470, %v12332
  %v12487 = vadd.f32 %v12471, %v12332
  %v12488 = vadd.f32 %v12472, %v12332
  %v12489 = vadd.f32 %v12473, %v12332
  %v12490 = vadd.f32 %v12474, %v12332
  %v12491 = vadd.f32 %v12475, %v12332
  %v12492 = vadd.f32 %v12476, %v12332
  %v12493 = vadd.f32 %v12477, %v12332
  %v12494 = vmax.f32 %v12478, 0.0
  %v12495 = vmax.f32 %v12479, 0.0
  %v12496 = vmax.f32 %v12480, 0.0
  %v12497 = vmax.f32 %v12481, 0.0
  %v12498 = vmax.f32 %v12482, 0.0
  %v12499 = vmax.f32 %v12483, 0.0
  %v12500 = vmax.f32 %v12484, 0.0
  %v12501 = vmax.f32 %v12485, 0.0
  %v12502 = vmax.f32 %v12486, 0.0
  %v12503 = vmax.f32 %v12487, 0.0
  %v12504 = vmax.f32 %v12488, 0.0
  %v12505 = vmax.f32 %v12489, 0.0
  %v12506 = vmax.f32 %v12490, 0.0
  %v12507 = vmax.f32 %v12491, 0.0
  %v12508 = vmax.f32 %v12492, 0.0
  %v12509 = vmax.f32 %v12493, 0.0
  %v12510 = vpack.c.bf16 %v12350, %v12350
  %v12511 = vpack.c.bf16 %v12351, %v12351
  %v12512 = vpack.c.bf16 %v12352, %v12352
  %v12513 = vpack.c.bf16 %v12353, %v12353
  %v12514 = vpack.c.bf16 %v12354, %v12354
  %v12515 = vpack.c.bf16 %v12355, %v12355
  %v12516 = vpack.c.bf16 %v12356, %v12356
  %v12517 = vpack.c.bf16 %v12357, %v12357
  %v12518 = vpack.c.bf16 %v12358, %v12358
  %v12519 = vpack.c.bf16 %v12359, %v12359
  %v12520 = vpack.c.bf16 %v12360, %v12360
  %v12521 = vpack.c.bf16 %v12361, %v12361
  %v12522 = vpack.c.bf16 %v12362, %v12362
  %v12523 = vpack.c.bf16 %v12363, %v12363
  %v12524 = vpack.c.bf16 %v12364, %v12364
  %v12525 = vpack.c.bf16 %v12365, %v12365
  %12526 = vst.msk [vmem:[%s8] sm:$0xf] %vm270, %v12510
  %12527 = vst.msk [vmem:[%s8 + $0x4] sm:$0xf] %vm270, %v12511
  %12528 = vst.msk [vmem:[%s8 + $0x8] sm:$0xf] %vm270, %v12512
  %12529 = vst.msk [vmem:[%s8 + $0xc] sm:$0xf] %vm270, %v12513
  %12530 = vst.msk [vmem:[%s8 + $0x10] sm:$0xf] %vm270, %v12514
  %12531 = vst.msk [vmem:[%s8 + $0x14] sm:$0xf] %vm270, %v12515
  %12532 = vst.msk [vmem:[%s8 + $0x18] sm:$0xf] %vm270, %v12516
  %12533 = vst.msk [vmem:[%s8 + $0x1c] sm:$0xf] %vm270, %v12517
  %12534 = vst.msk [vmem:[%s8 + $0x20] sm:$0xf] %vm270, %v12518
  %12535 = vst.msk [vmem:[%s8 + $0x24] sm:$0xf] %vm270, %v12519
  %12536 = vst.msk [vmem:[%s8 + $0x28] sm:$0xf] %vm270, %v12520
  %12537 = vst.msk [vmem:[%s8 + $0x2c] sm:$0xf] %vm270, %v12521
  %12538 = vst.msk [vmem:[%s8 + $0x30] sm:$0xf] %vm270, %v12522
  %12539 = vst.msk [vmem:[%s8 + $0x34] sm:$0xf] %vm270, %v12523
  %12540 = vst.msk [vmem:[%s8 + $0x38] sm:$0xf] %vm270, %v12524
  %12541 = vst.msk [vmem:[%s8 + $0x3c] sm:$0xf] %vm270, %v12525
  %v12542 = vpack.c.bf16 %v12398, %v12398
  %v12543 = vpack.c.bf16 %v12399, %v12399
  %v12544 = vpack.c.bf16 %v12400, %v12400
  %v12545 = vpack.c.bf16 %v12401, %v12401
  %v12546 = vpack.c.bf16 %v12402, %v12402
  %v12547 = vpack.c.bf16 %v12403, %v12403
  %v12548 = vpack.c.bf16 %v12404, %v12404
  %v12549 = vpack.c.bf16 %v12405, %v12405
  %v12550 = vpack.c.bf16 %v12406, %v12406
  %v12551 = vpack.c.bf16 %v12407, %v12407
  %v12552 = vpack.c.bf16 %v12408, %v12408
  %v12553 = vpack.c.bf16 %v12409, %v12409
  %v12554 = vpack.c.bf16 %v12410, %v12410
  %v12555 = vpack.c.bf16 %v12411, %v12411
  %v12556 = vpack.c.bf16 %v12412, %v12412
  %v12557 = vpack.c.bf16 %v12413, %v12413
  %s12558 = scalar_lea.vmem %s8, 64
  %12559 = vst.msk [vmem:[%s12558] sm:$0xf] %vm270, %v12542
  %12560 = vst.msk [vmem:[%s12558 + $0x4] sm:$0xf] %vm270, %v12543
  %12561 = vst.msk [vmem:[%s12558 + $0x8] sm:$0xf] %vm270, %v12544
  %12562 = vst.msk [vmem:[%s12558 + $0xc] sm:$0xf] %vm270, %v12545
  %12563 = vst.msk [vmem:[%s12558 + $0x10] sm:$0xf] %vm270, %v12546
  %12564 = vst.msk [vmem:[%s12558 + $0x14] sm:$0xf] %vm270, %v12547
  %12565 = vst.msk [vmem:[%s12558 + $0x18] sm:$0xf] %vm270, %v12548
  %12566 = vst.msk [vmem:[%s12558 + $0x1c] sm:$0xf] %vm270, %v12549
  %12567 = vst.msk [vmem:[%s12558 + $0x20] sm:$0xf] %vm270, %v12550
  %12568 = vst.msk [vmem:[%s12558 + $0x24] sm:$0xf] %vm270, %v12551
  %12569 = vst.msk [vmem:[%s12558 + $0x28] sm:$0xf] %vm270, %v12552
  %12570 = vst.msk [vmem:[%s12558 + $0x2c] sm:$0xf] %vm270, %v12553
  %12571 = vst.msk [vmem:[%s12558 + $0x30] sm:$0xf] %vm270, %v12554
  %12572 = vst.msk [vmem:[%s12558 + $0x34] sm:$0xf] %vm270, %v12555
  %12573 = vst.msk [vmem:[%s12558 + $0x38] sm:$0xf] %vm270, %v12556
  %12574 = vst.msk [vmem:[%s12558 + $0x3c] sm:$0xf] %vm270, %v12557
  %v12575 = vpack.c.bf16 %v12446, %v12446
  %v12576 = vpack.c.bf16 %v12447, %v12447
  %v12577 = vpack.c.bf16 %v12448, %v12448
  %v12578 = vpack.c.bf16 %v12449, %v12449
  %v12579 = vpack.c.bf16 %v12450, %v12450
  %v12580 = vpack.c.bf16 %v12451, %v12451
  %v12581 = vpack.c.bf16 %v12452, %v12452
  %v12582 = vpack.c.bf16 %v12453, %v12453
  %v12583 = vpack.c.bf16 %v12454, %v12454
  %v12584 = vpack.c.bf16 %v12455, %v12455
  %v12585 = vpack.c.bf16 %v12456, %v12456
  %v12586 = vpack.c.bf16 %v12457, %v12457
  %v12587 = vpack.c.bf16 %v12458, %v12458
  %v12588 = vpack.c.bf16 %v12459, %v12459
  %v12589 = vpack.c.bf16 %v12460, %v12460
  %v12590 = vpack.c.bf16 %v12461, %v12461
  %s12591 = scalar_lea.vmem %s8, 128
  %12592 = vst.msk [vmem:[%s12591] sm:$0xf] %vm270, %v12575
  %12593 = vst.msk [vmem:[%s12591 + $0x4] sm:$0xf] %vm270, %v12576
  %12594 = vst.msk [vmem:[%s12591 + $0x8] sm:$0xf] %vm270, %v12577
  %12595 = vst.msk [vmem:[%s12591 + $0xc] sm:$0xf] %vm270, %v12578
  %12596 = vst.msk [vmem:[%s12591 + $0x10] sm:$0xf] %vm270, %v12579
  %12597 = vst.msk [vmem:[%s12591 + $0x14] sm:$0xf] %vm270, %v12580
  %12598 = vst.msk [vmem:[%s12591 + $0x18] sm:$0xf] %vm270, %v12581
  %12599 = vst.msk [vmem:[%s12591 + $0x1c] sm:$0xf] %vm270, %v12582
  %12600 = vst.msk [vmem:[%s12591 + $0x20] sm:$0xf] %vm270, %v12583
  %12601 = vst.msk [vmem:[%s12591 + $0x24] sm:$0xf] %vm270, %v12584
  %12602 = vst.msk [vmem:[%s12591 + $0x28] sm:$0xf] %vm270, %v12585
  %12603 = vst.msk [vmem:[%s12591 + $0x2c] sm:$0xf] %vm270, %v12586
  %12604 = vst.msk [vmem:[%s12591 + $0x30] sm:$0xf] %vm270, %v12587
  %12605 = vst.msk [vmem:[%s12591 + $0x34] sm:$0xf] %vm270, %v12588
  %12606 = vst.msk [vmem:[%s12591 + $0x38] sm:$0xf] %vm270, %v12589
  %12607 = vst.msk [vmem:[%s12591 + $0x3c] sm:$0xf] %vm270, %v12590
  %v12608 = vpack.c.bf16 %v12494, %v12494
  %v12609 = vpack.c.bf16 %v12495, %v12495
  %v12610 = vpack.c.bf16 %v12496, %v12496
  %v12611 = vpack.c.bf16 %v12497, %v12497
  %v12612 = vpack.c.bf16 %v12498, %v12498
  %v12613 = vpack.c.bf16 %v12499, %v12499
  %v12614 = vpack.c.bf16 %v12500, %v12500
  %v12615 = vpack.c.bf16 %v12501, %v12501
  %v12616 = vpack.c.bf16 %v12502, %v12502
  %v12617 = vpack.c.bf16 %v12503, %v12503
  %v12618 = vpack.c.bf16 %v12504, %v12504
  %v12619 = vpack.c.bf16 %v12505, %v12505
  %v12620 = vpack.c.bf16 %v12506, %v12506
  %v12621 = vpack.c.bf16 %v12507, %v12507
  %v12622 = vpack.c.bf16 %v12508, %v12508
  %v12623 = vpack.c.bf16 %v12509, %v12509
  %s12624 = scalar_lea.vmem %s8, 192
  %12625 = vst.msk [vmem:[%s12624] sm:$0xf] %vm270, %v12608
  %12626 = vst.msk [vmem:[%s12624 + $0x4] sm:$0xf] %vm270, %v12609
  %12627 = vst.msk [vmem:[%s12624 + $0x8] sm:$0xf] %vm270, %v12610
  %12628 = vst.msk [vmem:[%s12624 + $0xc] sm:$0xf] %vm270, %v12611
  %12629 = vst.msk [vmem:[%s12624 + $0x10] sm:$0xf] %vm270, %v12612
  %12630 = vst.msk [vmem:[%s12624 + $0x14] sm:$0xf] %vm270, %v12613
  %12631 = vst.msk [vmem:[%s12624 + $0x18] sm:$0xf] %vm270, %v12614
  %12632 = vst.msk [vmem:[%s12624 + $0x1c] sm:$0xf] %vm270, %v12615
  %12633 = vst.msk [vmem:[%s12624 + $0x20] sm:$0xf] %vm270, %v12616
  %12634 = vst.msk [vmem:[%s12624 + $0x24] sm:$0xf] %vm270, %v12617
  %12635 = vst.msk [vmem:[%s12624 + $0x28] sm:$0xf] %vm270, %v12618
  %12636 = vst.msk [vmem:[%s12624 + $0x2c] sm:$0xf] %vm270, %v12619
  %12637 = vst.msk [vmem:[%s12624 + $0x30] sm:$0xf] %vm270, %v12620
  %12638 = vst.msk [vmem:[%s12624 + $0x34] sm:$0xf] %vm270, %v12621
  %12639 = vst.msk [vmem:[%s12624 + $0x38] sm:$0xf] %vm270, %v12622
  %12640 = vst.msk [vmem:[%s12624 + $0x3c] sm:$0xf] %vm270, %v12623
  // Predicated region
  $region34: #{tpu_custom_call.1} parent=0 // pred_check
    _
  $region35: #{tpu_custom_call.1} parent=0 // pred_check_branch
    %12642 = sbr.rel (0) target = $region37
  $region36: #{tpu_custom_call.1} parent=0 // pred_region
    _
  $region37: #{tpu_custom_call.1} parent=0 // pred_fallthru
    _
  // Predicated region
  $region38: #{tpu_custom_call.1} parent=0 // pred_check
    _
  $region39: #{tpu_custom_call.1} parent=0 // pred_check_branch
    %12644 = sbr.rel (0) target = $region41
  $region40: #{tpu_custom_call.1} parent=0 // pred_region
    _
  $region41: #{tpu_custom_call.1} parent=0 // pred_fallthru
    _

</llo_original>
